<compile_context>
chip_gen: v7x
topology: tpu7x:2x2x1
jax: 0.10.0
libtpu: 0.0.40
codegen_flags: <defaults>
</compile_context>

<pallas_src>
import functools

import jax
import jax.numpy as jnp
from jax.experimental import pallas as pl
from jax.experimental.pallas import tpu as pltpu

BN_EPS = 1e-5
TM_MAX = 512                      # M-tile rows for the GEMM kernels (~85% HBM roofline)
TR_MAX = 1024                     # row tile for the elementwise BN-apply kernel
LANES = 128
VMEM_LIMIT = 32 * 1024 * 1024     # fits scoped VMEM on v5e / v6e / v7x


def _round_up(x, m):
    return (x + m - 1) // m * m


def _pad_rows(a, mult):
    m = a.shape[0]
    mp = _round_up(max(m, 1), mult)
    if mp == m:
        return a
    pad = [(0, mp - m)] + [(0, 0)] * (a.ndim - 1)
    return jnp.pad(a, pad)


def _compiler_params(n_parallel_axes):
    return pltpu.CompilerParams(
        dimension_semantics=("parallel",) * n_parallel_axes,
        vmem_limit_bytes=VMEM_LIMIT,
    )


# ----------------------------------------------------------------------------
# Pallas kernels
# ----------------------------------------------------------------------------
def _gemm_stats_kernel(p_ref, w_ref, y_ref, s_ref, q_ref):
    """y = P @ W (bf16 x bf16 -> f32 acc); plus per-channel partial sum / sumsq."""
    y = jnp.dot(p_ref[...], w_ref[...], preferred_element_type=jnp.float32)
    y_ref[...] = y.astype(y_ref.dtype)
    s_ref[...] = jnp.sum(y, axis=0)[None, None, :]
    q_ref[...] = jnp.sum(y * y, axis=0)[None, None, :]


def _dual_gemm_stats_kernel(pa_ref, wa_ref, pb_ref, wb_ref, y_ref, s_ref, q_ref):
    """y = Pa @ Wa + Pb @ Wb  (decoder conv over [upsampled, skip] without concat)."""
    y = jnp.dot(pa_ref[...], wa_ref[...], preferred_element_type=jnp.float32)
    y = y + jnp.dot(pb_ref[...], wb_ref[...], preferred_element_type=jnp.float32)
    y_ref[...] = y.astype(y_ref.dtype)
    s_ref[...] = jnp.sum(y, axis=0)[None, None, :]
    q_ref[...] = jnp.sum(y * y, axis=0)[None, None, :]


def _batched_gemm_bias_kernel(p_ref, w_ref, b_ref, o_ref):
    """o[g] = P[g] @ W[g] + b   (grid axis 0 = phase/group, axis 1 = M tiles)."""
    y = jnp.dot(p_ref[0], w_ref[0], preferred_element_type=jnp.float32) + b_ref[...]
    o_ref[...] = y[None].astype(o_ref.dtype)


def _affine_act_kernel(y_ref, sc_ref, sh_ref, o_ref, *, relu):
    """out = y * scale + shift (+ReLU) — epilogue math in f32, storage bf16."""
    y = y_ref[...].astype(jnp.float32) * sc_ref[...] + sh_ref[...]
    if relu:
        y = jnp.maximum(y, 0.0)
    o_ref[...] = y.astype(o_ref.dtype)


# ----------------------------------------------------------------------------
# Pallas call wrappers
# ----------------------------------------------------------------------------
def gemm_batch_stats(patches_list, weights_list, m_real, out_dtype=jnp.bfloat16):
    """Tiled (Pa@Wa [+ Pb@Wb]) with per-channel batch sum / sum-of-squares.

    patches_list: 1 or 2 arrays of shape (M, K_i), bf16; weights_list: (K_i, C) bf16.
    Returns y (m_real, C) in out_dtype, mean (C,), biased var (C,)  — BN batch stats.
    Padded rows are exactly zero (no bias in this path), so the stats stay exact.
    """
    M = patches_list[0].shape[0]
    C = weights_list[0].shape[1]
    tm = min(TM_MAX, _round_up(M, 8))
    patches_list = [_pad_rows(p, tm) for p in patches_list]
    Mp = patches_list[0].shape[0]
    nm = Mp // tm

    flops = 2 * Mp * C * sum(int(w.shape[0]) for w in weights_list)
    bytes_accessed = (sum(int(p.size) * 2 for p in patches_list)
                      + sum(int(w.size) * 2 for w in weights_list)
                      + Mp * C * jnp.dtype(out_dtype).itemsize + 2 * nm * C * 4)

    if len(patches_list) == 1:
        kernel = _gemm_stats_kernel
        in_specs = [
            pl.BlockSpec((tm, patches_list[0].shape[1]), lambda i: (i, 0)),
            pl.BlockSpec(weights_list[0].shape, lambda i: (0, 0)),
        ]
        args = (patches_list[0], weights_list[0])
    else:
        kernel = _dual_gemm_stats_kernel
        in_specs = [
            pl.BlockSpec((tm, patches_list[0].shape[1]), lambda i: (i, 0)),
            pl.BlockSpec(weights_list[0].shape, lambda i: (0, 0)),
            pl.BlockSpec((tm, patches_list[1].shape[1]), lambda i: (i, 0)),
            pl.BlockSpec(weights_list[1].shape, lambda i: (0, 0)),
        ]
        args = (patches_list[0], weights_list[0],
                patches_list[1], weights_list[1])

    y, s, q = pl.pallas_call(
        kernel,
        out_shape=(jax.ShapeDtypeStruct((Mp, C), out_dtype),
                   jax.ShapeDtypeStruct((nm, 1, C), jnp.float32),
                   jax.ShapeDtypeStruct((nm, 1, C), jnp.float32)),
        grid=(nm,),
        in_specs=in_specs,
        out_specs=(pl.BlockSpec((tm, C), lambda i: (i, 0)),
                   pl.BlockSpec((1, 1, C), lambda i: (i, 0, 0)),
                   pl.BlockSpec((1, 1, C), lambda i: (i, 0, 0))),
        compiler_params=_compiler_params(1),
        cost_estimate=pl.CostEstimate(flops=flops, transcendentals=0,
                                      bytes_accessed=bytes_accessed),
    )(*args)

    inv_m = 1.0 / float(m_real)
    mean = jnp.sum(s, axis=0)[0] * inv_m
    var = jnp.maximum(jnp.sum(q, axis=0)[0] * inv_m - mean * mean, 0.0)
    return y[:m_real], mean, var


def batched_gemm_bias(patches, w, b, out_dtype):
    """patches (G, M, K) @ w (G, K, C) + b (C,) -> (G, M, C), tiled over (G, M)."""
    G, M, K = patches.shape
    C = w.shape[-1]
    tm = min(TM_MAX, _round_up(M, 8))
    Mp = _round_up(M, tm)
    if Mp != M:
        patches = jnp.pad(patches, ((0, 0), (0, Mp - M), (0, 0)))
    nm = Mp // tm

    out = pl.pallas_call(
        _batched_gemm_bias_kernel,
        out_shape=jax.ShapeDtypeStruct((G, Mp, C), out_dtype),
        grid=(G, nm),
        in_specs=[
            pl.BlockSpec((1, tm, K), lambda g, i: (g, i, 0)),
            pl.BlockSpec((1, K, C), lambda g, i: (g, 0, 0)),
            pl.BlockSpec((1, C), lambda g, i: (0, 0)),
        ],
        out_specs=pl.BlockSpec((1, tm, C), lambda g, i: (g, i, 0)),
        compiler_params=_compiler_params(2),
        cost_estimate=pl.CostEstimate(
            flops=2 * G * Mp * K * C, transcendentals=0,
            bytes_accessed=(G * Mp * K * 2 + G * K * C * 2
                            + G * Mp * C * jnp.dtype(out_dtype).itemsize)),
    )(patches, w, b.reshape(1, C).astype(jnp.float32))
    return out[:, :M]


def bn_act_apply(y, mean, var, gamma, beta, relu, out_dtype=jnp.bfloat16):
    """out = gamma*(y - mean)*rsqrt(var+eps) + beta (+ReLU), tiled elementwise.

    When C divides 128 the tensor is re-viewed as (M*C/128, 128) so both loads and
    stores are lane-dense (avoids masked vst on tiny channel counts)."""
    M, C = y.shape
    scale = (gamma * jax.lax.rsqrt(var + BN_EPS)).astype(jnp.float32)
    shift = (beta - mean * scale).astype(jnp.float32)

    if (M * C) % LANES == 0 and LANES % C == 0:
        rep = LANES // C
        yf = y.reshape(M * C // LANES, LANES)
        sc = jnp.tile(scale, rep).reshape(1, LANES)
        sh = jnp.tile(shift, rep).reshape(1, LANES)
    else:
        yf = y
        sc = scale.reshape(1, C)
        sh = shift.reshape(1, C)

    R, L = yf.shape
    tr = min(TR_MAX, _round_up(R, 8))
    yp = _pad_rows(yf, tr)
    Rp = yp.shape[0]

    out = pl.pallas_call(
        functools.partial(_affine_act_kernel, relu=relu),
        out_shape=jax.ShapeDtypeStruct((Rp, L), out_dtype),
        grid=(Rp // tr,),
        in_specs=[
            pl.BlockSpec((tr, L), lambda i: (i, 0)),
            pl.BlockSpec((1, L), lambda i: (0, 0)),
            pl.BlockSpec((1, L), lambda i: (0, 0)),
        ],
        out_specs=pl.BlockSpec((tr, L), lambda i: (i, 0)),
        compiler_params=_compiler_params(1),
        cost_estimate=pl.CostEstimate(
            flops=2 * Rp * L, transcendentals=0,
            bytes_accessed=Rp * L * (y.dtype.itemsize + jnp.dtype(out_dtype).itemsize)),
    )(yp, sc, sh)
    return out[:R].reshape(M, C)


# ----------------------------------------------------------------------------
# JAX glue: im2col / phase patches / weight re-layout (hoisted, one-time)
# ----------------------------------------------------------------------------
def _im2col_3d(x, k, stride, pad):
    """x: (B, D, H, W, C) -> (B*Do*Ho*Wo, k^3*C); column order (kD, kH, kW, Cin)."""
    B, D, H, W, C = x.shape
    xp = jnp.pad(x, ((0, 0), (pad, pad), (pad, pad), (pad, pad), (0, 0)))
    Do = (D + 2 * pad - k) // stride + 1
    Ho = (H + 2 * pad - k) // stride + 1
    Wo = (W + 2 * pad - k) // stride + 1
    cols = []
    for dz in range(k):
        for dy in range(k):
            for dx in range(k):
                cols.append(xp[:, dz:dz + Do * stride:stride,
                                  dy:dy + Ho * stride:stride,
                                  dx:dx + Wo * stride:stride, :])
    patches = jnp.concatenate(cols, axis=-1)
    return patches.reshape(B * Do * Ho * Wo, k * k * k * C), (B, Do, Ho, Wo)


def _convT_phase_patches(x):
    """Subpixel decomposition of ConvTranspose3d(k=4, s=2, p=1):
    returns (8, B*D*H*W, 8*C) stride-1 2x2x2 patches, one per output parity."""
    B, D, H, W, C = x.shape
    xp = jnp.pad(x, ((0, 0), (1, 1), (1, 1), (1, 1), (0, 0)))
    phases = []
    for pz in (0, 1):
        for py in (0, 1):
            for px in (0, 1):
                cols = []
                for jz in (0, 1):
                    for jy in (0, 1):
                        for jx in (0, 1):
                            cols.append(xp[:, pz + jz:pz + jz + D,
                                              py + jy:py + jy + H,
                                              px + jx:px + jx + W, :])
                phases.append(
                    jnp.concatenate(cols, axis=-1).reshape(B * D * H * W, 8 * C))
    return jnp.stack(phases, axis=0), (B, D, H, W)


def _conv_w_to_gemm(w_torch):
    """(Cout, Cin, k, k, k) -> (k^3*Cin, Cout) in im2col column order, bf16."""
    cout, cin, k = w_torch.shape[0], w_torch.shape[1], w_torch.shape[2]
    return (jnp.transpose(w_torch, (2, 3, 4, 1, 0))
            .reshape(k * k * k * cin, cout).astype(jnp.bfloat16))


def _convT_w_to_phase_gemm(w_torch):
    """(Cin, Cout, 4, 4, 4) -> (8, 8*Cin, Cout) per-parity sub-kernels (bf16)."""
    cin, cout = w_torch.shape[0], w_torch.shape[1]

    def tap(j, p):      # kernel tap hit by window column j for output parity p
        return 3 - 2 * j if p == 0 else 2 - 2 * j

    phase_ws = []
    for pz in (0, 1):
        for py in (0, 1):
            for px in (0, 1):
                taps = []
                for jz in (0, 1):
                    for jy in (0, 1):
                        for jx in (0, 1):
                            taps.append(
                                w_torch[:, :, tap(jz, pz), tap(jy, py), tap(jx, px)])
                phase_ws.append(jnp.stack(taps, axis=0).reshape(8 * cin, cout))
    return jnp.stack(phase_ws, axis=0).astype(jnp.bfloat16)


def prepare_params(tp):
    """One-time torch-layout -> GEMM-layout (bf16) weight conversion (hoisted)."""
    enc = []
    for p in tp["encoder"]:
        enc.append(dict(
            w=_conv_w_to_gemm(p["w"]),
            # conv bias dropped: a per-channel constant cancels exactly in BatchNorm
            gamma=p["gamma"].astype(jnp.float32),
            beta=p["beta"].astype(jnp.float32),
        ))
    dec = []
    for p in tp["decoder"]:
        cup = p["up_w"].shape[1]        # channels produced by the upsample branch
        dec.append(dict(
            up_w=_convT_w_to_phase_gemm(p["up_w"]),
            up_b=p["up_b"].astype(jnp.float32),
            conv_w_up=_conv_w_to_gemm(p["conv_w"][:, :cup]),
            conv_w_skip=_conv_w_to_gemm(p["conv_w"][:, cup:]),
            gamma=p["gamma"].astype(jnp.float32),
            beta=p["beta"].astype(jnp.float32),
        ))
    final = dict(w=_conv_w_to_gemm(tp["final"]["w"]),
                 b=tp["final"]["b"].astype(jnp.float32))
    return dict(encoder=enc, decoder=dec, final=final)


# ----------------------------------------------------------------------------
# Module building blocks
# ----------------------------------------------------------------------------
def downsample(x, p):
    """Downsample = Conv3d(k=3, s=2, p=1) + BatchNorm3d (batch stats, no act)."""
    patches, (B, Do, Ho, Wo) = _im2col_3d(x, 3, 2, 1)
    C = p["w"].shape[1]
    y, mean, var = gemm_batch_stats([patches], [p["w"]], m_real=B * Do * Ho * Wo)
    y = bn_act_apply(y, mean, var, p["gamma"], p["beta"], relu=False)
    return y.reshape(B, Do, Ho, Wo, C)


def conv_transpose3d(x, w_phase, b):
    """ConvTranspose3d(k=4, s=2, p=1) via 8-phase subpixel decomposition."""
    patches, (B, D, H, W) = _convT_phase_patches(x)
    C = w_phase.shape[-1]
    y = batched_gemm_bias(patches, w_phase, b, out_dtype=jnp.bfloat16)  # (8, M, C)
    y = y.reshape(2, 2, 2, B, D, H, W, C)
    y = jnp.transpose(y, (3, 4, 0, 5, 1, 6, 2, 7))       # (B, D, 2, H, 2, W, 2, C)
    return y.reshape(B, 2 * D, 2 * H, 2 * W, C)


def decoder_block(x, skip, p):
    """DecoderBlock: ConvTranspose3d -> [implicit concat] -> Conv3d(3) -> BN -> ReLU.
    The concat is never materialized: the conv runs as two accumulating GEMMs."""
    up = conv_transpose3d(x, p["up_w"], p["up_b"])
    patches_up, (B, D, H, W) = _im2col_3d(up, 3, 1, 1)
    patches_sk, _ = _im2col_3d(skip, 3, 1, 1)
    C = p["conv_w_up"].shape[1]
    y, mean, var = gemm_batch_stats([patches_up, patches_sk],
                                    [p["conv_w_up"], p["conv_w_skip"]],
                                    m_real=B * D * H * W)
    y = bn_act_apply(y, mean, var, p["gamma"], p["beta"], relu=True)
    return y.reshape(B, D, H, W, C)


# ----------------------------------------------------------------------------
# DeepGCN forward
# ----------------------------------------------------------------------------
def deep_gcn_forward(x_ncdhw, params):
    x = jnp.transpose(x_ncdhw, (0, 2, 3, 4, 1)).astype(jnp.bfloat16)  # NCDHW->NDHWC
    inp = x
    skips = []
    for p in params["encoder"]:
        x = downsample(x, p)
        skips.append(x)
    # skips paired by matching resolution for valid concatenation
    skip_list = [skips[1], skips[0], inp]
    for p, skip in zip(params["decoder"], skip_list):
        x = decoder_block(x, skip, p)
    # final 1x1 Conv3d -> 13 classes (bias, no norm / activation)
    B, D, H, W, C = x.shape
    y = batched_gemm_bias(x.reshape(1, B * D * H * W, C),
                          params["final"]["w"][None], params["final"]["b"],
                          out_dtype=jnp.float32)[0]
    y = y.reshape(B, D, H, W, -1)
    return jnp.transpose(y, (0, 4, 1, 2, 3))              # back to NCDHW


# ----------------------------------------------------------------------------
# Deterministic parameter initialization (torch-layout shapes per module __init__)
# ----------------------------------------------------------------------------
def init_params(key, channels):
    def nrm(k, shape):
        fan_in = 1
        for s in shape[1:]:
            fan_in *= s
        return jax.random.normal(k, shape, jnp.float32) * (fan_in ** -0.5)

    keys = iter(jax.random.split(key, 64))
    enc = []
    for cin, cout in zip(channels[:-1], channels[1:]):
        enc.append(dict(
            w=nrm(next(keys), (cout, cin, 3, 3, 3)),
            b=jnp.zeros((cout,), jnp.float32),
            gamma=jnp.ones((cout,), jnp.float32),
            beta=jnp.zeros((cout,), jnp.float32),
        ))
    dec = []
    dec_specs = [  # (Cin_up, Cout_up, Cin_conv_after_concat, Cout_conv)
        (channels[3], channels[2], channels[2] * 2, channels[2]),
        (channels[2], channels[1], channels[1] * 2, channels[1]),
        (channels[1], channels[0], channels[0] * 2, channels[0]),
    ]
    for cin_u, cout_u, cin_c, cout_c in dec_specs:
        dec.append(dict(
            up_w=nrm(next(keys), (cin_u, cout_u, 4, 4, 4)),
            up_b=jnp.zeros((cout_u,), jnp.float32),
            conv_w=nrm(next(keys), (cout_c, cin_c, 3, 3, 3)),
            conv_b=jnp.zeros((cout_c,), jnp.float32),
            gamma=jnp.ones((cout_c,), jnp.float32),
            beta=jnp.zeros((cout_c,), jnp.float32),
        ))
    final = dict(
        w=nrm(next(keys), (13, channels[0], 1, 1, 1)),
        b=jnp.zeros((13,), jnp.float32),
    )
    return dict(encoder=enc, decoder=dec, final=final)


if __name__ == "__main__":
    # Small config: opt.channels = [4, 8, 16, 32], opt.img_size = (8, 8, 8), B = 2
    channels = [4, 8, 16, 32]
    B, D, H, W = 2, 8, 8, 8

    key = jax.random.PRNGKey(0)
    k_x, k_p = jax.random.split(key)
    x = jax.random.normal(k_x, (B, channels[0], D, H, W), jnp.float32)  # NCDHW
    params = prepare_params(init_params(k_p, channels))   # one-time weight re-layout

    fwd = jax.jit(deep_gcn_forward)
    out = jax.block_until_ready(fwd(x, params))
    assert out.shape == (B, 13, D, H, W), out.shape
    assert bool(jnp.all(jnp.isfinite(out)))
    print("KERNEL_OK")
</pallas_src>

<mosaic_0001>
module attributes {stable_mosaic.version = 11 : i64} {
  func.func @_gemm_stats_kernel(%arg0: i32, %arg1: memref<128x108xbf16, #tpu.memory_space<vmem>>, %arg2: memref<108x8xbf16, #tpu.memory_space<vmem>>, %arg3: memref<128x8xbf16, #tpu.memory_space<vmem>>, %arg4: memref<1x1x8xf32, #tpu.memory_space<vmem>>, %arg5: memref<1x1x8xf32, #tpu.memory_space<vmem>>) attributes {dimension_semantics = [#tpu.dimension_semantics<parallel>], iteration_bounds = array<i64: 1>, scalar_prefetch = 0 : i64, scratch_operands = 0 : i64, tpu.core_type = #tpu.core_type<tc>, window_params = [{transform_indices = @transform_0, window_bounds = array<i64: 128, 108>}, {pipeline_mode = #tpu.pipeline_mode<synchronous>, transform_indices = @transform_1, window_bounds = array<i64: 108, 8>}, {transform_indices = @transform_2, window_bounds = array<i64: 128, 8>}, {transform_indices = @transform_3, window_bounds = array<i64: 1, 1, 8>}, {transform_indices = @transform_4, window_bounds = array<i64: 1, 1, 8>}]} {
    %c0 = arith.constant 0 : index
    %c0_0 = arith.constant 0 : index
    %0 = vector.load %arg1[%c0, %c0_0] : memref<128x108xbf16, #tpu.memory_space<vmem>>, vector<128x108xbf16>
    %c0_1 = arith.constant 0 : index
    %c0_2 = arith.constant 0 : index
    %1 = vector.load %arg2[%c0_1, %c0_2] : memref<108x8xbf16, #tpu.memory_space<vmem>>, vector<108x8xbf16>
    %cst = arith.constant dense<0.000000e+00> : vector<128x8xf32>
    %2 = tpu.matmul %0, %1, %cst {dimension_numbers = #tpu.dot_dimension_numbers<[1], [0], [0], [1], [0, 0, 1, 1], [], []>} : vector<128x108xbf16>, vector<108x8xbf16>, vector<128x8xf32> -> vector<128x8xf32>
    %3 = arith.truncf %2 : vector<128x8xf32> to vector<128x8xbf16>
    %c0_3 = arith.constant 0 : index
    %c0_4 = arith.constant 0 : index
    %4 = vector.load %arg3[%c0_3, %c0_4] : memref<128x8xbf16, #tpu.memory_space<vmem>>, vector<128x8xbf16>
    tpu.vector_store %arg3[%c0_3, %c0_4], %3 {strides = array<i32>} : memref<128x8xbf16, #tpu.memory_space<vmem>>, vector<128x8xbf16>,
    %cst_5 = arith.constant dense<0.000000e+00> : vector<8xf32>
    %5 = vector.multi_reduction <add>, %2, %cst_5 [0] : vector<128x8xf32> to vector<8xf32>
    %6 = vector.shape_cast %5 : vector<8xf32> to vector<1x1x8xf32>
    %c0_6 = arith.constant 0 : index
    %c0_7 = arith.constant 0 : index
    %c0_8 = arith.constant 0 : index
    %7 = vector.load %arg4[%c0_6, %c0_7, %c0_8] : memref<1x1x8xf32, #tpu.memory_space<vmem>>, vector<1x1x8xf32>
    tpu.vector_store %arg4[%c0_6, %c0_7, %c0_8], %6 {strides = array<i32>} : memref<1x1x8xf32, #tpu.memory_space<vmem>>, vector<1x1x8xf32>,
    %8 = arith.mulf %2, %2 : vector<128x8xf32>
    %cst_9 = arith.constant dense<0.000000e+00> : vector<8xf32>
    %9 = vector.multi_reduction <add>, %8, %cst_9 [0] : vector<128x8xf32> to vector<8xf32>
    %10 = vector.shape_cast %9 : vector<8xf32> to vector<1x1x8xf32>
    %c0_10 = arith.constant 0 : index
    %c0_11 = arith.constant 0 : index
    %c0_12 = arith.constant 0 : index
    %11 = vector.load %arg5[%c0_10, %c0_11, %c0_12] : memref<1x1x8xf32, #tpu.memory_space<vmem>>, vector<1x1x8xf32>
    tpu.vector_store %arg5[%c0_10, %c0_11, %c0_12], %10 {strides = array<i32>} : memref<1x1x8xf32, #tpu.memory_space<vmem>>, vector<1x1x8xf32>,
    return
  }
  func.func @transform_0(%arg0: i32) -> (i32, i32) {
    %c0_i32 = arith.constant 0 : i32
    %c0_i32_0 = arith.constant 0 : i32
    return %arg0, %c0_i32 : i32, i32
  }
  func.func @transform_1(%arg0: i32) -> (i32, i32) {
    %c0_i32 = arith.constant 0 : i32
    %c0_i32_0 = arith.constant 0 : i32
    %c0_i32_1 = arith.constant 0 : i32
    return %c0_i32, %c0_i32_0 : i32, i32
  }
  func.func @transform_2(%arg0: i32) -> (i32, i32) {
    %c0_i32 = arith.constant 0 : i32
    %c0_i32_0 = arith.constant 0 : i32
    return %arg0, %c0_i32 : i32, i32
  }
  func.func @transform_3(%arg0: i32) -> (i32, i32, i32) {
    %c0_i32 = arith.constant 0 : i32
    %c0_i32_0 = arith.constant 0 : i32
    %c0_i32_1 = arith.constant 0 : i32
    return %arg0, %c0_i32, %c0_i32_0 : i32, i32, i32
  }
  func.func @transform_4(%arg0: i32) -> (i32, i32, i32) {
    %c0_i32 = arith.constant 0 : i32
    %c0_i32_0 = arith.constant 0 : i32
    %c0_i32_1 = arith.constant 0 : i32
    return %arg0, %c0_i32, %c0_i32_0 : i32, i32, i32
  }
}

module attributes {stable_mosaic.version = 11 : i64} {
  func.func @_affine_act_kernel(%arg0: i32, %arg1: memref<8x128xbf16, #tpu.memory_space<vmem>>, %arg2: memref<1x128xf32, #tpu.memory_space<vmem>>, %arg3: memref<1x128xf32, #tpu.memory_space<vmem>>, %arg4: memref<8x128xbf16, #tpu.memory_space<vmem>>) attributes {dimension_semantics = [#tpu.dimension_semantics<parallel>], iteration_bounds = array<i64: 1>, scalar_prefetch = 0 : i64, scratch_operands = 0 : i64, tpu.core_type = #tpu.core_type<tc>, window_params = [{transform_indices = @transform_0, window_bounds = array<i64: 8, 128>}, {pipeline_mode = #tpu.pipeline_mode<synchronous>, transform_indices = @transform_1, window_bounds = array<i64: 1, 128>}, {pipeline_mode = #tpu.pipeline_mode<synchronous>, transform_indices = @transform_2, window_bounds = array<i64: 1, 128>}, {transform_indices = @transform_3, window_bounds = array<i64: 8, 128>}]} {
    %c0 = arith.constant 0 : index
    %c0_0 = arith.constant 0 : index
    %0 = vector.load %arg1[%c0, %c0_0] : memref<8x128xbf16, #tpu.memory_space<vmem>>, vector<8x128xbf16>
    %1 = arith.extf %0 : vector<8x128xbf16> to vector<8x128xf32>
    %c0_1 = arith.constant 0 : index
    %c0_2 = arith.constant 0 : index
    %2 = vector.load %arg2[%c0_1, %c0_2] : memref<1x128xf32, #tpu.memory_space<vmem>>, vector<1x128xf32>
    %3 = vector.broadcast %2 : vector<1x128xf32> to vector<8x128xf32>
    %4 = arith.mulf %1, %3 : vector<8x128xf32>
    %c0_3 = arith.constant 0 : index
    %c0_4 = arith.constant 0 : index
    %5 = vector.load %arg3[%c0_3, %c0_4] : memref<1x128xf32, #tpu.memory_space<vmem>>, vector<1x128xf32>
    %6 = vector.broadcast %5 : vector<1x128xf32> to vector<8x128xf32>
    %7 = arith.addf %4, %6 : vector<8x128xf32>
    %8 = arith.truncf %7 : vector<8x128xf32> to vector<8x128xbf16>
    %c0_5 = arith.constant 0 : index
    %c0_6 = arith.constant 0 : index
    %9 = vector.load %arg4[%c0_5, %c0_6] : memref<8x128xbf16, #tpu.memory_space<vmem>>, vector<8x128xbf16>
    tpu.vector_store %arg4[%c0_5, %c0_6], %8 {strides = array<i32>} : memref<8x128xbf16, #tpu.memory_space<vmem>>, vector<8x128xbf16>,
    return
  }
  func.func @transform_0(%arg0: i32) -> (i32, i32) {
    %c0_i32 = arith.constant 0 : i32
    %c0_i32_0 = arith.constant 0 : i32
    return %arg0, %c0_i32 : i32, i32
  }
  func.func @transform_1(%arg0: i32) -> (i32, i32) {
    %c0_i32 = arith.constant 0 : i32
    %c0_i32_0 = arith.constant 0 : i32
    %c0_i32_1 = arith.constant 0 : i32
    return %c0_i32, %c0_i32_0 : i32, i32
  }
  func.func @transform_2(%arg0: i32) -> (i32, i32) {
    %c0_i32 = arith.constant 0 : i32
    %c0_i32_0 = arith.constant 0 : i32
    %c0_i32_1 = arith.constant 0 : i32
    return %c0_i32, %c0_i32_0 : i32, i32
  }
  func.func @transform_3(%arg0: i32) -> (i32, i32) {
    %c0_i32 = arith.constant 0 : i32
    %c0_i32_0 = arith.constant 0 : i32
    return %arg0, %c0_i32 : i32, i32
  }
}

module attributes {stable_mosaic.version = 11 : i64} {
  func.func @_gemm_stats_kernel(%arg0: i32, %arg1: memref<16x216xbf16, #tpu.memory_space<vmem>>, %arg2: memref<216x16xbf16, #tpu.memory_space<vmem>>, %arg3: memref<16x16xbf16, #tpu.memory_space<vmem>>, %arg4: memref<1x1x16xf32, #tpu.memory_space<vmem>>, %arg5: memref<1x1x16xf32, #tpu.memory_space<vmem>>) attributes {dimension_semantics = [#tpu.dimension_semantics<parallel>], iteration_bounds = array<i64: 1>, scalar_prefetch = 0 : i64, scratch_operands = 0 : i64, tpu.core_type = #tpu.core_type<tc>, window_params = [{transform_indices = @transform_0, window_bounds = array<i64: 16, 216>}, {pipeline_mode = #tpu.pipeline_mode<synchronous>, transform_indices = @transform_1, window_bounds = array<i64: 216, 16>}, {transform_indices = @transform_2, window_bounds = array<i64: 16, 16>}, {transform_indices = @transform_3, window_bounds = array<i64: 1, 1, 16>}, {transform_indices = @transform_4, window_bounds = array<i64: 1, 1, 16>}]} {
    %c0 = arith.constant 0 : index
    %c0_0 = arith.constant 0 : index
    %0 = vector.load %arg1[%c0, %c0_0] : memref<16x216xbf16, #tpu.memory_space<vmem>>, vector<16x216xbf16>
    %c0_1 = arith.constant 0 : index
    %c0_2 = arith.constant 0 : index
    %1 = vector.load %arg2[%c0_1, %c0_2] : memref<216x16xbf16, #tpu.memory_space<vmem>>, vector<216x16xbf16>
    %cst = arith.constant dense<0.000000e+00> : vector<16x16xf32>
    %2 = tpu.matmul %0, %1, %cst {dimension_numbers = #tpu.dot_dimension_numbers<[1], [0], [0], [1], [0, 0, 1, 1], [], []>} : vector<16x216xbf16>, vector<216x16xbf16>, vector<16x16xf32> -> vector<16x16xf32>
    %3 = arith.truncf %2 : vector<16x16xf32> to vector<16x16xbf16>
    %c0_3 = arith.constant 0 : index
    %c0_4 = arith.constant 0 : index
    %4 = vector.load %arg3[%c0_3, %c0_4] : memref<16x16xbf16, #tpu.memory_space<vmem>>, vector<16x16xbf16>
    tpu.vector_store %arg3[%c0_3, %c0_4], %3 {strides = array<i32>} : memref<16x16xbf16, #tpu.memory_space<vmem>>, vector<16x16xbf16>,
    %cst_5 = arith.constant dense<0.000000e+00> : vector<16xf32>
    %5 = vector.multi_reduction <add>, %2, %cst_5 [0] : vector<16x16xf32> to vector<16xf32>
    %6 = vector.shape_cast %5 : vector<16xf32> to vector<1x1x16xf32>
    %c0_6 = arith.constant 0 : index
    %c0_7 = arith.constant 0 : index
    %c0_8 = arith.constant 0 : index
    %7 = vector.load %arg4[%c0_6, %c0_7, %c0_8] : memref<1x1x16xf32, #tpu.memory_space<vmem>>, vector<1x1x16xf32>
    tpu.vector_store %arg4[%c0_6, %c0_7, %c0_8], %6 {strides = array<i32>} : memref<1x1x16xf32, #tpu.memory_space<vmem>>, vector<1x1x16xf32>,
    %8 = arith.mulf %2, %2 : vector<16x16xf32>
    %cst_9 = arith.constant dense<0.000000e+00> : vector<16xf32>
    %9 = vector.multi_reduction <add>, %8, %cst_9 [0] : vector<16x16xf32> to vector<16xf32>
    %10 = vector.shape_cast %9 : vector<16xf32> to vector<1x1x16xf32>
    %c0_10 = arith.constant 0 : index
    %c0_11 = arith.constant 0 : index
    %c0_12 = arith.constant 0 : index
    %11 = vector.load %arg5[%c0_10, %c0_11, %c0_12] : memref<1x1x16xf32, #tpu.memory_space<vmem>>, vector<1x1x16xf32>
    tpu.vector_store %arg5[%c0_10, %c0_11, %c0_12], %10 {strides = array<i32>} : memref<1x1x16xf32, #tpu.memory_space<vmem>>, vector<1x1x16xf32>,
    return
  }
  func.func @transform_0(%arg0: i32) -> (i32, i32) {
    %c0_i32 = arith.constant 0 : i32
    %c0_i32_0 = arith.constant 0 : i32
    return %arg0, %c0_i32 : i32, i32
  }
  func.func @transform_1(%arg0: i32) -> (i32, i32) {
    %c0_i32 = arith.constant 0 : i32
    %c0_i32_0 = arith.constant 0 : i32
    %c0_i32_1 = arith.constant 0 : i32
    return %c0_i32, %c0_i32_0 : i32, i32
  }
  func.func @transform_2(%arg0: i32) -> (i32, i32) {
    %c0_i32 = arith.constant 0 : i32
    %c0_i32_0 = arith.constant 0 : i32
    return %arg0, %c0_i32 : i32, i32
  }
  func.func @transform_3(%arg0: i32) -> (i32, i32, i32) {
    %c0_i32 = arith.constant 0 : i32
    %c0_i32_0 = arith.constant 0 : i32
    %c0_i32_1 = arith.constant 0 : i32
    return %arg0, %c0_i32, %c0_i32_0 : i32, i32, i32
  }
  func.func @transform_4(%arg0: i32) -> (i32, i32, i32) {
    %c0_i32 = arith.constant 0 : i32
    %c0_i32_0 = arith.constant 0 : i32
    %c0_i32_1 = arith.constant 0 : i32
    return %arg0, %c0_i32, %c0_i32_0 : i32, i32, i32
  }
}

module attributes {stable_mosaic.version = 11 : i64} {
  func.func @_gemm_stats_kernel(%arg0: i32, %arg1: memref<8x432xbf16, #tpu.memory_space<vmem>>, %arg2: memref<432x32xbf16, #tpu.memory_space<vmem>>, %arg3: memref<8x32xbf16, #tpu.memory_space<vmem>>, %arg4: memref<1x1x32xf32, #tpu.memory_space<vmem>>, %arg5: memref<1x1x32xf32, #tpu.memory_space<vmem>>) attributes {dimension_semantics = [#tpu.dimension_semantics<parallel>], iteration_bounds = array<i64: 1>, scalar_prefetch = 0 : i64, scratch_operands = 0 : i64, tpu.core_type = #tpu.core_type<tc>, window_params = [{transform_indices = @transform_0, window_bounds = array<i64: 8, 432>}, {pipeline_mode = #tpu.pipeline_mode<synchronous>, transform_indices = @transform_1, window_bounds = array<i64: 432, 32>}, {transform_indices = @transform_2, window_bounds = array<i64: 8, 32>}, {transform_indices = @transform_3, window_bounds = array<i64: 1, 1, 32>}, {transform_indices = @transform_4, window_bounds = array<i64: 1, 1, 32>}]} {
    %c0 = arith.constant 0 : index
    %c0_0 = arith.constant 0 : index
    %0 = vector.load %arg1[%c0, %c0_0] : memref<8x432xbf16, #tpu.memory_space<vmem>>, vector<8x432xbf16>
    %c0_1 = arith.constant 0 : index
    %c0_2 = arith.constant 0 : index
    %1 = vector.load %arg2[%c0_1, %c0_2] : memref<432x32xbf16, #tpu.memory_space<vmem>>, vector<432x32xbf16>
    %cst = arith.constant dense<0.000000e+00> : vector<8x32xf32>
    %2 = tpu.matmul %0, %1, %cst {dimension_numbers = #tpu.dot_dimension_numbers<[1], [0], [0], [1], [0, 0, 1, 1], [], []>} : vector<8x432xbf16>, vector<432x32xbf16>, vector<8x32xf32> -> vector<8x32xf32>
    %3 = arith.truncf %2 : vector<8x32xf32> to vector<8x32xbf16>
    %c0_3 = arith.constant 0 : index
    %c0_4 = arith.constant 0 : index
    %4 = vector.load %arg3[%c0_3, %c0_4] : memref<8x32xbf16, #tpu.memory_space<vmem>>, vector<8x32xbf16>
    tpu.vector_store %arg3[%c0_3, %c0_4], %3 {strides = array<i32>} : memref<8x32xbf16, #tpu.memory_space<vmem>>, vector<8x32xbf16>,
    %cst_5 = arith.constant dense<0.000000e+00> : vector<32xf32>
    %5 = vector.multi_reduction <add>, %2, %cst_5 [0] : vector<8x32xf32> to vector<32xf32>
    %6 = vector.shape_cast %5 : vector<32xf32> to vector<1x1x32xf32>
    %c0_6 = arith.constant 0 : index
    %c0_7 = arith.constant 0 : index
    %c0_8 = arith.constant 0 : index
    %7 = vector.load %arg4[%c0_6, %c0_7, %c0_8] : memref<1x1x32xf32, #tpu.memory_space<vmem>>, vector<1x1x32xf32>
    tpu.vector_store %arg4[%c0_6, %c0_7, %c0_8], %6 {strides = array<i32>} : memref<1x1x32xf32, #tpu.memory_space<vmem>>, vector<1x1x32xf32>,
    %8 = arith.mulf %2, %2 : vector<8x32xf32>
    %cst_9 = arith.constant dense<0.000000e+00> : vector<32xf32>
    %9 = vector.multi_reduction <add>, %8, %cst_9 [0] : vector<8x32xf32> to vector<32xf32>
    %10 = vector.shape_cast %9 : vector<32xf32> to vector<1x1x32xf32>
    %c0_10 = arith.constant 0 : index
    %c0_11 = arith.constant 0 : index
    %c0_12 = arith.constant 0 : index
    %11 = vector.load %arg5[%c0_10, %c0_11, %c0_12] : memref<1x1x32xf32, #tpu.memory_space<vmem>>, vector<1x1x32xf32>
    tpu.vector_store %arg5[%c0_10, %c0_11, %c0_12], %10 {strides = array<i32>} : memref<1x1x32xf32, #tpu.memory_space<vmem>>, vector<1x1x32xf32>,
    return
  }
  func.func @transform_0(%arg0: i32) -> (i32, i32) {
    %c0_i32 = arith.constant 0 : i32
    %c0_i32_0 = arith.constant 0 : i32
    return %arg0, %c0_i32 : i32, i32
  }
  func.func @transform_1(%arg0: i32) -> (i32, i32) {
    %c0_i32 = arith.constant 0 : i32
    %c0_i32_0 = arith.constant 0 : i32
    %c0_i32_1 = arith.constant 0 : i32
    return %c0_i32, %c0_i32_0 : i32, i32
  }
  func.func @transform_2(%arg0: i32) -> (i32, i32) {
    %c0_i32 = arith.constant 0 : i32
    %c0_i32_0 = arith.constant 0 : i32
    return %arg0, %c0_i32 : i32, i32
  }
  func.func @transform_3(%arg0: i32) -> (i32, i32, i32) {
    %c0_i32 = arith.constant 0 : i32
    %c0_i32_0 = arith.constant 0 : i32
    %c0_i32_1 = arith.constant 0 : i32
    return %arg0, %c0_i32, %c0_i32_0 : i32, i32, i32
  }
  func.func @transform_4(%arg0: i32) -> (i32, i32, i32) {
    %c0_i32 = arith.constant 0 : i32
    %c0_i32_0 = arith.constant 0 : i32
    %c0_i32_1 = arith.constant 0 : i32
    return %arg0, %c0_i32, %c0_i32_0 : i32, i32, i32
  }
}

module attributes {stable_mosaic.version = 11 : i64} {
  func.func @_affine_act_kernel(%arg0: i32, %arg1: memref<8x32xbf16, #tpu.memory_space<vmem>>, %arg2: memref<1x32xf32, #tpu.memory_space<vmem>>, %arg3: memref<1x32xf32, #tpu.memory_space<vmem>>, %arg4: memref<8x32xbf16, #tpu.memory_space<vmem>>) attributes {dimension_semantics = [#tpu.dimension_semantics<parallel>], iteration_bounds = array<i64: 1>, scalar_prefetch = 0 : i64, scratch_operands = 0 : i64, tpu.core_type = #tpu.core_type<tc>, window_params = [{transform_indices = @transform_0, window_bounds = array<i64: 8, 32>}, {pipeline_mode = #tpu.pipeline_mode<synchronous>, transform_indices = @transform_1, window_bounds = array<i64: 1, 32>}, {pipeline_mode = #tpu.pipeline_mode<synchronous>, transform_indices = @transform_2, window_bounds = array<i64: 1, 32>}, {transform_indices = @transform_3, window_bounds = array<i64: 8, 32>}]} {
    %c0 = arith.constant 0 : index
    %c0_0 = arith.constant 0 : index
    %0 = vector.load %arg1[%c0, %c0_0] : memref<8x32xbf16, #tpu.memory_space<vmem>>, vector<8x32xbf16>
    %1 = arith.extf %0 : vector<8x32xbf16> to vector<8x32xf32>
    %c0_1 = arith.constant 0 : index
    %c0_2 = arith.constant 0 : index
    %2 = vector.load %arg2[%c0_1, %c0_2] : memref<1x32xf32, #tpu.memory_space<vmem>>, vector<1x32xf32>
    %3 = vector.broadcast %2 : vector<1x32xf32> to vector<8x32xf32>
    %4 = arith.mulf %1, %3 : vector<8x32xf32>
    %c0_3 = arith.constant 0 : index
    %c0_4 = arith.constant 0 : index
    %5 = vector.load %arg3[%c0_3, %c0_4] : memref<1x32xf32, #tpu.memory_space<vmem>>, vector<1x32xf32>
    %6 = vector.broadcast %5 : vector<1x32xf32> to vector<8x32xf32>
    %7 = arith.addf %4, %6 : vector<8x32xf32>
    %8 = arith.truncf %7 : vector<8x32xf32> to vector<8x32xbf16>
    %c0_5 = arith.constant 0 : index
    %c0_6 = arith.constant 0 : index
    %9 = vector.load %arg4[%c0_5, %c0_6] : memref<8x32xbf16, #tpu.memory_space<vmem>>, vector<8x32xbf16>
    tpu.vector_store %arg4[%c0_5, %c0_6], %8 {strides = array<i32>} : memref<8x32xbf16, #tpu.memory_space<vmem>>, vector<8x32xbf16>,
    return
  }
  func.func @transform_0(%arg0: i32) -> (i32, i32) {
    %c0_i32 = arith.constant 0 : i32
    %c0_i32_0 = arith.constant 0 : i32
    return %arg0, %c0_i32 : i32, i32
  }
  func.func @transform_1(%arg0: i32) -> (i32, i32) {
    %c0_i32 = arith.constant 0 : i32
    %c0_i32_0 = arith.constant 0 : i32
    %c0_i32_1 = arith.constant 0 : i32
    return %c0_i32, %c0_i32_0 : i32, i32
  }
  func.func @transform_2(%arg0: i32) -> (i32, i32) {
    %c0_i32 = arith.constant 0 : i32
    %c0_i32_0 = arith.constant 0 : i32
    %c0_i32_1 = arith.constant 0 : i32
    return %c0_i32, %c0_i32_0 : i32, i32
  }
  func.func @transform_3(%arg0: i32) -> (i32, i32) {
    %c0_i32 = arith.constant 0 : i32
    %c0_i32_0 = arith.constant 0 : i32
    return %arg0, %c0_i32 : i32, i32
  }
}

module attributes {stable_mosaic.version = 11 : i64} {
  func.func @_batched_gemm_bias_kernel(%arg0: i32, %arg1: i32, %arg2: memref<1x8x256xbf16, #tpu.memory_space<vmem>>, %arg3: memref<1x256x16xbf16, #tpu.memory_space<vmem>>, %arg4: memref<1x16xf32, #tpu.memory_space<vmem>>, %arg5: memref<1x8x16xbf16, #tpu.memory_space<vmem>>) attributes {dimension_semantics = [#tpu.dimension_semantics<parallel>, #tpu.dimension_semantics<parallel>], iteration_bounds = array<i64: 8, 1>, scalar_prefetch = 0 : i64, scratch_operands = 0 : i64, tpu.core_type = #tpu.core_type<tc>, window_params = [{transform_indices = @transform_0, window_bounds = array<i64: 1, 8, 256>}, {transform_indices = @transform_1, window_bounds = array<i64: 1, 256, 16>}, {pipeline_mode = #tpu.pipeline_mode<synchronous>, transform_indices = @transform_2, window_bounds = array<i64: 1, 16>}, {transform_indices = @transform_3, window_bounds = array<i64: 1, 8, 16>}]} {
    %c0 = arith.constant 0 : index
    %c0_0 = arith.constant 0 : index
    %c0_1 = arith.constant 0 : index
    %0 = vector.load %arg2[%c0, %c0_0, %c0_1] : memref<1x8x256xbf16, #tpu.memory_space<vmem>>, vector<1x8x256xbf16>
    %1 = vector.shape_cast %0 : vector<1x8x256xbf16> to vector<8x256xbf16>
    %c0_2 = arith.constant 0 : index
    %c0_3 = arith.constant 0 : index
    %c0_4 = arith.constant 0 : index
    %2 = vector.load %arg3[%c0_2, %c0_3, %c0_4] : memref<1x256x16xbf16, #tpu.memory_space<vmem>>, vector<1x256x16xbf16>
    %3 = vector.shape_cast %2 : vector<1x256x16xbf16> to vector<256x16xbf16>
    %cst = arith.constant dense<0.000000e+00> : vector<8x16xf32>
    %4 = tpu.matmul %1, %3, %cst {dimension_numbers = #tpu.dot_dimension_numbers<[1], [0], [0], [1], [0, 0, 1, 1], [], []>} : vector<8x256xbf16>, vector<256x16xbf16>, vector<8x16xf32> -> vector<8x16xf32>
    %c0_5 = arith.constant 0 : index
    %c0_6 = arith.constant 0 : index
    %5 = vector.load %arg4[%c0_5, %c0_6] : memref<1x16xf32, #tpu.memory_space<vmem>>, vector<1x16xf32>
    %6 = vector.broadcast %5 : vector<1x16xf32> to vector<8x16xf32>
    %7 = arith.addf %4, %6 : vector<8x16xf32>
    %8 = vector.shape_cast %7 : vector<8x16xf32> to vector<1x8x16xf32>
    %9 = arith.truncf %8 : vector<1x8x16xf32> to vector<1x8x16xbf16>
    %c0_7 = arith.constant 0 : index
    %c0_8 = arith.constant 0 : index
    %c0_9 = arith.constant 0 : index
    %10 = vector.load %arg5[%c0_7, %c0_8, %c0_9] : memref<1x8x16xbf16, #tpu.memory_space<vmem>>, vector<1x8x16xbf16>
    tpu.vector_store %arg5[%c0_7, %c0_8, %c0_9], %9 {strides = array<i32>} : memref<1x8x16xbf16, #tpu.memory_space<vmem>>, vector<1x8x16xbf16>,
    return
  }
  func.func @transform_0(%arg0: i32, %arg1: i32) -> (i32, i32, i32) {
    %c0_i32 = arith.constant 0 : i32
    %c0_i32_0 = arith.constant 0 : i32
    return %arg0, %arg1, %c0_i32 : i32, i32, i32
  }
  func.func @transform_1(%arg0: i32, %arg1: i32) -> (i32, i32, i32) {
    %c0_i32 = arith.constant 0 : i32
    %c0_i32_0 = arith.constant 0 : i32
    %c0_i32_1 = arith.constant 0 : i32
    return %arg0, %c0_i32, %c0_i32_0 : i32, i32, i32
  }
  func.func @transform_2(%arg0: i32, %arg1: i32) -> (i32, i32) {
    %c0_i32 = arith.constant 0 : i32
    %c0_i32_0 = arith.constant 0 : i32
    %c0_i32_1 = arith.constant 0 : i32
    return %c0_i32, %c0_i32_0 : i32, i32
  }
  func.func @transform_3(%arg0: i32, %arg1: i32) -> (i32, i32, i32) {
    %c0_i32 = arith.constant 0 : i32
    %c0_i32_0 = arith.constant 0 : i32
    return %arg0, %arg1, %c0_i32 : i32, i32, i32
  }
}

module attributes {stable_mosaic.version = 11 : i64} {
  func.func @_dual_gemm_stats_kernel(%arg0: i32, %arg1: memref<16x432xbf16, #tpu.memory_space<vmem>>, %arg2: memref<432x16xbf16, #tpu.memory_space<vmem>>, %arg3: memref<16x432xbf16, #tpu.memory_space<vmem>>, %arg4: memref<432x16xbf16, #tpu.memory_space<vmem>>, %arg5: memref<16x16xbf16, #tpu.memory_space<vmem>>, %arg6: memref<1x1x16xf32, #tpu.memory_space<vmem>>, %arg7: memref<1x1x16xf32, #tpu.memory_space<vmem>>) attributes {dimension_semantics = [#tpu.dimension_semantics<parallel>], iteration_bounds = array<i64: 1>, scalar_prefetch = 0 : i64, scratch_operands = 0 : i64, tpu.core_type = #tpu.core_type<tc>, window_params = [{transform_indices = @transform_0, window_bounds = array<i64: 16, 432>}, {pipeline_mode = #tpu.pipeline_mode<synchronous>, transform_indices = @transform_1, window_bounds = array<i64: 432, 16>}, {transform_indices = @transform_2, window_bounds = array<i64: 16, 432>}, {pipeline_mode = #tpu.pipeline_mode<synchronous>, transform_indices = @transform_3, window_bounds = array<i64: 432, 16>}, {transform_indices = @transform_4, window_bounds = array<i64: 16, 16>}, {transform_indices = @transform_5, window_bounds = array<i64: 1, 1, 16>}, {transform_indices = @transform_6, window_bounds = array<i64: 1, 1, 16>}]} {
    %c0 = arith.constant 0 : index
    %c0_0 = arith.constant 0 : index
    %0 = vector.load %arg1[%c0, %c0_0] : memref<16x432xbf16, #tpu.memory_space<vmem>>, vector<16x432xbf16>
    %c0_1 = arith.constant 0 : index
    %c0_2 = arith.constant 0 : index
    %1 = vector.load %arg2[%c0_1, %c0_2] : memref<432x16xbf16, #tpu.memory_space<vmem>>, vector<432x16xbf16>
    %cst = arith.constant dense<0.000000e+00> : vector<16x16xf32>
    %2 = tpu.matmul %0, %1, %cst {dimension_numbers = #tpu.dot_dimension_numbers<[1], [0], [0], [1], [0, 0, 1, 1], [], []>} : vector<16x432xbf16>, vector<432x16xbf16>, vector<16x16xf32> -> vector<16x16xf32>
    %c0_3 = arith.constant 0 : index
    %c0_4 = arith.constant 0 : index
    %3 = vector.load %arg3[%c0_3, %c0_4] : memref<16x432xbf16, #tpu.memory_space<vmem>>, vector<16x432xbf16>
    %c0_5 = arith.constant 0 : index
    %c0_6 = arith.constant 0 : index
    %4 = vector.load %arg4[%c0_5, %c0_6] : memref<432x16xbf16, #tpu.memory_space<vmem>>, vector<432x16xbf16>
    %cst_7 = arith.constant dense<0.000000e+00> : vector<16x16xf32>
    %5 = tpu.matmul %3, %4, %cst_7 {dimension_numbers = #tpu.dot_dimension_numbers<[1], [0], [0], [1], [0, 0, 1, 1], [], []>} : vector<16x432xbf16>, vector<432x16xbf16>, vector<16x16xf32> -> vector<16x16xf32>
    %6 = arith.addf %2, %5 : vector<16x16xf32>
    %7 = arith.truncf %6 : vector<16x16xf32> to vector<16x16xbf16>
    %c0_8 = arith.constant 0 : index
    %c0_9 = arith.constant 0 : index
    %8 = vector.load %arg5[%c0_8, %c0_9] : memref<16x16xbf16, #tpu.memory_space<vmem>>, vector<16x16xbf16>
    tpu.vector_store %arg5[%c0_8, %c0_9], %7 {strides = array<i32>} : memref<16x16xbf16, #tpu.memory_space<vmem>>, vector<16x16xbf16>,
    %cst_10 = arith.constant dense<0.000000e+00> : vector<16xf32>
    %9 = vector.multi_reduction <add>, %6, %cst_10 [0] : vector<16x16xf32> to vector<16xf32>
    %10 = vector.shape_cast %9 : vector<16xf32> to vector<1x1x16xf32>
    %c0_11 = arith.constant 0 : index
    %c0_12 = arith.constant 0 : index
    %c0_13 = arith.constant 0 : index
    %11 = vector.load %arg6[%c0_11, %c0_12, %c0_13] : memref<1x1x16xf32, #tpu.memory_space<vmem>>, vector<1x1x16xf32>
    tpu.vector_store %arg6[%c0_11, %c0_12, %c0_13], %10 {strides = array<i32>} : memref<1x1x16xf32, #tpu.memory_space<vmem>>, vector<1x1x16xf32>,
    %12 = arith.mulf %6, %6 : vector<16x16xf32>
    %cst_14 = arith.constant dense<0.000000e+00> : vector<16xf32>
    %13 = vector.multi_reduction <add>, %12, %cst_14 [0] : vector<16x16xf32> to vector<16xf32>
    %14 = vector.shape_cast %13 : vector<16xf32> to vector<1x1x16xf32>
    %c0_15 = arith.constant 0 : index
    %c0_16 = arith.constant 0 : index
    %c0_17 = arith.constant 0 : index
    %15 = vector.load %arg7[%c0_15, %c0_16, %c0_17] : memref<1x1x16xf32, #tpu.memory_space<vmem>>, vector<1x1x16xf32>
    tpu.vector_store %arg7[%c0_15, %c0_16, %c0_17], %14 {strides = array<i32>} : memref<1x1x16xf32, #tpu.memory_space<vmem>>, vector<1x1x16xf32>,
    return
  }
  func.func @transform_0(%arg0: i32) -> (i32, i32) {
    %c0_i32 = arith.constant 0 : i32
    %c0_i32_0 = arith.constant 0 : i32
    return %arg0, %c0_i32 : i32, i32
  }
  func.func @transform_1(%arg0: i32) -> (i32, i32) {
    %c0_i32 = arith.constant 0 : i32
    %c0_i32_0 = arith.constant 0 : i32
    %c0_i32_1 = arith.constant 0 : i32
    return %c0_i32, %c0_i32_0 : i32, i32
  }
  func.func @transform_2(%arg0: i32) -> (i32, i32) {
    %c0_i32 = arith.constant 0 : i32
    %c0_i32_0 = arith.constant 0 : i32
    return %arg0, %c0_i32 : i32, i32
  }
  func.func @transform_3(%arg0: i32) -> (i32, i32) {
    %c0_i32 = arith.constant 0 : i32
    %c0_i32_0 = arith.constant 0 : i32
    %c0_i32_1 = arith.constant 0 : i32
    return %c0_i32, %c0_i32_0 : i32, i32
  }
  func.func @transform_4(%arg0: i32) -> (i32, i32) {
    %c0_i32 = arith.constant 0 : i32
    %c0_i32_0 = arith.constant 0 : i32
    return %arg0, %c0_i32 : i32, i32
  }
  func.func @transform_5(%arg0: i32) -> (i32, i32, i32) {
    %c0_i32 = arith.constant 0 : i32
    %c0_i32_0 = arith.constant 0 : i32
    %c0_i32_1 = arith.constant 0 : i32
    return %arg0, %c0_i32, %c0_i32_0 : i32, i32, i32
  }
  func.func @transform_6(%arg0: i32) -> (i32, i32, i32) {
    %c0_i32 = arith.constant 0 : i32
    %c0_i32_0 = arith.constant 0 : i32
    %c0_i32_1 = arith.constant 0 : i32
    return %arg0, %c0_i32, %c0_i32_0 : i32, i32, i32
  }
}

module attributes {stable_mosaic.version = 11 : i64} {
  func.func @_affine_act_kernel(%arg0: i32, %arg1: memref<8x128xbf16, #tpu.memory_space<vmem>>, %arg2: memref<1x128xf32, #tpu.memory_space<vmem>>, %arg3: memref<1x128xf32, #tpu.memory_space<vmem>>, %arg4: memref<8x128xbf16, #tpu.memory_space<vmem>>) attributes {dimension_semantics = [#tpu.dimension_semantics<parallel>], iteration_bounds = array<i64: 1>, scalar_prefetch = 0 : i64, scratch_operands = 0 : i64, tpu.core_type = #tpu.core_type<tc>, window_params = [{transform_indices = @transform_0, window_bounds = array<i64: 8, 128>}, {pipeline_mode = #tpu.pipeline_mode<synchronous>, transform_indices = @transform_1, window_bounds = array<i64: 1, 128>}, {pipeline_mode = #tpu.pipeline_mode<synchronous>, transform_indices = @transform_2, window_bounds = array<i64: 1, 128>}, {transform_indices = @transform_3, window_bounds = array<i64: 8, 128>}]} {
    %c0 = arith.constant 0 : index
    %c0_0 = arith.constant 0 : index
    %0 = vector.load %arg1[%c0, %c0_0] : memref<8x128xbf16, #tpu.memory_space<vmem>>, vector<8x128xbf16>
    %1 = arith.extf %0 : vector<8x128xbf16> to vector<8x128xf32>
    %c0_1 = arith.constant 0 : index
    %c0_2 = arith.constant 0 : index
    %2 = vector.load %arg2[%c0_1, %c0_2] : memref<1x128xf32, #tpu.memory_space<vmem>>, vector<1x128xf32>
    %3 = vector.broadcast %2 : vector<1x128xf32> to vector<8x128xf32>
    %4 = arith.mulf %1, %3 : vector<8x128xf32>
    %c0_3 = arith.constant 0 : index
    %c0_4 = arith.constant 0 : index
    %5 = vector.load %arg3[%c0_3, %c0_4] : memref<1x128xf32, #tpu.memory_space<vmem>>, vector<1x128xf32>
    %6 = vector.broadcast %5 : vector<1x128xf32> to vector<8x128xf32>
    %7 = arith.addf %4, %6 : vector<8x128xf32>
    %cst = arith.constant 0.000000e+00 : f32
    %8 = vector.broadcast %cst : f32 to vector<8x128xf32>
    %9 = arith.maximumf %7, %8 : vector<8x128xf32>
    %10 = arith.truncf %9 : vector<8x128xf32> to vector<8x128xbf16>
    %c0_5 = arith.constant 0 : index
    %c0_6 = arith.constant 0 : index
    %11 = vector.load %arg4[%c0_5, %c0_6] : memref<8x128xbf16, #tpu.memory_space<vmem>>, vector<8x128xbf16>
    tpu.vector_store %arg4[%c0_5, %c0_6], %10 {strides = array<i32>} : memref<8x128xbf16, #tpu.memory_space<vmem>>, vector<8x128xbf16>,
    return
  }
  func.func @transform_0(%arg0: i32) -> (i32, i32) {
    %c0_i32 = arith.constant 0 : i32
    %c0_i32_0 = arith.constant 0 : i32
    return %arg0, %c0_i32 : i32, i32
  }
  func.func @transform_1(%arg0: i32) -> (i32, i32) {
    %c0_i32 = arith.constant 0 : i32
    %c0_i32_0 = arith.constant 0 : i32
    %c0_i32_1 = arith.constant 0 : i32
    return %c0_i32, %c0_i32_0 : i32, i32
  }
  func.func @transform_2(%arg0: i32) -> (i32, i32) {
    %c0_i32 = arith.constant 0 : i32
    %c0_i32_0 = arith.constant 0 : i32
    %c0_i32_1 = arith.constant 0 : i32
    return %c0_i32, %c0_i32_0 : i32, i32
  }
  func.func @transform_3(%arg0: i32) -> (i32, i32) {
    %c0_i32 = arith.constant 0 : i32
    %c0_i32_0 = arith.constant 0 : i32
    return %arg0, %c0_i32 : i32, i32
  }
}

module attributes {stable_mosaic.version = 11 : i64} {
  func.func @_batched_gemm_bias_kernel(%arg0: i32, %arg1: i32, %arg2: memref<1x16x128xbf16, #tpu.memory_space<vmem>>, %arg3: memref<1x128x8xbf16, #tpu.memory_space<vmem>>, %arg4: memref<1x8xf32, #tpu.memory_space<vmem>>, %arg5: memref<1x16x8xbf16, #tpu.memory_space<vmem>>) attributes {dimension_semantics = [#tpu.dimension_semantics<parallel>, #tpu.dimension_semantics<parallel>], iteration_bounds = array<i64: 8, 1>, scalar_prefetch = 0 : i64, scratch_operands = 0 : i64, tpu.core_type = #tpu.core_type<tc>, window_params = [{transform_indices = @transform_0, window_bounds = array<i64: 1, 16, 128>}, {transform_indices = @transform_1, window_bounds = array<i64: 1, 128, 8>}, {pipeline_mode = #tpu.pipeline_mode<synchronous>, transform_indices = @transform_2, window_bounds = array<i64: 1, 8>}, {transform_indices = @transform_3, window_bounds = array<i64: 1, 16, 8>}]} {
    %c0 = arith.constant 0 : index
    %c0_0 = arith.constant 0 : index
    %c0_1 = arith.constant 0 : index
    %0 = vector.load %arg2[%c0, %c0_0, %c0_1] : memref<1x16x128xbf16, #tpu.memory_space<vmem>>, vector<1x16x128xbf16>
    %1 = vector.shape_cast %0 : vector<1x16x128xbf16> to vector<16x128xbf16>
    %c0_2 = arith.constant 0 : index
    %c0_3 = arith.constant 0 : index
    %c0_4 = arith.constant 0 : index
    %2 = vector.load %arg3[%c0_2, %c0_3, %c0_4] : memref<1x128x8xbf16, #tpu.memory_space<vmem>>, vector<1x128x8xbf16>
    %3 = vector.shape_cast %2 : vector<1x128x8xbf16> to vector<128x8xbf16>
    %cst = arith.constant dense<0.000000e+00> : vector<16x8xf32>
    %4 = tpu.matmul %1, %3, %cst {dimension_numbers = #tpu.dot_dimension_numbers<[1], [0], [0], [1], [0, 0, 1, 1], [], []>} : vector<16x128xbf16>, vector<128x8xbf16>, vector<16x8xf32> -> vector<16x8xf32>
    %c0_5 = arith.constant 0 : index
    %c0_6 = arith.constant 0 : index
    %5 = vector.load %arg4[%c0_5, %c0_6] : memref<1x8xf32, #tpu.memory_space<vmem>>, vector<1x8xf32>
    %6 = vector.broadcast %5 : vector<1x8xf32> to vector<16x8xf32>
    %7 = arith.addf %4, %6 : vector<16x8xf32>
    %8 = vector.shape_cast %7 : vector<16x8xf32> to vector<1x16x8xf32>
    %9 = arith.truncf %8 : vector<1x16x8xf32> to vector<1x16x8xbf16>
    %c0_7 = arith.constant 0 : index
    %c0_8 = arith.constant 0 : index
    %c0_9 = arith.constant 0 : index
    %10 = vector.load %arg5[%c0_7, %c0_8, %c0_9] : memref<1x16x8xbf16, #tpu.memory_space<vmem>>, vector<1x16x8xbf16>
    tpu.vector_store %arg5[%c0_7, %c0_8, %c0_9], %9 {strides = array<i32>} : memref<1x16x8xbf16, #tpu.memory_space<vmem>>, vector<1x16x8xbf16>,
    return
  }
  func.func @transform_0(%arg0: i32, %arg1: i32) -> (i32, i32, i32) {
    %c0_i32 = arith.constant 0 : i32
    %c0_i32_0 = arith.constant 0 : i32
    return %arg0, %arg1, %c0_i32 : i32, i32, i32
  }
  func.func @transform_1(%arg0: i32, %arg1: i32) -> (i32, i32, i32) {
    %c0_i32 = arith.constant 0 : i32
    %c0_i32_0 = arith.constant 0 : i32
    %c0_i32_1 = arith.constant 0 : i32
    return %arg0, %c0_i32, %c0_i32_0 : i32, i32, i32
  }
  func.func @transform_2(%arg0: i32, %arg1: i32) -> (i32, i32) {
    %c0_i32 = arith.constant 0 : i32
    %c0_i32_0 = arith.constant 0 : i32
    %c0_i32_1 = arith.constant 0 : i32
    return %c0_i32, %c0_i32_0 : i32, i32
  }
  func.func @transform_3(%arg0: i32, %arg1: i32) -> (i32, i32, i32) {
    %c0_i32 = arith.constant 0 : i32
    %c0_i32_0 = arith.constant 0 : i32
    return %arg0, %arg1, %c0_i32 : i32, i32, i32
  }
}

module attributes {stable_mosaic.version = 11 : i64} {
  func.func @_dual_gemm_stats_kernel(%arg0: i32, %arg1: memref<128x216xbf16, #tpu.memory_space<vmem>>, %arg2: memref<216x8xbf16, #tpu.memory_space<vmem>>, %arg3: memref<128x216xbf16, #tpu.memory_space<vmem>>, %arg4: memref<216x8xbf16, #tpu.memory_space<vmem>>, %arg5: memref<128x8xbf16, #tpu.memory_space<vmem>>, %arg6: memref<1x1x8xf32, #tpu.memory_space<vmem>>, %arg7: memref<1x1x8xf32, #tpu.memory_space<vmem>>) attributes {dimension_semantics = [#tpu.dimension_semantics<parallel>], iteration_bounds = array<i64: 1>, scalar_prefetch = 0 : i64, scratch_operands = 0 : i64, tpu.core_type = #tpu.core_type<tc>, window_params = [{transform_indices = @transform_0, window_bounds = array<i64: 128, 216>}, {pipeline_mode = #tpu.pipeline_mode<synchronous>, transform_indices = @transform_1, window_bounds = array<i64: 216, 8>}, {transform_indices = @transform_2, window_bounds = array<i64: 128, 216>}, {pipeline_mode = #tpu.pipeline_mode<synchronous>, transform_indices = @transform_3, window_bounds = array<i64: 216, 8>}, {transform_indices = @transform_4, window_bounds = array<i64: 128, 8>}, {transform_indices = @transform_5, window_bounds = array<i64: 1, 1, 8>}, {transform_indices = @transform_6, window_bounds = array<i64: 1, 1, 8>}]} {
    %c0 = arith.constant 0 : index
    %c0_0 = arith.constant 0 : index
    %0 = vector.load %arg1[%c0, %c0_0] : memref<128x216xbf16, #tpu.memory_space<vmem>>, vector<128x216xbf16>
    %c0_1 = arith.constant 0 : index
    %c0_2 = arith.constant 0 : index
    %1 = vector.load %arg2[%c0_1, %c0_2] : memref<216x8xbf16, #tpu.memory_space<vmem>>, vector<216x8xbf16>
    %cst = arith.constant dense<0.000000e+00> : vector<128x8xf32>
    %2 = tpu.matmul %0, %1, %cst {dimension_numbers = #tpu.dot_dimension_numbers<[1], [0], [0], [1], [0, 0, 1, 1], [], []>} : vector<128x216xbf16>, vector<216x8xbf16>, vector<128x8xf32> -> vector<128x8xf32>
    %c0_3 = arith.constant 0 : index
    %c0_4 = arith.constant 0 : index
    %3 = vector.load %arg3[%c0_3, %c0_4] : memref<128x216xbf16, #tpu.memory_space<vmem>>, vector<128x216xbf16>
    %c0_5 = arith.constant 0 : index
    %c0_6 = arith.constant 0 : index
    %4 = vector.load %arg4[%c0_5, %c0_6] : memref<216x8xbf16, #tpu.memory_space<vmem>>, vector<216x8xbf16>
    %cst_7 = arith.constant dense<0.000000e+00> : vector<128x8xf32>
    %5 = tpu.matmul %3, %4, %cst_7 {dimension_numbers = #tpu.dot_dimension_numbers<[1], [0], [0], [1], [0, 0, 1, 1], [], []>} : vector<128x216xbf16>, vector<216x8xbf16>, vector<128x8xf32> -> vector<128x8xf32>
    %6 = arith.addf %2, %5 : vector<128x8xf32>
    %7 = arith.truncf %6 : vector<128x8xf32> to vector<128x8xbf16>
    %c0_8 = arith.constant 0 : index
    %c0_9 = arith.constant 0 : index
    %8 = vector.load %arg5[%c0_8, %c0_9] : memref<128x8xbf16, #tpu.memory_space<vmem>>, vector<128x8xbf16>
    tpu.vector_store %arg5[%c0_8, %c0_9], %7 {strides = array<i32>} : memref<128x8xbf16, #tpu.memory_space<vmem>>, vector<128x8xbf16>,
    %cst_10 = arith.constant dense<0.000000e+00> : vector<8xf32>
    %9 = vector.multi_reduction <add>, %6, %cst_10 [0] : vector<128x8xf32> to vector<8xf32>
    %10 = vector.shape_cast %9 : vector<8xf32> to vector<1x1x8xf32>
    %c0_11 = arith.constant 0 : index
    %c0_12 = arith.constant 0 : index
    %c0_13 = arith.constant 0 : index
    %11 = vector.load %arg6[%c0_11, %c0_12, %c0_13] : memref<1x1x8xf32, #tpu.memory_space<vmem>>, vector<1x1x8xf32>
    tpu.vector_store %arg6[%c0_11, %c0_12, %c0_13], %10 {strides = array<i32>} : memref<1x1x8xf32, #tpu.memory_space<vmem>>, vector<1x1x8xf32>,
    %12 = arith.mulf %6, %6 : vector<128x8xf32>
    %cst_14 = arith.constant dense<0.000000e+00> : vector<8xf32>
    %13 = vector.multi_reduction <add>, %12, %cst_14 [0] : vector<128x8xf32> to vector<8xf32>
    %14 = vector.shape_cast %13 : vector<8xf32> to vector<1x1x8xf32>
    %c0_15 = arith.constant 0 : index
    %c0_16 = arith.constant 0 : index
    %c0_17 = arith.constant 0 : index
    %15 = vector.load %arg7[%c0_15, %c0_16, %c0_17] : memref<1x1x8xf32, #tpu.memory_space<vmem>>, vector<1x1x8xf32>
    tpu.vector_store %arg7[%c0_15, %c0_16, %c0_17], %14 {strides = array<i32>} : memref<1x1x8xf32, #tpu.memory_space<vmem>>, vector<1x1x8xf32>,
    return
  }
  func.func @transform_0(%arg0: i32) -> (i32, i32) {
    %c0_i32 = arith.constant 0 : i32
    %c0_i32_0 = arith.constant 0 : i32
    return %arg0, %c0_i32 : i32, i32
  }
  func.func @transform_1(%arg0: i32) -> (i32, i32) {
    %c0_i32 = arith.constant 0 : i32
    %c0_i32_0 = arith.constant 0 : i32
    %c0_i32_1 = arith.constant 0 : i32
    return %c0_i32, %c0_i32_0 : i32, i32
  }
  func.func @transform_2(%arg0: i32) -> (i32, i32) {
    %c0_i32 = arith.constant 0 : i32
    %c0_i32_0 = arith.constant 0 : i32
    return %arg0, %c0_i32 : i32, i32
  }
  func.func @transform_3(%arg0: i32) -> (i32, i32) {
    %c0_i32 = arith.constant 0 : i32
    %c0_i32_0 = arith.constant 0 : i32
    %c0_i32_1 = arith.constant 0 : i32
    return %c0_i32, %c0_i32_0 : i32, i32
  }
  func.func @transform_4(%arg0: i32) -> (i32, i32) {
    %c0_i32 = arith.constant 0 : i32
    %c0_i32_0 = arith.constant 0 : i32
    return %arg0, %c0_i32 : i32, i32
  }
  func.func @transform_5(%arg0: i32) -> (i32, i32, i32) {
    %c0_i32 = arith.constant 0 : i32
    %c0_i32_0 = arith.constant 0 : i32
    %c0_i32_1 = arith.constant 0 : i32
    return %arg0, %c0_i32, %c0_i32_0 : i32, i32, i32
  }
  func.func @transform_6(%arg0: i32) -> (i32, i32, i32) {
    %c0_i32 = arith.constant 0 : i32
    %c0_i32_0 = arith.constant 0 : i32
    %c0_i32_1 = arith.constant 0 : i32
    return %arg0, %c0_i32, %c0_i32_0 : i32, i32, i32
  }
}

module attributes {stable_mosaic.version = 11 : i64} {
  func.func @_batched_gemm_bias_kernel(%arg0: i32, %arg1: i32, %arg2: memref<1x128x64xbf16, #tpu.memory_space<vmem>>, %arg3: memref<1x64x4xbf16, #tpu.memory_space<vmem>>, %arg4: memref<1x4xf32, #tpu.memory_space<vmem>>, %arg5: memref<1x128x4xbf16, #tpu.memory_space<vmem>>) attributes {dimension_semantics = [#tpu.dimension_semantics<parallel>, #tpu.dimension_semantics<parallel>], iteration_bounds = array<i64: 8, 1>, scalar_prefetch = 0 : i64, scratch_operands = 0 : i64, tpu.core_type = #tpu.core_type<tc>, window_params = [{transform_indices = @transform_0, window_bounds = array<i64: 1, 128, 64>}, {transform_indices = @transform_1, window_bounds = array<i64: 1, 64, 4>}, {pipeline_mode = #tpu.pipeline_mode<synchronous>, transform_indices = @transform_2, window_bounds = array<i64: 1, 4>}, {transform_indices = @transform_3, window_bounds = array<i64: 1, 128, 4>}]} {
    %c0 = arith.constant 0 : index
    %c0_0 = arith.constant 0 : index
    %c0_1 = arith.constant 0 : index
    %0 = vector.load %arg2[%c0, %c0_0, %c0_1] : memref<1x128x64xbf16, #tpu.memory_space<vmem>>, vector<1x128x64xbf16>
    %1 = vector.shape_cast %0 : vector<1x128x64xbf16> to vector<128x64xbf16>
    %c0_2 = arith.constant 0 : index
    %c0_3 = arith.constant 0 : index
    %c0_4 = arith.constant 0 : index
    %2 = vector.load %arg3[%c0_2, %c0_3, %c0_4] : memref<1x64x4xbf16, #tpu.memory_space<vmem>>, vector<1x64x4xbf16>
    %3 = vector.shape_cast %2 : vector<1x64x4xbf16> to vector<64x4xbf16>
    %cst = arith.constant dense<0.000000e+00> : vector<128x4xf32>
    %4 = tpu.matmul %1, %3, %cst {dimension_numbers = #tpu.dot_dimension_numbers<[1], [0], [0], [1], [0, 0, 1, 1], [], []>} : vector<128x64xbf16>, vector<64x4xbf16>, vector<128x4xf32> -> vector<128x4xf32>
    %c0_5 = arith.constant 0 : index
    %c0_6 = arith.constant 0 : index
    %5 = vector.load %arg4[%c0_5, %c0_6] : memref<1x4xf32, #tpu.memory_space<vmem>>, vector<1x4xf32>
    %6 = vector.broadcast %5 : vector<1x4xf32> to vector<128x4xf32>
    %7 = arith.addf %4, %6 : vector<128x4xf32>
    %8 = vector.shape_cast %7 : vector<128x4xf32> to vector<1x128x4xf32>
    %9 = arith.truncf %8 : vector<1x128x4xf32> to vector<1x128x4xbf16>
    %c0_7 = arith.constant 0 : index
    %c0_8 = arith.constant 0 : index
    %c0_9 = arith.constant 0 : index
    %10 = vector.load %arg5[%c0_7, %c0_8, %c0_9] : memref<1x128x4xbf16, #tpu.memory_space<vmem>>, vector<1x128x4xbf16>
    tpu.vector_store %arg5[%c0_7, %c0_8, %c0_9], %9 {strides = array<i32>} : memref<1x128x4xbf16, #tpu.memory_space<vmem>>, vector<1x128x4xbf16>,
    return
  }
  func.func @transform_0(%arg0: i32, %arg1: i32) -> (i32, i32, i32) {
    %c0_i32 = arith.constant 0 : i32
    %c0_i32_0 = arith.constant 0 : i32
    return %arg0, %arg1, %c0_i32 : i32, i32, i32
  }
  func.func @transform_1(%arg0: i32, %arg1: i32) -> (i32, i32, i32) {
    %c0_i32 = arith.constant 0 : i32
    %c0_i32_0 = arith.constant 0 : i32
    %c0_i32_1 = arith.constant 0 : i32
    return %arg0, %c0_i32, %c0_i32_0 : i32, i32, i32
  }
  func.func @transform_2(%arg0: i32, %arg1: i32) -> (i32, i32) {
    %c0_i32 = arith.constant 0 : i32
    %c0_i32_0 = arith.constant 0 : i32
    %c0_i32_1 = arith.constant 0 : i32
    return %c0_i32, %c0_i32_0 : i32, i32
  }
  func.func @transform_3(%arg0: i32, %arg1: i32) -> (i32, i32, i32) {
    %c0_i32 = arith.constant 0 : i32
    %c0_i32_0 = arith.constant 0 : i32
    return %arg0, %arg1, %c0_i32 : i32, i32, i32
  }
}

module attributes {stable_mosaic.version = 11 : i64} {
  func.func @_dual_gemm_stats_kernel(%arg0: i32, %arg1: memref<512x108xbf16, #tpu.memory_space<vmem>>, %arg2: memref<108x4xbf16, #tpu.memory_space<vmem>>, %arg3: memref<512x108xbf16, #tpu.memory_space<vmem>>, %arg4: memref<108x4xbf16, #tpu.memory_space<vmem>>, %arg5: memref<512x4xbf16, #tpu.memory_space<vmem>>, %arg6: memref<1x1x4xf32, #tpu.memory_space<vmem>>, %arg7: memref<1x1x4xf32, #tpu.memory_space<vmem>>) attributes {dimension_semantics = [#tpu.dimension_semantics<parallel>], iteration_bounds = array<i64: 2>, scalar_prefetch = 0 : i64, scratch_operands = 0 : i64, tpu.core_type = #tpu.core_type<tc>, window_params = [{transform_indices = @transform_0, window_bounds = array<i64: 512, 108>}, {pipeline_mode = #tpu.pipeline_mode<synchronous>, transform_indices = @transform_1, window_bounds = array<i64: 108, 4>}, {transform_indices = @transform_2, window_bounds = array<i64: 512, 108>}, {pipeline_mode = #tpu.pipeline_mode<synchronous>, transform_indices = @transform_3, window_bounds = array<i64: 108, 4>}, {transform_indices = @transform_4, window_bounds = array<i64: 512, 4>}, {transform_indices = @transform_5, window_bounds = array<i64: 1, 1, 4>}, {transform_indices = @transform_6, window_bounds = array<i64: 1, 1, 4>}]} {
    %c0 = arith.constant 0 : index
    %c0_0 = arith.constant 0 : index
    %0 = vector.load %arg1[%c0, %c0_0] : memref<512x108xbf16, #tpu.memory_space<vmem>>, vector<512x108xbf16>
    %c0_1 = arith.constant 0 : index
    %c0_2 = arith.constant 0 : index
    %1 = vector.load %arg2[%c0_1, %c0_2] : memref<108x4xbf16, #tpu.memory_space<vmem>>, vector<108x4xbf16>
    %cst = arith.constant dense<0.000000e+00> : vector<512x4xf32>
    %2 = tpu.matmul %0, %1, %cst {dimension_numbers = #tpu.dot_dimension_numbers<[1], [0], [0], [1], [0, 0, 1, 1], [], []>} : vector<512x108xbf16>, vector<108x4xbf16>, vector<512x4xf32> -> vector<512x4xf32>
    %c0_3 = arith.constant 0 : index
    %c0_4 = arith.constant 0 : index
    %3 = vector.load %arg3[%c0_3, %c0_4] : memref<512x108xbf16, #tpu.memory_space<vmem>>, vector<512x108xbf16>
    %c0_5 = arith.constant 0 : index
    %c0_6 = arith.constant 0 : index
    %4 = vector.load %arg4[%c0_5, %c0_6] : memref<108x4xbf16, #tpu.memory_space<vmem>>, vector<108x4xbf16>
    %cst_7 = arith.constant dense<0.000000e+00> : vector<512x4xf32>
    %5 = tpu.matmul %3, %4, %cst_7 {dimension_numbers = #tpu.dot_dimension_numbers<[1], [0], [0], [1], [0, 0, 1, 1], [], []>} : vector<512x108xbf16>, vector<108x4xbf16>, vector<512x4xf32> -> vector<512x4xf32>
    %6 = arith.addf %2, %5 : vector<512x4xf32>
    %7 = arith.truncf %6 : vector<512x4xf32> to vector<512x4xbf16>
    %c0_8 = arith.constant 0 : index
    %c0_9 = arith.constant 0 : index
    %8 = vector.load %arg5[%c0_8, %c0_9] : memref<512x4xbf16, #tpu.memory_space<vmem>>, vector<512x4xbf16>
    tpu.vector_store %arg5[%c0_8, %c0_9], %7 {strides = array<i32>} : memref<512x4xbf16, #tpu.memory_space<vmem>>, vector<512x4xbf16>,
    %cst_10 = arith.constant dense<0.000000e+00> : vector<4xf32>
    %9 = vector.multi_reduction <add>, %6, %cst_10 [0] : vector<512x4xf32> to vector<4xf32>
    %10 = vector.shape_cast %9 : vector<4xf32> to vector<1x1x4xf32>
    %c0_11 = arith.constant 0 : index
    %c0_12 = arith.constant 0 : index
    %c0_13 = arith.constant 0 : index
    %11 = vector.load %arg6[%c0_11, %c0_12, %c0_13] : memref<1x1x4xf32, #tpu.memory_space<vmem>>, vector<1x1x4xf32>
    tpu.vector_store %arg6[%c0_11, %c0_12, %c0_13], %10 {strides = array<i32>} : memref<1x1x4xf32, #tpu.memory_space<vmem>>, vector<1x1x4xf32>,
    %12 = arith.mulf %6, %6 : vector<512x4xf32>
    %cst_14 = arith.constant dense<0.000000e+00> : vector<4xf32>
    %13 = vector.multi_reduction <add>, %12, %cst_14 [0] : vector<512x4xf32> to vector<4xf32>
    %14 = vector.shape_cast %13 : vector<4xf32> to vector<1x1x4xf32>
    %c0_15 = arith.constant 0 : index
    %c0_16 = arith.constant 0 : index
    %c0_17 = arith.constant 0 : index
    %15 = vector.load %arg7[%c0_15, %c0_16, %c0_17] : memref<1x1x4xf32, #tpu.memory_space<vmem>>, vector<1x1x4xf32>
    tpu.vector_store %arg7[%c0_15, %c0_16, %c0_17], %14 {strides = array<i32>} : memref<1x1x4xf32, #tpu.memory_space<vmem>>, vector<1x1x4xf32>,
    return
  }
  func.func @transform_0(%arg0: i32) -> (i32, i32) {
    %c0_i32 = arith.constant 0 : i32
    %c0_i32_0 = arith.constant 0 : i32
    return %arg0, %c0_i32 : i32, i32
  }
  func.func @transform_1(%arg0: i32) -> (i32, i32) {
    %c0_i32 = arith.constant 0 : i32
    %c0_i32_0 = arith.constant 0 : i32
    %c0_i32_1 = arith.constant 0 : i32
    return %c0_i32, %c0_i32_0 : i32, i32
  }
  func.func @transform_2(%arg0: i32) -> (i32, i32) {
    %c0_i32 = arith.constant 0 : i32
    %c0_i32_0 = arith.constant 0 : i32
    return %arg0, %c0_i32 : i32, i32
  }
  func.func @transform_3(%arg0: i32) -> (i32, i32) {
    %c0_i32 = arith.constant 0 : i32
    %c0_i32_0 = arith.constant 0 : i32
    %c0_i32_1 = arith.constant 0 : i32
    return %c0_i32, %c0_i32_0 : i32, i32
  }
  func.func @transform_4(%arg0: i32) -> (i32, i32) {
    %c0_i32 = arith.constant 0 : i32
    %c0_i32_0 = arith.constant 0 : i32
    return %arg0, %c0_i32 : i32, i32
  }
  func.func @transform_5(%arg0: i32) -> (i32, i32, i32) {
    %c0_i32 = arith.constant 0 : i32
    %c0_i32_0 = arith.constant 0 : i32
    %c0_i32_1 = arith.constant 0 : i32
    return %arg0, %c0_i32, %c0_i32_0 : i32, i32, i32
  }
  func.func @transform_6(%arg0: i32) -> (i32, i32, i32) {
    %c0_i32 = arith.constant 0 : i32
    %c0_i32_0 = arith.constant 0 : i32
    %c0_i32_1 = arith.constant 0 : i32
    return %arg0, %c0_i32, %c0_i32_0 : i32, i32, i32
  }
}

module attributes {stable_mosaic.version = 11 : i64} {
  func.func @_affine_act_kernel(%arg0: i32, %arg1: memref<32x128xbf16, #tpu.memory_space<vmem>>, %arg2: memref<1x128xf32, #tpu.memory_space<vmem>>, %arg3: memref<1x128xf32, #tpu.memory_space<vmem>>, %arg4: memref<32x128xbf16, #tpu.memory_space<vmem>>) attributes {dimension_semantics = [#tpu.dimension_semantics<parallel>], iteration_bounds = array<i64: 1>, scalar_prefetch = 0 : i64, scratch_operands = 0 : i64, tpu.core_type = #tpu.core_type<tc>, window_params = [{transform_indices = @transform_0, window_bounds = array<i64: 32, 128>}, {pipeline_mode = #tpu.pipeline_mode<synchronous>, transform_indices = @transform_1, window_bounds = array<i64: 1, 128>}, {pipeline_mode = #tpu.pipeline_mode<synchronous>, transform_indices = @transform_2, window_bounds = array<i64: 1, 128>}, {transform_indices = @transform_3, window_bounds = array<i64: 32, 128>}]} {
    %c0 = arith.constant 0 : index
    %c0_0 = arith.constant 0 : index
    %0 = vector.load %arg1[%c0, %c0_0] : memref<32x128xbf16, #tpu.memory_space<vmem>>, vector<32x128xbf16>
    %1 = arith.extf %0 : vector<32x128xbf16> to vector<32x128xf32>
    %c0_1 = arith.constant 0 : index
    %c0_2 = arith.constant 0 : index
    %2 = vector.load %arg2[%c0_1, %c0_2] : memref<1x128xf32, #tpu.memory_space<vmem>>, vector<1x128xf32>
    %3 = vector.broadcast %2 : vector<1x128xf32> to vector<32x128xf32>
    %4 = arith.mulf %1, %3 : vector<32x128xf32>
    %c0_3 = arith.constant 0 : index
    %c0_4 = arith.constant 0 : index
    %5 = vector.load %arg3[%c0_3, %c0_4] : memref<1x128xf32, #tpu.memory_space<vmem>>, vector<1x128xf32>
    %6 = vector.broadcast %5 : vector<1x128xf32> to vector<32x128xf32>
    %7 = arith.addf %4, %6 : vector<32x128xf32>
    %cst = arith.constant 0.000000e+00 : f32
    %8 = vector.broadcast %cst : f32 to vector<32x128xf32>
    %9 = arith.maximumf %7, %8 : vector<32x128xf32>
    %10 = arith.truncf %9 : vector<32x128xf32> to vector<32x128xbf16>
    %c0_5 = arith.constant 0 : index
    %c0_6 = arith.constant 0 : index
    %11 = vector.load %arg4[%c0_5, %c0_6] : memref<32x128xbf16, #tpu.memory_space<vmem>>, vector<32x128xbf16>
    tpu.vector_store %arg4[%c0_5, %c0_6], %10 {strides = array<i32>} : memref<32x128xbf16, #tpu.memory_space<vmem>>, vector<32x128xbf16>,
    return
  }
  func.func @transform_0(%arg0: i32) -> (i32, i32) {
    %c0_i32 = arith.constant 0 : i32
    %c0_i32_0 = arith.constant 0 : i32
    return %arg0, %c0_i32 : i32, i32
  }
  func.func @transform_1(%arg0: i32) -> (i32, i32) {
    %c0_i32 = arith.constant 0 : i32
    %c0_i32_0 = arith.constant 0 : i32
    %c0_i32_1 = arith.constant 0 : i32
    return %c0_i32, %c0_i32_0 : i32, i32
  }
  func.func @transform_2(%arg0: i32) -> (i32, i32) {
    %c0_i32 = arith.constant 0 : i32
    %c0_i32_0 = arith.constant 0 : i32
    %c0_i32_1 = arith.constant 0 : i32
    return %c0_i32, %c0_i32_0 : i32, i32
  }
  func.func @transform_3(%arg0: i32) -> (i32, i32) {
    %c0_i32 = arith.constant 0 : i32
    %c0_i32_0 = arith.constant 0 : i32
    return %arg0, %c0_i32 : i32, i32
  }
}

module attributes {stable_mosaic.version = 11 : i64} {
  func.func @_batched_gemm_bias_kernel(%arg0: i32, %arg1: i32, %arg2: memref<1x512x4xbf16, #tpu.memory_space<vmem>>, %arg3: memref<1x4x13xbf16, #tpu.memory_space<vmem>>, %arg4: memref<1x13xf32, #tpu.memory_space<vmem>>, %arg5: memref<1x512x13xf32, #tpu.memory_space<vmem>>) attributes {dimension_semantics = [#tpu.dimension_semantics<parallel>, #tpu.dimension_semantics<parallel>], iteration_bounds = array<i64: 1, 2>, scalar_prefetch = 0 : i64, scratch_operands = 0 : i64, tpu.core_type = #tpu.core_type<tc>, window_params = [{transform_indices = @transform_0, window_bounds = array<i64: 1, 512, 4>}, {transform_indices = @transform_1, window_bounds = array<i64: 1, 4, 13>}, {pipeline_mode = #tpu.pipeline_mode<synchronous>, transform_indices = @transform_2, window_bounds = array<i64: 1, 13>}, {transform_indices = @transform_3, window_bounds = array<i64: 1, 512, 13>}]} {
    %c0 = arith.constant 0 : index
    %c0_0 = arith.constant 0 : index
    %c0_1 = arith.constant 0 : index
    %0 = vector.load %arg2[%c0, %c0_0, %c0_1] : memref<1x512x4xbf16, #tpu.memory_space<vmem>>, vector<1x512x4xbf16>
    %1 = vector.shape_cast %0 : vector<1x512x4xbf16> to vector<512x4xbf16>
    %c0_2 = arith.constant 0 : index
    %c0_3 = arith.constant 0 : index
    %c0_4 = arith.constant 0 : index
    %2 = vector.load %arg3[%c0_2, %c0_3, %c0_4] : memref<1x4x13xbf16, #tpu.memory_space<vmem>>, vector<1x4x13xbf16>
    %3 = vector.shape_cast %2 : vector<1x4x13xbf16> to vector<4x13xbf16>
    %cst = arith.constant dense<0.000000e+00> : vector<512x13xf32>
    %4 = tpu.matmul %1, %3, %cst {dimension_numbers = #tpu.dot_dimension_numbers<[1], [0], [0], [1], [0, 0, 1, 1], [], []>} : vector<512x4xbf16>, vector<4x13xbf16>, vector<512x13xf32> -> vector<512x13xf32>
    %c0_5 = arith.constant 0 : index
    %c0_6 = arith.constant 0 : index
    %5 = vector.load %arg4[%c0_5, %c0_6] : memref<1x13xf32, #tpu.memory_space<vmem>>, vector<1x13xf32>
    %6 = vector.broadcast %5 : vector<1x13xf32> to vector<512x13xf32>
    %7 = arith.addf %4, %6 : vector<512x13xf32>
    %8 = vector.shape_cast %7 : vector<512x13xf32> to vector<1x512x13xf32>
    %c0_7 = arith.constant 0 : index
    %c0_8 = arith.constant 0 : index
    %c0_9 = arith.constant 0 : index
    %9 = vector.load %arg5[%c0_7, %c0_8, %c0_9] : memref<1x512x13xf32, #tpu.memory_space<vmem>>, vector<1x512x13xf32>
    tpu.vector_store %arg5[%c0_7, %c0_8, %c0_9], %8 {strides = array<i32>} : memref<1x512x13xf32, #tpu.memory_space<vmem>>, vector<1x512x13xf32>,
    return
  }
  func.func @transform_0(%arg0: i32, %arg1: i32) -> (i32, i32, i32) {
    %c0_i32 = arith.constant 0 : i32
    %c0_i32_0 = arith.constant 0 : i32
    return %arg0, %arg1, %c0_i32 : i32, i32, i32
  }
  func.func @transform_1(%arg0: i32, %arg1: i32) -> (i32, i32, i32) {
    %c0_i32 = arith.constant 0 : i32
    %c0_i32_0 = arith.constant 0 : i32
    %c0_i32_1 = arith.constant 0 : i32
    return %arg0, %c0_i32, %c0_i32_0 : i32, i32, i32
  }
  func.func @transform_2(%arg0: i32, %arg1: i32) -> (i32, i32) {
    %c0_i32 = arith.constant 0 : i32
    %c0_i32_0 = arith.constant 0 : i32
    %c0_i32_1 = arith.constant 0 : i32
    return %c0_i32, %c0_i32_0 : i32, i32
  }
  func.func @transform_3(%arg0: i32, %arg1: i32) -> (i32, i32, i32) {
    %c0_i32 = arith.constant 0 : i32
    %c0_i32_0 = arith.constant 0 : i32
    return %arg0, %arg1, %c0_i32 : i32, i32, i32
  }
}

</mosaic_0001>

<llo_original>
// kernel: tile.53
$region0: #{tile.53}
  #allocation0 [shape = 's32[1]{0}', space=sflag, size = 0x4, scoped, tag = 'scoped memory for tile.53']
  %s0 = inlined_call_operand.vmem [shape: f32[8], index: 0, kind: input, shape index: {}]
  %s1 = inlined_call_operand.vmem [shape: f32[16,8], index: 1, kind: output, shape index: {}]
  // Predicated region
  $region2: #{tile.53} parent=0 // pred_check
    _
  $region3: #{tile.53} parent=0 // pred_check_branch
    %3 = sbr.rel (0) target = $region5
  $region4: #{tile.53} parent=0 // pred_region
    _
  $region5: #{tile.53} parent=0 // pred_fallthru
    _
  %v4 = vld [vmem:[%s0] ss:$0 sm:$0xff]
  %5 = vst [vmem:[%s1] sm:$0xff] %v4
  %s6 = scalar_lea.vmem %s1, 8
  %7 = vst [vmem:[%s6] sm:$0xff] %v4

// kernel: tile.54
$region0: #{tile.54}
  %s0 = inlined_call_operand.vmem [shape: f32[16,8], index: 0, kind: input, shape index: {}]
  %s1 = inlined_call_operand.vmem [shape: f32[1,128], index: 1, kind: output, shape index: {}]
  $region1: #{tile.54} parent=0
    #allocation0 [shape = 'u8[4096]{0}', space=vmem, size = 0x1000, scoped, tag = 'scoped mem for output reshape']
    %v2 = vld [vmem:[%s0] sm:$0x1]
    %vm3 = vcmask 64512
    %4 = vst.msk [vmem:[#allocation0] sm:$0x1] %vm3, %v2
    %s5 = scalar_lea.vmem %s0, 15
    %v6 = vld [vmem:[%s5] sm:$0x1]
    %7 = vrot.lane.b32.xlu0 %v6, 120
    %v8 = vpop.permute.xlu0 %7
    %vm9 = vcmask 1048512
    %10 = vst.msk [vmem:[#allocation0] sm:$0x1] %vm9, %v8
    %s11 = scalar_lea.vmem %s0, 14
    %v12 = vld [vmem:[%s11] sm:$0x1]
    %13 = vrot.lane.b32.xlu0 %v12, 112
    %v14 = vpop.permute.xlu0 %13
    %vm15 = vcmask 982912
    %16 = vst.msk [vmem:[#allocation0] sm:$0x1] %vm15, %v14
    %s17 = scalar_lea.vmem %s0, 13
    %v18 = vld [vmem:[%s17] sm:$0x1]
    %19 = vrot.lane.b32.xlu0 %v18, 104
    %v20 = vpop.permute.xlu0 %19
    %vm21 = vcmask 917312
    %22 = vst.msk [vmem:[#allocation0] sm:$0x1] %vm21, %v20
    %s23 = scalar_lea.vmem %s0, 12
    %v24 = vld [vmem:[%s23] sm:$0x1]
    %25 = vrot.lane.b32.xlu0 %v24, 96
    %v26 = vpop.permute.xlu0 %25
    %vm27 = vcmask 851712
    %28 = vst.msk [vmem:[#allocation0] sm:$0x1] %vm27, %v26
    %s29 = scalar_lea.vmem %s0, 11
    %v30 = vld [vmem:[%s29] sm:$0x1]
    %31 = vrot.lane.b32.xlu0 %v30, 88
    %v32 = vpop.permute.xlu0 %31
    %vm33 = vcmask 786112
    %34 = vst.msk [vmem:[#allocation0] sm:$0x1] %vm33, %v32
    %s35 = scalar_lea.vmem %s0, 10
    %v36 = vld [vmem:[%s35] sm:$0x1]
    %37 = vrot.lane.b32.xlu0 %v36, 80
    %v38 = vpop.permute.xlu0 %37
    %vm39 = vcmask 720512
    %40 = vst.msk [vmem:[#allocation0] sm:$0x1] %vm39, %v38
    %s41 = scalar_lea.vmem %s0, 9
    %v42 = vld [vmem:[%s41] sm:$0x1]
    %43 = vrot.lane.b32.xlu0 %v42, 72
    %v44 = vpop.permute.xlu0 %43
    %vm45 = vcmask 654912
    %46 = vst.msk [vmem:[#allocation0] sm:$0x1] %vm45, %v44
    %s47 = scalar_lea.vmem %s0, 8
    %v48 = vld [vmem:[%s47] sm:$0x1]
    %49 = vrot.lane.b32.xlu0 %v48, 64
    %v50 = vpop.permute.xlu0 %49
    %vm51 = vcmask 589312
    %52 = vst.msk [vmem:[#allocation0] sm:$0x1] %vm51, %v50
    %s53 = scalar_lea.vmem %s0, 7
    %v54 = vld [vmem:[%s53] sm:$0x1]
    %55 = vrot.lane.b32.xlu0 %v54, 56
    %v56 = vpop.permute.xlu0 %55
    %vm57 = vcmask 523712
    %58 = vst.msk [vmem:[#allocation0] sm:$0x1] %vm57, %v56
    %s59 = scalar_lea.vmem %s0, 6
    %v60 = vld [vmem:[%s59] sm:$0x1]
    %61 = vrot.lane.b32.xlu0 %v60, 48
    %v62 = vpop.permute.xlu0 %61
    %vm63 = vcmask 458112
    %64 = vst.msk [vmem:[#allocation0] sm:$0x1] %vm63, %v62
    %s65 = scalar_lea.vmem %s0, 5
    %v66 = vld [vmem:[%s65] sm:$0x1]
    %67 = vrot.lane.b32.xlu0 %v66, 40
    %v68 = vpop.permute.xlu0 %67
    %vm69 = vcmask 392512
    %70 = vst.msk [vmem:[#allocation0] sm:$0x1] %vm69, %v68
    %s71 = scalar_lea.vmem %s0, 4
    %v72 = vld [vmem:[%s71] sm:$0x1]
    %73 = vrot.lane.b32.xlu0 %v72, 32
    %v74 = vpop.permute.xlu0 %73
    %vm75 = vcmask 326912
    %76 = vst.msk [vmem:[#allocation0] sm:$0x1] %vm75, %v74
    %s77 = scalar_lea.vmem %s0, 3
    %v78 = vld [vmem:[%s77] sm:$0x1]
    %79 = vrot.lane.b32.xlu0 %v78, 24
    %v80 = vpop.permute.xlu0 %79
    %vm81 = vcmask 261312
    %82 = vst.msk [vmem:[#allocation0] sm:$0x1] %vm81, %v80
    %s83 = scalar_lea.vmem %s0, 2
    %v84 = vld [vmem:[%s83] sm:$0x1]
    %85 = vrot.lane.b32.xlu0 %v84, 16
    %v86 = vpop.permute.xlu0 %85
    %vm87 = vcmask 195712
    %88 = vst.msk [vmem:[#allocation0] sm:$0x1] %vm87, %v86
    %s89 = scalar_lea.vmem %s0, 1
    %v90 = vld [vmem:[%s89] sm:$0x1]
    %91 = vrot.lane.b32.xlu0 %v90, 8
    %v92 = vpop.permute.xlu0 %91
    %vm93 = vcmask 130112
    %94 = vst.msk [vmem:[#allocation0] sm:$0x1] %vm93, %v92
    %s96 = sshllo.u32 0, 1
    %v98 = vld [vmem:[#allocation0] sm:%s96]
    %s99 = sshllo.u32 0, 1
    %100 = vst [vmem:[%s1] sm:%s99] %v98

// kernel: deep_gcn_forward.17
$region0: #{deep_gcn_forward.17}
  #allocation0 [shape = 'u32[]', space=smem, size = 0x4, offset = 0x4, fixed_abs, tag = 'smem constant byte address 0x4 - core index']
  #allocation1 [shape = 'u32[144,128]{1,0:T(1,128)}', space=vmem, size = 0x12000, scoped, tag = 'internal scratch']
  %s0 = inlined_call_operand.vmem [shape: bf16[8,128], index: 0, kind: input, shape index: {}]
  %s1 = inlined_call_operand.vmem [shape: f32[1,128], index: 1, kind: input, shape index: {}]
  %s2 = inlined_call_operand.vmem [shape: f32[1,128], index: 2, kind: input, shape index: {}]
  %s3 = inlined_call_operand.vmem [shape: bf16[8,128], index: 3, kind: output, shape index: {}]
  %s4 = sld [smem:[#allocation0]]
  $region22: #{deep_gcn_forward.17} parent=0
    _
  %s6 = ssub.s32 1, %s4
  %s7 = scalar_select 0, %s6, %s4
  // Predicated region
  $region2: #{deep_gcn_forward.17} parent=0 // pred_check
    _
  $region3: #{deep_gcn_forward.17} parent=0 // pred_check_branch
    %9 = sbr.rel (0) target = $region5
  $region4: #{deep_gcn_forward.17} parent=0 // pred_region
    _
  $region5: #{deep_gcn_forward.17} parent=0 // pred_fallthru
    _
  // Predicated region
  $region6: #{deep_gcn_forward.17} parent=0 // pred_check
    _
  $region7: #{deep_gcn_forward.17} parent=0 // pred_check_branch
    %11 = sbr.rel (0) target = $region9
  $region8: #{deep_gcn_forward.17} parent=0 // pred_region
    _
  $region9: #{deep_gcn_forward.17} parent=0 // pred_fallthru
    _
  // Predicated region
  $region10: #{deep_gcn_forward.17} parent=0 // pred_check
    _
  $region11: #{deep_gcn_forward.17} parent=0 // pred_check_branch
    %13 = sbr.rel (0) target = $region13
  $region12: #{deep_gcn_forward.17} parent=0 // pred_region
    _
  $region13: #{deep_gcn_forward.17} parent=0 // pred_fallthru
    _
  %v14 = vld [vmem:[%s0] sm:$0xf]
  %v15 = vunpack.c.l.bf16 %v14
  %v16 = vld [vmem:[%s1] sm:$0x1]
  %v18 = vlaneseq
  %v19 = vshrl.u32 %v18, 7
  %v20 = vsub.s32 0, %v19
  %v21 = vrot.slane %v16, %v20
  %v23 = vmul.f32 %v15, %v21
  %v24 = vld [vmem:[%s2] sm:$0x1]
  %v26 = vlaneseq
  %v27 = vshrl.u32 %v26, 7
  %v28 = vsub.s32 0, %v27
  %v29 = vrot.slane %v24, %v28
  %v31 = vadd.f32 %v23, %v29
  %v32 = vpack.c.bf16 %v31, %v31
  %33 = vst [vmem:[%s3] sm:$0xf] %v32
  // Predicated region
  $region14: #{deep_gcn_forward.17} parent=0 // pred_check
    _
  $region15: #{deep_gcn_forward.17} parent=0 // pred_check_branch
    %35 = sbr.rel (0) target = $region17
  $region16: #{deep_gcn_forward.17} parent=0 // pred_region
    _
  $region17: #{deep_gcn_forward.17} parent=0 // pred_fallthru
    _
  // Predicated region
  $region18: #{deep_gcn_forward.17} parent=0 // pred_check
    _
  $region19: #{deep_gcn_forward.17} parent=0 // pred_check_branch
    %37 = sbr.rel (0) target = $region21
  $region20: #{deep_gcn_forward.17} parent=0 // pred_region
    _
  $region21: #{deep_gcn_forward.17} parent=0 // pred_fallthru
    _

// kernel: deep_gcn_forward.16
$region0: #{deep_gcn_forward.16}
  #allocation0 [shape = 'u32[]', space=smem, size = 0x4, offset = 0x4, fixed_abs, tag = 'smem constant byte address 0x4 - core index']
  #allocation1 [shape = 'u32[144,128]{1,0:T(1,128)}', space=vmem, size = 0x12000, scoped, tag = 'internal scratch']
  %s0 = inlined_call_operand.vmem [shape: bf16[128,108], index: 0, kind: input, shape index: {}]
  %s1 = inlined_call_operand.vmem [shape: bf16[108,8], index: 1, kind: input, shape index: {}]
  %s2 = inlined_call_operand.vmem [shape: bf16[128,8], index: 2, kind: output, shape index: {0}]
  %s3 = inlined_call_operand.vmem [shape: f32[1,1,8], index: 3, kind: output, shape index: {1}]
  %s4 = inlined_call_operand.vmem [shape: f32[1,1,8], index: 4, kind: output, shape index: {2}]
  %5 = xla_tuple %s2, %s3, %s4
  %s6 = sld [smem:[#allocation0]]
  $region34: #{deep_gcn_forward.16} parent=0
    _
  %s8 = ssub.s32 1, %s6
  %s9 = scalar_select 0, %s8, %s6
  // Predicated region
  $region2: #{deep_gcn_forward.16} parent=0 // pred_check
    _
  $region3: #{deep_gcn_forward.16} parent=0 // pred_check_branch
    %11 = sbr.rel (0) target = $region5
  $region4: #{deep_gcn_forward.16} parent=0 // pred_region
    _
  $region5: #{deep_gcn_forward.16} parent=0 // pred_fallthru
    _
  // Predicated region
  $region6: #{deep_gcn_forward.16} parent=0 // pred_check
    _
  $region7: #{deep_gcn_forward.16} parent=0 // pred_check_branch
    %13 = sbr.rel (0) target = $region9
  $region8: #{deep_gcn_forward.16} parent=0 // pred_region
    _
  $region9: #{deep_gcn_forward.16} parent=0 // pred_fallthru
    _
  %v15 = vld [vmem:[%s0] sm:$0xf]
  %v16 = vld [vmem:[%s0 + $0x4] sm:$0xf]
  %v17 = vld [vmem:[%s0 + $0x8] sm:$0xf]
  %v18 = vld [vmem:[%s0 + $0xc] sm:$0xf]
  %v19 = vld [vmem:[%s0 + $0x10] sm:$0xf]
  %v20 = vld [vmem:[%s0 + $0x14] sm:$0xf]
  %v21 = vld [vmem:[%s0 + $0x18] sm:$0xf]
  %v22 = vld [vmem:[%s0 + $0x1c] sm:$0xf]
  %v23 = vld [vmem:[%s0 + $0x20] sm:$0xf]
  %v24 = vld [vmem:[%s0 + $0x24] sm:$0xf]
  %v25 = vld [vmem:[%s0 + $0x28] sm:$0xf]
  %v26 = vld [vmem:[%s0 + $0x2c] sm:$0xf]
  %v27 = vld [vmem:[%s0 + $0x30] sm:$0xf]
  %v28 = vld [vmem:[%s0 + $0x34] sm:$0xf]
  %v29 = vld [vmem:[%s0 + $0x38] sm:$0xf]
  %v30 = vld [vmem:[%s0 + $0x3c] sm:$0xf]
  %v31 = vld [vmem:[%s1] sm:$0xf]
  %v32 = vld [vmem:[%s1 + $0x4] sm:$0xf]
  %v33 = vld [vmem:[%s1 + $0x8] sm:$0xf]
  %v34 = vld [vmem:[%s1 + $0xc] sm:$0xf]
  %v35 = vld [vmem:[%s1 + $0x10] sm:$0xf]
  %v36 = vld [vmem:[%s1 + $0x14] sm:$0xf]
  %v37 = vld [vmem:[%s1 + $0x18] sm:$0xf]
  %v38 = vld [vmem:[%s1 + $0x1c] sm:$0xf]
  %v39 = vld [vmem:[%s1 + $0x20] sm:$0xf]
  %v40 = vld [vmem:[%s1 + $0x24] sm:$0xf]
  %v41 = vld [vmem:[%s1 + $0x28] sm:$0xf]
  %v42 = vld [vmem:[%s1 + $0x2c] sm:$0xf]
  %v43 = vld [vmem:[%s1 + $0x30] sm:$0xf]
  %v44 = vld [vmem:[%s1 + $0x34] sm:$0x3]
  %v61 = vunpack.c.l.b16 %v15
  %v62 = vunpack.c.l.b16 %v16
  %v63 = vunpack.c.l.b16 %v17
  %v64 = vunpack.c.l.b16 %v18
  %v65 = vunpack.c.l.b16 %v19
  %v66 = vunpack.c.l.b16 %v20
  %v67 = vunpack.c.l.b16 %v21
  %v68 = vunpack.c.l.b16 %v22
  %v69 = vunpack.c.l.b16 %v23
  %v70 = vunpack.c.l.b16 %v24
  %v71 = vunpack.c.l.b16 %v25
  %v72 = vunpack.c.l.b16 %v26
  %v73 = vunpack.c.l.b16 %v27
  %v74 = vunpack.c.l.b16 %v28
  %v75 = vunpack.c.l.b16 %v29
  %v76 = vunpack.c.l.b16 %v30
  %v77 = vpack.c.b16 %v62, %v61
  %v78 = vpack.c.b16 %v64, %v63
  %v79 = vpack.c.b16 %v66, %v65
  %v80 = vpack.c.b16 %v68, %v67
  %v81 = vpack.c.b16 %v70, %v69
  %v82 = vpack.c.b16 %v72, %v71
  %v83 = vpack.c.b16 %v74, %v73
  %v84 = vpack.c.b16 %v76, %v75
  %v99 = vunpack.c.l.b16 %v31
  %v100 = vunpack.c.l.b16 %v32
  %v101 = vunpack.c.l.b16 %v33
  %v102 = vunpack.c.l.b16 %v34
  %v103 = vunpack.c.l.b16 %v35
  %v104 = vunpack.c.l.b16 %v36
  %v105 = vunpack.c.l.b16 %v37
  %v106 = vunpack.c.l.b16 %v38
  %v107 = vunpack.c.l.b16 %v39
  %v108 = vunpack.c.l.b16 %v40
  %v109 = vunpack.c.l.b16 %v41
  %v110 = vunpack.c.l.b16 %v42
  %v111 = vunpack.c.l.b16 %v43
  %v112 = vunpack.c.l.b16 %v44
  %v113 = vpack.c.b16 %v100, %v99
  %v114 = vpack.c.b16 %v102, %v101
  %v115 = vpack.c.b16 %v104, %v103
  %v116 = vpack.c.b16 %v106, %v105
  %v117 = vpack.c.b16 %v108, %v107
  %v118 = vpack.c.b16 %v110, %v109
  %v119 = vpack.c.b16 %v112, %v111
  %vm126 = vcmask 883712
  %v128 = vsel %vm126, %v77, 0
  %v131 = vsel %vm126, %v78, 0
  %v134 = vsel %vm126, %v79, 0
  %v137 = vsel %vm126, %v80, 0
  %v140 = vsel %vm126, %v81, 0
  %v143 = vsel %vm126, %v82, 0
  %v146 = vsel %vm126, %v83, 0
  %v149 = vsel %vm126, %v84, 0
  %vm151 = vcmask 1045504
  %v153 = vsel %vm151, %v119, 0
  %155 = vmatprep.subr.bf16.mxu0 0
  %156 = vmatpush1.bf16.msra.mxu0 %v113
  %157 = vmatprep.subr.bf16.mxu0 0
  %158 = vmatpush1.bf16.msra.mxu0 %v114
  %159 = vmatprep.subr.bf16.mxu0 0
  %160 = vmatpush1.bf16.msra.mxu0 %v115
  %161 = vmatprep.subr.bf16.mxu0 0
  %162 = vmatpush1.bf16.msra.mxu0 %v116
  %163 = vmatprep.subr.bf16.mxu0 0
  %164 = vmatpush1.bf16.msra.mxu0 %v117
  %165 = vmatprep.subr.bf16.mxu0 0
  %166 = vmatpush1.bf16.msra.mxu0 %v118
  %167 = vmatprep.subr.bf16.mxu0 0
  %168 = vmatpush1.bf16.msra.mxu0 %v153
  %169 = vmatprep.subr.bf16.mxu0 0
  %170 = vmatpush1.bf16.msra.mxu0 0
  %171 = vmatprep.subr.bf16.mxu0 0
  %172 = vmatpush1.bf16.msra.mxu0 0
  %173 = vmatprep.subr.bf16.mxu0 0
  %174 = vmatpush1.bf16.msra.mxu0 0
  %175 = vmatprep.subr.bf16.mxu0 0
  %176 = vmatpush1.bf16.msra.mxu0 0
  %177 = vmatprep.subr.bf16.mxu0 0
  %178 = vmatpush1.bf16.msra.mxu0 0
  %179 = vmatprep.subr.bf16.mxu0 0
  %180 = vmatpush1.bf16.msra.mxu0 0
  %181 = vmatprep.subr.bf16.mxu0 0
  %182 = vmatpush1.bf16.msra.mxu0 0
  %183 = vmatprep.subr.bf16.mxu0 0
  %184 = vmatpush1.bf16.msra.mxu0 0
  %185 = vmatprep.subr.bf16.mxu0 0
  %186 = vmatpush1.bf16.msra.mxu0 0
  %187 = vmatprep.mubr.bf16.mxu0 0
  %188 = vmatmul.mubr.bf16.gmra.mrb[0].mxu0 %v128
  %v189 = vpop.f32.mrb[0].mxu0
  %v190 = vadd.f32 0.0, %v189
  %v191 = vpop.f32.mrb[0].mxu0
  %v192 = vpop.f32.mrb[0].mxu0
  %v193 = vadd.f32 0.0, %v192
  %v194 = vpop.f32.mrb[0].mxu0
  %195 = vmatprep.mubr.bf16.mxu0 0
  %196 = vmatmul.mubr.bf16.gmra.mrb[0].mxu0 %v131
  %v197 = vpop.f32.mrb[0].mxu0
  %v198 = vadd.f32 0.0, %v197
  %v199 = vpop.f32.mrb[0].mxu0
  %v200 = vpop.f32.mrb[0].mxu0
  %v201 = vadd.f32 0.0, %v200
  %v202 = vpop.f32.mrb[0].mxu0
  %203 = vmatprep.mubr.bf16.mxu0 0
  %204 = vmatmul.mubr.bf16.gmra.mrb[0].mxu0 %v134
  %v205 = vpop.f32.mrb[0].mxu0
  %v206 = vadd.f32 0.0, %v205
  %v207 = vpop.f32.mrb[0].mxu0
  %v208 = vpop.f32.mrb[0].mxu0
  %v209 = vadd.f32 0.0, %v208
  %v210 = vpop.f32.mrb[0].mxu0
  %211 = vmatprep.mubr.bf16.mxu0 0
  %212 = vmatmul.mubr.bf16.gmra.mrb[0].mxu0 %v137
  %v213 = vpop.f32.mrb[0].mxu0
  %v214 = vadd.f32 0.0, %v213
  %v215 = vpop.f32.mrb[0].mxu0
  %v216 = vpop.f32.mrb[0].mxu0
  %v217 = vadd.f32 0.0, %v216
  %v218 = vpop.f32.mrb[0].mxu0
  %219 = vmatprep.mubr.bf16.mxu0 0
  %220 = vmatmul.mubr.bf16.gmra.mrb[0].mxu0 %v140
  %v221 = vpop.f32.mrb[0].mxu0
  %v222 = vadd.f32 0.0, %v221
  %v223 = vpop.f32.mrb[0].mxu0
  %v224 = vpop.f32.mrb[0].mxu0
  %v225 = vadd.f32 0.0, %v224
  %v226 = vpop.f32.mrb[0].mxu0
  %227 = vmatprep.mubr.bf16.mxu0 0
  %228 = vmatmul.mubr.bf16.gmra.mrb[0].mxu0 %v143
  %v229 = vpop.f32.mrb[0].mxu0
  %v230 = vadd.f32 0.0, %v229
  %v231 = vpop.f32.mrb[0].mxu0
  %v232 = vpop.f32.mrb[0].mxu0
  %v233 = vadd.f32 0.0, %v232
  %v234 = vpop.f32.mrb[0].mxu0
  %235 = vmatprep.mubr.bf16.mxu0 0
  %236 = vmatmul.mubr.bf16.gmra.mrb[0].mxu0 %v146
  %v237 = vpop.f32.mrb[0].mxu0
  %v238 = vadd.f32 0.0, %v237
  %v239 = vpop.f32.mrb[0].mxu0
  %v240 = vpop.f32.mrb[0].mxu0
  %v241 = vadd.f32 0.0, %v240
  %v242 = vpop.f32.mrb[0].mxu0
  %243 = vmatprep.mubr.bf16.mxu0 0
  %244 = vmatmul.mubr.bf16.gmra.mrb[0].mxu0 %v149
  %v245 = vpop.f32.mrb[0].mxu0
  %v246 = vadd.f32 0.0, %v245
  %v247 = vpop.f32.mrb[0].mxu0
  %v248 = vpop.f32.mrb[0].mxu0
  %v249 = vadd.f32 0.0, %v248
  %v250 = vpop.f32.mrb[0].mxu0
  %251 = vdwg.mxu0
  %v252 = vpack.c.bf16 %v193, %v190
  %v253 = vpack.c.bf16 %v201, %v198
  %v254 = vpack.c.bf16 %v209, %v206
  %v255 = vpack.c.bf16 %v217, %v214
  %v256 = vpack.c.bf16 %v225, %v222
  %v257 = vpack.c.bf16 %v233, %v230
  %v258 = vpack.c.bf16 %v241, %v238
  %v259 = vpack.c.bf16 %v249, %v246
  %v268 = vunpack.c.l.b16 %v252
  %v269 = vunpack.c.h.b16 %v252
  %v270 = vunpack.c.l.b16 %v253
  %v271 = vunpack.c.h.b16 %v253
  %v272 = vunpack.c.l.b16 %v254
  %v273 = vunpack.c.h.b16 %v254
  %v274 = vunpack.c.l.b16 %v255
  %v275 = vunpack.c.h.b16 %v255
  %v276 = vunpack.c.l.b16 %v256
  %v277 = vunpack.c.h.b16 %v256
  %v278 = vunpack.c.l.b16 %v257
  %v279 = vunpack.c.h.b16 %v257
  %v280 = vunpack.c.l.b16 %v258
  %v281 = vunpack.c.h.b16 %v258
  %v282 = vunpack.c.l.b16 %v259
  %v283 = vunpack.c.h.b16 %v259
  %v284 = vpack.c.b16 %v268, %v268
  %v285 = vpack.c.b16 %v269, %v269
  %v286 = vpack.c.b16 %v270, %v270
  %v287 = vpack.c.b16 %v271, %v271
  %v288 = vpack.c.b16 %v272, %v272
  %v289 = vpack.c.b16 %v273, %v273
  %v290 = vpack.c.b16 %v274, %v274
  %v291 = vpack.c.b16 %v275, %v275
  %v292 = vpack.c.b16 %v276, %v276
  %v293 = vpack.c.b16 %v277, %v277
  %v294 = vpack.c.b16 %v278, %v278
  %v295 = vpack.c.b16 %v279, %v279
  %v296 = vpack.c.b16 %v280, %v280
  %v297 = vpack.c.b16 %v281, %v281
  %v298 = vpack.c.b16 %v282, %v282
  %v299 = vpack.c.b16 %v283, %v283
  %vm316 = vcmask 60416
  %317 = vst.msk [vmem:[%s2] sm:$0xf] %vm316, %v284
  %318 = vst.msk [vmem:[%s2 + $0x4] sm:$0xf] %vm316, %v285
  %319 = vst.msk [vmem:[%s2 + $0x8] sm:$0xf] %vm316, %v286
  %320 = vst.msk [vmem:[%s2 + $0xc] sm:$0xf] %vm316, %v287
  %321 = vst.msk [vmem:[%s2 + $0x10] sm:$0xf] %vm316, %v288
  %322 = vst.msk [vmem:[%s2 + $0x14] sm:$0xf] %vm316, %v289
  %323 = vst.msk [vmem:[%s2 + $0x18] sm:$0xf] %vm316, %v290
  %324 = vst.msk [vmem:[%s2 + $0x1c] sm:$0xf] %vm316, %v291
  %325 = vst.msk [vmem:[%s2 + $0x20] sm:$0xf] %vm316, %v292
  %326 = vst.msk [vmem:[%s2 + $0x24] sm:$0xf] %vm316, %v293
  %327 = vst.msk [vmem:[%s2 + $0x28] sm:$0xf] %vm316, %v294
  %328 = vst.msk [vmem:[%s2 + $0x2c] sm:$0xf] %vm316, %v295
  %329 = vst.msk [vmem:[%s2 + $0x30] sm:$0xf] %vm316, %v296
  %330 = vst.msk [vmem:[%s2 + $0x34] sm:$0xf] %vm316, %v297
  %331 = vst.msk [vmem:[%s2 + $0x38] sm:$0xf] %vm316, %v298
  %332 = vst.msk [vmem:[%s2 + $0x3c] sm:$0xf] %vm316, %v299
  %vm333 = vcmask 64512
  %v334 = vsel %vm333, %v190, 0.0
  %v335 = vsel %vm333, %v193, 0.0
  %v336 = vadd.f32 %v334, %v335
  %v337 = vsel %vm333, %v198, 0.0
  %v338 = vadd.f32 %v336, %v337
  %v339 = vsel %vm333, %v201, 0.0
  %v340 = vadd.f32 %v338, %v339
  %v341 = vsel %vm333, %v206, 0.0
  %v342 = vadd.f32 %v340, %v341
  %v343 = vsel %vm333, %v209, 0.0
  %v344 = vadd.f32 %v342, %v343
  %v345 = vsel %vm333, %v214, 0.0
  %v346 = vadd.f32 %v344, %v345
  %v347 = vsel %vm333, %v217, 0.0
  %v348 = vadd.f32 %v346, %v347
  %v349 = vsel %vm333, %v222, 0.0
  %v350 = vadd.f32 %v348, %v349
  %v351 = vsel %vm333, %v225, 0.0
  %v352 = vadd.f32 %v350, %v351
  %v353 = vsel %vm333, %v230, 0.0
  %v354 = vadd.f32 %v352, %v353
  %v355 = vsel %vm333, %v233, 0.0
  %v356 = vadd.f32 %v354, %v355
  %v357 = vsel %vm333, %v238, 0.0
  %v358 = vadd.f32 %v356, %v357
  %v359 = vsel %vm333, %v241, 0.0
  %v360 = vadd.f32 %v358, %v359
  %v361 = vsel %vm333, %v246, 0.0
  %v362 = vadd.f32 %v360, %v361
  %v363 = vsel %vm333, %v249, 0.0
  %v364 = vadd.f32 %v362, %v363
  %v365 = vrot.slane %v364, 4
  %v366 = vadd.f32 %v364, %v365
  %v367 = vrot.slane %v366, 2
  %v368 = vadd.f32 %v366, %v367
  %v369 = vrot.slane %v368, 1
  %v370 = vadd.f32 %v368, %v369
  %vm371 = vcmask 57344
  %372 = vst.msk [vmem:[%s3] sm:$0x1] %vm371, %v370
  %v373 = vmul.f32 %v190, %v190
  %v374 = vmul.f32 %v193, %v193
  %v375 = vmul.f32 %v198, %v198
  %v376 = vmul.f32 %v201, %v201
  %v377 = vmul.f32 %v206, %v206
  %v378 = vmul.f32 %v209, %v209
  %v379 = vmul.f32 %v214, %v214
  %v380 = vmul.f32 %v217, %v217
  %v381 = vmul.f32 %v222, %v222
  %v382 = vmul.f32 %v225, %v225
  %v383 = vmul.f32 %v230, %v230
  %v384 = vmul.f32 %v233, %v233
  %v385 = vmul.f32 %v238, %v238
  %v386 = vmul.f32 %v241, %v241
  %v387 = vmul.f32 %v246, %v246
  %v388 = vmul.f32 %v249, %v249
  %v389 = vsel %vm333, %v373, 0.0
  %v390 = vsel %vm333, %v374, 0.0
  %v391 = vadd.f32 %v389, %v390
  %v392 = vsel %vm333, %v375, 0.0
  %v393 = vadd.f32 %v391, %v392
  %v394 = vsel %vm333, %v376, 0.0
  %v395 = vadd.f32 %v393, %v394
  %v396 = vsel %vm333, %v377, 0.0
  %v397 = vadd.f32 %v395, %v396
  %v398 = vsel %vm333, %v378, 0.0
  %v399 = vadd.f32 %v397, %v398
  %v400 = vsel %vm333, %v379, 0.0
  %v401 = vadd.f32 %v399, %v400
  %v402 = vsel %vm333, %v380, 0.0
  %v403 = vadd.f32 %v401, %v402
  %v404 = vsel %vm333, %v381, 0.0
  %v405 = vadd.f32 %v403, %v404
  %v406 = vsel %vm333, %v382, 0.0
  %v407 = vadd.f32 %v405, %v406
  %v408 = vsel %vm333, %v383, 0.0
  %v409 = vadd.f32 %v407, %v408
  %v410 = vsel %vm333, %v384, 0.0
  %v411 = vadd.f32 %v409, %v410
  %v412 = vsel %vm333, %v385, 0.0
  %v413 = vadd.f32 %v411, %v412
  %v414 = vsel %vm333, %v386, 0.0
  %v415 = vadd.f32 %v413, %v414
  %v416 = vsel %vm333, %v387, 0.0
  %v417 = vadd.f32 %v415, %v416
  %v418 = vsel %vm333, %v388, 0.0
  %v419 = vadd.f32 %v417, %v418
  %v420 = vrot.slane %v419, 4
  %v421 = vadd.f32 %v419, %v420
  %v422 = vrot.slane %v421, 2
  %v423 = vadd.f32 %v421, %v422
  %v424 = vrot.slane %v423, 1
  %v425 = vadd.f32 %v423, %v424
  %426 = vst.msk [vmem:[%s4] sm:$0x1] %vm371, %v425
  // Predicated region
  $region10: #{deep_gcn_forward.16} parent=0 // pred_check
    _
  $region11: #{deep_gcn_forward.16} parent=0 // pred_check_branch
    %428 = sbr.rel (0) target = $region13
  $region12: #{deep_gcn_forward.16} parent=0 // pred_region
    _
  $region13: #{deep_gcn_forward.16} parent=0 // pred_fallthru
    _
  // Predicated region
  $region14: #{deep_gcn_forward.16} parent=0 // pred_check
    _
  $region15: #{deep_gcn_forward.16} parent=0 // pred_check_branch
    %430 = sbr.rel (0) target = $region17
  $region16: #{deep_gcn_forward.16} parent=0 // pred_region
    _
  $region17: #{deep_gcn_forward.16} parent=0 // pred_fallthru
    _
  // Predicated region
  $region18: #{deep_gcn_forward.16} parent=0 // pred_check
    _
  $region19: #{deep_gcn_forward.16} parent=0 // pred_check_branch
    %432 = sbr.rel (0) target = $region21
  $region20: #{deep_gcn_forward.16} parent=0 // pred_region
    _
  $region21: #{deep_gcn_forward.16} parent=0 // pred_fallthru
    _
  // Predicated region
  $region22: #{deep_gcn_forward.16} parent=0 // pred_check
    _
  $region23: #{deep_gcn_forward.16} parent=0 // pred_check_branch
    %434 = sbr.rel (0) target = $region25
  $region24: #{deep_gcn_forward.16} parent=0 // pred_region
    _
  $region25: #{deep_gcn_forward.16} parent=0 // pred_fallthru
    _
  // Predicated region
  $region26: #{deep_gcn_forward.16} parent=0 // pred_check
    _
  $region27: #{deep_gcn_forward.16} parent=0 // pred_check_branch
    %436 = sbr.rel (0) target = $region29
  $region28: #{deep_gcn_forward.16} parent=0 // pred_region
    _
  $region29: #{deep_gcn_forward.16} parent=0 // pred_fallthru
    _
  // Predicated region
  $region30: #{deep_gcn_forward.16} parent=0 // pred_check
    _
  $region31: #{deep_gcn_forward.16} parent=0 // pred_check_branch
    %438 = sbr.rel (0) target = $region33
  $region32: #{deep_gcn_forward.16} parent=0 // pred_region
    _
  $region33: #{deep_gcn_forward.16} parent=0 // pred_fallthru
    _

// kernel: tile.63
$region0: #{tile.63}
  #allocation0 [shape = 's32[1]{0}', space=sflag, size = 0x4, scoped, tag = 'scoped memory for tile.63']
  %s0 = inlined_call_operand.vmem [shape: f32[16], index: 0, kind: input, shape index: {}]
  %s1 = inlined_call_operand.vmem [shape: f32[8,16], index: 1, kind: output, shape index: {}]
  // Predicated region
  $region2: #{tile.63} parent=0 // pred_check
    _
  $region3: #{tile.63} parent=0 // pred_check_branch
    %3 = sbr.rel (0) target = $region5
  $region4: #{tile.63} parent=0 // pred_region
    _
  $region5: #{tile.63} parent=0 // pred_fallthru
    _
  %v4 = vld [vmem:[%s0] ss:$0 sm:$0xff]
  %5 = vst [vmem:[%s1] sm:$0xff] %v4

// kernel: tile.64
$region0: #{tile.64}
  %s0 = inlined_call_operand.vmem [shape: f32[8,16], index: 0, kind: input, shape index: {}]
  %s1 = inlined_call_operand.vmem [shape: f32[1,128], index: 1, kind: output, shape index: {}]
  $region1: #{tile.64} parent=0
    #allocation0 [shape = 'u8[4096]{0}', space=vmem, size = 0x1000, scoped, tag = 'scoped mem for output reshape']
    %v2 = vld [vmem:[%s0] sm:$0x1]
    %vm3 = vcmask 130048
    %4 = vst.msk [vmem:[#allocation0] sm:$0x1] %vm3, %v2
    %s5 = scalar_lea.vmem %s0, 7
    %v6 = vld [vmem:[%s5] sm:$0x1]
    %7 = vrot.lane.b32.xlu0 %v6, 112
    %v8 = vpop.permute.xlu0 %7
    %vm9 = vcmask 1048448
    %10 = vst.msk [vmem:[#allocation0] sm:$0x1] %vm9, %v8
    %s11 = scalar_lea.vmem %s0, 6
    %v12 = vld [vmem:[%s11] sm:$0x1]
    %13 = vrot.lane.b32.xlu0 %v12, 96
    %v14 = vpop.permute.xlu0 %13
    %vm15 = vcmask 917248
    %16 = vst.msk [vmem:[#allocation0] sm:$0x1] %vm15, %v14
    %s17 = scalar_lea.vmem %s0, 5
    %v18 = vld [vmem:[%s17] sm:$0x1]
    %19 = vrot.lane.b32.xlu0 %v18, 80
    %v20 = vpop.permute.xlu0 %19
    %vm21 = vcmask 786048
    %22 = vst.msk [vmem:[#allocation0] sm:$0x1] %vm21, %v20
    %s23 = scalar_lea.vmem %s0, 4
    %v24 = vld [vmem:[%s23] sm:$0x1]
    %25 = vrot.lane.b32.xlu0 %v24, 64
    %v26 = vpop.permute.xlu0 %25
    %vm27 = vcmask 654848
    %28 = vst.msk [vmem:[#allocation0] sm:$0x1] %vm27, %v26
    %s29 = scalar_lea.vmem %s0, 3
    %v30 = vld [vmem:[%s29] sm:$0x1]
    %31 = vrot.lane.b32.xlu0 %v30, 48
    %v32 = vpop.permute.xlu0 %31
    %vm33 = vcmask 523648
    %34 = vst.msk [vmem:[#allocation0] sm:$0x1] %vm33, %v32
    %s35 = scalar_lea.vmem %s0, 2
    %v36 = vld [vmem:[%s35] sm:$0x1]
    %37 = vrot.lane.b32.xlu0 %v36, 32
    %v38 = vpop.permute.xlu0 %37
    %vm39 = vcmask 392448
    %40 = vst.msk [vmem:[#allocation0] sm:$0x1] %vm39, %v38
    %s41 = scalar_lea.vmem %s0, 1
    %v42 = vld [vmem:[%s41] sm:$0x1]
    %43 = vrot.lane.b32.xlu0 %v42, 16
    %v44 = vpop.permute.xlu0 %43
    %vm45 = vcmask 261248
    %46 = vst.msk [vmem:[#allocation0] sm:$0x1] %vm45, %v44
    %s48 = sshllo.u32 0, 1
    %v50 = vld [vmem:[#allocation0] sm:%s48]
    %s51 = sshllo.u32 0, 1
    %52 = vst [vmem:[%s1] sm:%s51] %v50

// kernel: deep_gcn_forward.18
$region0: #{deep_gcn_forward.18}
  #allocation0 [shape = 'u32[]', space=smem, size = 0x4, offset = 0x4, fixed_abs, tag = 'smem constant byte address 0x4 - core index']
  #allocation1 [shape = 'u32[144,128]{1,0:T(1,128)}', space=vmem, size = 0x12000, scoped, tag = 'internal scratch']
  %s0 = inlined_call_operand.vmem [shape: bf16[16,216], index: 0, kind: input, shape index: {}]
  %s1 = inlined_call_operand.vmem [shape: bf16[216,16], index: 1, kind: input, shape index: {}]
  %s2 = inlined_call_operand.vmem [shape: bf16[16,16], index: 2, kind: output, shape index: {0}]
  %s3 = inlined_call_operand.vmem [shape: f32[1,1,16], index: 3, kind: output, shape index: {1}]
  %s4 = inlined_call_operand.vmem [shape: f32[1,1,16], index: 4, kind: output, shape index: {2}]
  %5 = xla_tuple %s2, %s3, %s4
  %s6 = sld [smem:[#allocation0]]
  $region34: #{deep_gcn_forward.18} parent=0
    _
  %s8 = ssub.s32 1, %s6
  %s9 = scalar_select 0, %s8, %s6
  // Predicated region
  $region2: #{deep_gcn_forward.18} parent=0 // pred_check
    _
  $region3: #{deep_gcn_forward.18} parent=0 // pred_check_branch
    %11 = sbr.rel (0) target = $region5
  $region4: #{deep_gcn_forward.18} parent=0 // pred_region
    _
  $region5: #{deep_gcn_forward.18} parent=0 // pred_fallthru
    _
  // Predicated region
  $region6: #{deep_gcn_forward.18} parent=0 // pred_check
    _
  $region7: #{deep_gcn_forward.18} parent=0 // pred_check_branch
    %13 = sbr.rel (0) target = $region9
  $region8: #{deep_gcn_forward.18} parent=0 // pred_region
    _
  $region9: #{deep_gcn_forward.18} parent=0 // pred_fallthru
    _
  %v15 = vld [vmem:[%s0] sm:$0xff]
  %v16 = vld [vmem:[%s0 + $0x8] sm:$0xff]
  %v17 = vld [vmem:[%s1] sm:$0xf]
  %v18 = vld [vmem:[%s1 + $0x4] sm:$0xf]
  %v19 = vld [vmem:[%s1 + $0x8] sm:$0xf]
  %v20 = vld [vmem:[%s1 + $0xc] sm:$0xf]
  %v21 = vld [vmem:[%s1 + $0x10] sm:$0xf]
  %v22 = vld [vmem:[%s1 + $0x14] sm:$0xf]
  %v23 = vld [vmem:[%s1 + $0x18] sm:$0xf]
  %v24 = vld [vmem:[%s1 + $0x1c] sm:$0xf]
  %v25 = vld [vmem:[%s1 + $0x20] sm:$0xf]
  %v26 = vld [vmem:[%s1 + $0x24] sm:$0xf]
  %v27 = vld [vmem:[%s1 + $0x28] sm:$0xf]
  %v28 = vld [vmem:[%s1 + $0x2c] sm:$0xf]
  %v29 = vld [vmem:[%s1 + $0x30] sm:$0xf]
  %v30 = vld [vmem:[%s1 + $0x34] sm:$0xf]
  %v31 = vld [vmem:[%s1 + $0x38] sm:$0xf]
  %v32 = vld [vmem:[%s1 + $0x3c] sm:$0xf]
  %v33 = vld [vmem:[%s1 + $0x40] sm:$0xf]
  %v34 = vld [vmem:[%s1 + $0x44] sm:$0xf]
  %v35 = vld [vmem:[%s1 + $0x48] sm:$0xf]
  %v36 = vld [vmem:[%s1 + $0x4c] sm:$0xf]
  %v37 = vld [vmem:[%s1 + $0x50] sm:$0xf]
  %v38 = vld [vmem:[%s1 + $0x54] sm:$0xf]
  %v39 = vld [vmem:[%s1 + $0x58] sm:$0xf]
  %v40 = vld [vmem:[%s1 + $0x5c] sm:$0xf]
  %v41 = vld [vmem:[%s1 + $0x60] sm:$0xf]
  %v42 = vld [vmem:[%s1 + $0x64] sm:$0xf]
  %v43 = vld [vmem:[%s1 + $0x68] sm:$0xf]
  %v46 = vunpack.c.l.b16 %v15
  %v47 = vunpack.c.h.b16 %v15
  %v48 = vunpack.c.l.b16 %v16
  %v49 = vunpack.c.h.b16 %v16
  %v50 = vpack.c.b16 %v48, %v46
  %v51 = vpack.c.b16 %v49, %v47
  %v80 = vunpack.c.l.b16 %v17
  %v81 = vunpack.c.l.b16 %v18
  %v82 = vunpack.c.l.b16 %v19
  %v83 = vunpack.c.l.b16 %v20
  %v84 = vunpack.c.l.b16 %v21
  %v85 = vunpack.c.l.b16 %v22
  %v86 = vunpack.c.l.b16 %v23
  %v87 = vunpack.c.l.b16 %v24
  %v88 = vunpack.c.l.b16 %v25
  %v89 = vunpack.c.l.b16 %v26
  %v90 = vunpack.c.l.b16 %v27
  %v91 = vunpack.c.l.b16 %v28
  %v92 = vunpack.c.l.b16 %v29
  %v93 = vunpack.c.l.b16 %v30
  %v94 = vunpack.c.l.b16 %v31
  %v95 = vunpack.c.l.b16 %v32
  %v96 = vunpack.c.l.b16 %v33
  %v97 = vunpack.c.l.b16 %v34
  %v98 = vunpack.c.l.b16 %v35
  %v99 = vunpack.c.l.b16 %v36
  %v100 = vunpack.c.l.b16 %v37
  %v101 = vunpack.c.l.b16 %v38
  %v102 = vunpack.c.l.b16 %v39
  %v103 = vunpack.c.l.b16 %v40
  %v104 = vunpack.c.l.b16 %v41
  %v105 = vunpack.c.l.b16 %v42
  %v106 = vunpack.c.l.b16 %v43
  %v107 = vpack.c.b16 %v81, %v80
  %v108 = vpack.c.b16 %v83, %v82
  %v109 = vpack.c.b16 %v85, %v84
  %v110 = vpack.c.b16 %v87, %v86
  %v111 = vpack.c.b16 %v89, %v88
  %v112 = vpack.c.b16 %v91, %v90
  %v113 = vpack.c.b16 %v93, %v92
  %v114 = vpack.c.b16 %v95, %v94
  %v115 = vpack.c.b16 %v97, %v96
  %v116 = vpack.c.b16 %v99, %v98
  %v117 = vpack.c.b16 %v101, %v100
  %v118 = vpack.c.b16 %v103, %v102
  %v119 = vpack.c.b16 %v105, %v104
  %v120 = vpack.c.b16 %v106, %v106
  %vm134 = vcmask 719872
  %v136 = vsel %vm134, %v51, 0
  %vm138 = vcmask 1043456
  %v140 = vsel %vm138, %v120, 0
  %142 = vmatprep.subr.bf16.mxu0 0
  %143 = vmatpush1.bf16.msra.mxu0 %v107
  %144 = vmatprep.subr.bf16.mxu0 0
  %145 = vmatpush1.bf16.msra.mxu0 %v108
  %146 = vmatprep.subr.bf16.mxu0 0
  %147 = vmatpush1.bf16.msra.mxu0 %v109
  %148 = vmatprep.subr.bf16.mxu0 0
  %149 = vmatpush1.bf16.msra.mxu0 %v110
  %150 = vmatprep.subr.bf16.mxu0 0
  %151 = vmatpush1.bf16.msra.mxu0 %v111
  %152 = vmatprep.subr.bf16.mxu0 0
  %153 = vmatpush1.bf16.msra.mxu0 %v112
  %154 = vmatprep.subr.bf16.mxu0 0
  %155 = vmatpush1.bf16.msra.mxu0 %v113
  %156 = vmatprep.subr.bf16.mxu0 0
  %157 = vmatpush1.bf16.msra.mxu0 %v114
  %158 = vmatprep.subr.bf16.mxu0 0
  %159 = vmatpush1.bf16.msra.mxu0 %v115
  %160 = vmatprep.subr.bf16.mxu0 0
  %161 = vmatpush1.bf16.msra.mxu0 %v116
  %162 = vmatprep.subr.bf16.mxu0 0
  %163 = vmatpush1.bf16.msra.mxu0 %v117
  %164 = vmatprep.subr.bf16.mxu0 0
  %165 = vmatpush1.bf16.msra.mxu0 %v118
  %166 = vmatprep.subr.bf16.mxu0 0
  %167 = vmatpush1.bf16.msra.mxu0 %v119
  %168 = vmatprep.subr.bf16.mxu0 0
  %169 = vmatpush1.bf16.msra.mxu0 %v140
  %170 = vmatprep.subr.bf16.mxu0 0
  %171 = vmatpush1.bf16.msra.mxu0 0
  %172 = vmatprep.subr.bf16.mxu0 0
  %173 = vmatpush1.bf16.msra.mxu0 0
  %174 = vmatprep.mubr.bf16.mxu0 %v136
  %175 = vmatmul.mubr.bf16.gmra.mrb[0].mxu0 %v50
  %v176 = vpop.f32.mrb[0].mxu0
  %v177 = vadd.f32 0.0, %v176
  %v178 = vpop.f32.mrb[0].mxu0
  %v179 = vpop.f32.mrb[0].mxu0
  %v180 = vadd.f32 0.0, %v179
  %v181 = vpop.f32.mrb[0].mxu0
  %182 = vdwg.mxu0
  %v183 = vpack.c.bf16 %v180, %v177
  %v185 = vunpack.c.l.b16 %v183
  %v186 = vunpack.c.h.b16 %v183
  %v187 = vpack.c.b16 %v185, %v185
  %v188 = vpack.c.b16 %v186, %v186
  %vm191 = vcmask 125952
  %192 = vst.msk [vmem:[%s2] sm:$0xf] %vm191, %v187
  %193 = vst.msk [vmem:[%s2 + $0x4] sm:$0xf] %vm191, %v188
  %vm194 = vcmask 130048
  %v195 = vsel %vm194, %v177, 0.0
  %v196 = vsel %vm194, %v180, 0.0
  %v197 = vadd.f32 %v195, %v196
  %v198 = vrot.slane %v197, 4
  %v199 = vadd.f32 %v197, %v198
  %v200 = vrot.slane %v199, 2
  %v201 = vadd.f32 %v199, %v200
  %v202 = vrot.slane %v201, 1
  %v203 = vadd.f32 %v201, %v202
  %vm204 = vcmask 122880
  %205 = vst.msk [vmem:[%s3] sm:$0x1] %vm204, %v203
  %v206 = vmul.f32 %v177, %v177
  %v207 = vmul.f32 %v180, %v180
  %v208 = vsel %vm194, %v206, 0.0
  %v209 = vsel %vm194, %v207, 0.0
  %v210 = vadd.f32 %v208, %v209
  %v211 = vrot.slane %v210, 4
  %v212 = vadd.f32 %v210, %v211
  %v213 = vrot.slane %v212, 2
  %v214 = vadd.f32 %v212, %v213
  %v215 = vrot.slane %v214, 1
  %v216 = vadd.f32 %v214, %v215
  %217 = vst.msk [vmem:[%s4] sm:$0x1] %vm204, %v216
  // Predicated region
  $region10: #{deep_gcn_forward.18} parent=0 // pred_check
    _
  $region11: #{deep_gcn_forward.18} parent=0 // pred_check_branch
    %219 = sbr.rel (0) target = $region13
  $region12: #{deep_gcn_forward.18} parent=0 // pred_region
    _
  $region13: #{deep_gcn_forward.18} parent=0 // pred_fallthru
    _
  // Predicated region
  $region14: #{deep_gcn_forward.18} parent=0 // pred_check
    _
  $region15: #{deep_gcn_forward.18} parent=0 // pred_check_branch
    %221 = sbr.rel (0) target = $region17
  $region16: #{deep_gcn_forward.18} parent=0 // pred_region
    _
  $region17: #{deep_gcn_forward.18} parent=0 // pred_fallthru
    _
  // Predicated region
  $region18: #{deep_gcn_forward.18} parent=0 // pred_check
    _
  $region19: #{deep_gcn_forward.18} parent=0 // pred_check_branch
    %223 = sbr.rel (0) target = $region21
  $region20: #{deep_gcn_forward.18} parent=0 // pred_region
    _
  $region21: #{deep_gcn_forward.18} parent=0 // pred_fallthru
    _
  // Predicated region
  $region22: #{deep_gcn_forward.18} parent=0 // pred_check
    _
  $region23: #{deep_gcn_forward.18} parent=0 // pred_check_branch
    %225 = sbr.rel (0) target = $region25
  $region24: #{deep_gcn_forward.18} parent=0 // pred_region
    _
  $region25: #{deep_gcn_forward.18} parent=0 // pred_fallthru
    _
  // Predicated region
  $region26: #{deep_gcn_forward.18} parent=0 // pred_check
    _
  $region27: #{deep_gcn_forward.18} parent=0 // pred_check_branch
    %227 = sbr.rel (0) target = $region29
  $region28: #{deep_gcn_forward.18} parent=0 // pred_region
    _
  $region29: #{deep_gcn_forward.18} parent=0 // pred_fallthru
    _
  // Predicated region
  $region30: #{deep_gcn_forward.18} parent=0 // pred_check
    _
  $region31: #{deep_gcn_forward.18} parent=0 // pred_check_branch
    %229 = sbr.rel (0) target = $region33
  $region32: #{deep_gcn_forward.18} parent=0 // pred_region
    _
  $region33: #{deep_gcn_forward.18} parent=0 // pred_fallthru
    _

// kernel: deep_gcn_forward.20
$region0: #{deep_gcn_forward.20}
  #allocation0 [shape = 'u32[]', space=smem, size = 0x4, offset = 0x4, fixed_abs, tag = 'smem constant byte address 0x4 - core index']
  #allocation1 [shape = 'u32[144,128]{1,0:T(1,128)}', space=vmem, size = 0x12000, scoped, tag = 'internal scratch']
  %s0 = inlined_call_operand.vmem [shape: bf16[8,432], index: 0, kind: input, shape index: {}]
  %s1 = inlined_call_operand.vmem [shape: bf16[432,32], index: 1, kind: input, shape index: {}]
  %s2 = inlined_call_operand.vmem [shape: bf16[8,32], index: 2, kind: output, shape index: {0}]
  %s3 = inlined_call_operand.vmem [shape: f32[1,1,32], index: 3, kind: output, shape index: {1}]
  %s4 = inlined_call_operand.vmem [shape: f32[1,1,32], index: 4, kind: output, shape index: {2}]
  %5 = xla_tuple %s2, %s3, %s4
  %s6 = sld [smem:[#allocation0]]
  $region34: #{deep_gcn_forward.20} parent=0
    _
  %s8 = ssub.s32 1, %s6
  %s9 = scalar_select 0, %s8, %s6
  // Predicated region
  $region2: #{deep_gcn_forward.20} parent=0 // pred_check
    _
  $region3: #{deep_gcn_forward.20} parent=0 // pred_check_branch
    %11 = sbr.rel (0) target = $region5
  $region4: #{deep_gcn_forward.20} parent=0 // pred_region
    _
  $region5: #{deep_gcn_forward.20} parent=0 // pred_fallthru
    _
  // Predicated region
  $region6: #{deep_gcn_forward.20} parent=0 // pred_check
    _
  $region7: #{deep_gcn_forward.20} parent=0 // pred_check_branch
    %13 = sbr.rel (0) target = $region9
  $region8: #{deep_gcn_forward.20} parent=0 // pred_region
    _
  $region9: #{deep_gcn_forward.20} parent=0 // pred_fallthru
    _
  %v15 = vld [vmem:[%s0] sm:$0xff]
  %v16 = vld [vmem:[%s0 + $0x8] sm:$0xff]
  %v17 = vld [vmem:[%s1] sm:$0xf]
  %v18 = vld [vmem:[%s1 + $0x4] sm:$0xf]
  %v19 = vld [vmem:[%s1 + $0x8] sm:$0xf]
  %v20 = vld [vmem:[%s1 + $0xc] sm:$0xf]
  %v21 = vld [vmem:[%s1 + $0x10] sm:$0xf]
  %v22 = vld [vmem:[%s1 + $0x14] sm:$0xf]
  %v23 = vld [vmem:[%s1 + $0x18] sm:$0xf]
  %v24 = vld [vmem:[%s1 + $0x1c] sm:$0xf]
  %v25 = vld [vmem:[%s1 + $0x20] sm:$0xf]
  %v26 = vld [vmem:[%s1 + $0x24] sm:$0xf]
  %v27 = vld [vmem:[%s1 + $0x28] sm:$0xf]
  %v28 = vld [vmem:[%s1 + $0x2c] sm:$0xf]
  %v29 = vld [vmem:[%s1 + $0x30] sm:$0xf]
  %v30 = vld [vmem:[%s1 + $0x34] sm:$0xf]
  %v31 = vld [vmem:[%s1 + $0x38] sm:$0xf]
  %v32 = vld [vmem:[%s1 + $0x3c] sm:$0xf]
  %v33 = vld [vmem:[%s1 + $0x40] sm:$0xf]
  %v34 = vld [vmem:[%s1 + $0x44] sm:$0xf]
  %v35 = vld [vmem:[%s1 + $0x48] sm:$0xf]
  %v36 = vld [vmem:[%s1 + $0x4c] sm:$0xf]
  %v37 = vld [vmem:[%s1 + $0x50] sm:$0xf]
  %v38 = vld [vmem:[%s1 + $0x54] sm:$0xf]
  %v39 = vld [vmem:[%s1 + $0x58] sm:$0xf]
  %v40 = vld [vmem:[%s1 + $0x5c] sm:$0xf]
  %v41 = vld [vmem:[%s1 + $0x60] sm:$0xf]
  %v42 = vld [vmem:[%s1 + $0x64] sm:$0xf]
  %v43 = vld [vmem:[%s1 + $0x68] sm:$0xf]
  %v44 = vld [vmem:[%s1 + $0x6c] sm:$0xf]
  %v45 = vld [vmem:[%s1 + $0x70] sm:$0xf]
  %v46 = vld [vmem:[%s1 + $0x74] sm:$0xf]
  %v47 = vld [vmem:[%s1 + $0x78] sm:$0xf]
  %v48 = vld [vmem:[%s1 + $0x7c] sm:$0xf]
  %v49 = vld [vmem:[%s1 + $0x80] sm:$0xf]
  %v50 = vld [vmem:[%s1 + $0x84] sm:$0xf]
  %v51 = vld [vmem:[%s1 + $0x88] sm:$0xf]
  %v52 = vld [vmem:[%s1 + $0x8c] sm:$0xf]
  %v53 = vld [vmem:[%s1 + $0x90] sm:$0xf]
  %v54 = vld [vmem:[%s1 + $0x94] sm:$0xf]
  %v55 = vld [vmem:[%s1 + $0x98] sm:$0xf]
  %v56 = vld [vmem:[%s1 + $0x9c] sm:$0xf]
  %v57 = vld [vmem:[%s1 + $0xa0] sm:$0xf]
  %v58 = vld [vmem:[%s1 + $0xa4] sm:$0xf]
  %v59 = vld [vmem:[%s1 + $0xa8] sm:$0xf]
  %v60 = vld [vmem:[%s1 + $0xac] sm:$0xf]
  %v61 = vld [vmem:[%s1 + $0xb0] sm:$0xf]
  %v62 = vld [vmem:[%s1 + $0xb4] sm:$0xf]
  %v63 = vld [vmem:[%s1 + $0xb8] sm:$0xf]
  %v64 = vld [vmem:[%s1 + $0xbc] sm:$0xf]
  %v65 = vld [vmem:[%s1 + $0xc0] sm:$0xf]
  %v66 = vld [vmem:[%s1 + $0xc4] sm:$0xf]
  %v67 = vld [vmem:[%s1 + $0xc8] sm:$0xf]
  %v68 = vld [vmem:[%s1 + $0xcc] sm:$0xf]
  %v69 = vld [vmem:[%s1 + $0xd0] sm:$0xf]
  %v70 = vld [vmem:[%s1 + $0xd4] sm:$0xf]
  %v73 = vunpack.c.l.b16 %v15
  %v74 = vunpack.c.h.b16 %v15
  %v75 = vunpack.c.l.b16 %v16
  %v76 = vunpack.c.h.b16 %v16
  %v77 = vpack.c.b16 %v73, %v73
  %v78 = vpack.c.b16 %v74, %v74
  %v79 = vpack.c.b16 %v75, %v75
  %v80 = vpack.c.b16 %v76, %v76
  %v138 = vunpack.c.l.b16 %v17
  %v139 = vunpack.c.l.b16 %v18
  %v140 = vunpack.c.l.b16 %v19
  %v141 = vunpack.c.l.b16 %v20
  %v142 = vunpack.c.l.b16 %v21
  %v143 = vunpack.c.l.b16 %v22
  %v144 = vunpack.c.l.b16 %v23
  %v145 = vunpack.c.l.b16 %v24
  %v146 = vunpack.c.l.b16 %v25
  %v147 = vunpack.c.l.b16 %v26
  %v148 = vunpack.c.l.b16 %v27
  %v149 = vunpack.c.l.b16 %v28
  %v150 = vunpack.c.l.b16 %v29
  %v151 = vunpack.c.l.b16 %v30
  %v152 = vunpack.c.l.b16 %v31
  %v153 = vunpack.c.l.b16 %v32
  %v154 = vunpack.c.l.b16 %v33
  %v155 = vunpack.c.l.b16 %v34
  %v156 = vunpack.c.l.b16 %v35
  %v157 = vunpack.c.l.b16 %v36
  %v158 = vunpack.c.l.b16 %v37
  %v159 = vunpack.c.l.b16 %v38
  %v160 = vunpack.c.l.b16 %v39
  %v161 = vunpack.c.l.b16 %v40
  %v162 = vunpack.c.l.b16 %v41
  %v163 = vunpack.c.l.b16 %v42
  %v164 = vunpack.c.l.b16 %v43
  %v165 = vunpack.c.l.b16 %v44
  %v166 = vunpack.c.l.b16 %v45
  %v167 = vunpack.c.l.b16 %v46
  %v168 = vunpack.c.l.b16 %v47
  %v169 = vunpack.c.l.b16 %v48
  %v170 = vunpack.c.l.b16 %v49
  %v171 = vunpack.c.l.b16 %v50
  %v172 = vunpack.c.l.b16 %v51
  %v173 = vunpack.c.l.b16 %v52
  %v174 = vunpack.c.l.b16 %v53
  %v175 = vunpack.c.l.b16 %v54
  %v176 = vunpack.c.l.b16 %v55
  %v177 = vunpack.c.l.b16 %v56
  %v178 = vunpack.c.l.b16 %v57
  %v179 = vunpack.c.l.b16 %v58
  %v180 = vunpack.c.l.b16 %v59
  %v181 = vunpack.c.l.b16 %v60
  %v182 = vunpack.c.l.b16 %v61
  %v183 = vunpack.c.l.b16 %v62
  %v184 = vunpack.c.l.b16 %v63
  %v185 = vunpack.c.l.b16 %v64
  %v186 = vunpack.c.l.b16 %v65
  %v187 = vunpack.c.l.b16 %v66
  %v188 = vunpack.c.l.b16 %v67
  %v189 = vunpack.c.l.b16 %v68
  %v190 = vunpack.c.l.b16 %v69
  %v191 = vunpack.c.l.b16 %v70
  %v192 = vpack.c.b16 %v139, %v138
  %v193 = vpack.c.b16 %v141, %v140
  %v194 = vpack.c.b16 %v143, %v142
  %v195 = vpack.c.b16 %v145, %v144
  %v196 = vpack.c.b16 %v147, %v146
  %v197 = vpack.c.b16 %v149, %v148
  %v198 = vpack.c.b16 %v151, %v150
  %v199 = vpack.c.b16 %v153, %v152
  %v200 = vpack.c.b16 %v155, %v154
  %v201 = vpack.c.b16 %v157, %v156
  %v202 = vpack.c.b16 %v159, %v158
  %v203 = vpack.c.b16 %v161, %v160
  %v204 = vpack.c.b16 %v163, %v162
  %v205 = vpack.c.b16 %v165, %v164
  %v206 = vpack.c.b16 %v167, %v166
  %v207 = vpack.c.b16 %v169, %v168
  %v208 = vpack.c.b16 %v171, %v170
  %v209 = vpack.c.b16 %v173, %v172
  %v210 = vpack.c.b16 %v175, %v174
  %v211 = vpack.c.b16 %v177, %v176
  %v212 = vpack.c.b16 %v179, %v178
  %v213 = vpack.c.b16 %v181, %v180
  %v214 = vpack.c.b16 %v183, %v182
  %v215 = vpack.c.b16 %v185, %v184
  %v216 = vpack.c.b16 %v187, %v186
  %v217 = vpack.c.b16 %v189, %v188
  %v218 = vpack.c.b16 %v191, %v190
  %vm246 = vcmask 392192
  %v248 = vsel %vm246, %v80, 0
  %250 = vmatprep.subr.bf16.mxu0 0
  %251 = vmatpush1.bf16.msra.mxu0 %v192
  %252 = vmatprep.subr.bf16.mxu0 0
  %253 = vmatpush1.bf16.msra.mxu0 %v193
  %254 = vmatprep.subr.bf16.mxu0 0
  %255 = vmatpush1.bf16.msra.mxu0 %v194
  %256 = vmatprep.subr.bf16.mxu0 0
  %257 = vmatpush1.bf16.msra.mxu0 %v195
  %258 = vmatprep.subr.bf16.mxu0 0
  %259 = vmatpush1.bf16.msra.mxu0 %v196
  %260 = vmatprep.subr.bf16.mxu0 0
  %261 = vmatpush1.bf16.msra.mxu0 %v197
  %262 = vmatprep.subr.bf16.mxu0 0
  %263 = vmatpush1.bf16.msra.mxu0 %v198
  %264 = vmatprep.subr.bf16.mxu0 0
  %265 = vmatpush1.bf16.msra.mxu0 %v199
  %266 = vmatprep.subr.bf16.mxu0 0
  %267 = vmatpush1.bf16.msra.mxu0 %v200
  %268 = vmatprep.subr.bf16.mxu0 0
  %269 = vmatpush1.bf16.msra.mxu0 %v201
  %270 = vmatprep.subr.bf16.mxu0 0
  %271 = vmatpush1.bf16.msra.mxu0 %v202
  %272 = vmatprep.subr.bf16.mxu0 0
  %273 = vmatpush1.bf16.msra.mxu0 %v203
  %274 = vmatprep.subr.bf16.mxu0 0
  %275 = vmatpush1.bf16.msra.mxu0 %v204
  %276 = vmatprep.subr.bf16.mxu0 0
  %277 = vmatpush1.bf16.msra.mxu0 %v205
  %278 = vmatprep.subr.bf16.mxu0 0
  %279 = vmatpush1.bf16.msra.mxu0 %v206
  %280 = vmatprep.subr.bf16.mxu0 0
  %281 = vmatpush1.bf16.msra.mxu0 %v207
  %282 = vmatprep.mubr.bf16.mxu0 %v78
  %283 = vmatmul.mubr.bf16.gmra.mrb[0].mxu0 %v77
  %v284 = vpop.f32.mrb[0].mxu0
  %v285 = vadd.f32 0.0, %v284
  %v286 = vpop.f32.mrb[0].mxu0
  %v287 = vpop.f32.mrb[0].mxu0
  %v288 = vpop.f32.mrb[0].mxu0
  %289 = vdwg.mxu0
  %290 = vmatprep.subr.bf16.mxu0 0
  %291 = vmatpush1.bf16.msra.mxu0 %v208
  %292 = vmatprep.subr.bf16.mxu0 0
  %293 = vmatpush1.bf16.msra.mxu0 %v209
  %294 = vmatprep.subr.bf16.mxu0 0
  %295 = vmatpush1.bf16.msra.mxu0 %v210
  %296 = vmatprep.subr.bf16.mxu0 0
  %297 = vmatpush1.bf16.msra.mxu0 %v211
  %298 = vmatprep.subr.bf16.mxu0 0
  %299 = vmatpush1.bf16.msra.mxu0 %v212
  %300 = vmatprep.subr.bf16.mxu0 0
  %301 = vmatpush1.bf16.msra.mxu0 %v213
  %302 = vmatprep.subr.bf16.mxu0 0
  %303 = vmatpush1.bf16.msra.mxu0 %v214
  %304 = vmatprep.subr.bf16.mxu0 0
  %305 = vmatpush1.bf16.msra.mxu0 %v215
  %306 = vmatprep.subr.bf16.mxu0 0
  %307 = vmatpush1.bf16.msra.mxu0 %v216
  %308 = vmatprep.subr.bf16.mxu0 0
  %309 = vmatpush1.bf16.msra.mxu0 %v217
  %310 = vmatprep.subr.bf16.mxu0 0
  %311 = vmatpush1.bf16.msra.mxu0 %v218
  %312 = vmatprep.subr.bf16.mxu0 0
  %313 = vmatpush1.bf16.msra.mxu0 0
  %314 = vmatprep.subr.bf16.mxu0 0
  %315 = vmatpush1.bf16.msra.mxu0 0
  %316 = vmatprep.subr.bf16.mxu0 0
  %317 = vmatpush1.bf16.msra.mxu0 0
  %318 = vmatprep.subr.bf16.mxu0 0
  %319 = vmatpush1.bf16.msra.mxu0 0
  %320 = vmatprep.subr.bf16.mxu0 0
  %321 = vmatpush1.bf16.msra.mxu0 0
  %322 = vmatprep.mubr.bf16.mxu0 %v248
  %323 = vmatmul.mubr.bf16.gmra.mrb[0].mxu0 %v79
  %v324 = vpop.f32.mrb[0].mxu0
  %v325 = vadd.f32 %v285, %v324
  %v326 = vpop.f32.mrb[0].mxu0
  %v327 = vpop.f32.mrb[0].mxu0
  %v328 = vpop.f32.mrb[0].mxu0
  %329 = vdwg.mxu0
  %v330 = vpack.c.bf16 %v325, %v325
  %vm331 = vcmask 257024
  %332 = vst.msk [vmem:[%s2] sm:$0xf] %vm331, %v330
  %vm333 = vcmask 261120
  %v334 = vsel %vm333, %v325, 0.0
  %v335 = vrot.slane %v334, 4
  %v336 = vadd.f32 %v334, %v335
  %v337 = vrot.slane %v336, 2
  %v338 = vadd.f32 %v336, %v337
  %v339 = vrot.slane %v338, 1
  %v340 = vadd.f32 %v338, %v339
  %vm341 = vcmask 253952
  %342 = vst.msk [vmem:[%s3] sm:$0x1] %vm341, %v340
  %v343 = vmul.f32 %v325, %v325
  %v344 = vsel %vm333, %v343, 0.0
  %v345 = vrot.slane %v344, 4
  %v346 = vadd.f32 %v344, %v345
  %v347 = vrot.slane %v346, 2
  %v348 = vadd.f32 %v346, %v347
  %v349 = vrot.slane %v348, 1
  %v350 = vadd.f32 %v348, %v349
  %351 = vst.msk [vmem:[%s4] sm:$0x1] %vm341, %v350
  // Predicated region
  $region10: #{deep_gcn_forward.20} parent=0 // pred_check
    _
  $region11: #{deep_gcn_forward.20} parent=0 // pred_check_branch
    %353 = sbr.rel (0) target = $region13
  $region12: #{deep_gcn_forward.20} parent=0 // pred_region
    _
  $region13: #{deep_gcn_forward.20} parent=0 // pred_fallthru
    _
  // Predicated region
  $region14: #{deep_gcn_forward.20} parent=0 // pred_check
    _
  $region15: #{deep_gcn_forward.20} parent=0 // pred_check_branch
    %355 = sbr.rel (0) target = $region17
  $region16: #{deep_gcn_forward.20} parent=0 // pred_region
    _
  $region17: #{deep_gcn_forward.20} parent=0 // pred_fallthru
    _
  // Predicated region
  $region18: #{deep_gcn_forward.20} parent=0 // pred_check
    _
  $region19: #{deep_gcn_forward.20} parent=0 // pred_check_branch
    %357 = sbr.rel (0) target = $region21
  $region20: #{deep_gcn_forward.20} parent=0 // pred_region
    _
  $region21: #{deep_gcn_forward.20} parent=0 // pred_fallthru
    _
  // Predicated region
  $region22: #{deep_gcn_forward.20} parent=0 // pred_check
    _
  $region23: #{deep_gcn_forward.20} parent=0 // pred_check_branch
    %359 = sbr.rel (0) target = $region25
  $region24: #{deep_gcn_forward.20} parent=0 // pred_region
    _
  $region25: #{deep_gcn_forward.20} parent=0 // pred_fallthru
    _
  // Predicated region
  $region26: #{deep_gcn_forward.20} parent=0 // pred_check
    _
  $region27: #{deep_gcn_forward.20} parent=0 // pred_check_branch
    %361 = sbr.rel (0) target = $region29
  $region28: #{deep_gcn_forward.20} parent=0 // pred_region
    _
  $region29: #{deep_gcn_forward.20} parent=0 // pred_fallthru
    _
  // Predicated region
  $region30: #{deep_gcn_forward.20} parent=0 // pred_check
    _
  $region31: #{deep_gcn_forward.20} parent=0 // pred_check_branch
    %363 = sbr.rel (0) target = $region33
  $region32: #{deep_gcn_forward.20} parent=0 // pred_region
    _
  $region33: #{deep_gcn_forward.20} parent=0 // pred_fallthru
    _

// kernel: deep_gcn_forward.21
$region0: #{deep_gcn_forward.21}
  #allocation0 [shape = 'u32[]', space=smem, size = 0x4, offset = 0x4, fixed_abs, tag = 'smem constant byte address 0x4 - core index']
  #allocation1 [shape = 'u32[144,128]{1,0:T(1,128)}', space=vmem, size = 0x12000, scoped, tag = 'internal scratch']
  %s0 = inlined_call_operand.vmem [shape: bf16[8,32], index: 0, kind: input, shape index: {}]
  %s1 = inlined_call_operand.vmem [shape: f32[1,32], index: 1, kind: input, shape index: {}]
  %s2 = inlined_call_operand.vmem [shape: f32[1,32], index: 2, kind: input, shape index: {}]
  %s3 = inlined_call_operand.vmem [shape: bf16[8,32], index: 3, kind: output, shape index: {}]
  %s4 = sld [smem:[#allocation0]]
  $region22: #{deep_gcn_forward.21} parent=0
    _
  %s6 = ssub.s32 1, %s4
  %s7 = scalar_select 0, %s6, %s4
  // Predicated region
  $region2: #{deep_gcn_forward.21} parent=0 // pred_check
    _
  $region3: #{deep_gcn_forward.21} parent=0 // pred_check_branch
    %9 = sbr.rel (0) target = $region5
  $region4: #{deep_gcn_forward.21} parent=0 // pred_region
    _
  $region5: #{deep_gcn_forward.21} parent=0 // pred_fallthru
    _
  // Predicated region
  $region6: #{deep_gcn_forward.21} parent=0 // pred_check
    _
  $region7: #{deep_gcn_forward.21} parent=0 // pred_check_branch
    %11 = sbr.rel (0) target = $region9
  $region8: #{deep_gcn_forward.21} parent=0 // pred_region
    _
  $region9: #{deep_gcn_forward.21} parent=0 // pred_fallthru
    _
  // Predicated region
  $region10: #{deep_gcn_forward.21} parent=0 // pred_check
    _
  $region11: #{deep_gcn_forward.21} parent=0 // pred_check_branch
    %13 = sbr.rel (0) target = $region13
  $region12: #{deep_gcn_forward.21} parent=0 // pred_region
    _
  $region13: #{deep_gcn_forward.21} parent=0 // pred_fallthru
    _
  %v14 = vld [vmem:[%s0] sm:$0xf]
  %v15 = vunpack.c.l.bf16 %v14
  %v16 = vld [vmem:[%s1] sm:$0x1]
  %v18 = vlaneseq
  %v19 = vshrl.u32 %v18, 7
  %v20 = vsub.s32 0, %v19
  %v21 = vrot.slane %v16, %v20
  %v23 = vmul.f32 %v15, %v21
  %v24 = vld [vmem:[%s2] sm:$0x1]
  %v26 = vlaneseq
  %v27 = vshrl.u32 %v26, 7
  %v28 = vsub.s32 0, %v27
  %v29 = vrot.slane %v24, %v28
  %v31 = vadd.f32 %v23, %v29
  %v32 = vpack.c.bf16 %v31, %v31
  %vm33 = vcmask 257024
  %34 = vst.msk [vmem:[%s3] sm:$0xf] %vm33, %v32
  // Predicated region
  $region14: #{deep_gcn_forward.21} parent=0 // pred_check
    _
  $region15: #{deep_gcn_forward.21} parent=0 // pred_check_branch
    %36 = sbr.rel (0) target = $region17
  $region16: #{deep_gcn_forward.21} parent=0 // pred_region
    _
  $region17: #{deep_gcn_forward.21} parent=0 // pred_fallthru
    _
  // Predicated region
  $region18: #{deep_gcn_forward.21} parent=0 // pred_check
    _
  $region19: #{deep_gcn_forward.21} parent=0 // pred_check_branch
    %38 = sbr.rel (0) target = $region21
  $region20: #{deep_gcn_forward.21} parent=0 // pred_region
    _
  $region21: #{deep_gcn_forward.21} parent=0 // pred_fallthru
    _

// kernel: deep_gcn_forward.22
$region0: #{deep_gcn_forward.22}
  #allocation0 [shape = 'u32[]', space=smem, size = 0x4, offset = 0x4, fixed_abs, tag = 'smem constant byte address 0x4 - core index']
  #allocation1 [shape = 'u32[144,128]{1,0:T(1,128)}', space=vmem, size = 0x12000, scoped, tag = 'internal scratch']
  %s0 = inlined_call_operand.vmem [shape: bf16[8,8,256], index: 0, kind: input, shape index: {}]
  %s1 = inlined_call_operand.vmem [shape: bf16[8,256,16], index: 1, kind: input, shape index: {}]
  %s2 = inlined_call_operand.vmem [shape: f32[1,16], index: 2, kind: input, shape index: {}]
  %s3 = inlined_call_operand.vmem [shape: bf16[8,8,16], index: 3, kind: output, shape index: {}]
  %s4 = sld [smem:[#allocation0]]
  $region45: #{deep_gcn_forward.22} parent=0
    _
  %s6 = ssub.s32 1, %s4
  %s7 = scalar_select 0, %s6, %s4
  loop: start=0, step=1, limit=10
  $region2: #{deep_gcn_forward.22} parent=0 // loop_pre_header
    _
  $region3: #{deep_gcn_forward.22} parent=0 // loop_header
    %s9 = sphi 0, %s13
    %p10 = scmp.ge.s32.totalorder %s9, 10
    %s16 = sphi 0, %s28
    %s17 = sphi 0, %s24
    %s18 = sphi 0, %s16
    %s19 = sphi 0, %s17
    %s20 = sphi 0, %s18
    %s21 = sphi 0, %s19
    %s33 = sphi 0, %s35
    %s36 = sphi 0, %s33
    %s37 = sphi 0, %s36
    %s53 = sphi 0, %s37
    %s59 = sphi 0, %s61
    %s62 = sphi 0, %s59
    %s63 = sphi 0, %s62
    %s79 = sphi 0, %s63
    %s83 = sphi 0, %s83
    %s85 = sphi 0, %s83
    %s86 = sphi 0, %s85
    %s100 = sphi 0, %s86
    %s108 = sphi 0, %s110
    %s111 = sphi 0, %s108
    %s112 = sphi 0, %s111
    %s128 = sphi 0, %s112
  $region4: #{deep_gcn_forward.22} parent=0 // loop_header_branch
    %12 = sbr.rel (%p10) target = $region8
  $region5: #{deep_gcn_forward.22} parent=0 // loop_body
    %s14 = ssub.s32 %s9, 1
    %s15 = ssub.s32 %s9, 2
    %s22 = sadd.s32 1, %s17
    %p23 = scmp.ge.s32.totalorder %s22, 1
    %s24 = scalar_select %p23, 0, %s22
    %s25 = sadd.s32 1, %s16
    %s26 = scalar_select %p23, %s25, %s16
    %p27 = scmp.ge.s32.totalorder %s26, 8
    %s28 = scalar_select %p27, 0, %s26
    %s29 = ssub.s32 %s16, %s28
    %s30 = ssub.s32 %s17, %s24
    %s31 = sor.u32 %s29, %s30
    %p32 = scmp.eq.s32.totalorder %s31, 0
    %s34 = sadd.s32 %s33, 1
    %s35 = scalar_select %p32, %s33, %s34
    %p38 = pneg %p32
    %p39 = scmp.eq.s32.totalorder %s9, 7
    %p40 = por %p38, %p39
    %p41 = scmp.ne.s32.totalorder %s33, %s36
    %p42 = scmp.eq.s32.totalorder %s9, 0
    %p43 = por %p41, %p42
    %p44 = scmp.ne.s32.totalorder %s33, %s36
    %p45 = scmp.eq.s32.totalorder %s14, 7
    %p46 = por %p44, %p45
    %p47 = scmp.ne.s32.totalorder %s36, %s37
    %p48 = scmp.eq.s32.totalorder %s14, 0
    %p49 = por %p47, %p48
    %p50 = scmp.ne.s32.totalorder %s36, %s37
    %p51 = scmp.eq.s32.totalorder %s15, 7
    %p52 = por %p50, %p51
    %p54 = scmp.ne.s32.totalorder %s37, %s53
    %p55 = scmp.eq.s32.totalorder %s15, 0
    %p56 = por %p54, %p55
    %s57 = ssub.s32 %s16, %s28
    %p58 = scmp.eq.s32.totalorder %s57, 0
    %s60 = sadd.s32 %s59, 1
    %s61 = scalar_select %p58, %s59, %s60
    %p64 = pneg %p58
    %p65 = scmp.eq.s32.totalorder %s9, 7
    %p66 = por %p64, %p65
    %p67 = scmp.ne.s32.totalorder %s59, %s62
    %p68 = scmp.eq.s32.totalorder %s9, 0
    %p69 = por %p67, %p68
    %p70 = scmp.ne.s32.totalorder %s59, %s62
    %p71 = scmp.eq.s32.totalorder %s14, 7
    %p72 = por %p70, %p71
    %p73 = scmp.ne.s32.totalorder %s62, %s63
    %p74 = scmp.eq.s32.totalorder %s14, 0
    %p75 = por %p73, %p74
    %p76 = scmp.ne.s32.totalorder %s62, %s63
    %p77 = scmp.eq.s32.totalorder %s15, 7
    %p78 = por %p76, %p77
    %p80 = scmp.ne.s32.totalorder %s63, %s79
    %p81 = scmp.eq.s32.totalorder %s15, 0
    %p82 = por %p80, %p81
    %s84 = sadd.s32 %s83, 1
    %p87 = scmp.eq.s32.totalorder %s9, 7
    %p88 = scmp.ne.s32.totalorder %s83, %s85
    %p89 = scmp.eq.s32.totalorder %s9, 0
    %p90 = por %p88, %p89
    %p91 = scmp.ne.s32.totalorder %s83, %s85
    %p92 = scmp.eq.s32.totalorder %s14, 7
    %p93 = por %p91, %p92
    %p94 = scmp.ne.s32.totalorder %s85, %s86
    %p95 = scmp.eq.s32.totalorder %s14, 0
    %p96 = por %p94, %p95
    %p97 = scmp.ne.s32.totalorder %s85, %s86
    %p98 = scmp.eq.s32.totalorder %s15, 7
    %p99 = por %p97, %p98
    %p101 = scmp.ne.s32.totalorder %s86, %s100
    %p102 = scmp.eq.s32.totalorder %s15, 0
    %p103 = por %p101, %p102
    %s104 = ssub.s32 %s16, %s28
    %s105 = ssub.s32 %s17, %s24
    %s106 = sor.u32 %s104, %s105
    %p107 = scmp.eq.s32.totalorder %s106, 0
    %s109 = sadd.s32 %s108, 1
    %s110 = scalar_select %p107, %s108, %s109
    %p113 = pneg %p107
    %p114 = scmp.eq.s32.totalorder %s9, 7
    %p115 = por %p113, %p114
    %p116 = scmp.ne.s32.totalorder %s108, %s111
    %p117 = scmp.eq.s32.totalorder %s9, 0
    %p118 = por %p116, %p117
    %p119 = scmp.ne.s32.totalorder %s108, %s111
    %p120 = scmp.eq.s32.totalorder %s14, 7
    %p121 = por %p119, %p120
    %p122 = scmp.ne.s32.totalorder %s111, %s112
    %p123 = scmp.eq.s32.totalorder %s14, 0
    %p124 = por %p122, %p123
    %p125 = scmp.ne.s32.totalorder %s111, %s112
    %p126 = scmp.eq.s32.totalorder %s15, 7
    %p127 = por %p125, %p126
    %p129 = scmp.ne.s32.totalorder %s112, %s128
    %p130 = scmp.eq.s32.totalorder %s15, 0
    %p131 = por %p129, %p130
    %p132 = scmp.le.s32.totalorder 1, %s9
    %p133 = scmp.lt.s32.totalorder %s9, 9
    %p134 = pnand %p132, %p133
    %p135 = pneg %p134
    // Predicated region
    $region9: #{deep_gcn_forward.22} parent=5 // pred_check
      _
    $region10: #{deep_gcn_forward.22} parent=5 // pred_check_branch
      %137 = sbr.rel (%p134) target = $region12
    $region11: #{deep_gcn_forward.22} parent=5 // pred_region
      %s138 = ssub.s32 %s9, 1
      // Predicated region
      $region13: #{deep_gcn_forward.22} parent=11 // pred_check
        %p139 = pneg %p96
      $region14: #{deep_gcn_forward.22} parent=11 // pred_check_branch
        %141 = sbr.rel (%p139) target = $region16
      $region15: #{deep_gcn_forward.22} parent=11 // pred_region
        _
      $region16: #{deep_gcn_forward.22} parent=11 // pred_fallthru
        _
    $region12: #{deep_gcn_forward.22} parent=5 // pred_fallthru
      _
    %p142 = scmp.lt.s32.totalorder %s9, 8
    // Predicated region
    $region17: #{deep_gcn_forward.22} parent=5 // pred_check
      %p143 = pneg %p142
    $region18: #{deep_gcn_forward.22} parent=5 // pred_check_branch
      %145 = sbr.rel (%p143) target = $region20
    $region19: #{deep_gcn_forward.22} parent=5 // pred_region
      // Predicated region
      $region21: #{deep_gcn_forward.22} parent=19 // pred_check
        %p146 = pneg %p43
      $region22: #{deep_gcn_forward.22} parent=19 // pred_check_branch
        %148 = sbr.rel (%p146) target = $region24
      $region23: #{deep_gcn_forward.22} parent=19 // pred_region
        %p149 = scmp.lt.s32.totalorder %s16, 7
        %s150 = scalar_select %p149, %s16, 7
        %p151 = scmp.lt.s32.totalorder %s17, 0
        %s152 = scalar_select %p151, %s17, 0
        %s153 = smul.addr %s152, 2
        %s154 = smul.addr %s150, 2
        %s155 = sadd.s32 %s153, %s154
        %s156 = smul.addr %s155, 4
        %s157 = scalar_lea.vmem %s0, %s156
      $region24: #{deep_gcn_forward.22} parent=19 // pred_fallthru
        _
      // Predicated region
      $region25: #{deep_gcn_forward.22} parent=19 // pred_check
        %p158 = pneg %p69
      $region26: #{deep_gcn_forward.22} parent=19 // pred_check_branch
        %160 = sbr.rel (%p158) target = $region28
      $region27: #{deep_gcn_forward.22} parent=19 // pred_region
        %p161 = scmp.lt.s32.totalorder %s16, 7
        %s162 = scalar_select %p161, %s16, 7
        %s163 = smul.addr %s162, 32
        %s164 = smul.addr %s163, 4
        %s165 = scalar_lea.vmem %s1, %s164
      $region28: #{deep_gcn_forward.22} parent=19 // pred_fallthru
        _
    $region20: #{deep_gcn_forward.22} parent=5 // pred_fallthru
      _
    %p166 = scmp.le.s32.totalorder 1, %s9
    %p167 = scmp.lt.s32.totalorder %s9, 9
    %p168 = pnand %p166, %p167
    %p169 = pneg %p168
    // Predicated region
    $region29: #{deep_gcn_forward.22} parent=5 // pred_check
      _
    $region30: #{deep_gcn_forward.22} parent=5 // pred_check_branch
      %171 = sbr.rel (%p168) target = $region32
    $region31: #{deep_gcn_forward.22} parent=5 // pred_region
      %s172 = ssub.s32 %s9, 1
      %p173 = scmp.lt.s32.totalorder %s18, 7
      %s174 = scalar_select %p173, %s18, 7
      %p175 = scmp.lt.s32.totalorder %s19, 0
      %s176 = scalar_select %p175, %s19, 0
      %s177 = smul.addr %s176, 2
      %s178 = smul.addr %s174, 2
      %s179 = sadd.s32 %s177, %s178
      %s180 = smul.addr %s179, 4
      %s181 = scalar_lea.vmem %s0, %s180
      %p182 = pneg %p49
      %p183 = pneg %p46
      %p184 = scmp.lt.s32.totalorder %s18, 7
      %s185 = scalar_select %p184, %s18, 7
      %s186 = smul.addr %s185, 32
      %s187 = smul.addr %s186, 4
      %s188 = scalar_lea.vmem %s1, %s187
      %p189 = pneg %p75
      %p190 = pneg %p72
      %p191 = pneg %p96
      %p192 = pneg %p93
      %p193 = pneg %p124
      %p194 = pneg %p121
      %p195 = scmp.lt.s32.totalorder %s18, 7
      %s196 = scalar_select %p195, %s18, 7
      %p197 = scmp.lt.s32.totalorder %s19, 0
      %s198 = scalar_select %p197, %s19, 0
      %s199 = sadd.s32 %s198, %s196
      %s200 = smul.addr %s199, 4
      %s201 = scalar_lea.vmem %s3, %s200
      %p202 = scmp.lt.s32.totalorder %s18, 7
      %s203 = scalar_select %p202, %s18, 7
      %p204 = scmp.lt.s32.totalorder %s19, 0
      %s205 = scalar_select %p204, %s19, 0
      %s206 = smul.addr %s205, 2
      %s207 = smul.addr %s203, 2
      %s208 = sadd.s32 %s206, %s207
      %s209 = smul.addr %s208, 4
      %s210 = scalar_lea.vmem %s0, %s209
      %p211 = scmp.lt.s32.totalorder %s18, 7
      %s212 = scalar_select %p211, %s18, 7
      %s213 = smul.addr %s212, 32
      %s214 = smul.addr %s213, 4
      %s215 = scalar_lea.vmem %s1, %s214
      %p216 = scmp.lt.s32.totalorder %s18, 7
      %s217 = scalar_select %p216, %s18, 7
      %p218 = scmp.lt.s32.totalorder %s19, 0
      %s219 = scalar_select %p218, %s19, 0
      %s220 = sadd.s32 %s219, %s217
      %s221 = smul.addr %s220, 4
      %s222 = scalar_lea.vmem %s3, %s221
      %v224 = vld [vmem:[%s210] sm:$0xff]
      %v225 = vld [vmem:[%s215] sm:$0xf]
      %v226 = vld [vmem:[%s215 + $0x4] sm:$0xf]
      %v227 = vld [vmem:[%s215 + $0x8] sm:$0xf]
      %v228 = vld [vmem:[%s215 + $0xc] sm:$0xf]
      %v229 = vld [vmem:[%s215 + $0x10] sm:$0xf]
      %v230 = vld [vmem:[%s215 + $0x14] sm:$0xf]
      %v231 = vld [vmem:[%s215 + $0x18] sm:$0xf]
      %v232 = vld [vmem:[%s215 + $0x1c] sm:$0xf]
      %v233 = vld [vmem:[%s215 + $0x20] sm:$0xf]
      %v234 = vld [vmem:[%s215 + $0x24] sm:$0xf]
      %v235 = vld [vmem:[%s215 + $0x28] sm:$0xf]
      %v236 = vld [vmem:[%s215 + $0x2c] sm:$0xf]
      %v237 = vld [vmem:[%s215 + $0x30] sm:$0xf]
      %v238 = vld [vmem:[%s215 + $0x34] sm:$0xf]
      %v239 = vld [vmem:[%s215 + $0x38] sm:$0xf]
      %v240 = vld [vmem:[%s215 + $0x3c] sm:$0xf]
      %v241 = vld [vmem:[%s215 + $0x40] sm:$0xf]
      %v242 = vld [vmem:[%s215 + $0x44] sm:$0xf]
      %v243 = vld [vmem:[%s215 + $0x48] sm:$0xf]
      %v244 = vld [vmem:[%s215 + $0x4c] sm:$0xf]
      %v245 = vld [vmem:[%s215 + $0x50] sm:$0xf]
      %v246 = vld [vmem:[%s215 + $0x54] sm:$0xf]
      %v247 = vld [vmem:[%s215 + $0x58] sm:$0xf]
      %v248 = vld [vmem:[%s215 + $0x5c] sm:$0xf]
      %v249 = vld [vmem:[%s215 + $0x60] sm:$0xf]
      %v250 = vld [vmem:[%s215 + $0x64] sm:$0xf]
      %v251 = vld [vmem:[%s215 + $0x68] sm:$0xf]
      %v252 = vld [vmem:[%s215 + $0x6c] sm:$0xf]
      %v253 = vld [vmem:[%s215 + $0x70] sm:$0xf]
      %v254 = vld [vmem:[%s215 + $0x74] sm:$0xf]
      %v255 = vld [vmem:[%s215 + $0x78] sm:$0xf]
      %v256 = vld [vmem:[%s215 + $0x7c] sm:$0xf]
      %v257 = vld [vmem:[%s2] sm:$0x1]
      %v259 = vlaneseq
      %v260 = vshrl.u32 %v259, 7
      %v261 = vsub.s32 0, %v260
      %v262 = vrot.slane %v257, %v261
      %v265 = vunpack.c.l.b16 %v224
      %v266 = vunpack.c.h.b16 %v224
      %v267 = vpack.c.b16 %v265, %v265
      %v268 = vpack.c.b16 %v266, %v266
      %v303 = vunpack.c.l.b16 %v225
      %v304 = vunpack.c.l.b16 %v226
      %v305 = vunpack.c.l.b16 %v227
      %v306 = vunpack.c.l.b16 %v228
      %v307 = vunpack.c.l.b16 %v229
      %v308 = vunpack.c.l.b16 %v230
      %v309 = vunpack.c.l.b16 %v231
      %v310 = vunpack.c.l.b16 %v232
      %v311 = vunpack.c.l.b16 %v233
      %v312 = vunpack.c.l.b16 %v234
      %v313 = vunpack.c.l.b16 %v235
      %v314 = vunpack.c.l.b16 %v236
      %v315 = vunpack.c.l.b16 %v237
      %v316 = vunpack.c.l.b16 %v238
      %v317 = vunpack.c.l.b16 %v239
      %v318 = vunpack.c.l.b16 %v240
      %v319 = vunpack.c.l.b16 %v241
      %v320 = vunpack.c.l.b16 %v242
      %v321 = vunpack.c.l.b16 %v243
      %v322 = vunpack.c.l.b16 %v244
      %v323 = vunpack.c.l.b16 %v245
      %v324 = vunpack.c.l.b16 %v246
      %v325 = vunpack.c.l.b16 %v247
      %v326 = vunpack.c.l.b16 %v248
      %v327 = vunpack.c.l.b16 %v249
      %v328 = vunpack.c.l.b16 %v250
      %v329 = vunpack.c.l.b16 %v251
      %v330 = vunpack.c.l.b16 %v252
      %v331 = vunpack.c.l.b16 %v253
      %v332 = vunpack.c.l.b16 %v254
      %v333 = vunpack.c.l.b16 %v255
      %v334 = vunpack.c.l.b16 %v256
      %v335 = vpack.c.b16 %v304, %v303
      %v336 = vpack.c.b16 %v306, %v305
      %v337 = vpack.c.b16 %v308, %v307
      %v338 = vpack.c.b16 %v310, %v309
      %v339 = vpack.c.b16 %v312, %v311
      %v340 = vpack.c.b16 %v314, %v313
      %v341 = vpack.c.b16 %v316, %v315
      %v342 = vpack.c.b16 %v318, %v317
      %v343 = vpack.c.b16 %v320, %v319
      %v344 = vpack.c.b16 %v322, %v321
      %v345 = vpack.c.b16 %v324, %v323
      %v346 = vpack.c.b16 %v326, %v325
      %v347 = vpack.c.b16 %v328, %v327
      %v348 = vpack.c.b16 %v330, %v329
      %v349 = vpack.c.b16 %v332, %v331
      %v350 = vpack.c.b16 %v334, %v333
      %367 = vmatprep.subr.bf16.mxu0 0
      %368 = vmatpush1.bf16.msra.mxu0 %v335
      %369 = vmatprep.subr.bf16.mxu0 0
      %370 = vmatpush1.bf16.msra.mxu0 %v336
      %371 = vmatprep.subr.bf16.mxu0 0
      %372 = vmatpush1.bf16.msra.mxu0 %v337
      %373 = vmatprep.subr.bf16.mxu0 0
      %374 = vmatpush1.bf16.msra.mxu0 %v338
      %375 = vmatprep.subr.bf16.mxu0 0
      %376 = vmatpush1.bf16.msra.mxu0 %v339
      %377 = vmatprep.subr.bf16.mxu0 0
      %378 = vmatpush1.bf16.msra.mxu0 %v340
      %379 = vmatprep.subr.bf16.mxu0 0
      %380 = vmatpush1.bf16.msra.mxu0 %v341
      %381 = vmatprep.subr.bf16.mxu0 0
      %382 = vmatpush1.bf16.msra.mxu0 %v342
      %383 = vmatprep.subr.bf16.mxu0 0
      %384 = vmatpush1.bf16.msra.mxu0 %v343
      %385 = vmatprep.subr.bf16.mxu0 0
      %386 = vmatpush1.bf16.msra.mxu0 %v344
      %387 = vmatprep.subr.bf16.mxu0 0
      %388 = vmatpush1.bf16.msra.mxu0 %v345
      %389 = vmatprep.subr.bf16.mxu0 0
      %390 = vmatpush1.bf16.msra.mxu0 %v346
      %391 = vmatprep.subr.bf16.mxu0 0
      %392 = vmatpush1.bf16.msra.mxu0 %v347
      %393 = vmatprep.subr.bf16.mxu0 0
      %394 = vmatpush1.bf16.msra.mxu0 %v348
      %395 = vmatprep.subr.bf16.mxu0 0
      %396 = vmatpush1.bf16.msra.mxu0 %v349
      %397 = vmatprep.subr.bf16.mxu0 0
      %398 = vmatpush1.bf16.msra.mxu0 %v350
      %399 = vmatprep.mubr.bf16.mxu0 %v268
      %400 = vmatmul.mubr.bf16.gmra.mrb[0].mxu0 %v267
      %v401 = vpop.f32.mrb[0].mxu0
      %v402 = vadd.f32 %v262, %v401
      %v403 = vpop.f32.mrb[0].mxu0
      %v404 = vpop.f32.mrb[0].mxu0
      %v405 = vpop.f32.mrb[0].mxu0
      %406 = vdwg.mxu0
      %v407 = vpack.c.bf16 %v402, %v402
      %vm408 = vcmask 125952
      %409 = vst.msk [vmem:[%s222] sm:$0xf] %vm408, %v407
      %p410 = scmp.lt.s32.totalorder %s18, 7
      %s411 = scalar_select %p410, %s18, 7
      %p412 = scmp.lt.s32.totalorder %s19, 0
      %s413 = scalar_select %p412, %s19, 0
      %s414 = sadd.s32 %s413, %s411
      %s415 = smul.addr %s414, 4
      %s416 = scalar_lea.vmem %s3, %s415
      // Predicated region
      $region33: #{deep_gcn_forward.22} parent=31 // pred_check
        %p417 = pneg %p121
      $region34: #{deep_gcn_forward.22} parent=31 // pred_check_branch
        %419 = sbr.rel (%p417) target = $region36
      $region35: #{deep_gcn_forward.22} parent=31 // pred_region
        _
      $region36: #{deep_gcn_forward.22} parent=31 // pred_fallthru
        _
    $region32: #{deep_gcn_forward.22} parent=5 // pred_fallthru
      _
    %p420 = scmp.le.s32.totalorder 2, %s9
    // Predicated region
    $region37: #{deep_gcn_forward.22} parent=5 // pred_check
      %p421 = pneg %p420
    $region38: #{deep_gcn_forward.22} parent=5 // pred_check_branch
      %423 = sbr.rel (%p421) target = $region40
    $region39: #{deep_gcn_forward.22} parent=5 // pred_region
      %s424 = ssub.s32 %s9, 2
      // Predicated region
      $region41: #{deep_gcn_forward.22} parent=39 // pred_check
        %p425 = pneg %p127
      $region42: #{deep_gcn_forward.22} parent=39 // pred_check_branch
        %427 = sbr.rel (%p425) target = $region44
      $region43: #{deep_gcn_forward.22} parent=39 // pred_region
        %p428 = scmp.lt.s32.totalorder %s20, 7
        %s429 = scalar_select %p428, %s20, 7
        %p430 = scmp.lt.s32.totalorder %s21, 0
        %s431 = scalar_select %p430, %s21, 0
        %s432 = sadd.s32 %s431, %s429
        %s433 = smul.addr %s432, 4
        %s434 = scalar_lea.vmem %s3, %s433
      $region44: #{deep_gcn_forward.22} parent=39 // pred_fallthru
        _
    $region40: #{deep_gcn_forward.22} parent=5 // pred_fallthru
      _
  $region6: #{deep_gcn_forward.22} parent=0 // loop_footer
    %s13 = sadd.s32 1, %s9
  $region7: #{deep_gcn_forward.22} parent=0 // loop_footer_branch
    %8 = sbr.rel target = $region3
  $region8: #{deep_gcn_forward.22} parent=0 // loop_exit
    _

// kernel: deep_gcn_forward.24
$region0: #{deep_gcn_forward.24}
  #allocation0 [shape = 'u32[]', space=smem, size = 0x4, offset = 0x4, fixed_abs, tag = 'smem constant byte address 0x4 - core index']
  #allocation1 [shape = 'u32[144,128]{1,0:T(1,128)}', space=vmem, size = 0x12000, scoped, tag = 'internal scratch']
  %s0 = inlined_call_operand.vmem [shape: bf16[8,128], index: 0, kind: input, shape index: {}]
  %s1 = inlined_call_operand.vmem [shape: f32[1,128], index: 1, kind: input, shape index: {}]
  %s2 = inlined_call_operand.vmem [shape: f32[1,128], index: 2, kind: input, shape index: {}]
  %s3 = inlined_call_operand.vmem [shape: bf16[8,128], index: 3, kind: output, shape index: {}]
  %s4 = sld [smem:[#allocation0]]
  $region22: #{deep_gcn_forward.24} parent=0
    _
  %s6 = ssub.s32 1, %s4
  %s7 = scalar_select 0, %s6, %s4
  // Predicated region
  $region2: #{deep_gcn_forward.24} parent=0 // pred_check
    _
  $region3: #{deep_gcn_forward.24} parent=0 // pred_check_branch
    %9 = sbr.rel (0) target = $region5
  $region4: #{deep_gcn_forward.24} parent=0 // pred_region
    _
  $region5: #{deep_gcn_forward.24} parent=0 // pred_fallthru
    _
  // Predicated region
  $region6: #{deep_gcn_forward.24} parent=0 // pred_check
    _
  $region7: #{deep_gcn_forward.24} parent=0 // pred_check_branch
    %11 = sbr.rel (0) target = $region9
  $region8: #{deep_gcn_forward.24} parent=0 // pred_region
    _
  $region9: #{deep_gcn_forward.24} parent=0 // pred_fallthru
    _
  // Predicated region
  $region10: #{deep_gcn_forward.24} parent=0 // pred_check
    _
  $region11: #{deep_gcn_forward.24} parent=0 // pred_check_branch
    %13 = sbr.rel (0) target = $region13
  $region12: #{deep_gcn_forward.24} parent=0 // pred_region
    _
  $region13: #{deep_gcn_forward.24} parent=0 // pred_fallthru
    _
  %v14 = vld [vmem:[%s0] sm:$0xf]
  %v15 = vunpack.c.l.bf16 %v14
  %v16 = vld [vmem:[%s1] sm:$0x1]
  %v18 = vlaneseq
  %v19 = vshrl.u32 %v18, 7
  %v20 = vsub.s32 0, %v19
  %v21 = vrot.slane %v16, %v20
  %v23 = vmul.f32 %v15, %v21
  %v24 = vld [vmem:[%s2] sm:$0x1]
  %v26 = vlaneseq
  %v27 = vshrl.u32 %v26, 7
  %v28 = vsub.s32 0, %v27
  %v29 = vrot.slane %v24, %v28
  %v31 = vadd.f32 %v23, %v29
  %v32 = vmax.f32 %v31, 0.0
  %v33 = vpack.c.bf16 %v32, %v32
  %34 = vst [vmem:[%s3] sm:$0xf] %v33
  // Predicated region
  $region14: #{deep_gcn_forward.24} parent=0 // pred_check
    _
  $region15: #{deep_gcn_forward.24} parent=0 // pred_check_branch
    %36 = sbr.rel (0) target = $region17
  $region16: #{deep_gcn_forward.24} parent=0 // pred_region
    _
  $region17: #{deep_gcn_forward.24} parent=0 // pred_fallthru
    _
  // Predicated region
  $region18: #{deep_gcn_forward.24} parent=0 // pred_check
    _
  $region19: #{deep_gcn_forward.24} parent=0 // pred_check_branch
    %38 = sbr.rel (0) target = $region21
  $region20: #{deep_gcn_forward.24} parent=0 // pred_region
    _
  $region21: #{deep_gcn_forward.24} parent=0 // pred_fallthru
    _

// kernel: deep_gcn_forward.23
$region0: #{deep_gcn_forward.23}
  #allocation0 [shape = 'u32[]', space=smem, size = 0x4, offset = 0x4, fixed_abs, tag = 'smem constant byte address 0x4 - core index']
  #allocation1 [shape = 'u32[144,128]{1,0:T(1,128)}', space=vmem, size = 0x12000, scoped, tag = 'internal scratch']
  %s0 = inlined_call_operand.vmem [shape: bf16[16,432], index: 0, kind: input, shape index: {}]
  %s1 = inlined_call_operand.vmem [shape: bf16[432,16], index: 1, kind: input, shape index: {}]
  %s2 = inlined_call_operand.vmem [shape: bf16[16,432], index: 2, kind: input, shape index: {}]
  %s3 = inlined_call_operand.vmem [shape: bf16[432,16], index: 3, kind: input, shape index: {}]
  %s4 = inlined_call_operand.vmem [shape: bf16[16,16], index: 4, kind: output, shape index: {0}]
  %s5 = inlined_call_operand.vmem [shape: f32[1,1,16], index: 5, kind: output, shape index: {1}]
  %s6 = inlined_call_operand.vmem [shape: f32[1,1,16], index: 6, kind: output, shape index: {2}]
  %7 = xla_tuple %s4, %s5, %s6
  %s8 = sld [smem:[#allocation0]]
  $region42: #{deep_gcn_forward.23} parent=0
    _
  %s10 = ssub.s32 1, %s8
  %s11 = scalar_select 0, %s10, %s8
  // Predicated region
  $region2: #{deep_gcn_forward.23} parent=0 // pred_check
    _
  $region3: #{deep_gcn_forward.23} parent=0 // pred_check_branch
    %13 = sbr.rel (0) target = $region5
  $region4: #{deep_gcn_forward.23} parent=0 // pred_region
    _
  $region5: #{deep_gcn_forward.23} parent=0 // pred_fallthru
    _
  // Predicated region
  $region6: #{deep_gcn_forward.23} parent=0 // pred_check
    _
  $region7: #{deep_gcn_forward.23} parent=0 // pred_check_branch
    %15 = sbr.rel (0) target = $region9
  $region8: #{deep_gcn_forward.23} parent=0 // pred_region
    _
  $region9: #{deep_gcn_forward.23} parent=0 // pred_fallthru
    _
  // Predicated region
  $region10: #{deep_gcn_forward.23} parent=0 // pred_check
    _
  $region11: #{deep_gcn_forward.23} parent=0 // pred_check_branch
    %17 = sbr.rel (0) target = $region13
  $region12: #{deep_gcn_forward.23} parent=0 // pred_region
    _
  $region13: #{deep_gcn_forward.23} parent=0 // pred_fallthru
    _
  // Predicated region
  $region14: #{deep_gcn_forward.23} parent=0 // pred_check
    _
  $region15: #{deep_gcn_forward.23} parent=0 // pred_check_branch
    %19 = sbr.rel (0) target = $region17
  $region16: #{deep_gcn_forward.23} parent=0 // pred_region
    _
  $region17: #{deep_gcn_forward.23} parent=0 // pred_fallthru
    _
  %v21 = vld [vmem:[%s0] sm:$0xff]
  %v22 = vld [vmem:[%s0 + $0x8] sm:$0xff]
  %v23 = vld [vmem:[%s0 + $0x10] sm:$0xff]
  %v24 = vld [vmem:[%s0 + $0x18] sm:$0xff]
  %v25 = vld [vmem:[%s1] sm:$0xf]
  %v26 = vld [vmem:[%s1 + $0x4] sm:$0xf]
  %v27 = vld [vmem:[%s1 + $0x8] sm:$0xf]
  %v28 = vld [vmem:[%s1 + $0xc] sm:$0xf]
  %v29 = vld [vmem:[%s1 + $0x10] sm:$0xf]
  %v30 = vld [vmem:[%s1 + $0x14] sm:$0xf]
  %v31 = vld [vmem:[%s1 + $0x18] sm:$0xf]
  %v32 = vld [vmem:[%s1 + $0x1c] sm:$0xf]
  %v33 = vld [vmem:[%s1 + $0x20] sm:$0xf]
  %v34 = vld [vmem:[%s1 + $0x24] sm:$0xf]
  %v35 = vld [vmem:[%s1 + $0x28] sm:$0xf]
  %v36 = vld [vmem:[%s1 + $0x2c] sm:$0xf]
  %v37 = vld [vmem:[%s1 + $0x30] sm:$0xf]
  %v38 = vld [vmem:[%s1 + $0x34] sm:$0xf]
  %v39 = vld [vmem:[%s1 + $0x38] sm:$0xf]
  %v40 = vld [vmem:[%s1 + $0x3c] sm:$0xf]
  %v41 = vld [vmem:[%s1 + $0x40] sm:$0xf]
  %v42 = vld [vmem:[%s1 + $0x44] sm:$0xf]
  %v43 = vld [vmem:[%s1 + $0x48] sm:$0xf]
  %v44 = vld [vmem:[%s1 + $0x4c] sm:$0xf]
  %v45 = vld [vmem:[%s1 + $0x50] sm:$0xf]
  %v46 = vld [vmem:[%s1 + $0x54] sm:$0xf]
  %v47 = vld [vmem:[%s1 + $0x58] sm:$0xf]
  %v48 = vld [vmem:[%s1 + $0x5c] sm:$0xf]
  %v49 = vld [vmem:[%s1 + $0x60] sm:$0xf]
  %v50 = vld [vmem:[%s1 + $0x64] sm:$0xf]
  %v51 = vld [vmem:[%s1 + $0x68] sm:$0xf]
  %v52 = vld [vmem:[%s1 + $0x6c] sm:$0xf]
  %v53 = vld [vmem:[%s1 + $0x70] sm:$0xf]
  %v54 = vld [vmem:[%s1 + $0x74] sm:$0xf]
  %v55 = vld [vmem:[%s1 + $0x78] sm:$0xf]
  %v56 = vld [vmem:[%s1 + $0x7c] sm:$0xf]
  %v57 = vld [vmem:[%s1 + $0x80] sm:$0xf]
  %v58 = vld [vmem:[%s1 + $0x84] sm:$0xf]
  %v59 = vld [vmem:[%s1 + $0x88] sm:$0xf]
  %v60 = vld [vmem:[%s1 + $0x8c] sm:$0xf]
  %v61 = vld [vmem:[%s1 + $0x90] sm:$0xf]
  %v62 = vld [vmem:[%s1 + $0x94] sm:$0xf]
  %v63 = vld [vmem:[%s1 + $0x98] sm:$0xf]
  %v64 = vld [vmem:[%s1 + $0x9c] sm:$0xf]
  %v65 = vld [vmem:[%s1 + $0xa0] sm:$0xf]
  %v66 = vld [vmem:[%s1 + $0xa4] sm:$0xf]
  %v67 = vld [vmem:[%s1 + $0xa8] sm:$0xf]
  %v68 = vld [vmem:[%s1 + $0xac] sm:$0xf]
  %v69 = vld [vmem:[%s1 + $0xb0] sm:$0xf]
  %v70 = vld [vmem:[%s1 + $0xb4] sm:$0xf]
  %v71 = vld [vmem:[%s1 + $0xb8] sm:$0xf]
  %v72 = vld [vmem:[%s1 + $0xbc] sm:$0xf]
  %v73 = vld [vmem:[%s1 + $0xc0] sm:$0xf]
  %v74 = vld [vmem:[%s1 + $0xc4] sm:$0xf]
  %v75 = vld [vmem:[%s1 + $0xc8] sm:$0xf]
  %v76 = vld [vmem:[%s1 + $0xcc] sm:$0xf]
  %v77 = vld [vmem:[%s1 + $0xd0] sm:$0xf]
  %v78 = vld [vmem:[%s1 + $0xd4] sm:$0xf]
  %v79 = vld [vmem:[%s2] sm:$0xff]
  %v80 = vld [vmem:[%s2 + $0x8] sm:$0xff]
  %v81 = vld [vmem:[%s2 + $0x10] sm:$0xff]
  %v82 = vld [vmem:[%s2 + $0x18] sm:$0xff]
  %v83 = vld [vmem:[%s3] sm:$0xf]
  %v84 = vld [vmem:[%s3 + $0x4] sm:$0xf]
  %v85 = vld [vmem:[%s3 + $0x8] sm:$0xf]
  %v86 = vld [vmem:[%s3 + $0xc] sm:$0xf]
  %v87 = vld [vmem:[%s3 + $0x10] sm:$0xf]
  %v88 = vld [vmem:[%s3 + $0x14] sm:$0xf]
  %v89 = vld [vmem:[%s3 + $0x18] sm:$0xf]
  %v90 = vld [vmem:[%s3 + $0x1c] sm:$0xf]
  %v91 = vld [vmem:[%s3 + $0x20] sm:$0xf]
  %v92 = vld [vmem:[%s3 + $0x24] sm:$0xf]
  %v93 = vld [vmem:[%s3 + $0x28] sm:$0xf]
  %v94 = vld [vmem:[%s3 + $0x2c] sm:$0xf]
  %v95 = vld [vmem:[%s3 + $0x30] sm:$0xf]
  %v96 = vld [vmem:[%s3 + $0x34] sm:$0xf]
  %v97 = vld [vmem:[%s3 + $0x38] sm:$0xf]
  %v98 = vld [vmem:[%s3 + $0x3c] sm:$0xf]
  %v99 = vld [vmem:[%s3 + $0x40] sm:$0xf]
  %v100 = vld [vmem:[%s3 + $0x44] sm:$0xf]
  %v101 = vld [vmem:[%s3 + $0x48] sm:$0xf]
  %v102 = vld [vmem:[%s3 + $0x4c] sm:$0xf]
  %v103 = vld [vmem:[%s3 + $0x50] sm:$0xf]
  %v104 = vld [vmem:[%s3 + $0x54] sm:$0xf]
  %v105 = vld [vmem:[%s3 + $0x58] sm:$0xf]
  %v106 = vld [vmem:[%s3 + $0x5c] sm:$0xf]
  %v107 = vld [vmem:[%s3 + $0x60] sm:$0xf]
  %v108 = vld [vmem:[%s3 + $0x64] sm:$0xf]
  %v109 = vld [vmem:[%s3 + $0x68] sm:$0xf]
  %v110 = vld [vmem:[%s3 + $0x6c] sm:$0xf]
  %v111 = vld [vmem:[%s3 + $0x70] sm:$0xf]
  %v112 = vld [vmem:[%s3 + $0x74] sm:$0xf]
  %v113 = vld [vmem:[%s3 + $0x78] sm:$0xf]
  %v114 = vld [vmem:[%s3 + $0x7c] sm:$0xf]
  %v115 = vld [vmem:[%s3 + $0x80] sm:$0xf]
  %v116 = vld [vmem:[%s3 + $0x84] sm:$0xf]
  %v117 = vld [vmem:[%s3 + $0x88] sm:$0xf]
  %v118 = vld [vmem:[%s3 + $0x8c] sm:$0xf]
  %v119 = vld [vmem:[%s3 + $0x90] sm:$0xf]
  %v120 = vld [vmem:[%s3 + $0x94] sm:$0xf]
  %v121 = vld [vmem:[%s3 + $0x98] sm:$0xf]
  %v122 = vld [vmem:[%s3 + $0x9c] sm:$0xf]
  %v123 = vld [vmem:[%s3 + $0xa0] sm:$0xf]
  %v124 = vld [vmem:[%s3 + $0xa4] sm:$0xf]
  %v125 = vld [vmem:[%s3 + $0xa8] sm:$0xf]
  %v126 = vld [vmem:[%s3 + $0xac] sm:$0xf]
  %v127 = vld [vmem:[%s3 + $0xb0] sm:$0xf]
  %v128 = vld [vmem:[%s3 + $0xb4] sm:$0xf]
  %v129 = vld [vmem:[%s3 + $0xb8] sm:$0xf]
  %v130 = vld [vmem:[%s3 + $0xbc] sm:$0xf]
  %v131 = vld [vmem:[%s3 + $0xc0] sm:$0xf]
  %v132 = vld [vmem:[%s3 + $0xc4] sm:$0xf]
  %v133 = vld [vmem:[%s3 + $0xc8] sm:$0xf]
  %v134 = vld [vmem:[%s3 + $0xcc] sm:$0xf]
  %v135 = vld [vmem:[%s3 + $0xd0] sm:$0xf]
  %v136 = vld [vmem:[%s3 + $0xd4] sm:$0xf]
  %v141 = vunpack.c.l.b16 %v79
  %v142 = vunpack.c.h.b16 %v79
  %v143 = vunpack.c.l.b16 %v80
  %v144 = vunpack.c.h.b16 %v80
  %v145 = vunpack.c.l.b16 %v81
  %v146 = vunpack.c.h.b16 %v81
  %v147 = vunpack.c.l.b16 %v82
  %v148 = vunpack.c.h.b16 %v82
  %v149 = vpack.c.b16 %v145, %v141
  %v150 = vpack.c.b16 %v146, %v142
  %v151 = vpack.c.b16 %v147, %v143
  %v152 = vpack.c.b16 %v148, %v144
  %v210 = vunpack.c.l.b16 %v83
  %v211 = vunpack.c.l.b16 %v84
  %v212 = vunpack.c.l.b16 %v85
  %v213 = vunpack.c.l.b16 %v86
  %v214 = vunpack.c.l.b16 %v87
  %v215 = vunpack.c.l.b16 %v88
  %v216 = vunpack.c.l.b16 %v89
  %v217 = vunpack.c.l.b16 %v90
  %v218 = vunpack.c.l.b16 %v91
  %v219 = vunpack.c.l.b16 %v92
  %v220 = vunpack.c.l.b16 %v93
  %v221 = vunpack.c.l.b16 %v94
  %v222 = vunpack.c.l.b16 %v95
  %v223 = vunpack.c.l.b16 %v96
  %v224 = vunpack.c.l.b16 %v97
  %v225 = vunpack.c.l.b16 %v98
  %v226 = vunpack.c.l.b16 %v99
  %v227 = vunpack.c.l.b16 %v100
  %v228 = vunpack.c.l.b16 %v101
  %v229 = vunpack.c.l.b16 %v102
  %v230 = vunpack.c.l.b16 %v103
  %v231 = vunpack.c.l.b16 %v104
  %v232 = vunpack.c.l.b16 %v105
  %v233 = vunpack.c.l.b16 %v106
  %v234 = vunpack.c.l.b16 %v107
  %v235 = vunpack.c.l.b16 %v108
  %v236 = vunpack.c.l.b16 %v109
  %v237 = vunpack.c.l.b16 %v110
  %v238 = vunpack.c.l.b16 %v111
  %v239 = vunpack.c.l.b16 %v112
  %v240 = vunpack.c.l.b16 %v113
  %v241 = vunpack.c.l.b16 %v114
  %v242 = vunpack.c.l.b16 %v115
  %v243 = vunpack.c.l.b16 %v116
  %v244 = vunpack.c.l.b16 %v117
  %v245 = vunpack.c.l.b16 %v118
  %v246 = vunpack.c.l.b16 %v119
  %v247 = vunpack.c.l.b16 %v120
  %v248 = vunpack.c.l.b16 %v121
  %v249 = vunpack.c.l.b16 %v122
  %v250 = vunpack.c.l.b16 %v123
  %v251 = vunpack.c.l.b16 %v124
  %v252 = vunpack.c.l.b16 %v125
  %v253 = vunpack.c.l.b16 %v126
  %v254 = vunpack.c.l.b16 %v127
  %v255 = vunpack.c.l.b16 %v128
  %v256 = vunpack.c.l.b16 %v129
  %v257 = vunpack.c.l.b16 %v130
  %v258 = vunpack.c.l.b16 %v131
  %v259 = vunpack.c.l.b16 %v132
  %v260 = vunpack.c.l.b16 %v133
  %v261 = vunpack.c.l.b16 %v134
  %v262 = vunpack.c.l.b16 %v135
  %v263 = vunpack.c.l.b16 %v136
  %v264 = vpack.c.b16 %v211, %v210
  %v265 = vpack.c.b16 %v213, %v212
  %v266 = vpack.c.b16 %v215, %v214
  %v267 = vpack.c.b16 %v217, %v216
  %v268 = vpack.c.b16 %v219, %v218
  %v269 = vpack.c.b16 %v221, %v220
  %v270 = vpack.c.b16 %v223, %v222
  %v271 = vpack.c.b16 %v225, %v224
  %v272 = vpack.c.b16 %v227, %v226
  %v273 = vpack.c.b16 %v229, %v228
  %v274 = vpack.c.b16 %v231, %v230
  %v275 = vpack.c.b16 %v233, %v232
  %v276 = vpack.c.b16 %v235, %v234
  %v277 = vpack.c.b16 %v237, %v236
  %v278 = vpack.c.b16 %v239, %v238
  %v279 = vpack.c.b16 %v241, %v240
  %v280 = vpack.c.b16 %v243, %v242
  %v281 = vpack.c.b16 %v245, %v244
  %v282 = vpack.c.b16 %v247, %v246
  %v283 = vpack.c.b16 %v249, %v248
  %v284 = vpack.c.b16 %v251, %v250
  %v285 = vpack.c.b16 %v253, %v252
  %v286 = vpack.c.b16 %v255, %v254
  %v287 = vpack.c.b16 %v257, %v256
  %v288 = vpack.c.b16 %v259, %v258
  %v289 = vpack.c.b16 %v261, %v260
  %v290 = vpack.c.b16 %v263, %v262
  %vm318 = vcmask 392192
  %v320 = vsel %vm318, %v152, 0
  %322 = vmatprep.subr.bf16.mxu0 0
  %323 = vmatpush1.bf16.msra.mxu0 %v264
  %324 = vmatprep.subr.bf16.mxu0 0
  %325 = vmatpush1.bf16.msra.mxu0 %v265
  %326 = vmatprep.subr.bf16.mxu0 0
  %327 = vmatpush1.bf16.msra.mxu0 %v266
  %328 = vmatprep.subr.bf16.mxu0 0
  %329 = vmatpush1.bf16.msra.mxu0 %v267
  %330 = vmatprep.subr.bf16.mxu0 0
  %331 = vmatpush1.bf16.msra.mxu0 %v268
  %332 = vmatprep.subr.bf16.mxu0 0
  %333 = vmatpush1.bf16.msra.mxu0 %v269
  %334 = vmatprep.subr.bf16.mxu0 0
  %335 = vmatpush1.bf16.msra.mxu0 %v270
  %336 = vmatprep.subr.bf16.mxu0 0
  %337 = vmatpush1.bf16.msra.mxu0 %v271
  %338 = vmatprep.subr.bf16.mxu0 0
  %339 = vmatpush1.bf16.msra.mxu0 %v272
  %340 = vmatprep.subr.bf16.mxu0 0
  %341 = vmatpush1.bf16.msra.mxu0 %v273
  %342 = vmatprep.subr.bf16.mxu0 0
  %343 = vmatpush1.bf16.msra.mxu0 %v274
  %344 = vmatprep.subr.bf16.mxu0 0
  %345 = vmatpush1.bf16.msra.mxu0 %v275
  %346 = vmatprep.subr.bf16.mxu0 0
  %347 = vmatpush1.bf16.msra.mxu0 %v276
  %348 = vmatprep.subr.bf16.mxu0 0
  %349 = vmatpush1.bf16.msra.mxu0 %v277
  %350 = vmatprep.subr.bf16.mxu0 0
  %351 = vmatpush1.bf16.msra.mxu0 %v278
  %352 = vmatprep.subr.bf16.mxu0 0
  %353 = vmatpush1.bf16.msra.mxu0 %v279
  %354 = vmatprep.mubr.bf16.mxu0 %v150
  %355 = vmatmul.mubr.bf16.gmra.mrb[0].mxu0 %v149
  %v356 = vpop.f32.mrb[0].mxu0
  %v357 = vadd.f32 0.0, %v356
  %v358 = vpop.f32.mrb[0].mxu0
  %v359 = vpop.f32.mrb[0].mxu0
  %v360 = vadd.f32 0.0, %v359
  %v361 = vpop.f32.mrb[0].mxu0
  %362 = vdwg.mxu0
  %363 = vmatprep.subr.bf16.mxu0 0
  %364 = vmatpush1.bf16.msra.mxu0 %v280
  %365 = vmatprep.subr.bf16.mxu0 0
  %366 = vmatpush1.bf16.msra.mxu0 %v281
  %367 = vmatprep.subr.bf16.mxu0 0
  %368 = vmatpush1.bf16.msra.mxu0 %v282
  %369 = vmatprep.subr.bf16.mxu0 0
  %370 = vmatpush1.bf16.msra.mxu0 %v283
  %371 = vmatprep.subr.bf16.mxu0 0
  %372 = vmatpush1.bf16.msra.mxu0 %v284
  %373 = vmatprep.subr.bf16.mxu0 0
  %374 = vmatpush1.bf16.msra.mxu0 %v285
  %375 = vmatprep.subr.bf16.mxu0 0
  %376 = vmatpush1.bf16.msra.mxu0 %v286
  %377 = vmatprep.subr.bf16.mxu0 0
  %378 = vmatpush1.bf16.msra.mxu0 %v287
  %379 = vmatprep.subr.bf16.mxu0 0
  %380 = vmatpush1.bf16.msra.mxu0 %v288
  %381 = vmatprep.subr.bf16.mxu0 0
  %382 = vmatpush1.bf16.msra.mxu0 %v289
  %383 = vmatprep.subr.bf16.mxu0 0
  %384 = vmatpush1.bf16.msra.mxu0 %v290
  %385 = vmatprep.subr.bf16.mxu0 0
  %386 = vmatpush1.bf16.msra.mxu0 0
  %387 = vmatprep.subr.bf16.mxu0 0
  %388 = vmatpush1.bf16.msra.mxu0 0
  %389 = vmatprep.subr.bf16.mxu0 0
  %390 = vmatpush1.bf16.msra.mxu0 0
  %391 = vmatprep.subr.bf16.mxu0 0
  %392 = vmatpush1.bf16.msra.mxu0 0
  %393 = vmatprep.subr.bf16.mxu0 0
  %394 = vmatpush1.bf16.msra.mxu0 0
  %395 = vmatprep.mubr.bf16.mxu0 %v320
  %396 = vmatmul.mubr.bf16.gmra.mrb[0].mxu0 %v151
  %v397 = vpop.f32.mrb[0].mxu0
  %v398 = vadd.f32 %v357, %v397
  %v399 = vpop.f32.mrb[0].mxu0
  %v400 = vpop.f32.mrb[0].mxu0
  %v401 = vadd.f32 %v360, %v400
  %v402 = vpop.f32.mrb[0].mxu0
  %403 = vdwg.mxu0
  %v408 = vunpack.c.l.b16 %v21
  %v409 = vunpack.c.h.b16 %v21
  %v410 = vunpack.c.l.b16 %v22
  %v411 = vunpack.c.h.b16 %v22
  %v412 = vunpack.c.l.b16 %v23
  %v413 = vunpack.c.h.b16 %v23
  %v414 = vunpack.c.l.b16 %v24
  %v415 = vunpack.c.h.b16 %v24
  %v416 = vpack.c.b16 %v412, %v408
  %v417 = vpack.c.b16 %v413, %v409
  %v418 = vpack.c.b16 %v414, %v410
  %v419 = vpack.c.b16 %v415, %v411
  %v477 = vunpack.c.l.b16 %v25
  %v478 = vunpack.c.l.b16 %v26
  %v479 = vunpack.c.l.b16 %v27
  %v480 = vunpack.c.l.b16 %v28
  %v481 = vunpack.c.l.b16 %v29
  %v482 = vunpack.c.l.b16 %v30
  %v483 = vunpack.c.l.b16 %v31
  %v484 = vunpack.c.l.b16 %v32
  %v485 = vunpack.c.l.b16 %v33
  %v486 = vunpack.c.l.b16 %v34
  %v487 = vunpack.c.l.b16 %v35
  %v488 = vunpack.c.l.b16 %v36
  %v489 = vunpack.c.l.b16 %v37
  %v490 = vunpack.c.l.b16 %v38
  %v491 = vunpack.c.l.b16 %v39
  %v492 = vunpack.c.l.b16 %v40
  %v493 = vunpack.c.l.b16 %v41
  %v494 = vunpack.c.l.b16 %v42
  %v495 = vunpack.c.l.b16 %v43
  %v496 = vunpack.c.l.b16 %v44
  %v497 = vunpack.c.l.b16 %v45
  %v498 = vunpack.c.l.b16 %v46
  %v499 = vunpack.c.l.b16 %v47
  %v500 = vunpack.c.l.b16 %v48
  %v501 = vunpack.c.l.b16 %v49
  %v502 = vunpack.c.l.b16 %v50
  %v503 = vunpack.c.l.b16 %v51
  %v504 = vunpack.c.l.b16 %v52
  %v505 = vunpack.c.l.b16 %v53
  %v506 = vunpack.c.l.b16 %v54
  %v507 = vunpack.c.l.b16 %v55
  %v508 = vunpack.c.l.b16 %v56
  %v509 = vunpack.c.l.b16 %v57
  %v510 = vunpack.c.l.b16 %v58
  %v511 = vunpack.c.l.b16 %v59
  %v512 = vunpack.c.l.b16 %v60
  %v513 = vunpack.c.l.b16 %v61
  %v514 = vunpack.c.l.b16 %v62
  %v515 = vunpack.c.l.b16 %v63
  %v516 = vunpack.c.l.b16 %v64
  %v517 = vunpack.c.l.b16 %v65
  %v518 = vunpack.c.l.b16 %v66
  %v519 = vunpack.c.l.b16 %v67
  %v520 = vunpack.c.l.b16 %v68
  %v521 = vunpack.c.l.b16 %v69
  %v522 = vunpack.c.l.b16 %v70
  %v523 = vunpack.c.l.b16 %v71
  %v524 = vunpack.c.l.b16 %v72
  %v525 = vunpack.c.l.b16 %v73
  %v526 = vunpack.c.l.b16 %v74
  %v527 = vunpack.c.l.b16 %v75
  %v528 = vunpack.c.l.b16 %v76
  %v529 = vunpack.c.l.b16 %v77
  %v530 = vunpack.c.l.b16 %v78
  %v531 = vpack.c.b16 %v478, %v477
  %v532 = vpack.c.b16 %v480, %v479
  %v533 = vpack.c.b16 %v482, %v481
  %v534 = vpack.c.b16 %v484, %v483
  %v535 = vpack.c.b16 %v486, %v485
  %v536 = vpack.c.b16 %v488, %v487
  %v537 = vpack.c.b16 %v490, %v489
  %v538 = vpack.c.b16 %v492, %v491
  %v539 = vpack.c.b16 %v494, %v493
  %v540 = vpack.c.b16 %v496, %v495
  %v541 = vpack.c.b16 %v498, %v497
  %v542 = vpack.c.b16 %v500, %v499
  %v543 = vpack.c.b16 %v502, %v501
  %v544 = vpack.c.b16 %v504, %v503
  %v545 = vpack.c.b16 %v506, %v505
  %v546 = vpack.c.b16 %v508, %v507
  %v547 = vpack.c.b16 %v510, %v509
  %v548 = vpack.c.b16 %v512, %v511
  %v549 = vpack.c.b16 %v514, %v513
  %v550 = vpack.c.b16 %v516, %v515
  %v551 = vpack.c.b16 %v518, %v517
  %v552 = vpack.c.b16 %v520, %v519
  %v553 = vpack.c.b16 %v522, %v521
  %v554 = vpack.c.b16 %v524, %v523
  %v555 = vpack.c.b16 %v526, %v525
  %v556 = vpack.c.b16 %v528, %v527
  %v557 = vpack.c.b16 %v530, %v529
  %v586 = vsel %vm318, %v419, 0
  %588 = vmatprep.subr.bf16.mxu0 0
  %589 = vmatpush1.bf16.msra.mxu0 %v531
  %590 = vmatprep.subr.bf16.mxu0 0
  %591 = vmatpush1.bf16.msra.mxu0 %v532
  %592 = vmatprep.subr.bf16.mxu0 0
  %593 = vmatpush1.bf16.msra.mxu0 %v533
  %594 = vmatprep.subr.bf16.mxu0 0
  %595 = vmatpush1.bf16.msra.mxu0 %v534
  %596 = vmatprep.subr.bf16.mxu0 0
  %597 = vmatpush1.bf16.msra.mxu0 %v535
  %598 = vmatprep.subr.bf16.mxu0 0
  %599 = vmatpush1.bf16.msra.mxu0 %v536
  %600 = vmatprep.subr.bf16.mxu0 0
  %601 = vmatpush1.bf16.msra.mxu0 %v537
  %602 = vmatprep.subr.bf16.mxu0 0
  %603 = vmatpush1.bf16.msra.mxu0 %v538
  %604 = vmatprep.subr.bf16.mxu0 0
  %605 = vmatpush1.bf16.msra.mxu0 %v539
  %606 = vmatprep.subr.bf16.mxu0 0
  %607 = vmatpush1.bf16.msra.mxu0 %v540
  %608 = vmatprep.subr.bf16.mxu0 0
  %609 = vmatpush1.bf16.msra.mxu0 %v541
  %610 = vmatprep.subr.bf16.mxu0 0
  %611 = vmatpush1.bf16.msra.mxu0 %v542
  %612 = vmatprep.subr.bf16.mxu0 0
  %613 = vmatpush1.bf16.msra.mxu0 %v543
  %614 = vmatprep.subr.bf16.mxu0 0
  %615 = vmatpush1.bf16.msra.mxu0 %v544
  %616 = vmatprep.subr.bf16.mxu0 0
  %617 = vmatpush1.bf16.msra.mxu0 %v545
  %618 = vmatprep.subr.bf16.mxu0 0
  %619 = vmatpush1.bf16.msra.mxu0 %v546
  %620 = vmatprep.mubr.bf16.mxu0 %v417
  %621 = vmatmul.mubr.bf16.gmra.mrb[0].mxu0 %v416
  %v622 = vpop.f32.mrb[0].mxu0
  %v623 = vadd.f32 %v398, %v622
  %v624 = vpop.f32.mrb[0].mxu0
  %v625 = vpop.f32.mrb[0].mxu0
  %v626 = vadd.f32 %v401, %v625
  %v627 = vpop.f32.mrb[0].mxu0
  %628 = vdwg.mxu0
  %629 = vmatprep.subr.bf16.mxu0 0
  %630 = vmatpush1.bf16.msra.mxu0 %v547
  %631 = vmatprep.subr.bf16.mxu0 0
  %632 = vmatpush1.bf16.msra.mxu0 %v548
  %633 = vmatprep.subr.bf16.mxu0 0
  %634 = vmatpush1.bf16.msra.mxu0 %v549
  %635 = vmatprep.subr.bf16.mxu0 0
  %636 = vmatpush1.bf16.msra.mxu0 %v550
  %637 = vmatprep.subr.bf16.mxu0 0
  %638 = vmatpush1.bf16.msra.mxu0 %v551
  %639 = vmatprep.subr.bf16.mxu0 0
  %640 = vmatpush1.bf16.msra.mxu0 %v552
  %641 = vmatprep.subr.bf16.mxu0 0
  %642 = vmatpush1.bf16.msra.mxu0 %v553
  %643 = vmatprep.subr.bf16.mxu0 0
  %644 = vmatpush1.bf16.msra.mxu0 %v554
  %645 = vmatprep.subr.bf16.mxu0 0
  %646 = vmatpush1.bf16.msra.mxu0 %v555
  %647 = vmatprep.subr.bf16.mxu0 0
  %648 = vmatpush1.bf16.msra.mxu0 %v556
  %649 = vmatprep.subr.bf16.mxu0 0
  %650 = vmatpush1.bf16.msra.mxu0 %v557
  %651 = vmatprep.subr.bf16.mxu0 0
  %652 = vmatpush1.bf16.msra.mxu0 0
  %653 = vmatprep.subr.bf16.mxu0 0
  %654 = vmatpush1.bf16.msra.mxu0 0
  %655 = vmatprep.subr.bf16.mxu0 0
  %656 = vmatpush1.bf16.msra.mxu0 0
  %657 = vmatprep.subr.bf16.mxu0 0
  %658 = vmatpush1.bf16.msra.mxu0 0
  %659 = vmatprep.subr.bf16.mxu0 0
  %660 = vmatpush1.bf16.msra.mxu0 0
  %661 = vmatprep.mubr.bf16.mxu0 %v586
  %662 = vmatmul.mubr.bf16.gmra.mrb[0].mxu0 %v418
  %v663 = vpop.f32.mrb[0].mxu0
  %v664 = vadd.f32 %v623, %v663
  %v665 = vpop.f32.mrb[0].mxu0
  %v666 = vpop.f32.mrb[0].mxu0
  %v667 = vadd.f32 %v626, %v666
  %v668 = vpop.f32.mrb[0].mxu0
  %669 = vdwg.mxu0
  %v670 = vpack.c.bf16 %v667, %v664
  %v672 = vunpack.c.l.b16 %v670
  %v673 = vunpack.c.h.b16 %v670
  %v674 = vpack.c.b16 %v672, %v672
  %v675 = vpack.c.b16 %v673, %v673
  %vm678 = vcmask 125952
  %679 = vst.msk [vmem:[%s4] sm:$0xf] %vm678, %v674
  %680 = vst.msk [vmem:[%s4 + $0x4] sm:$0xf] %vm678, %v675
  %vm681 = vcmask 130048
  %v682 = vsel %vm681, %v664, 0.0
  %v683 = vsel %vm681, %v667, 0.0
  %v684 = vadd.f32 %v682, %v683
  %v685 = vrot.slane %v684, 4
  %v686 = vadd.f32 %v684, %v685
  %v687 = vrot.slane %v686, 2
  %v688 = vadd.f32 %v686, %v687
  %v689 = vrot.slane %v688, 1
  %v690 = vadd.f32 %v688, %v689
  %vm691 = vcmask 122880
  %692 = vst.msk [vmem:[%s5] sm:$0x1] %vm691, %v690
  %v693 = vmul.f32 %v664, %v664
  %v694 = vmul.f32 %v667, %v667
  %v695 = vsel %vm681, %v693, 0.0
  %v696 = vsel %vm681, %v694, 0.0
  %v697 = vadd.f32 %v695, %v696
  %v698 = vrot.slane %v697, 4
  %v699 = vadd.f32 %v697, %v698
  %v700 = vrot.slane %v699, 2
  %v701 = vadd.f32 %v699, %v700
  %v702 = vrot.slane %v701, 1
  %v703 = vadd.f32 %v701, %v702
  %704 = vst.msk [vmem:[%s6] sm:$0x1] %vm691, %v703
  // Predicated region
  $region18: #{deep_gcn_forward.23} parent=0 // pred_check
    _
  $region19: #{deep_gcn_forward.23} parent=0 // pred_check_branch
    %706 = sbr.rel (0) target = $region21
  $region20: #{deep_gcn_forward.23} parent=0 // pred_region
    _
  $region21: #{deep_gcn_forward.23} parent=0 // pred_fallthru
    _
  // Predicated region
  $region22: #{deep_gcn_forward.23} parent=0 // pred_check
    _
  $region23: #{deep_gcn_forward.23} parent=0 // pred_check_branch
    %708 = sbr.rel (0) target = $region25
  $region24: #{deep_gcn_forward.23} parent=0 // pred_region
    _
  $region25: #{deep_gcn_forward.23} parent=0 // pred_fallthru
    _
  // Predicated region
  $region26: #{deep_gcn_forward.23} parent=0 // pred_check
    _
  $region27: #{deep_gcn_forward.23} parent=0 // pred_check_branch
    %710 = sbr.rel (0) target = $region29
  $region28: #{deep_gcn_forward.23} parent=0 // pred_region
    _
  $region29: #{deep_gcn_forward.23} parent=0 // pred_fallthru
    _
  // Predicated region
  $region30: #{deep_gcn_forward.23} parent=0 // pred_check
    _
  $region31: #{deep_gcn_forward.23} parent=0 // pred_check_branch
    %712 = sbr.rel (0) target = $region33
  $region32: #{deep_gcn_forward.23} parent=0 // pred_region
    _
  $region33: #{deep_gcn_forward.23} parent=0 // pred_fallthru
    _
  // Predicated region
  $region34: #{deep_gcn_forward.23} parent=0 // pred_check
    _
  $region35: #{deep_gcn_forward.23} parent=0 // pred_check_branch
    %714 = sbr.rel (0) target = $region37
  $region36: #{deep_gcn_forward.23} parent=0 // pred_region
    _
  $region37: #{deep_gcn_forward.23} parent=0 // pred_fallthru
    _
  // Predicated region
  $region38: #{deep_gcn_forward.23} parent=0 // pred_check
    _
  $region39: #{deep_gcn_forward.23} parent=0 // pred_check_branch
    %716 = sbr.rel (0) target = $region41
  $region40: #{deep_gcn_forward.23} parent=0 // pred_region
    _
  $region41: #{deep_gcn_forward.23} parent=0 // pred_fallthru
    _

// kernel: deep_gcn_forward.25
$region0: #{deep_gcn_forward.25}
  #allocation0 [shape = 'u32[]', space=smem, size = 0x4, offset = 0x4, fixed_abs, tag = 'smem constant byte address 0x4 - core index']
  #allocation1 [shape = 'u32[144,128]{1,0:T(1,128)}', space=vmem, size = 0x12000, scoped, tag = 'internal scratch']
  %s0 = inlined_call_operand.vmem [shape: bf16[8,16,128], index: 0, kind: input, shape index: {}]
  %s1 = inlined_call_operand.vmem [shape: bf16[8,128,8], index: 1, kind: input, shape index: {}]
  %s2 = inlined_call_operand.vmem [shape: f32[1,8], index: 2, kind: input, shape index: {}]
  %s3 = inlined_call_operand.vmem [shape: bf16[8,16,8], index: 3, kind: output, shape index: {}]
  %s4 = sld [smem:[#allocation0]]
  $region45: #{deep_gcn_forward.25} parent=0
    _
  %s6 = ssub.s32 1, %s4
  %s7 = scalar_select 0, %s6, %s4
  loop: start=0, step=1, limit=10
  $region2: #{deep_gcn_forward.25} parent=0 // loop_pre_header
    _
  $region3: #{deep_gcn_forward.25} parent=0 // loop_header
    %s9 = sphi 0, %s13
    %p10 = scmp.ge.s32.totalorder %s9, 10
    %s16 = sphi 0, %s28
    %s17 = sphi 0, %s24
    %s18 = sphi 0, %s16
    %s19 = sphi 0, %s17
    %s20 = sphi 0, %s18
    %s21 = sphi 0, %s19
    %s33 = sphi 0, %s35
    %s36 = sphi 0, %s33
    %s37 = sphi 0, %s36
    %s53 = sphi 0, %s37
    %s59 = sphi 0, %s61
    %s62 = sphi 0, %s59
    %s63 = sphi 0, %s62
    %s79 = sphi 0, %s63
    %s83 = sphi 0, %s83
    %s85 = sphi 0, %s83
    %s86 = sphi 0, %s85
    %s100 = sphi 0, %s86
    %s108 = sphi 0, %s110
    %s111 = sphi 0, %s108
    %s112 = sphi 0, %s111
    %s128 = sphi 0, %s112
  $region4: #{deep_gcn_forward.25} parent=0 // loop_header_branch
    %12 = sbr.rel (%p10) target = $region8
  $region5: #{deep_gcn_forward.25} parent=0 // loop_body
    %s14 = ssub.s32 %s9, 1
    %s15 = ssub.s32 %s9, 2
    %s22 = sadd.s32 1, %s17
    %p23 = scmp.ge.s32.totalorder %s22, 1
    %s24 = scalar_select %p23, 0, %s22
    %s25 = sadd.s32 1, %s16
    %s26 = scalar_select %p23, %s25, %s16
    %p27 = scmp.ge.s32.totalorder %s26, 8
    %s28 = scalar_select %p27, 0, %s26
    %s29 = ssub.s32 %s16, %s28
    %s30 = ssub.s32 %s17, %s24
    %s31 = sor.u32 %s29, %s30
    %p32 = scmp.eq.s32.totalorder %s31, 0
    %s34 = sadd.s32 %s33, 1
    %s35 = scalar_select %p32, %s33, %s34
    %p38 = pneg %p32
    %p39 = scmp.eq.s32.totalorder %s9, 7
    %p40 = por %p38, %p39
    %p41 = scmp.ne.s32.totalorder %s33, %s36
    %p42 = scmp.eq.s32.totalorder %s9, 0
    %p43 = por %p41, %p42
    %p44 = scmp.ne.s32.totalorder %s33, %s36
    %p45 = scmp.eq.s32.totalorder %s14, 7
    %p46 = por %p44, %p45
    %p47 = scmp.ne.s32.totalorder %s36, %s37
    %p48 = scmp.eq.s32.totalorder %s14, 0
    %p49 = por %p47, %p48
    %p50 = scmp.ne.s32.totalorder %s36, %s37
    %p51 = scmp.eq.s32.totalorder %s15, 7
    %p52 = por %p50, %p51
    %p54 = scmp.ne.s32.totalorder %s37, %s53
    %p55 = scmp.eq.s32.totalorder %s15, 0
    %p56 = por %p54, %p55
    %s57 = ssub.s32 %s16, %s28
    %p58 = scmp.eq.s32.totalorder %s57, 0
    %s60 = sadd.s32 %s59, 1
    %s61 = scalar_select %p58, %s59, %s60
    %p64 = pneg %p58
    %p65 = scmp.eq.s32.totalorder %s9, 7
    %p66 = por %p64, %p65
    %p67 = scmp.ne.s32.totalorder %s59, %s62
    %p68 = scmp.eq.s32.totalorder %s9, 0
    %p69 = por %p67, %p68
    %p70 = scmp.ne.s32.totalorder %s59, %s62
    %p71 = scmp.eq.s32.totalorder %s14, 7
    %p72 = por %p70, %p71
    %p73 = scmp.ne.s32.totalorder %s62, %s63
    %p74 = scmp.eq.s32.totalorder %s14, 0
    %p75 = por %p73, %p74
    %p76 = scmp.ne.s32.totalorder %s62, %s63
    %p77 = scmp.eq.s32.totalorder %s15, 7
    %p78 = por %p76, %p77
    %p80 = scmp.ne.s32.totalorder %s63, %s79
    %p81 = scmp.eq.s32.totalorder %s15, 0
    %p82 = por %p80, %p81
    %s84 = sadd.s32 %s83, 1
    %p87 = scmp.eq.s32.totalorder %s9, 7
    %p88 = scmp.ne.s32.totalorder %s83, %s85
    %p89 = scmp.eq.s32.totalorder %s9, 0
    %p90 = por %p88, %p89
    %p91 = scmp.ne.s32.totalorder %s83, %s85
    %p92 = scmp.eq.s32.totalorder %s14, 7
    %p93 = por %p91, %p92
    %p94 = scmp.ne.s32.totalorder %s85, %s86
    %p95 = scmp.eq.s32.totalorder %s14, 0
    %p96 = por %p94, %p95
    %p97 = scmp.ne.s32.totalorder %s85, %s86
    %p98 = scmp.eq.s32.totalorder %s15, 7
    %p99 = por %p97, %p98
    %p101 = scmp.ne.s32.totalorder %s86, %s100
    %p102 = scmp.eq.s32.totalorder %s15, 0
    %p103 = por %p101, %p102
    %s104 = ssub.s32 %s16, %s28
    %s105 = ssub.s32 %s17, %s24
    %s106 = sor.u32 %s104, %s105
    %p107 = scmp.eq.s32.totalorder %s106, 0
    %s109 = sadd.s32 %s108, 1
    %s110 = scalar_select %p107, %s108, %s109
    %p113 = pneg %p107
    %p114 = scmp.eq.s32.totalorder %s9, 7
    %p115 = por %p113, %p114
    %p116 = scmp.ne.s32.totalorder %s108, %s111
    %p117 = scmp.eq.s32.totalorder %s9, 0
    %p118 = por %p116, %p117
    %p119 = scmp.ne.s32.totalorder %s108, %s111
    %p120 = scmp.eq.s32.totalorder %s14, 7
    %p121 = por %p119, %p120
    %p122 = scmp.ne.s32.totalorder %s111, %s112
    %p123 = scmp.eq.s32.totalorder %s14, 0
    %p124 = por %p122, %p123
    %p125 = scmp.ne.s32.totalorder %s111, %s112
    %p126 = scmp.eq.s32.totalorder %s15, 7
    %p127 = por %p125, %p126
    %p129 = scmp.ne.s32.totalorder %s112, %s128
    %p130 = scmp.eq.s32.totalorder %s15, 0
    %p131 = por %p129, %p130
    %p132 = scmp.le.s32.totalorder 1, %s9
    %p133 = scmp.lt.s32.totalorder %s9, 9
    %p134 = pnand %p132, %p133
    %p135 = pneg %p134
    // Predicated region
    $region9: #{deep_gcn_forward.25} parent=5 // pred_check
      _
    $region10: #{deep_gcn_forward.25} parent=5 // pred_check_branch
      %137 = sbr.rel (%p134) target = $region12
    $region11: #{deep_gcn_forward.25} parent=5 // pred_region
      %s138 = ssub.s32 %s9, 1
      // Predicated region
      $region13: #{deep_gcn_forward.25} parent=11 // pred_check
        %p139 = pneg %p96
      $region14: #{deep_gcn_forward.25} parent=11 // pred_check_branch
        %141 = sbr.rel (%p139) target = $region16
      $region15: #{deep_gcn_forward.25} parent=11 // pred_region
        _
      $region16: #{deep_gcn_forward.25} parent=11 // pred_fallthru
        _
    $region12: #{deep_gcn_forward.25} parent=5 // pred_fallthru
      _
    %p142 = scmp.lt.s32.totalorder %s9, 8
    // Predicated region
    $region17: #{deep_gcn_forward.25} parent=5 // pred_check
      %p143 = pneg %p142
    $region18: #{deep_gcn_forward.25} parent=5 // pred_check_branch
      %145 = sbr.rel (%p143) target = $region20
    $region19: #{deep_gcn_forward.25} parent=5 // pred_region
      // Predicated region
      $region21: #{deep_gcn_forward.25} parent=19 // pred_check
        %p146 = pneg %p43
      $region22: #{deep_gcn_forward.25} parent=19 // pred_check_branch
        %148 = sbr.rel (%p146) target = $region24
      $region23: #{deep_gcn_forward.25} parent=19 // pred_region
        %s149 = smul.u32 2, %s17
        %p150 = scmp.lt.s32.totalorder %s16, 7
        %s151 = scalar_select %p150, %s16, 7
        %p152 = scmp.lt.s32.totalorder %s149, 1
        %s153 = scalar_select %p152, %s149, 1
        %s154 = smul.addr %s151, 2
        %s155 = sadd.s32 %s153, %s154
        %s156 = smul.addr %s155, 4
        %s157 = scalar_lea.vmem %s0, %s156
        %s158 = smul.u32 2, %s17
      $region24: #{deep_gcn_forward.25} parent=19 // pred_fallthru
        _
      // Predicated region
      $region25: #{deep_gcn_forward.25} parent=19 // pred_check
        %p159 = pneg %p69
      $region26: #{deep_gcn_forward.25} parent=19 // pred_check_branch
        %161 = sbr.rel (%p159) target = $region28
      $region27: #{deep_gcn_forward.25} parent=19 // pred_region
        %p162 = scmp.lt.s32.totalorder %s16, 7
        %s163 = scalar_select %p162, %s16, 7
        %s164 = smul.addr %s163, 16
        %s165 = smul.addr %s164, 4
        %s166 = scalar_lea.vmem %s1, %s165
      $region28: #{deep_gcn_forward.25} parent=19 // pred_fallthru
        _
    $region20: #{deep_gcn_forward.25} parent=5 // pred_fallthru
      _
    %p167 = scmp.le.s32.totalorder 1, %s9
    %p168 = scmp.lt.s32.totalorder %s9, 9
    %p169 = pnand %p167, %p168
    %p170 = pneg %p169
    // Predicated region
    $region29: #{deep_gcn_forward.25} parent=5 // pred_check
      _
    $region30: #{deep_gcn_forward.25} parent=5 // pred_check_branch
      %172 = sbr.rel (%p169) target = $region32
    $region31: #{deep_gcn_forward.25} parent=5 // pred_region
      %s173 = ssub.s32 %s9, 1
      %s174 = smul.u32 2, %s19
      %p175 = scmp.lt.s32.totalorder %s18, 7
      %s176 = scalar_select %p175, %s18, 7
      %p177 = scmp.lt.s32.totalorder %s174, 1
      %s178 = scalar_select %p177, %s174, 1
      %s179 = smul.addr %s176, 2
      %s180 = sadd.s32 %s178, %s179
      %s181 = smul.addr %s180, 4
      %s182 = scalar_lea.vmem %s0, %s181
      %p183 = pneg %p49
      %p184 = pneg %p46
      %p185 = scmp.lt.s32.totalorder %s18, 7
      %s186 = scalar_select %p185, %s18, 7
      %s187 = smul.addr %s186, 16
      %s188 = smul.addr %s187, 4
      %s189 = scalar_lea.vmem %s1, %s188
      %p190 = pneg %p75
      %p191 = pneg %p72
      %p192 = pneg %p96
      %p193 = pneg %p93
      %p194 = pneg %p124
      %p195 = pneg %p121
      %s196 = smul.u32 2, %s19
      %p197 = scmp.lt.s32.totalorder %s18, 7
      %s198 = scalar_select %p197, %s18, 7
      %p199 = scmp.lt.s32.totalorder %s196, 1
      %s200 = scalar_select %p199, %s196, 1
      %s201 = smul.addr %s198, 2
      %s202 = sadd.s32 %s200, %s201
      %s203 = smul.addr %s202, 4
      %s204 = scalar_lea.vmem %s3, %s203
      %s205 = smul.u32 2, %s19
      %p206 = scmp.lt.s32.totalorder %s18, 7
      %s207 = scalar_select %p206, %s18, 7
      %p208 = scmp.lt.s32.totalorder %s205, 1
      %s209 = scalar_select %p208, %s205, 1
      %s210 = smul.addr %s207, 2
      %s211 = sadd.s32 %s209, %s210
      %s212 = smul.addr %s211, 4
      %s213 = scalar_lea.vmem %s0, %s212
      %s214 = smul.u32 2, %s19
      %p215 = scmp.lt.s32.totalorder %s18, 7
      %s216 = scalar_select %p215, %s18, 7
      %s217 = smul.addr %s216, 16
      %s218 = smul.addr %s217, 4
      %s219 = scalar_lea.vmem %s1, %s218
      %s220 = smul.u32 2, %s19
      %p221 = scmp.lt.s32.totalorder %s18, 7
      %s222 = scalar_select %p221, %s18, 7
      %p223 = scmp.lt.s32.totalorder %s220, 1
      %s224 = scalar_select %p223, %s220, 1
      %s225 = smul.addr %s222, 2
      %s226 = sadd.s32 %s224, %s225
      %s227 = smul.addr %s226, 4
      %s228 = scalar_lea.vmem %s3, %s227
      %s229 = smul.u32 2, %s19
      %v231 = vld [vmem:[%s213] sm:$0xf]
      %v232 = vld [vmem:[%s213 + $0x4] sm:$0xf]
      %v233 = vld [vmem:[%s219] sm:$0xf]
      %v234 = vld [vmem:[%s219 + $0x4] sm:$0xf]
      %v235 = vld [vmem:[%s219 + $0x8] sm:$0xf]
      %v236 = vld [vmem:[%s219 + $0xc] sm:$0xf]
      %v237 = vld [vmem:[%s219 + $0x10] sm:$0xf]
      %v238 = vld [vmem:[%s219 + $0x14] sm:$0xf]
      %v239 = vld [vmem:[%s219 + $0x18] sm:$0xf]
      %v240 = vld [vmem:[%s219 + $0x1c] sm:$0xf]
      %v241 = vld [vmem:[%s219 + $0x20] sm:$0xf]
      %v242 = vld [vmem:[%s219 + $0x24] sm:$0xf]
      %v243 = vld [vmem:[%s219 + $0x28] sm:$0xf]
      %v244 = vld [vmem:[%s219 + $0x2c] sm:$0xf]
      %v245 = vld [vmem:[%s219 + $0x30] sm:$0xf]
      %v246 = vld [vmem:[%s219 + $0x34] sm:$0xf]
      %v247 = vld [vmem:[%s219 + $0x38] sm:$0xf]
      %v248 = vld [vmem:[%s219 + $0x3c] sm:$0xf]
      %v249 = vld [vmem:[%s2] sm:$0x1]
      %v251 = vlaneseq
      %v252 = vshrl.u32 %v251, 7
      %v253 = vsub.s32 0, %v252
      %v254 = vrot.slane %v249, %v253
      %v258 = vunpack.c.l.b16 %v231
      %v259 = vunpack.c.l.b16 %v232
      %v260 = vpack.c.b16 %v259, %v258
      %v278 = vunpack.c.l.b16 %v233
      %v279 = vunpack.c.l.b16 %v234
      %v280 = vunpack.c.l.b16 %v235
      %v281 = vunpack.c.l.b16 %v236
      %v282 = vunpack.c.l.b16 %v237
      %v283 = vunpack.c.l.b16 %v238
      %v284 = vunpack.c.l.b16 %v239
      %v285 = vunpack.c.l.b16 %v240
      %v286 = vunpack.c.l.b16 %v241
      %v287 = vunpack.c.l.b16 %v242
      %v288 = vunpack.c.l.b16 %v243
      %v289 = vunpack.c.l.b16 %v244
      %v290 = vunpack.c.l.b16 %v245
      %v291 = vunpack.c.l.b16 %v246
      %v292 = vunpack.c.l.b16 %v247
      %v293 = vunpack.c.l.b16 %v248
      %v294 = vpack.c.b16 %v279, %v278
      %v295 = vpack.c.b16 %v281, %v280
      %v296 = vpack.c.b16 %v283, %v282
      %v297 = vpack.c.b16 %v285, %v284
      %v298 = vpack.c.b16 %v287, %v286
      %v299 = vpack.c.b16 %v289, %v288
      %v300 = vpack.c.b16 %v291, %v290
      %v301 = vpack.c.b16 %v293, %v292
      %310 = vmatprep.subr.bf16.mxu0 0
      %311 = vmatpush1.bf16.msra.mxu0 %v294
      %312 = vmatprep.subr.bf16.mxu0 0
      %313 = vmatpush1.bf16.msra.mxu0 %v295
      %314 = vmatprep.subr.bf16.mxu0 0
      %315 = vmatpush1.bf16.msra.mxu0 %v296
      %316 = vmatprep.subr.bf16.mxu0 0
      %317 = vmatpush1.bf16.msra.mxu0 %v297
      %318 = vmatprep.subr.bf16.mxu0 0
      %319 = vmatpush1.bf16.msra.mxu0 %v298
      %320 = vmatprep.subr.bf16.mxu0 0
      %321 = vmatpush1.bf16.msra.mxu0 %v299
      %322 = vmatprep.subr.bf16.mxu0 0
      %323 = vmatpush1.bf16.msra.mxu0 %v300
      %324 = vmatprep.subr.bf16.mxu0 0
      %325 = vmatpush1.bf16.msra.mxu0 %v301
      %326 = vmatprep.subr.bf16.mxu0 0
      %327 = vmatpush1.bf16.msra.mxu0 0
      %328 = vmatprep.subr.bf16.mxu0 0
      %329 = vmatpush1.bf16.msra.mxu0 0
      %330 = vmatprep.subr.bf16.mxu0 0
      %331 = vmatpush1.bf16.msra.mxu0 0
      %332 = vmatprep.subr.bf16.mxu0 0
      %333 = vmatpush1.bf16.msra.mxu0 0
      %334 = vmatprep.subr.bf16.mxu0 0
      %335 = vmatpush1.bf16.msra.mxu0 0
      %336 = vmatprep.subr.bf16.mxu0 0
      %337 = vmatpush1.bf16.msra.mxu0 0
      %338 = vmatprep.subr.bf16.mxu0 0
      %339 = vmatpush1.bf16.msra.mxu0 0
      %340 = vmatprep.subr.bf16.mxu0 0
      %341 = vmatpush1.bf16.msra.mxu0 0
      %342 = vmatprep.mubr.bf16.mxu0 0
      %343 = vmatmul.mubr.bf16.gmra.mrb[0].mxu0 %v260
      %v344 = vpop.f32.mrb[0].mxu0
      %v345 = vadd.f32 %v254, %v344
      %v346 = vpop.f32.mrb[0].mxu0
      %v347 = vpop.f32.mrb[0].mxu0
      %v348 = vadd.f32 %v254, %v347
      %v349 = vpop.f32.mrb[0].mxu0
      %350 = vdwg.mxu0
      %v351 = vpack.c.bf16 %v348, %v345
      %v353 = vunpack.c.l.b16 %v351
      %v354 = vunpack.c.h.b16 %v351
      %v355 = vpack.c.b16 %v353, %v353
      %v356 = vpack.c.b16 %v354, %v354
      %vm359 = vcmask 60416
      %360 = vst.msk [vmem:[%s228] sm:$0xf] %vm359, %v355
      %361 = vst.msk [vmem:[%s228 + $0x4] sm:$0xf] %vm359, %v356
      %s362 = smul.u32 2, %s19
      %p363 = scmp.lt.s32.totalorder %s18, 7
      %s364 = scalar_select %p363, %s18, 7
      %p365 = scmp.lt.s32.totalorder %s362, 1
      %s366 = scalar_select %p365, %s362, 1
      %s367 = smul.addr %s364, 2
      %s368 = sadd.s32 %s366, %s367
      %s369 = smul.addr %s368, 4
      %s370 = scalar_lea.vmem %s3, %s369
      // Predicated region
      $region33: #{deep_gcn_forward.25} parent=31 // pred_check
        %p371 = pneg %p121
      $region34: #{deep_gcn_forward.25} parent=31 // pred_check_branch
        %373 = sbr.rel (%p371) target = $region36
      $region35: #{deep_gcn_forward.25} parent=31 // pred_region
        %s374 = smul.u32 2, %s19
      $region36: #{deep_gcn_forward.25} parent=31 // pred_fallthru
        _
    $region32: #{deep_gcn_forward.25} parent=5 // pred_fallthru
      _
    %p375 = scmp.le.s32.totalorder 2, %s9
    // Predicated region
    $region37: #{deep_gcn_forward.25} parent=5 // pred_check
      %p376 = pneg %p375
    $region38: #{deep_gcn_forward.25} parent=5 // pred_check_branch
      %378 = sbr.rel (%p376) target = $region40
    $region39: #{deep_gcn_forward.25} parent=5 // pred_region
      %s379 = ssub.s32 %s9, 2
      // Predicated region
      $region41: #{deep_gcn_forward.25} parent=39 // pred_check
        %p380 = pneg %p127
      $region42: #{deep_gcn_forward.25} parent=39 // pred_check_branch
        %382 = sbr.rel (%p380) target = $region44
      $region43: #{deep_gcn_forward.25} parent=39 // pred_region
        %s383 = smul.u32 2, %s21
        %p384 = scmp.lt.s32.totalorder %s20, 7
        %s385 = scalar_select %p384, %s20, 7
        %p386 = scmp.lt.s32.totalorder %s383, 1
        %s387 = scalar_select %p386, %s383, 1
        %s388 = smul.addr %s385, 2
        %s389 = sadd.s32 %s387, %s388
        %s390 = smul.addr %s389, 4
        %s391 = scalar_lea.vmem %s3, %s390
      $region44: #{deep_gcn_forward.25} parent=39 // pred_fallthru
        _
    $region40: #{deep_gcn_forward.25} parent=5 // pred_fallthru
      _
  $region6: #{deep_gcn_forward.25} parent=0 // loop_footer
    %s13 = sadd.s32 1, %s9
  $region7: #{deep_gcn_forward.25} parent=0 // loop_footer_branch
    %8 = sbr.rel target = $region3
  $region8: #{deep_gcn_forward.25} parent=0 // loop_exit
    _

// kernel: deep_gcn_forward.26
$region0: #{deep_gcn_forward.26}
  #allocation0 [shape = 'u32[]', space=smem, size = 0x4, offset = 0x4, fixed_abs, tag = 'smem constant byte address 0x4 - core index']
  #allocation1 [shape = 'u32[144,128]{1,0:T(1,128)}', space=vmem, size = 0x12000, scoped, tag = 'internal scratch']
  %s0 = inlined_call_operand.vmem [shape: bf16[128,216], index: 0, kind: input, shape index: {}]
  %s1 = inlined_call_operand.vmem [shape: bf16[216,8], index: 1, kind: input, shape index: {}]
  %s2 = inlined_call_operand.vmem [shape: bf16[128,216], index: 2, kind: input, shape index: {}]
  %s3 = inlined_call_operand.vmem [shape: bf16[216,8], index: 3, kind: input, shape index: {}]
  %s4 = inlined_call_operand.vmem [shape: bf16[128,8], index: 4, kind: output, shape index: {0}]
  %s5 = inlined_call_operand.vmem [shape: f32[1,1,8], index: 5, kind: output, shape index: {1}]
  %s6 = inlined_call_operand.vmem [shape: f32[1,1,8], index: 6, kind: output, shape index: {2}]
  %7 = xla_tuple %s4, %s5, %s6
  %s8 = sld [smem:[#allocation0]]
  $region42: #{deep_gcn_forward.26} parent=0
    _
  %s10 = ssub.s32 1, %s8
  %s11 = scalar_select 0, %s10, %s8
  // Predicated region
  $region2: #{deep_gcn_forward.26} parent=0 // pred_check
    _
  $region3: #{deep_gcn_forward.26} parent=0 // pred_check_branch
    %13 = sbr.rel (0) target = $region5
  $region4: #{deep_gcn_forward.26} parent=0 // pred_region
    _
  $region5: #{deep_gcn_forward.26} parent=0 // pred_fallthru
    _
  // Predicated region
  $region6: #{deep_gcn_forward.26} parent=0 // pred_check
    _
  $region7: #{deep_gcn_forward.26} parent=0 // pred_check_branch
    %15 = sbr.rel (0) target = $region9
  $region8: #{deep_gcn_forward.26} parent=0 // pred_region
    _
  $region9: #{deep_gcn_forward.26} parent=0 // pred_fallthru
    _
  // Predicated region
  $region10: #{deep_gcn_forward.26} parent=0 // pred_check
    _
  $region11: #{deep_gcn_forward.26} parent=0 // pred_check_branch
    %17 = sbr.rel (0) target = $region13
  $region12: #{deep_gcn_forward.26} parent=0 // pred_region
    _
  $region13: #{deep_gcn_forward.26} parent=0 // pred_fallthru
    _
  // Predicated region
  $region14: #{deep_gcn_forward.26} parent=0 // pred_check
    _
  $region15: #{deep_gcn_forward.26} parent=0 // pred_check_branch
    %19 = sbr.rel (0) target = $region17
  $region16: #{deep_gcn_forward.26} parent=0 // pred_region
    _
  $region17: #{deep_gcn_forward.26} parent=0 // pred_fallthru
    _
  %v21 = vld [vmem:[%s0] sm:$0xff]
  %v22 = vld [vmem:[%s0 + $0x8] sm:$0xff]
  %v23 = vld [vmem:[%s0 + $0x10] sm:$0xff]
  %v24 = vld [vmem:[%s0 + $0x18] sm:$0xff]
  %v25 = vld [vmem:[%s0 + $0x20] sm:$0xff]
  %v26 = vld [vmem:[%s0 + $0x28] sm:$0xff]
  %v27 = vld [vmem:[%s0 + $0x30] sm:$0xff]
  %v28 = vld [vmem:[%s0 + $0x38] sm:$0xff]
  %v29 = vld [vmem:[%s0 + $0x40] sm:$0xff]
  %v30 = vld [vmem:[%s0 + $0x48] sm:$0xff]
  %v31 = vld [vmem:[%s0 + $0x50] sm:$0xff]
  %v32 = vld [vmem:[%s0 + $0x58] sm:$0xff]
  %v33 = vld [vmem:[%s0 + $0x60] sm:$0xff]
  %v34 = vld [vmem:[%s0 + $0x68] sm:$0xff]
  %v35 = vld [vmem:[%s0 + $0x70] sm:$0xff]
  %v36 = vld [vmem:[%s0 + $0x78] sm:$0xff]
  %v37 = vld [vmem:[%s1] sm:$0xf]
  %v38 = vld [vmem:[%s1 + $0x4] sm:$0xf]
  %v39 = vld [vmem:[%s1 + $0x8] sm:$0xf]
  %v40 = vld [vmem:[%s1 + $0xc] sm:$0xf]
  %v41 = vld [vmem:[%s1 + $0x10] sm:$0xf]
  %v42 = vld [vmem:[%s1 + $0x14] sm:$0xf]
  %v43 = vld [vmem:[%s1 + $0x18] sm:$0xf]
  %v44 = vld [vmem:[%s1 + $0x1c] sm:$0xf]
  %v45 = vld [vmem:[%s1 + $0x20] sm:$0xf]
  %v46 = vld [vmem:[%s1 + $0x24] sm:$0xf]
  %v47 = vld [vmem:[%s1 + $0x28] sm:$0xf]
  %v48 = vld [vmem:[%s1 + $0x2c] sm:$0xf]
  %v49 = vld [vmem:[%s1 + $0x30] sm:$0xf]
  %v50 = vld [vmem:[%s1 + $0x34] sm:$0xf]
  %v51 = vld [vmem:[%s1 + $0x38] sm:$0xf]
  %v52 = vld [vmem:[%s1 + $0x3c] sm:$0xf]
  %v53 = vld [vmem:[%s1 + $0x40] sm:$0xf]
  %v54 = vld [vmem:[%s1 + $0x44] sm:$0xf]
  %v55 = vld [vmem:[%s1 + $0x48] sm:$0xf]
  %v56 = vld [vmem:[%s1 + $0x4c] sm:$0xf]
  %v57 = vld [vmem:[%s1 + $0x50] sm:$0xf]
  %v58 = vld [vmem:[%s1 + $0x54] sm:$0xf]
  %v59 = vld [vmem:[%s1 + $0x58] sm:$0xf]
  %v60 = vld [vmem:[%s1 + $0x5c] sm:$0xf]
  %v61 = vld [vmem:[%s1 + $0x60] sm:$0xf]
  %v62 = vld [vmem:[%s1 + $0x64] sm:$0xf]
  %v63 = vld [vmem:[%s1 + $0x68] sm:$0xf]
  %v64 = vld [vmem:[%s2] sm:$0xff]
  %v65 = vld [vmem:[%s2 + $0x8] sm:$0xff]
  %v66 = vld [vmem:[%s2 + $0x10] sm:$0xff]
  %v67 = vld [vmem:[%s2 + $0x18] sm:$0xff]
  %v68 = vld [vmem:[%s2 + $0x20] sm:$0xff]
  %v69 = vld [vmem:[%s2 + $0x28] sm:$0xff]
  %v70 = vld [vmem:[%s2 + $0x30] sm:$0xff]
  %v71 = vld [vmem:[%s2 + $0x38] sm:$0xff]
  %v72 = vld [vmem:[%s2 + $0x40] sm:$0xff]
  %v73 = vld [vmem:[%s2 + $0x48] sm:$0xff]
  %v74 = vld [vmem:[%s2 + $0x50] sm:$0xff]
  %v75 = vld [vmem:[%s2 + $0x58] sm:$0xff]
  %v76 = vld [vmem:[%s2 + $0x60] sm:$0xff]
  %v77 = vld [vmem:[%s2 + $0x68] sm:$0xff]
  %v78 = vld [vmem:[%s2 + $0x70] sm:$0xff]
  %v79 = vld [vmem:[%s2 + $0x78] sm:$0xff]
  %v80 = vld [vmem:[%s3] sm:$0xf]
  %v81 = vld [vmem:[%s3 + $0x4] sm:$0xf]
  %v82 = vld [vmem:[%s3 + $0x8] sm:$0xf]
  %v83 = vld [vmem:[%s3 + $0xc] sm:$0xf]
  %v84 = vld [vmem:[%s3 + $0x10] sm:$0xf]
  %v85 = vld [vmem:[%s3 + $0x14] sm:$0xf]
  %v86 = vld [vmem:[%s3 + $0x18] sm:$0xf]
  %v87 = vld [vmem:[%s3 + $0x1c] sm:$0xf]
  %v88 = vld [vmem:[%s3 + $0x20] sm:$0xf]
  %v89 = vld [vmem:[%s3 + $0x24] sm:$0xf]
  %v90 = vld [vmem:[%s3 + $0x28] sm:$0xf]
  %v91 = vld [vmem:[%s3 + $0x2c] sm:$0xf]
  %v92 = vld [vmem:[%s3 + $0x30] sm:$0xf]
  %v93 = vld [vmem:[%s3 + $0x34] sm:$0xf]
  %v94 = vld [vmem:[%s3 + $0x38] sm:$0xf]
  %v95 = vld [vmem:[%s3 + $0x3c] sm:$0xf]
  %v96 = vld [vmem:[%s3 + $0x40] sm:$0xf]
  %v97 = vld [vmem:[%s3 + $0x44] sm:$0xf]
  %v98 = vld [vmem:[%s3 + $0x48] sm:$0xf]
  %v99 = vld [vmem:[%s3 + $0x4c] sm:$0xf]
  %v100 = vld [vmem:[%s3 + $0x50] sm:$0xf]
  %v101 = vld [vmem:[%s3 + $0x54] sm:$0xf]
  %v102 = vld [vmem:[%s3 + $0x58] sm:$0xf]
  %v103 = vld [vmem:[%s3 + $0x5c] sm:$0xf]
  %v104 = vld [vmem:[%s3 + $0x60] sm:$0xf]
  %v105 = vld [vmem:[%s3 + $0x64] sm:$0xf]
  %v106 = vld [vmem:[%s3 + $0x68] sm:$0xf]
  %v123 = vunpack.c.l.b16 %v64
  %v124 = vunpack.c.h.b16 %v64
  %v125 = vunpack.c.l.b16 %v65
  %v126 = vunpack.c.h.b16 %v65
  %v127 = vunpack.c.l.b16 %v66
  %v128 = vunpack.c.h.b16 %v66
  %v129 = vunpack.c.l.b16 %v67
  %v130 = vunpack.c.h.b16 %v67
  %v131 = vunpack.c.l.b16 %v68
  %v132 = vunpack.c.h.b16 %v68
  %v133 = vunpack.c.l.b16 %v69
  %v134 = vunpack.c.h.b16 %v69
  %v135 = vunpack.c.l.b16 %v70
  %v136 = vunpack.c.h.b16 %v70
  %v137 = vunpack.c.l.b16 %v71
  %v138 = vunpack.c.h.b16 %v71
  %v139 = vunpack.c.l.b16 %v72
  %v140 = vunpack.c.h.b16 %v72
  %v141 = vunpack.c.l.b16 %v73
  %v142 = vunpack.c.h.b16 %v73
  %v143 = vunpack.c.l.b16 %v74
  %v144 = vunpack.c.h.b16 %v74
  %v145 = vunpack.c.l.b16 %v75
  %v146 = vunpack.c.h.b16 %v75
  %v147 = vunpack.c.l.b16 %v76
  %v148 = vunpack.c.h.b16 %v76
  %v149 = vunpack.c.l.b16 %v77
  %v150 = vunpack.c.h.b16 %v77
  %v151 = vunpack.c.l.b16 %v78
  %v152 = vunpack.c.h.b16 %v78
  %v153 = vunpack.c.l.b16 %v79
  %v154 = vunpack.c.h.b16 %v79
  %v155 = vpack.c.b16 %v125, %v123
  %v156 = vpack.c.b16 %v126, %v124
  %v157 = vpack.c.b16 %v129, %v127
  %v158 = vpack.c.b16 %v130, %v128
  %v159 = vpack.c.b16 %v133, %v131
  %v160 = vpack.c.b16 %v134, %v132
  %v161 = vpack.c.b16 %v137, %v135
  %v162 = vpack.c.b16 %v138, %v136
  %v163 = vpack.c.b16 %v141, %v139
  %v164 = vpack.c.b16 %v142, %v140
  %v165 = vpack.c.b16 %v145, %v143
  %v166 = vpack.c.b16 %v146, %v144
  %v167 = vpack.c.b16 %v149, %v147
  %v168 = vpack.c.b16 %v150, %v148
  %v169 = vpack.c.b16 %v153, %v151
  %v170 = vpack.c.b16 %v154, %v152
  %v206 = vunpack.c.l.b16 %v80
  %v207 = vunpack.c.l.b16 %v81
  %v208 = vunpack.c.l.b16 %v82
  %v209 = vunpack.c.l.b16 %v83
  %v210 = vunpack.c.l.b16 %v84
  %v211 = vunpack.c.l.b16 %v85
  %v212 = vunpack.c.l.b16 %v86
  %v213 = vunpack.c.l.b16 %v87
  %v214 = vunpack.c.l.b16 %v88
  %v215 = vunpack.c.l.b16 %v89
  %v216 = vunpack.c.l.b16 %v90
  %v217 = vunpack.c.l.b16 %v91
  %v218 = vunpack.c.l.b16 %v92
  %v219 = vunpack.c.l.b16 %v93
  %v220 = vunpack.c.l.b16 %v94
  %v221 = vunpack.c.l.b16 %v95
  %v222 = vunpack.c.l.b16 %v96
  %v223 = vunpack.c.l.b16 %v97
  %v224 = vunpack.c.l.b16 %v98
  %v225 = vunpack.c.l.b16 %v99
  %v226 = vunpack.c.l.b16 %v100
  %v227 = vunpack.c.l.b16 %v101
  %v228 = vunpack.c.l.b16 %v102
  %v229 = vunpack.c.l.b16 %v103
  %v230 = vunpack.c.l.b16 %v104
  %v231 = vunpack.c.l.b16 %v105
  %v232 = vunpack.c.l.b16 %v106
  %v233 = vpack.c.b16 %v207, %v206
  %v234 = vpack.c.b16 %v209, %v208
  %v235 = vpack.c.b16 %v211, %v210
  %v236 = vpack.c.b16 %v213, %v212
  %v237 = vpack.c.b16 %v215, %v214
  %v238 = vpack.c.b16 %v217, %v216
  %v239 = vpack.c.b16 %v219, %v218
  %v240 = vpack.c.b16 %v221, %v220
  %v241 = vpack.c.b16 %v223, %v222
  %v242 = vpack.c.b16 %v225, %v224
  %v243 = vpack.c.b16 %v227, %v226
  %v244 = vpack.c.b16 %v229, %v228
  %v245 = vpack.c.b16 %v231, %v230
  %v246 = vpack.c.b16 %v232, %v232
  %vm260 = vcmask 719872
  %v262 = vsel %vm260, %v156, 0
  %v265 = vsel %vm260, %v158, 0
  %v268 = vsel %vm260, %v160, 0
  %v271 = vsel %vm260, %v162, 0
  %v274 = vsel %vm260, %v164, 0
  %v277 = vsel %vm260, %v166, 0
  %v280 = vsel %vm260, %v168, 0
  %v283 = vsel %vm260, %v170, 0
  %vm285 = vcmask 1043456
  %v287 = vsel %vm285, %v246, 0
  %289 = vmatprep.subr.bf16.mxu0 0
  %290 = vmatpush1.bf16.msra.mxu0 %v233
  %291 = vmatprep.subr.bf16.mxu0 0
  %292 = vmatpush1.bf16.msra.mxu0 %v234
  %293 = vmatprep.subr.bf16.mxu0 0
  %294 = vmatpush1.bf16.msra.mxu0 %v235
  %295 = vmatprep.subr.bf16.mxu0 0
  %296 = vmatpush1.bf16.msra.mxu0 %v236
  %297 = vmatprep.subr.bf16.mxu0 0
  %298 = vmatpush1.bf16.msra.mxu0 %v237
  %299 = vmatprep.subr.bf16.mxu0 0
  %300 = vmatpush1.bf16.msra.mxu0 %v238
  %301 = vmatprep.subr.bf16.mxu0 0
  %302 = vmatpush1.bf16.msra.mxu0 %v239
  %303 = vmatprep.subr.bf16.mxu0 0
  %304 = vmatpush1.bf16.msra.mxu0 %v240
  %305 = vmatprep.subr.bf16.mxu0 0
  %306 = vmatpush1.bf16.msra.mxu0 %v241
  %307 = vmatprep.subr.bf16.mxu0 0
  %308 = vmatpush1.bf16.msra.mxu0 %v242
  %309 = vmatprep.subr.bf16.mxu0 0
  %310 = vmatpush1.bf16.msra.mxu0 %v243
  %311 = vmatprep.subr.bf16.mxu0 0
  %312 = vmatpush1.bf16.msra.mxu0 %v244
  %313 = vmatprep.subr.bf16.mxu0 0
  %314 = vmatpush1.bf16.msra.mxu0 %v245
  %315 = vmatprep.subr.bf16.mxu0 0
  %316 = vmatpush1.bf16.msra.mxu0 %v287
  %317 = vmatprep.subr.bf16.mxu0 0
  %318 = vmatpush1.bf16.msra.mxu0 0
  %319 = vmatprep.subr.bf16.mxu0 0
  %320 = vmatpush1.bf16.msra.mxu0 0
  %321 = vmatprep.mubr.bf16.mxu0 %v262
  %322 = vmatmul.mubr.bf16.gmra.mrb[0].mxu0 %v155
  %v323 = vpop.f32.mrb[0].mxu0
  %v324 = vadd.f32 0.0, %v323
  %v325 = vpop.f32.mrb[0].mxu0
  %v326 = vpop.f32.mrb[0].mxu0
  %v327 = vadd.f32 0.0, %v326
  %v328 = vpop.f32.mrb[0].mxu0
  %329 = vmatprep.mubr.bf16.mxu0 %v265
  %330 = vmatmul.mubr.bf16.gmra.mrb[0].mxu0 %v157
  %v331 = vpop.f32.mrb[0].mxu0
  %v332 = vadd.f32 0.0, %v331
  %v333 = vpop.f32.mrb[0].mxu0
  %v334 = vpop.f32.mrb[0].mxu0
  %v335 = vadd.f32 0.0, %v334
  %v336 = vpop.f32.mrb[0].mxu0
  %337 = vmatprep.mubr.bf16.mxu0 %v268
  %338 = vmatmul.mubr.bf16.gmra.mrb[0].mxu0 %v159
  %v339 = vpop.f32.mrb[0].mxu0
  %v340 = vadd.f32 0.0, %v339
  %v341 = vpop.f32.mrb[0].mxu0
  %v342 = vpop.f32.mrb[0].mxu0
  %v343 = vadd.f32 0.0, %v342
  %v344 = vpop.f32.mrb[0].mxu0
  %345 = vmatprep.mubr.bf16.mxu0 %v271
  %346 = vmatmul.mubr.bf16.gmra.mrb[0].mxu0 %v161
  %v347 = vpop.f32.mrb[0].mxu0
  %v348 = vadd.f32 0.0, %v347
  %v349 = vpop.f32.mrb[0].mxu0
  %v350 = vpop.f32.mrb[0].mxu0
  %v351 = vadd.f32 0.0, %v350
  %v352 = vpop.f32.mrb[0].mxu0
  %353 = vmatprep.mubr.bf16.mxu0 %v274
  %354 = vmatmul.mubr.bf16.gmra.mrb[0].mxu0 %v163
  %v355 = vpop.f32.mrb[0].mxu0
  %v356 = vadd.f32 0.0, %v355
  %v357 = vpop.f32.mrb[0].mxu0
  %v358 = vpop.f32.mrb[0].mxu0
  %v359 = vadd.f32 0.0, %v358
  %v360 = vpop.f32.mrb[0].mxu0
  %361 = vmatprep.mubr.bf16.mxu0 %v277
  %362 = vmatmul.mubr.bf16.gmra.mrb[0].mxu0 %v165
  %v363 = vpop.f32.mrb[0].mxu0
  %v364 = vadd.f32 0.0, %v363
  %v365 = vpop.f32.mrb[0].mxu0
  %v366 = vpop.f32.mrb[0].mxu0
  %v367 = vadd.f32 0.0, %v366
  %v368 = vpop.f32.mrb[0].mxu0
  %369 = vmatprep.mubr.bf16.mxu0 %v280
  %370 = vmatmul.mubr.bf16.gmra.mrb[0].mxu0 %v167
  %v371 = vpop.f32.mrb[0].mxu0
  %v372 = vadd.f32 0.0, %v371
  %v373 = vpop.f32.mrb[0].mxu0
  %v374 = vpop.f32.mrb[0].mxu0
  %v375 = vadd.f32 0.0, %v374
  %v376 = vpop.f32.mrb[0].mxu0
  %377 = vmatprep.mubr.bf16.mxu0 %v283
  %378 = vmatmul.mubr.bf16.gmra.mrb[0].mxu0 %v169
  %v379 = vpop.f32.mrb[0].mxu0
  %v380 = vadd.f32 0.0, %v379
  %v381 = vpop.f32.mrb[0].mxu0
  %v382 = vpop.f32.mrb[0].mxu0
  %v383 = vadd.f32 0.0, %v382
  %v384 = vpop.f32.mrb[0].mxu0
  %385 = vdwg.mxu0
  %v402 = vunpack.c.l.b16 %v21
  %v403 = vunpack.c.h.b16 %v21
  %v404 = vunpack.c.l.b16 %v22
  %v405 = vunpack.c.h.b16 %v22
  %v406 = vunpack.c.l.b16 %v23
  %v407 = vunpack.c.h.b16 %v23
  %v408 = vunpack.c.l.b16 %v24
  %v409 = vunpack.c.h.b16 %v24
  %v410 = vunpack.c.l.b16 %v25
  %v411 = vunpack.c.h.b16 %v25
  %v412 = vunpack.c.l.b16 %v26
  %v413 = vunpack.c.h.b16 %v26
  %v414 = vunpack.c.l.b16 %v27
  %v415 = vunpack.c.h.b16 %v27
  %v416 = vunpack.c.l.b16 %v28
  %v417 = vunpack.c.h.b16 %v28
  %v418 = vunpack.c.l.b16 %v29
  %v419 = vunpack.c.h.b16 %v29
  %v420 = vunpack.c.l.b16 %v30
  %v421 = vunpack.c.h.b16 %v30
  %v422 = vunpack.c.l.b16 %v31
  %v423 = vunpack.c.h.b16 %v31
  %v424 = vunpack.c.l.b16 %v32
  %v425 = vunpack.c.h.b16 %v32
  %v426 = vunpack.c.l.b16 %v33
  %v427 = vunpack.c.h.b16 %v33
  %v428 = vunpack.c.l.b16 %v34
  %v429 = vunpack.c.h.b16 %v34
  %v430 = vunpack.c.l.b16 %v35
  %v431 = vunpack.c.h.b16 %v35
  %v432 = vunpack.c.l.b16 %v36
  %v433 = vunpack.c.h.b16 %v36
  %v434 = vpack.c.b16 %v404, %v402
  %v435 = vpack.c.b16 %v405, %v403
  %v436 = vpack.c.b16 %v408, %v406
  %v437 = vpack.c.b16 %v409, %v407
  %v438 = vpack.c.b16 %v412, %v410
  %v439 = vpack.c.b16 %v413, %v411
  %v440 = vpack.c.b16 %v416, %v414
  %v441 = vpack.c.b16 %v417, %v415
  %v442 = vpack.c.b16 %v420, %v418
  %v443 = vpack.c.b16 %v421, %v419
  %v444 = vpack.c.b16 %v424, %v422
  %v445 = vpack.c.b16 %v425, %v423
  %v446 = vpack.c.b16 %v428, %v426
  %v447 = vpack.c.b16 %v429, %v427
  %v448 = vpack.c.b16 %v432, %v430
  %v449 = vpack.c.b16 %v433, %v431
  %v485 = vunpack.c.l.b16 %v37
  %v486 = vunpack.c.l.b16 %v38
  %v487 = vunpack.c.l.b16 %v39
  %v488 = vunpack.c.l.b16 %v40
  %v489 = vunpack.c.l.b16 %v41
  %v490 = vunpack.c.l.b16 %v42
  %v491 = vunpack.c.l.b16 %v43
  %v492 = vunpack.c.l.b16 %v44
  %v493 = vunpack.c.l.b16 %v45
  %v494 = vunpack.c.l.b16 %v46
  %v495 = vunpack.c.l.b16 %v47
  %v496 = vunpack.c.l.b16 %v48
  %v497 = vunpack.c.l.b16 %v49
  %v498 = vunpack.c.l.b16 %v50
  %v499 = vunpack.c.l.b16 %v51
  %v500 = vunpack.c.l.b16 %v52
  %v501 = vunpack.c.l.b16 %v53
  %v502 = vunpack.c.l.b16 %v54
  %v503 = vunpack.c.l.b16 %v55
  %v504 = vunpack.c.l.b16 %v56
  %v505 = vunpack.c.l.b16 %v57
  %v506 = vunpack.c.l.b16 %v58
  %v507 = vunpack.c.l.b16 %v59
  %v508 = vunpack.c.l.b16 %v60
  %v509 = vunpack.c.l.b16 %v61
  %v510 = vunpack.c.l.b16 %v62
  %v511 = vunpack.c.l.b16 %v63
  %v512 = vpack.c.b16 %v486, %v485
  %v513 = vpack.c.b16 %v488, %v487
  %v514 = vpack.c.b16 %v490, %v489
  %v515 = vpack.c.b16 %v492, %v491
  %v516 = vpack.c.b16 %v494, %v493
  %v517 = vpack.c.b16 %v496, %v495
  %v518 = vpack.c.b16 %v498, %v497
  %v519 = vpack.c.b16 %v500, %v499
  %v520 = vpack.c.b16 %v502, %v501
  %v521 = vpack.c.b16 %v504, %v503
  %v522 = vpack.c.b16 %v506, %v505
  %v523 = vpack.c.b16 %v508, %v507
  %v524 = vpack.c.b16 %v510, %v509
  %v525 = vpack.c.b16 %v511, %v511
  %v540 = vsel %vm260, %v435, 0
  %v543 = vsel %vm260, %v437, 0
  %v546 = vsel %vm260, %v439, 0
  %v549 = vsel %vm260, %v441, 0
  %v552 = vsel %vm260, %v443, 0
  %v555 = vsel %vm260, %v445, 0
  %v558 = vsel %vm260, %v447, 0
  %v561 = vsel %vm260, %v449, 0
  %v564 = vsel %vm285, %v525, 0
  %566 = vmatprep.subr.bf16.mxu0 0
  %567 = vmatpush1.bf16.msra.mxu0 %v512
  %568 = vmatprep.subr.bf16.mxu0 0
  %569 = vmatpush1.bf16.msra.mxu0 %v513
  %570 = vmatprep.subr.bf16.mxu0 0
  %571 = vmatpush1.bf16.msra.mxu0 %v514
  %572 = vmatprep.subr.bf16.mxu0 0
  %573 = vmatpush1.bf16.msra.mxu0 %v515
  %574 = vmatprep.subr.bf16.mxu0 0
  %575 = vmatpush1.bf16.msra.mxu0 %v516
  %576 = vmatprep.subr.bf16.mxu0 0
  %577 = vmatpush1.bf16.msra.mxu0 %v517
  %578 = vmatprep.subr.bf16.mxu0 0
  %579 = vmatpush1.bf16.msra.mxu0 %v518
  %580 = vmatprep.subr.bf16.mxu0 0
  %581 = vmatpush1.bf16.msra.mxu0 %v519
  %582 = vmatprep.subr.bf16.mxu0 0
  %583 = vmatpush1.bf16.msra.mxu0 %v520
  %584 = vmatprep.subr.bf16.mxu0 0
  %585 = vmatpush1.bf16.msra.mxu0 %v521
  %586 = vmatprep.subr.bf16.mxu0 0
  %587 = vmatpush1.bf16.msra.mxu0 %v522
  %588 = vmatprep.subr.bf16.mxu0 0
  %589 = vmatpush1.bf16.msra.mxu0 %v523
  %590 = vmatprep.subr.bf16.mxu0 0
  %591 = vmatpush1.bf16.msra.mxu0 %v524
  %592 = vmatprep.subr.bf16.mxu0 0
  %593 = vmatpush1.bf16.msra.mxu0 %v564
  %594 = vmatprep.subr.bf16.mxu0 0
  %595 = vmatpush1.bf16.msra.mxu0 0
  %596 = vmatprep.subr.bf16.mxu0 0
  %597 = vmatpush1.bf16.msra.mxu0 0
  %598 = vmatprep.mubr.bf16.mxu0 %v540
  %599 = vmatmul.mubr.bf16.gmra.mrb[0].mxu0 %v434
  %v600 = vpop.f32.mrb[0].mxu0
  %v601 = vadd.f32 %v324, %v600
  %v602 = vpop.f32.mrb[0].mxu0
  %v603 = vpop.f32.mrb[0].mxu0
  %v604 = vadd.f32 %v327, %v603
  %v605 = vpop.f32.mrb[0].mxu0
  %606 = vmatprep.mubr.bf16.mxu0 %v543
  %607 = vmatmul.mubr.bf16.gmra.mrb[0].mxu0 %v436
  %v608 = vpop.f32.mrb[0].mxu0
  %v609 = vadd.f32 %v332, %v608
  %v610 = vpop.f32.mrb[0].mxu0
  %v611 = vpop.f32.mrb[0].mxu0
  %v612 = vadd.f32 %v335, %v611
  %v613 = vpop.f32.mrb[0].mxu0
  %614 = vmatprep.mubr.bf16.mxu0 %v546
  %615 = vmatmul.mubr.bf16.gmra.mrb[0].mxu0 %v438
  %v616 = vpop.f32.mrb[0].mxu0
  %v617 = vadd.f32 %v340, %v616
  %v618 = vpop.f32.mrb[0].mxu0
  %v619 = vpop.f32.mrb[0].mxu0
  %v620 = vadd.f32 %v343, %v619
  %v621 = vpop.f32.mrb[0].mxu0
  %622 = vmatprep.mubr.bf16.mxu0 %v549
  %623 = vmatmul.mubr.bf16.gmra.mrb[0].mxu0 %v440
  %v624 = vpop.f32.mrb[0].mxu0
  %v625 = vadd.f32 %v348, %v624
  %v626 = vpop.f32.mrb[0].mxu0
  %v627 = vpop.f32.mrb[0].mxu0
  %v628 = vadd.f32 %v351, %v627
  %v629 = vpop.f32.mrb[0].mxu0
  %630 = vmatprep.mubr.bf16.mxu0 %v552
  %631 = vmatmul.mubr.bf16.gmra.mrb[0].mxu0 %v442
  %v632 = vpop.f32.mrb[0].mxu0
  %v633 = vadd.f32 %v356, %v632
  %v634 = vpop.f32.mrb[0].mxu0
  %v635 = vpop.f32.mrb[0].mxu0
  %v636 = vadd.f32 %v359, %v635
  %v637 = vpop.f32.mrb[0].mxu0
  %638 = vmatprep.mubr.bf16.mxu0 %v555
  %639 = vmatmul.mubr.bf16.gmra.mrb[0].mxu0 %v444
  %v640 = vpop.f32.mrb[0].mxu0
  %v641 = vadd.f32 %v364, %v640
  %v642 = vpop.f32.mrb[0].mxu0
  %v643 = vpop.f32.mrb[0].mxu0
  %v644 = vadd.f32 %v367, %v643
  %v645 = vpop.f32.mrb[0].mxu0
  %646 = vmatprep.mubr.bf16.mxu0 %v558
  %647 = vmatmul.mubr.bf16.gmra.mrb[0].mxu0 %v446
  %v648 = vpop.f32.mrb[0].mxu0
  %v649 = vadd.f32 %v372, %v648
  %v650 = vpop.f32.mrb[0].mxu0
  %v651 = vpop.f32.mrb[0].mxu0
  %v652 = vadd.f32 %v375, %v651
  %v653 = vpop.f32.mrb[0].mxu0
  %654 = vmatprep.mubr.bf16.mxu0 %v561
  %655 = vmatmul.mubr.bf16.gmra.mrb[0].mxu0 %v448
  %v656 = vpop.f32.mrb[0].mxu0
  %v657 = vadd.f32 %v380, %v656
  %v658 = vpop.f32.mrb[0].mxu0
  %v659 = vpop.f32.mrb[0].mxu0
  %v660 = vadd.f32 %v383, %v659
  %v661 = vpop.f32.mrb[0].mxu0
  %662 = vdwg.mxu0
  %v663 = vpack.c.bf16 %v604, %v601
  %v664 = vpack.c.bf16 %v612, %v609
  %v665 = vpack.c.bf16 %v620, %v617
  %v666 = vpack.c.bf16 %v628, %v625
  %v667 = vpack.c.bf16 %v636, %v633
  %v668 = vpack.c.bf16 %v644, %v641
  %v669 = vpack.c.bf16 %v652, %v649
  %v670 = vpack.c.bf16 %v660, %v657
  %v679 = vunpack.c.l.b16 %v663
  %v680 = vunpack.c.h.b16 %v663
  %v681 = vunpack.c.l.b16 %v664
  %v682 = vunpack.c.h.b16 %v664
  %v683 = vunpack.c.l.b16 %v665
  %v684 = vunpack.c.h.b16 %v665
  %v685 = vunpack.c.l.b16 %v666
  %v686 = vunpack.c.h.b16 %v666
  %v687 = vunpack.c.l.b16 %v667
  %v688 = vunpack.c.h.b16 %v667
  %v689 = vunpack.c.l.b16 %v668
  %v690 = vunpack.c.h.b16 %v668
  %v691 = vunpack.c.l.b16 %v669
  %v692 = vunpack.c.h.b16 %v669
  %v693 = vunpack.c.l.b16 %v670
  %v694 = vunpack.c.h.b16 %v670
  %v695 = vpack.c.b16 %v679, %v679
  %v696 = vpack.c.b16 %v680, %v680
  %v697 = vpack.c.b16 %v681, %v681
  %v698 = vpack.c.b16 %v682, %v682
  %v699 = vpack.c.b16 %v683, %v683
  %v700 = vpack.c.b16 %v684, %v684
  %v701 = vpack.c.b16 %v685, %v685
  %v702 = vpack.c.b16 %v686, %v686
  %v703 = vpack.c.b16 %v687, %v687
  %v704 = vpack.c.b16 %v688, %v688
  %v705 = vpack.c.b16 %v689, %v689
  %v706 = vpack.c.b16 %v690, %v690
  %v707 = vpack.c.b16 %v691, %v691
  %v708 = vpack.c.b16 %v692, %v692
  %v709 = vpack.c.b16 %v693, %v693
  %v710 = vpack.c.b16 %v694, %v694
  %vm727 = vcmask 60416
  %728 = vst.msk [vmem:[%s4] sm:$0xf] %vm727, %v695
  %729 = vst.msk [vmem:[%s4 + $0x4] sm:$0xf] %vm727, %v696
  %730 = vst.msk [vmem:[%s4 + $0x8] sm:$0xf] %vm727, %v697
  %731 = vst.msk [vmem:[%s4 + $0xc] sm:$0xf] %vm727, %v698
  %732 = vst.msk [vmem:[%s4 + $0x10] sm:$0xf] %vm727, %v699
  %733 = vst.msk [vmem:[%s4 + $0x14] sm:$0xf] %vm727, %v700
  %734 = vst.msk [vmem:[%s4 + $0x18] sm:$0xf] %vm727, %v701
  %735 = vst.msk [vmem:[%s4 + $0x1c] sm:$0xf] %vm727, %v702
  %736 = vst.msk [vmem:[%s4 + $0x20] sm:$0xf] %vm727, %v703
  %737 = vst.msk [vmem:[%s4 + $0x24] sm:$0xf] %vm727, %v704
  %738 = vst.msk [vmem:[%s4 + $0x28] sm:$0xf] %vm727, %v705
  %739 = vst.msk [vmem:[%s4 + $0x2c] sm:$0xf] %vm727, %v706
  %740 = vst.msk [vmem:[%s4 + $0x30] sm:$0xf] %vm727, %v707
  %741 = vst.msk [vmem:[%s4 + $0x34] sm:$0xf] %vm727, %v708
  %742 = vst.msk [vmem:[%s4 + $0x38] sm:$0xf] %vm727, %v709
  %743 = vst.msk [vmem:[%s4 + $0x3c] sm:$0xf] %vm727, %v710
  %vm744 = vcmask 64512
  %v745 = vsel %vm744, %v601, 0.0
  %v746 = vsel %vm744, %v604, 0.0
  %v747 = vadd.f32 %v745, %v746
  %v748 = vsel %vm744, %v609, 0.0
  %v749 = vadd.f32 %v747, %v748
  %v750 = vsel %vm744, %v612, 0.0
  %v751 = vadd.f32 %v749, %v750
  %v752 = vsel %vm744, %v617, 0.0
  %v753 = vadd.f32 %v751, %v752
  %v754 = vsel %vm744, %v620, 0.0
  %v755 = vadd.f32 %v753, %v754
  %v756 = vsel %vm744, %v625, 0.0
  %v757 = vadd.f32 %v755, %v756
  %v758 = vsel %vm744, %v628, 0.0
  %v759 = vadd.f32 %v757, %v758
  %v760 = vsel %vm744, %v633, 0.0
  %v761 = vadd.f32 %v759, %v760
  %v762 = vsel %vm744, %v636, 0.0
  %v763 = vadd.f32 %v761, %v762
  %v764 = vsel %vm744, %v641, 0.0
  %v765 = vadd.f32 %v763, %v764
  %v766 = vsel %vm744, %v644, 0.0
  %v767 = vadd.f32 %v765, %v766
  %v768 = vsel %vm744, %v649, 0.0
  %v769 = vadd.f32 %v767, %v768
  %v770 = vsel %vm744, %v652, 0.0
  %v771 = vadd.f32 %v769, %v770
  %v772 = vsel %vm744, %v657, 0.0
  %v773 = vadd.f32 %v771, %v772
  %v774 = vsel %vm744, %v660, 0.0
  %v775 = vadd.f32 %v773, %v774
  %v776 = vrot.slane %v775, 4
  %v777 = vadd.f32 %v775, %v776
  %v778 = vrot.slane %v777, 2
  %v779 = vadd.f32 %v777, %v778
  %v780 = vrot.slane %v779, 1
  %v781 = vadd.f32 %v779, %v780
  %vm782 = vcmask 57344
  %783 = vst.msk [vmem:[%s5] sm:$0x1] %vm782, %v781
  %v784 = vmul.f32 %v601, %v601
  %v785 = vmul.f32 %v604, %v604
  %v786 = vmul.f32 %v609, %v609
  %v787 = vmul.f32 %v612, %v612
  %v788 = vmul.f32 %v617, %v617
  %v789 = vmul.f32 %v620, %v620
  %v790 = vmul.f32 %v625, %v625
  %v791 = vmul.f32 %v628, %v628
  %v792 = vmul.f32 %v633, %v633
  %v793 = vmul.f32 %v636, %v636
  %v794 = vmul.f32 %v641, %v641
  %v795 = vmul.f32 %v644, %v644
  %v796 = vmul.f32 %v649, %v649
  %v797 = vmul.f32 %v652, %v652
  %v798 = vmul.f32 %v657, %v657
  %v799 = vmul.f32 %v660, %v660
  %v800 = vsel %vm744, %v784, 0.0
  %v801 = vsel %vm744, %v785, 0.0
  %v802 = vadd.f32 %v800, %v801
  %v803 = vsel %vm744, %v786, 0.0
  %v804 = vadd.f32 %v802, %v803
  %v805 = vsel %vm744, %v787, 0.0
  %v806 = vadd.f32 %v804, %v805
  %v807 = vsel %vm744, %v788, 0.0
  %v808 = vadd.f32 %v806, %v807
  %v809 = vsel %vm744, %v789, 0.0
  %v810 = vadd.f32 %v808, %v809
  %v811 = vsel %vm744, %v790, 0.0
  %v812 = vadd.f32 %v810, %v811
  %v813 = vsel %vm744, %v791, 0.0
  %v814 = vadd.f32 %v812, %v813
  %v815 = vsel %vm744, %v792, 0.0
  %v816 = vadd.f32 %v814, %v815
  %v817 = vsel %vm744, %v793, 0.0
  %v818 = vadd.f32 %v816, %v817
  %v819 = vsel %vm744, %v794, 0.0
  %v820 = vadd.f32 %v818, %v819
  %v821 = vsel %vm744, %v795, 0.0
  %v822 = vadd.f32 %v820, %v821
  %v823 = vsel %vm744, %v796, 0.0
  %v824 = vadd.f32 %v822, %v823
  %v825 = vsel %vm744, %v797, 0.0
  %v826 = vadd.f32 %v824, %v825
  %v827 = vsel %vm744, %v798, 0.0
  %v828 = vadd.f32 %v826, %v827
  %v829 = vsel %vm744, %v799, 0.0
  %v830 = vadd.f32 %v828, %v829
  %v831 = vrot.slane %v830, 4
  %v832 = vadd.f32 %v830, %v831
  %v833 = vrot.slane %v832, 2
  %v834 = vadd.f32 %v832, %v833
  %v835 = vrot.slane %v834, 1
  %v836 = vadd.f32 %v834, %v835
  %837 = vst.msk [vmem:[%s6] sm:$0x1] %vm782, %v836
  // Predicated region
  $region18: #{deep_gcn_forward.26} parent=0 // pred_check
    _
  $region19: #{deep_gcn_forward.26} parent=0 // pred_check_branch
    %839 = sbr.rel (0) target = $region21
  $region20: #{deep_gcn_forward.26} parent=0 // pred_region
    _
  $region21: #{deep_gcn_forward.26} parent=0 // pred_fallthru
    _
  // Predicated region
  $region22: #{deep_gcn_forward.26} parent=0 // pred_check
    _
  $region23: #{deep_gcn_forward.26} parent=0 // pred_check_branch
    %841 = sbr.rel (0) target = $region25
  $region24: #{deep_gcn_forward.26} parent=0 // pred_region
    _
  $region25: #{deep_gcn_forward.26} parent=0 // pred_fallthru
    _
  // Predicated region
  $region26: #{deep_gcn_forward.26} parent=0 // pred_check
    _
  $region27: #{deep_gcn_forward.26} parent=0 // pred_check_branch
    %843 = sbr.rel (0) target = $region29
  $region28: #{deep_gcn_forward.26} parent=0 // pred_region
    _
  $region29: #{deep_gcn_forward.26} parent=0 // pred_fallthru
    _
  // Predicated region
  $region30: #{deep_gcn_forward.26} parent=0 // pred_check
    _
  $region31: #{deep_gcn_forward.26} parent=0 // pred_check_branch
    %845 = sbr.rel (0) target = $region33
  $region32: #{deep_gcn_forward.26} parent=0 // pred_region
    _
  $region33: #{deep_gcn_forward.26} parent=0 // pred_fallthru
    _
  // Predicated region
  $region34: #{deep_gcn_forward.26} parent=0 // pred_check
    _
  $region35: #{deep_gcn_forward.26} parent=0 // pred_check_branch
    %847 = sbr.rel (0) target = $region37
  $region36: #{deep_gcn_forward.26} parent=0 // pred_region
    _
  $region37: #{deep_gcn_forward.26} parent=0 // pred_fallthru
    _
  // Predicated region
  $region38: #{deep_gcn_forward.26} parent=0 // pred_check
    _
  $region39: #{deep_gcn_forward.26} parent=0 // pred_check_branch
    %849 = sbr.rel (0) target = $region41
  $region40: #{deep_gcn_forward.26} parent=0 // pred_region
    _
  $region41: #{deep_gcn_forward.26} parent=0 // pred_fallthru
    _

// kernel: deep_gcn_forward.28
$region0: #{deep_gcn_forward.28}
  #allocation0 [shape = 'u32[]', space=smem, size = 0x4, offset = 0x4, fixed_abs, tag = 'smem constant byte address 0x4 - core index']
  #allocation1 [shape = 'u32[144,128]{1,0:T(1,128)}', space=vmem, size = 0x12000, scoped, tag = 'internal scratch']
  %s0 = inlined_call_operand.vmem [shape: bf16[8,128,64], index: 0, kind: input, shape index: {}]
  %s1 = inlined_call_operand.vmem [shape: bf16[8,64,4], index: 1, kind: input, shape index: {}]
  %s2 = inlined_call_operand.vmem [shape: f32[1,4], index: 2, kind: input, shape index: {}]
  %s3 = inlined_call_operand.vmem [shape: bf16[8,128,4], index: 3, kind: output, shape index: {}]
  %s4 = sld [smem:[#allocation0]]
  $region45: #{deep_gcn_forward.28} parent=0
    _
  %s6 = ssub.s32 1, %s4
  %s7 = scalar_select 0, %s6, %s4
  loop: start=0, step=1, limit=10
  $region2: #{deep_gcn_forward.28} parent=0 // loop_pre_header
    _
  $region3: #{deep_gcn_forward.28} parent=0 // loop_header
    %s9 = sphi 0, %s13
    %p10 = scmp.ge.s32.totalorder %s9, 10
    %s16 = sphi 0, %s28
    %s17 = sphi 0, %s24
    %s18 = sphi 0, %s16
    %s19 = sphi 0, %s17
    %s20 = sphi 0, %s18
    %s21 = sphi 0, %s19
    %s33 = sphi 0, %s35
    %s36 = sphi 0, %s33
    %s37 = sphi 0, %s36
    %s53 = sphi 0, %s37
    %s59 = sphi 0, %s61
    %s62 = sphi 0, %s59
    %s63 = sphi 0, %s62
    %s79 = sphi 0, %s63
    %s83 = sphi 0, %s83
    %s85 = sphi 0, %s83
    %s86 = sphi 0, %s85
    %s100 = sphi 0, %s86
    %s108 = sphi 0, %s110
    %s111 = sphi 0, %s108
    %s112 = sphi 0, %s111
    %s128 = sphi 0, %s112
  $region4: #{deep_gcn_forward.28} parent=0 // loop_header_branch
    %12 = sbr.rel (%p10) target = $region8
  $region5: #{deep_gcn_forward.28} parent=0 // loop_body
    %s14 = ssub.s32 %s9, 1
    %s15 = ssub.s32 %s9, 2
    %s22 = sadd.s32 1, %s17
    %p23 = scmp.ge.s32.totalorder %s22, 1
    %s24 = scalar_select %p23, 0, %s22
    %s25 = sadd.s32 1, %s16
    %s26 = scalar_select %p23, %s25, %s16
    %p27 = scmp.ge.s32.totalorder %s26, 8
    %s28 = scalar_select %p27, 0, %s26
    %s29 = ssub.s32 %s16, %s28
    %s30 = ssub.s32 %s17, %s24
    %s31 = sor.u32 %s29, %s30
    %p32 = scmp.eq.s32.totalorder %s31, 0
    %s34 = sadd.s32 %s33, 1
    %s35 = scalar_select %p32, %s33, %s34
    %p38 = pneg %p32
    %p39 = scmp.eq.s32.totalorder %s9, 7
    %p40 = por %p38, %p39
    %p41 = scmp.ne.s32.totalorder %s33, %s36
    %p42 = scmp.eq.s32.totalorder %s9, 0
    %p43 = por %p41, %p42
    %p44 = scmp.ne.s32.totalorder %s33, %s36
    %p45 = scmp.eq.s32.totalorder %s14, 7
    %p46 = por %p44, %p45
    %p47 = scmp.ne.s32.totalorder %s36, %s37
    %p48 = scmp.eq.s32.totalorder %s14, 0
    %p49 = por %p47, %p48
    %p50 = scmp.ne.s32.totalorder %s36, %s37
    %p51 = scmp.eq.s32.totalorder %s15, 7
    %p52 = por %p50, %p51
    %p54 = scmp.ne.s32.totalorder %s37, %s53
    %p55 = scmp.eq.s32.totalorder %s15, 0
    %p56 = por %p54, %p55
    %s57 = ssub.s32 %s16, %s28
    %p58 = scmp.eq.s32.totalorder %s57, 0
    %s60 = sadd.s32 %s59, 1
    %s61 = scalar_select %p58, %s59, %s60
    %p64 = pneg %p58
    %p65 = scmp.eq.s32.totalorder %s9, 7
    %p66 = por %p64, %p65
    %p67 = scmp.ne.s32.totalorder %s59, %s62
    %p68 = scmp.eq.s32.totalorder %s9, 0
    %p69 = por %p67, %p68
    %p70 = scmp.ne.s32.totalorder %s59, %s62
    %p71 = scmp.eq.s32.totalorder %s14, 7
    %p72 = por %p70, %p71
    %p73 = scmp.ne.s32.totalorder %s62, %s63
    %p74 = scmp.eq.s32.totalorder %s14, 0
    %p75 = por %p73, %p74
    %p76 = scmp.ne.s32.totalorder %s62, %s63
    %p77 = scmp.eq.s32.totalorder %s15, 7
    %p78 = por %p76, %p77
    %p80 = scmp.ne.s32.totalorder %s63, %s79
    %p81 = scmp.eq.s32.totalorder %s15, 0
    %p82 = por %p80, %p81
    %s84 = sadd.s32 %s83, 1
    %p87 = scmp.eq.s32.totalorder %s9, 7
    %p88 = scmp.ne.s32.totalorder %s83, %s85
    %p89 = scmp.eq.s32.totalorder %s9, 0
    %p90 = por %p88, %p89
    %p91 = scmp.ne.s32.totalorder %s83, %s85
    %p92 = scmp.eq.s32.totalorder %s14, 7
    %p93 = por %p91, %p92
    %p94 = scmp.ne.s32.totalorder %s85, %s86
    %p95 = scmp.eq.s32.totalorder %s14, 0
    %p96 = por %p94, %p95
    %p97 = scmp.ne.s32.totalorder %s85, %s86
    %p98 = scmp.eq.s32.totalorder %s15, 7
    %p99 = por %p97, %p98
    %p101 = scmp.ne.s32.totalorder %s86, %s100
    %p102 = scmp.eq.s32.totalorder %s15, 0
    %p103 = por %p101, %p102
    %s104 = ssub.s32 %s16, %s28
    %s105 = ssub.s32 %s17, %s24
    %s106 = sor.u32 %s104, %s105
    %p107 = scmp.eq.s32.totalorder %s106, 0
    %s109 = sadd.s32 %s108, 1
    %s110 = scalar_select %p107, %s108, %s109
    %p113 = pneg %p107
    %p114 = scmp.eq.s32.totalorder %s9, 7
    %p115 = por %p113, %p114
    %p116 = scmp.ne.s32.totalorder %s108, %s111
    %p117 = scmp.eq.s32.totalorder %s9, 0
    %p118 = por %p116, %p117
    %p119 = scmp.ne.s32.totalorder %s108, %s111
    %p120 = scmp.eq.s32.totalorder %s14, 7
    %p121 = por %p119, %p120
    %p122 = scmp.ne.s32.totalorder %s111, %s112
    %p123 = scmp.eq.s32.totalorder %s14, 0
    %p124 = por %p122, %p123
    %p125 = scmp.ne.s32.totalorder %s111, %s112
    %p126 = scmp.eq.s32.totalorder %s15, 7
    %p127 = por %p125, %p126
    %p129 = scmp.ne.s32.totalorder %s112, %s128
    %p130 = scmp.eq.s32.totalorder %s15, 0
    %p131 = por %p129, %p130
    %p132 = scmp.le.s32.totalorder 1, %s9
    %p133 = scmp.lt.s32.totalorder %s9, 9
    %p134 = pnand %p132, %p133
    %p135 = pneg %p134
    // Predicated region
    $region9: #{deep_gcn_forward.28} parent=5 // pred_check
      _
    $region10: #{deep_gcn_forward.28} parent=5 // pred_check_branch
      %137 = sbr.rel (%p134) target = $region12
    $region11: #{deep_gcn_forward.28} parent=5 // pred_region
      %s138 = ssub.s32 %s9, 1
      // Predicated region
      $region13: #{deep_gcn_forward.28} parent=11 // pred_check
        %p139 = pneg %p96
      $region14: #{deep_gcn_forward.28} parent=11 // pred_check_branch
        %141 = sbr.rel (%p139) target = $region16
      $region15: #{deep_gcn_forward.28} parent=11 // pred_region
        _
      $region16: #{deep_gcn_forward.28} parent=11 // pred_fallthru
        _
    $region12: #{deep_gcn_forward.28} parent=5 // pred_fallthru
      _
    %p142 = scmp.lt.s32.totalorder %s9, 8
    // Predicated region
    $region17: #{deep_gcn_forward.28} parent=5 // pred_check
      %p143 = pneg %p142
    $region18: #{deep_gcn_forward.28} parent=5 // pred_check_branch
      %145 = sbr.rel (%p143) target = $region20
    $region19: #{deep_gcn_forward.28} parent=5 // pred_region
      // Predicated region
      $region21: #{deep_gcn_forward.28} parent=19 // pred_check
        %p146 = pneg %p43
      $region22: #{deep_gcn_forward.28} parent=19 // pred_check_branch
        %148 = sbr.rel (%p146) target = $region24
      $region23: #{deep_gcn_forward.28} parent=19 // pred_region
        %s149 = smul.u32 16, %s17
        %p150 = scmp.lt.s32.totalorder %s16, 7
        %s151 = scalar_select %p150, %s16, 7
        %p152 = scmp.lt.s32.totalorder %s149, 15
        %s153 = scalar_select %p152, %s149, 15
        %s154 = smul.addr %s151, 16
        %s155 = sadd.s32 %s153, %s154
        %s156 = smul.addr %s155, 4
        %s157 = scalar_lea.vmem %s0, %s156
        %s158 = smul.u32 16, %s17
      $region24: #{deep_gcn_forward.28} parent=19 // pred_fallthru
        _
      // Predicated region
      $region25: #{deep_gcn_forward.28} parent=19 // pred_check
        %p159 = pneg %p69
      $region26: #{deep_gcn_forward.28} parent=19 // pred_check_branch
        %161 = sbr.rel (%p159) target = $region28
      $region27: #{deep_gcn_forward.28} parent=19 // pred_region
        %p162 = scmp.lt.s32.totalorder %s16, 7
        %s163 = scalar_select %p162, %s16, 7
        %s164 = smul.addr %s163, 8
        %s165 = smul.addr %s164, 4
        %s166 = scalar_lea.vmem %s1, %s165
      $region28: #{deep_gcn_forward.28} parent=19 // pred_fallthru
        _
    $region20: #{deep_gcn_forward.28} parent=5 // pred_fallthru
      _
    %p167 = scmp.le.s32.totalorder 1, %s9
    %p168 = scmp.lt.s32.totalorder %s9, 9
    %p169 = pnand %p167, %p168
    %p170 = pneg %p169
    // Predicated region
    $region29: #{deep_gcn_forward.28} parent=5 // pred_check
      _
    $region30: #{deep_gcn_forward.28} parent=5 // pred_check_branch
      %172 = sbr.rel (%p169) target = $region32
    $region31: #{deep_gcn_forward.28} parent=5 // pred_region
      %s173 = ssub.s32 %s9, 1
      %s174 = smul.u32 16, %s19
      %p175 = scmp.lt.s32.totalorder %s18, 7
      %s176 = scalar_select %p175, %s18, 7
      %p177 = scmp.lt.s32.totalorder %s174, 15
      %s178 = scalar_select %p177, %s174, 15
      %s179 = smul.addr %s176, 16
      %s180 = sadd.s32 %s178, %s179
      %s181 = smul.addr %s180, 4
      %s182 = scalar_lea.vmem %s0, %s181
      %p183 = pneg %p49
      %p184 = pneg %p46
      %p185 = scmp.lt.s32.totalorder %s18, 7
      %s186 = scalar_select %p185, %s18, 7
      %s187 = smul.addr %s186, 8
      %s188 = smul.addr %s187, 4
      %s189 = scalar_lea.vmem %s1, %s188
      %p190 = pneg %p75
      %p191 = pneg %p72
      %p192 = pneg %p96
      %p193 = pneg %p93
      %p194 = pneg %p124
      %p195 = pneg %p121
      %s196 = smul.u32 16, %s19
      %p197 = scmp.lt.s32.totalorder %s18, 7
      %s198 = scalar_select %p197, %s18, 7
      %p199 = scmp.lt.s32.totalorder %s196, 15
      %s200 = scalar_select %p199, %s196, 15
      %s201 = smul.addr %s198, 16
      %s202 = sadd.s32 %s200, %s201
      %s203 = smul.addr %s202, 4
      %s204 = scalar_lea.vmem %s3, %s203
      %s205 = smul.u32 16, %s19
      %p206 = scmp.lt.s32.totalorder %s18, 7
      %s207 = scalar_select %p206, %s18, 7
      %p208 = scmp.lt.s32.totalorder %s205, 15
      %s209 = scalar_select %p208, %s205, 15
      %s210 = smul.addr %s207, 16
      %s211 = sadd.s32 %s209, %s210
      %s212 = smul.addr %s211, 4
      %s213 = scalar_lea.vmem %s0, %s212
      %s214 = smul.u32 16, %s19
      %p215 = scmp.lt.s32.totalorder %s18, 7
      %s216 = scalar_select %p215, %s18, 7
      %s217 = smul.addr %s216, 8
      %s218 = smul.addr %s217, 4
      %s219 = scalar_lea.vmem %s1, %s218
      %s220 = smul.u32 16, %s19
      %p221 = scmp.lt.s32.totalorder %s18, 7
      %s222 = scalar_select %p221, %s18, 7
      %p223 = scmp.lt.s32.totalorder %s220, 15
      %s224 = scalar_select %p223, %s220, 15
      %s225 = smul.addr %s222, 16
      %s226 = sadd.s32 %s224, %s225
      %s227 = smul.addr %s226, 4
      %s228 = scalar_lea.vmem %s3, %s227
      %s229 = smul.u32 16, %s19
      %v231 = vld [vmem:[%s213] sm:$0xf]
      %v232 = vld [vmem:[%s213 + $0x4] sm:$0xf]
      %v233 = vld [vmem:[%s213 + $0x8] sm:$0xf]
      %v234 = vld [vmem:[%s213 + $0xc] sm:$0xf]
      %v235 = vld [vmem:[%s213 + $0x10] sm:$0xf]
      %v236 = vld [vmem:[%s213 + $0x14] sm:$0xf]
      %v237 = vld [vmem:[%s213 + $0x18] sm:$0xf]
      %v238 = vld [vmem:[%s213 + $0x1c] sm:$0xf]
      %v239 = vld [vmem:[%s213 + $0x20] sm:$0xf]
      %v240 = vld [vmem:[%s213 + $0x24] sm:$0xf]
      %v241 = vld [vmem:[%s213 + $0x28] sm:$0xf]
      %v242 = vld [vmem:[%s213 + $0x2c] sm:$0xf]
      %v243 = vld [vmem:[%s213 + $0x30] sm:$0xf]
      %v244 = vld [vmem:[%s213 + $0x34] sm:$0xf]
      %v245 = vld [vmem:[%s213 + $0x38] sm:$0xf]
      %v246 = vld [vmem:[%s213 + $0x3c] sm:$0xf]
      %v247 = vld [vmem:[%s219] sm:$0xf]
      %v248 = vld [vmem:[%s219 + $0x4] sm:$0xf]
      %v249 = vld [vmem:[%s219 + $0x8] sm:$0xf]
      %v250 = vld [vmem:[%s219 + $0xc] sm:$0xf]
      %v251 = vld [vmem:[%s219 + $0x10] sm:$0xf]
      %v252 = vld [vmem:[%s219 + $0x14] sm:$0xf]
      %v253 = vld [vmem:[%s219 + $0x18] sm:$0xf]
      %v254 = vld [vmem:[%s219 + $0x1c] sm:$0xf]
      %v255 = vld [vmem:[%s2] sm:$0x1]
      %v257 = vlaneseq
      %v258 = vshrl.u32 %v257, 7
      %v259 = vsub.s32 0, %v258
      %v260 = vrot.slane %v255, %v259
      %v278 = vunpack.c.l.b16 %v231
      %v279 = vunpack.c.l.b16 %v232
      %v280 = vunpack.c.l.b16 %v233
      %v281 = vunpack.c.l.b16 %v234
      %v282 = vunpack.c.l.b16 %v235
      %v283 = vunpack.c.l.b16 %v236
      %v284 = vunpack.c.l.b16 %v237
      %v285 = vunpack.c.l.b16 %v238
      %v286 = vunpack.c.l.b16 %v239
      %v287 = vunpack.c.l.b16 %v240
      %v288 = vunpack.c.l.b16 %v241
      %v289 = vunpack.c.l.b16 %v242
      %v290 = vunpack.c.l.b16 %v243
      %v291 = vunpack.c.l.b16 %v244
      %v292 = vunpack.c.l.b16 %v245
      %v293 = vunpack.c.l.b16 %v246
      %v294 = vpack.c.b16 %v279, %v278
      %v295 = vpack.c.b16 %v281, %v280
      %v296 = vpack.c.b16 %v283, %v282
      %v297 = vpack.c.b16 %v285, %v284
      %v298 = vpack.c.b16 %v287, %v286
      %v299 = vpack.c.b16 %v289, %v288
      %v300 = vpack.c.b16 %v291, %v290
      %v301 = vpack.c.b16 %v293, %v292
      %v310 = vunpack.c.l.b16 %v247
      %v311 = vunpack.c.l.b16 %v248
      %v312 = vunpack.c.l.b16 %v249
      %v313 = vunpack.c.l.b16 %v250
      %v314 = vunpack.c.l.b16 %v251
      %v315 = vunpack.c.l.b16 %v252
      %v316 = vunpack.c.l.b16 %v253
      %v317 = vunpack.c.l.b16 %v254
      %v318 = vpack.c.b16 %v311, %v310
      %v319 = vpack.c.b16 %v313, %v312
      %v320 = vpack.c.b16 %v315, %v314
      %v321 = vpack.c.b16 %v317, %v316
      %vm326 = vcmask 523264
      %v328 = vsel %vm326, %v294, 0
      %v331 = vsel %vm326, %v295, 0
      %v334 = vsel %vm326, %v296, 0
      %v337 = vsel %vm326, %v297, 0
      %v340 = vsel %vm326, %v298, 0
      %v343 = vsel %vm326, %v299, 0
      %v346 = vsel %vm326, %v300, 0
      %v349 = vsel %vm326, %v301, 0
      %351 = vmatprep.subr.bf16.mxu0 0
      %352 = vmatpush1.bf16.msra.mxu0 %v318
      %353 = vmatprep.subr.bf16.mxu0 0
      %354 = vmatpush1.bf16.msra.mxu0 %v319
      %355 = vmatprep.subr.bf16.mxu0 0
      %356 = vmatpush1.bf16.msra.mxu0 %v320
      %357 = vmatprep.subr.bf16.mxu0 0
      %358 = vmatpush1.bf16.msra.mxu0 %v321
      %359 = vmatprep.subr.bf16.mxu0 0
      %360 = vmatpush1.bf16.msra.mxu0 0
      %361 = vmatprep.subr.bf16.mxu0 0
      %362 = vmatpush1.bf16.msra.mxu0 0
      %363 = vmatprep.subr.bf16.mxu0 0
      %364 = vmatpush1.bf16.msra.mxu0 0
      %365 = vmatprep.subr.bf16.mxu0 0
      %366 = vmatpush1.bf16.msra.mxu0 0
      %367 = vmatprep.subr.bf16.mxu0 0
      %368 = vmatpush1.bf16.msra.mxu0 0
      %369 = vmatprep.subr.bf16.mxu0 0
      %370 = vmatpush1.bf16.msra.mxu0 0
      %371 = vmatprep.subr.bf16.mxu0 0
      %372 = vmatpush1.bf16.msra.mxu0 0
      %373 = vmatprep.subr.bf16.mxu0 0
      %374 = vmatpush1.bf16.msra.mxu0 0
      %375 = vmatprep.subr.bf16.mxu0 0
      %376 = vmatpush1.bf16.msra.mxu0 0
      %377 = vmatprep.subr.bf16.mxu0 0
      %378 = vmatpush1.bf16.msra.mxu0 0
      %379 = vmatprep.subr.bf16.mxu0 0
      %380 = vmatpush1.bf16.msra.mxu0 0
      %381 = vmatprep.subr.bf16.mxu0 0
      %382 = vmatpush1.bf16.msra.mxu0 0
      %383 = vmatprep.mubr.bf16.mxu0 0
      %384 = vmatmul.mubr.bf16.gmra.mrb[0].mxu0 %v328
      %v385 = vpop.f32.mrb[0].mxu0
      %v386 = vadd.f32 %v260, %v385
      %v387 = vpop.f32.mrb[0].mxu0
      %v388 = vpop.f32.mrb[0].mxu0
      %v389 = vadd.f32 %v260, %v388
      %v390 = vpop.f32.mrb[0].mxu0
      %391 = vmatprep.mubr.bf16.mxu0 0
      %392 = vmatmul.mubr.bf16.gmra.mrb[0].mxu0 %v331
      %v393 = vpop.f32.mrb[0].mxu0
      %v394 = vadd.f32 %v260, %v393
      %v395 = vpop.f32.mrb[0].mxu0
      %v396 = vpop.f32.mrb[0].mxu0
      %v397 = vadd.f32 %v260, %v396
      %v398 = vpop.f32.mrb[0].mxu0
      %399 = vmatprep.mubr.bf16.mxu0 0
      %400 = vmatmul.mubr.bf16.gmra.mrb[0].mxu0 %v334
      %v401 = vpop.f32.mrb[0].mxu0
      %v402 = vadd.f32 %v260, %v401
      %v403 = vpop.f32.mrb[0].mxu0
      %v404 = vpop.f32.mrb[0].mxu0
      %v405 = vadd.f32 %v260, %v404
      %v406 = vpop.f32.mrb[0].mxu0
      %407 = vmatprep.mubr.bf16.mxu0 0
      %408 = vmatmul.mubr.bf16.gmra.mrb[0].mxu0 %v337
      %v409 = vpop.f32.mrb[0].mxu0
      %v410 = vadd.f32 %v260, %v409
      %v411 = vpop.f32.mrb[0].mxu0
      %v412 = vpop.f32.mrb[0].mxu0
      %v413 = vadd.f32 %v260, %v412
      %v414 = vpop.f32.mrb[0].mxu0
      %415 = vmatprep.mubr.bf16.mxu0 0
      %416 = vmatmul.mubr.bf16.gmra.mrb[0].mxu0 %v340
      %v417 = vpop.f32.mrb[0].mxu0
      %v418 = vadd.f32 %v260, %v417
      %v419 = vpop.f32.mrb[0].mxu0
      %v420 = vpop.f32.mrb[0].mxu0
      %v421 = vadd.f32 %v260, %v420
      %v422 = vpop.f32.mrb[0].mxu0
      %423 = vmatprep.mubr.bf16.mxu0 0
      %424 = vmatmul.mubr.bf16.gmra.mrb[0].mxu0 %v343
      %v425 = vpop.f32.mrb[0].mxu0
      %v426 = vadd.f32 %v260, %v425
      %v427 = vpop.f32.mrb[0].mxu0
      %v428 = vpop.f32.mrb[0].mxu0
      %v429 = vadd.f32 %v260, %v428
      %v430 = vpop.f32.mrb[0].mxu0
      %431 = vmatprep.mubr.bf16.mxu0 0
      %432 = vmatmul.mubr.bf16.gmra.mrb[0].mxu0 %v346
      %v433 = vpop.f32.mrb[0].mxu0
      %v434 = vadd.f32 %v260, %v433
      %v435 = vpop.f32.mrb[0].mxu0
      %v436 = vpop.f32.mrb[0].mxu0
      %v437 = vadd.f32 %v260, %v436
      %v438 = vpop.f32.mrb[0].mxu0
      %439 = vmatprep.mubr.bf16.mxu0 0
      %440 = vmatmul.mubr.bf16.gmra.mrb[0].mxu0 %v349
      %v441 = vpop.f32.mrb[0].mxu0
      %v442 = vadd.f32 %v260, %v441
      %v443 = vpop.f32.mrb[0].mxu0
      %v444 = vpop.f32.mrb[0].mxu0
      %v445 = vadd.f32 %v260, %v444
      %v446 = vpop.f32.mrb[0].mxu0
      %447 = vdwg.mxu0
      %v448 = vpack.c.bf16 %v389, %v386
      %v449 = vpack.c.bf16 %v397, %v394
      %v450 = vpack.c.bf16 %v405, %v402
      %v451 = vpack.c.bf16 %v413, %v410
      %v452 = vpack.c.bf16 %v421, %v418
      %v453 = vpack.c.bf16 %v429, %v426
      %v454 = vpack.c.bf16 %v437, %v434
      %v455 = vpack.c.bf16 %v445, %v442
      %v464 = vunpack.c.l.b16 %v448
      %v465 = vunpack.c.h.b16 %v448
      %v466 = vunpack.c.l.b16 %v449
      %v467 = vunpack.c.h.b16 %v449
      %v468 = vunpack.c.l.b16 %v450
      %v469 = vunpack.c.h.b16 %v450
      %v470 = vunpack.c.l.b16 %v451
      %v471 = vunpack.c.h.b16 %v451
      %v472 = vunpack.c.l.b16 %v452
      %v473 = vunpack.c.h.b16 %v452
      %v474 = vunpack.c.l.b16 %v453
      %v475 = vunpack.c.h.b16 %v453
      %v476 = vunpack.c.l.b16 %v454
      %v477 = vunpack.c.h.b16 %v454
      %v478 = vunpack.c.l.b16 %v455
      %v479 = vunpack.c.h.b16 %v455
      %v480 = vpack.c.b16 %v464, %v464
      %v481 = vpack.c.b16 %v465, %v465
      %v482 = vpack.c.b16 %v466, %v466
      %v483 = vpack.c.b16 %v467, %v467
      %v484 = vpack.c.b16 %v468, %v468
      %v485 = vpack.c.b16 %v469, %v469
      %v486 = vpack.c.b16 %v470, %v470
      %v487 = vpack.c.b16 %v471, %v471
      %v488 = vpack.c.b16 %v472, %v472
      %v489 = vpack.c.b16 %v473, %v473
      %v490 = vpack.c.b16 %v474, %v474
      %v491 = vpack.c.b16 %v475, %v475
      %v492 = vpack.c.b16 %v476, %v476
      %v493 = vpack.c.b16 %v477, %v477
      %v494 = vpack.c.b16 %v478, %v478
      %v495 = vpack.c.b16 %v479, %v479
      %vm512 = vcmask 27648
      %513 = vst.msk [vmem:[%s228] sm:$0xf] %vm512, %v480
      %514 = vst.msk [vmem:[%s228 + $0x4] sm:$0xf] %vm512, %v481
      %515 = vst.msk [vmem:[%s228 + $0x8] sm:$0xf] %vm512, %v482
      %516 = vst.msk [vmem:[%s228 + $0xc] sm:$0xf] %vm512, %v483
      %517 = vst.msk [vmem:[%s228 + $0x10] sm:$0xf] %vm512, %v484
      %518 = vst.msk [vmem:[%s228 + $0x14] sm:$0xf] %vm512, %v485
      %519 = vst.msk [vmem:[%s228 + $0x18] sm:$0xf] %vm512, %v486
      %520 = vst.msk [vmem:[%s228 + $0x1c] sm:$0xf] %vm512, %v487
      %521 = vst.msk [vmem:[%s228 + $0x20] sm:$0xf] %vm512, %v488
      %522 = vst.msk [vmem:[%s228 + $0x24] sm:$0xf] %vm512, %v489
      %523 = vst.msk [vmem:[%s228 + $0x28] sm:$0xf] %vm512, %v490
      %524 = vst.msk [vmem:[%s228 + $0x2c] sm:$0xf] %vm512, %v491
      %525 = vst.msk [vmem:[%s228 + $0x30] sm:$0xf] %vm512, %v492
      %526 = vst.msk [vmem:[%s228 + $0x34] sm:$0xf] %vm512, %v493
      %527 = vst.msk [vmem:[%s228 + $0x38] sm:$0xf] %vm512, %v494
      %528 = vst.msk [vmem:[%s228 + $0x3c] sm:$0xf] %vm512, %v495
      %s529 = smul.u32 16, %s19
      %p530 = scmp.lt.s32.totalorder %s18, 7
      %s531 = scalar_select %p530, %s18, 7
      %p532 = scmp.lt.s32.totalorder %s529, 15
      %s533 = scalar_select %p532, %s529, 15
      %s534 = smul.addr %s531, 16
      %s535 = sadd.s32 %s533, %s534
      %s536 = smul.addr %s535, 4
      %s537 = scalar_lea.vmem %s3, %s536
      // Predicated region
      $region33: #{deep_gcn_forward.28} parent=31 // pred_check
        %p538 = pneg %p121
      $region34: #{deep_gcn_forward.28} parent=31 // pred_check_branch
        %540 = sbr.rel (%p538) target = $region36
      $region35: #{deep_gcn_forward.28} parent=31 // pred_region
        %s541 = smul.u32 16, %s19
      $region36: #{deep_gcn_forward.28} parent=31 // pred_fallthru
        _
    $region32: #{deep_gcn_forward.28} parent=5 // pred_fallthru
      _
    %p542 = scmp.le.s32.totalorder 2, %s9
    // Predicated region
    $region37: #{deep_gcn_forward.28} parent=5 // pred_check
      %p543 = pneg %p542
    $region38: #{deep_gcn_forward.28} parent=5 // pred_check_branch
      %545 = sbr.rel (%p543) target = $region40
    $region39: #{deep_gcn_forward.28} parent=5 // pred_region
      %s546 = ssub.s32 %s9, 2
      // Predicated region
      $region41: #{deep_gcn_forward.28} parent=39 // pred_check
        %p547 = pneg %p127
      $region42: #{deep_gcn_forward.28} parent=39 // pred_check_branch
        %549 = sbr.rel (%p547) target = $region44
      $region43: #{deep_gcn_forward.28} parent=39 // pred_region
        %s550 = smul.u32 16, %s21
        %p551 = scmp.lt.s32.totalorder %s20, 7
        %s552 = scalar_select %p551, %s20, 7
        %p553 = scmp.lt.s32.totalorder %s550, 15
        %s554 = scalar_select %p553, %s550, 15
        %s555 = smul.addr %s552, 16
        %s556 = sadd.s32 %s554, %s555
        %s557 = smul.addr %s556, 4
        %s558 = scalar_lea.vmem %s3, %s557
      $region44: #{deep_gcn_forward.28} parent=39 // pred_fallthru
        _
    $region40: #{deep_gcn_forward.28} parent=5 // pred_fallthru
      _
  $region6: #{deep_gcn_forward.28} parent=0 // loop_footer
    %s13 = sadd.s32 1, %s9
  $region7: #{deep_gcn_forward.28} parent=0 // loop_footer_branch
    %8 = sbr.rel target = $region3
  $region8: #{deep_gcn_forward.28} parent=0 // loop_exit
    _

// kernel: tile.93
$region0: #{tile.93}
  #allocation0 [shape = 's32[1]{0}', space=sflag, size = 0x4, scoped, tag = 'scoped memory for tile.93']
  %s0 = inlined_call_operand.vmem [shape: f32[4], index: 0, kind: input, shape index: {}]
  %s1 = inlined_call_operand.vmem [shape: f32[32,4], index: 1, kind: output, shape index: {}]
  // Predicated region
  $region2: #{tile.93} parent=0 // pred_check
    _
  $region3: #{tile.93} parent=0 // pred_check_branch
    %3 = sbr.rel (0) target = $region5
  $region4: #{tile.93} parent=0 // pred_region
    _
  $region5: #{tile.93} parent=0 // pred_fallthru
    _
  %v4 = vld [vmem:[%s0] ss:$0 sm:$0xff]
  %5 = vst [vmem:[%s1] sm:$0xff] %v4
  %s6 = scalar_lea.vmem %s1, 8
  %7 = vst [vmem:[%s6] sm:$0xff] %v4
  %s8 = scalar_lea.vmem %s1, 16
  %9 = vst [vmem:[%s8] sm:$0xff] %v4
  %s10 = scalar_lea.vmem %s1, 24
  %11 = vst [vmem:[%s10] sm:$0xff] %v4

// kernel: tile.94
$region0: #{tile.94}
  %s0 = inlined_call_operand.vmem [shape: f32[32,4], index: 0, kind: input, shape index: {}]
  %s1 = inlined_call_operand.vmem [shape: f32[1,128], index: 1, kind: output, shape index: {}]
  $region1: #{tile.94} parent=0
    #allocation0 [shape = 'u8[4096]{0}', space=vmem, size = 0x1000, scoped, tag = 'scoped mem for output reshape']
    %v2 = vld [vmem:[%s0] sm:$0x1]
    %vm3 = vcmask 31744
    %4 = vst.msk [vmem:[#allocation0] sm:$0x1] %vm3, %v2
    %s5 = scalar_lea.vmem %s0, 31
    %v6 = vld [vmem:[%s5] sm:$0x1]
    %7 = vrot.lane.b32.xlu0 %v6, 124
    %v8 = vpop.permute.xlu0 %7
    %vm9 = vcmask 1048544
    %10 = vst.msk [vmem:[#allocation0] sm:$0x1] %vm9, %v8
    %s11 = scalar_lea.vmem %s0, 30
    %v12 = vld [vmem:[%s11] sm:$0x1]
    %13 = vrot.lane.b32.xlu0 %v12, 120
    %v14 = vpop.permute.xlu0 %13
    %vm15 = vcmask 1015744
    %16 = vst.msk [vmem:[#allocation0] sm:$0x1] %vm15, %v14
    %s17 = scalar_lea.vmem %s0, 29
    %v18 = vld [vmem:[%s17] sm:$0x1]
    %19 = vrot.lane.b32.xlu0 %v18, 116
    %v20 = vpop.permute.xlu0 %19
    %vm21 = vcmask 982944
    %22 = vst.msk [vmem:[#allocation0] sm:$0x1] %vm21, %v20
    %s23 = scalar_lea.vmem %s0, 28
    %v24 = vld [vmem:[%s23] sm:$0x1]
    %25 = vrot.lane.b32.xlu0 %v24, 112
    %v26 = vpop.permute.xlu0 %25
    %vm27 = vcmask 950144
    %28 = vst.msk [vmem:[#allocation0] sm:$0x1] %vm27, %v26
    %s29 = scalar_lea.vmem %s0, 27
    %v30 = vld [vmem:[%s29] sm:$0x1]
    %31 = vrot.lane.b32.xlu0 %v30, 108
    %v32 = vpop.permute.xlu0 %31
    %vm33 = vcmask 917344
    %34 = vst.msk [vmem:[#allocation0] sm:$0x1] %vm33, %v32
    %s35 = scalar_lea.vmem %s0, 26
    %v36 = vld [vmem:[%s35] sm:$0x1]
    %37 = vrot.lane.b32.xlu0 %v36, 104
    %v38 = vpop.permute.xlu0 %37
    %vm39 = vcmask 884544
    %40 = vst.msk [vmem:[#allocation0] sm:$0x1] %vm39, %v38
    %s41 = scalar_lea.vmem %s0, 25
    %v42 = vld [vmem:[%s41] sm:$0x1]
    %43 = vrot.lane.b32.xlu0 %v42, 100
    %v44 = vpop.permute.xlu0 %43
    %vm45 = vcmask 851744
    %46 = vst.msk [vmem:[#allocation0] sm:$0x1] %vm45, %v44
    %s47 = scalar_lea.vmem %s0, 24
    %v48 = vld [vmem:[%s47] sm:$0x1]
    %49 = vrot.lane.b32.xlu0 %v48, 96
    %v50 = vpop.permute.xlu0 %49
    %vm51 = vcmask 818944
    %52 = vst.msk [vmem:[#allocation0] sm:$0x1] %vm51, %v50
    %s53 = scalar_lea.vmem %s0, 23
    %v54 = vld [vmem:[%s53] sm:$0x1]
    %55 = vrot.lane.b32.xlu0 %v54, 92
    %v56 = vpop.permute.xlu0 %55
    %vm57 = vcmask 786144
    %58 = vst.msk [vmem:[#allocation0] sm:$0x1] %vm57, %v56
    %s59 = scalar_lea.vmem %s0, 22
    %v60 = vld [vmem:[%s59] sm:$0x1]
    %61 = vrot.lane.b32.xlu0 %v60, 88
    %v62 = vpop.permute.xlu0 %61
    %vm63 = vcmask 753344
    %64 = vst.msk [vmem:[#allocation0] sm:$0x1] %vm63, %v62
    %s65 = scalar_lea.vmem %s0, 21
    %v66 = vld [vmem:[%s65] sm:$0x1]
    %67 = vrot.lane.b32.xlu0 %v66, 84
    %v68 = vpop.permute.xlu0 %67
    %vm69 = vcmask 720544
    %70 = vst.msk [vmem:[#allocation0] sm:$0x1] %vm69, %v68
    %s71 = scalar_lea.vmem %s0, 20
    %v72 = vld [vmem:[%s71] sm:$0x1]
    %73 = vrot.lane.b32.xlu0 %v72, 80
    %v74 = vpop.permute.xlu0 %73
    %vm75 = vcmask 687744
    %76 = vst.msk [vmem:[#allocation0] sm:$0x1] %vm75, %v74
    %s77 = scalar_lea.vmem %s0, 19
    %v78 = vld [vmem:[%s77] sm:$0x1]
    %79 = vrot.lane.b32.xlu0 %v78, 76
    %v80 = vpop.permute.xlu0 %79
    %vm81 = vcmask 654944
    %82 = vst.msk [vmem:[#allocation0] sm:$0x1] %vm81, %v80
    %s83 = scalar_lea.vmem %s0, 18
    %v84 = vld [vmem:[%s83] sm:$0x1]
    %85 = vrot.lane.b32.xlu0 %v84, 72
    %v86 = vpop.permute.xlu0 %85
    %vm87 = vcmask 622144
    %88 = vst.msk [vmem:[#allocation0] sm:$0x1] %vm87, %v86
    %s89 = scalar_lea.vmem %s0, 17
    %v90 = vld [vmem:[%s89] sm:$0x1]
    %91 = vrot.lane.b32.xlu0 %v90, 68
    %v92 = vpop.permute.xlu0 %91
    %vm93 = vcmask 589344
    %94 = vst.msk [vmem:[#allocation0] sm:$0x1] %vm93, %v92
    %s95 = scalar_lea.vmem %s0, 16
    %v96 = vld [vmem:[%s95] sm:$0x1]
    %97 = vrot.lane.b32.xlu0 %v96, 64
    %v98 = vpop.permute.xlu0 %97
    %vm99 = vcmask 556544
    %100 = vst.msk [vmem:[#allocation0] sm:$0x1] %vm99, %v98
    %s101 = scalar_lea.vmem %s0, 15
    %v102 = vld [vmem:[%s101] sm:$0x1]
    %103 = vrot.lane.b32.xlu0 %v102, 60
    %v104 = vpop.permute.xlu0 %103
    %vm105 = vcmask 523744
    %106 = vst.msk [vmem:[#allocation0] sm:$0x1] %vm105, %v104
    %s107 = scalar_lea.vmem %s0, 14
    %v108 = vld [vmem:[%s107] sm:$0x1]
    %109 = vrot.lane.b32.xlu0 %v108, 56
    %v110 = vpop.permute.xlu0 %109
    %vm111 = vcmask 490944
    %112 = vst.msk [vmem:[#allocation0] sm:$0x1] %vm111, %v110
    %s113 = scalar_lea.vmem %s0, 13
    %v114 = vld [vmem:[%s113] sm:$0x1]
    %115 = vrot.lane.b32.xlu0 %v114, 52
    %v116 = vpop.permute.xlu0 %115
    %vm117 = vcmask 458144
    %118 = vst.msk [vmem:[#allocation0] sm:$0x1] %vm117, %v116
    %s119 = scalar_lea.vmem %s0, 12
    %v120 = vld [vmem:[%s119] sm:$0x1]
    %121 = vrot.lane.b32.xlu0 %v120, 48
    %v122 = vpop.permute.xlu0 %121
    %vm123 = vcmask 425344
    %124 = vst.msk [vmem:[#allocation0] sm:$0x1] %vm123, %v122
    %s125 = scalar_lea.vmem %s0, 11
    %v126 = vld [vmem:[%s125] sm:$0x1]
    %127 = vrot.lane.b32.xlu0 %v126, 44
    %v128 = vpop.permute.xlu0 %127
    %vm129 = vcmask 392544
    %130 = vst.msk [vmem:[#allocation0] sm:$0x1] %vm129, %v128
    %s131 = scalar_lea.vmem %s0, 10
    %v132 = vld [vmem:[%s131] sm:$0x1]
    %133 = vrot.lane.b32.xlu0 %v132, 40
    %v134 = vpop.permute.xlu0 %133
    %vm135 = vcmask 359744
    %136 = vst.msk [vmem:[#allocation0] sm:$0x1] %vm135, %v134
    %s137 = scalar_lea.vmem %s0, 9
    %v138 = vld [vmem:[%s137] sm:$0x1]
    %139 = vrot.lane.b32.xlu0 %v138, 36
    %v140 = vpop.permute.xlu0 %139
    %vm141 = vcmask 326944
    %142 = vst.msk [vmem:[#allocation0] sm:$0x1] %vm141, %v140
    %s143 = scalar_lea.vmem %s0, 8
    %v144 = vld [vmem:[%s143] sm:$0x1]
    %145 = vrot.lane.b32.xlu0 %v144, 32
    %v146 = vpop.permute.xlu0 %145
    %vm147 = vcmask 294144
    %148 = vst.msk [vmem:[#allocation0] sm:$0x1] %vm147, %v146
    %s149 = scalar_lea.vmem %s0, 7
    %v150 = vld [vmem:[%s149] sm:$0x1]
    %151 = vrot.lane.b32.xlu0 %v150, 28
    %v152 = vpop.permute.xlu0 %151
    %vm153 = vcmask 261344
    %154 = vst.msk [vmem:[#allocation0] sm:$0x1] %vm153, %v152
    %s155 = scalar_lea.vmem %s0, 6
    %v156 = vld [vmem:[%s155] sm:$0x1]
    %157 = vrot.lane.b32.xlu0 %v156, 24
    %v158 = vpop.permute.xlu0 %157
    %vm159 = vcmask 228544
    %160 = vst.msk [vmem:[#allocation0] sm:$0x1] %vm159, %v158
    %s161 = scalar_lea.vmem %s0, 5
    %v162 = vld [vmem:[%s161] sm:$0x1]
    %163 = vrot.lane.b32.xlu0 %v162, 20
    %v164 = vpop.permute.xlu0 %163
    %vm165 = vcmask 195744
    %166 = vst.msk [vmem:[#allocation0] sm:$0x1] %vm165, %v164
    %s167 = scalar_lea.vmem %s0, 4
    %v168 = vld [vmem:[%s167] sm:$0x1]
    %169 = vrot.lane.b32.xlu0 %v168, 16
    %v170 = vpop.permute.xlu0 %169
    %vm171 = vcmask 162944
    %172 = vst.msk [vmem:[#allocation0] sm:$0x1] %vm171, %v170
    %s173 = scalar_lea.vmem %s0, 3
    %v174 = vld [vmem:[%s173] sm:$0x1]
    %175 = vrot.lane.b32.xlu0 %v174, 12
    %v176 = vpop.permute.xlu0 %175
    %vm177 = vcmask 130144
    %178 = vst.msk [vmem:[#allocation0] sm:$0x1] %vm177, %v176
    %s179 = scalar_lea.vmem %s0, 2
    %v180 = vld [vmem:[%s179] sm:$0x1]
    %181 = vrot.lane.b32.xlu0 %v180, 8
    %v182 = vpop.permute.xlu0 %181
    %vm183 = vcmask 97344
    %184 = vst.msk [vmem:[#allocation0] sm:$0x1] %vm183, %v182
    %s185 = scalar_lea.vmem %s0, 1
    %v186 = vld [vmem:[%s185] sm:$0x1]
    %187 = vrot.lane.b32.xlu0 %v186, 4
    %v188 = vpop.permute.xlu0 %187
    %vm189 = vcmask 64544
    %190 = vst.msk [vmem:[#allocation0] sm:$0x1] %vm189, %v188
    %s192 = sshllo.u32 0, 1
    %v194 = vld [vmem:[#allocation0] sm:%s192]
    %s195 = sshllo.u32 0, 1
    %196 = vst [vmem:[%s1] sm:%s195] %v194

// kernel: deep_gcn_forward.29
$region0: #{deep_gcn_forward.29}
  #allocation0 [shape = 'u32[]', space=smem, size = 0x4, offset = 0x4, fixed_abs, tag = 'smem constant byte address 0x4 - core index']
  #allocation1 [shape = 'u32[144,128]{1,0:T(1,128)}', space=vmem, size = 0x12000, scoped, tag = 'internal scratch']
  %s0 = inlined_call_operand.vmem [shape: bf16[1024,108], index: 0, kind: input, shape index: {}]
  %s1 = inlined_call_operand.vmem [shape: bf16[108,4], index: 1, kind: input, shape index: {}]
  %s2 = inlined_call_operand.vmem [shape: bf16[1024,108], index: 2, kind: input, shape index: {}]
  %s3 = inlined_call_operand.vmem [shape: bf16[108,4], index: 3, kind: input, shape index: {}]
  %s4 = inlined_call_operand.vmem [shape: bf16[1024,4], index: 4, kind: output, shape index: {0}]
  %s5 = inlined_call_operand.vmem [shape: f32[2,1,4], index: 5, kind: output, shape index: {1}]
  %s6 = inlined_call_operand.vmem [shape: f32[2,1,4], index: 6, kind: output, shape index: {2}]
  %7 = xla_tuple %s4, %s5, %s6
  %s8 = sld [smem:[#allocation0]]
  $region65: #{deep_gcn_forward.29} parent=0
    _
  %s10 = ssub.s32 1, %s8
  %s11 = scalar_select 0, %s10, %s8
  loop: start=0, step=1, limit=4
  $region2: #{deep_gcn_forward.29} parent=0 // loop_pre_header
    _
  $region3: #{deep_gcn_forward.29} parent=0 // loop_header
    %s13 = sphi 0, %s17
    %p14 = scmp.ge.s32.totalorder %s13, 4
    %s23 = sphi 0, %s25
    %s26 = sphi 0, %s23
    %s27 = sphi 0, %s26
    %s43 = sphi 0, %s27
    %s47 = sphi 0, %s47
    %s49 = sphi 0, %s47
    %s50 = sphi 0, %s49
    %s64 = sphi 0, %s50
    %s70 = sphi 0, %s72
    %s73 = sphi 0, %s70
    %s74 = sphi 0, %s73
    %s90 = sphi 0, %s74
    %s94 = sphi 0, %s94
    %s96 = sphi 0, %s94
    %s97 = sphi 0, %s96
    %s111 = sphi 0, %s97
    %s117 = sphi 0, %s119
    %s120 = sphi 0, %s117
    %s121 = sphi 0, %s120
    %s137 = sphi 0, %s121
    %s143 = sphi 0, %s145
    %s146 = sphi 0, %s143
    %s147 = sphi 0, %s146
    %s163 = sphi 0, %s147
    %s169 = sphi 0, %s171
    %s172 = sphi 0, %s169
    %s173 = sphi 0, %s172
    %s189 = sphi 0, %s173
  $region4: #{deep_gcn_forward.29} parent=0 // loop_header_branch
    %16 = sbr.rel (%p14) target = $region8
  $region5: #{deep_gcn_forward.29} parent=0 // loop_body
    %s18 = ssub.s32 %s13, 1
    %s19 = ssub.s32 %s13, 2
    %s20 = sadd.s32 %s13, 1
    %s21 = ssub.s32 %s13, %s20
    %p22 = scmp.eq.s32.totalorder %s21, 0
    %s24 = sadd.s32 %s23, 1
    %s25 = scalar_select %p22, %s23, %s24
    %p28 = pneg %p22
    %p29 = scmp.eq.s32.totalorder %s13, 1
    %p30 = por %p28, %p29
    %p31 = scmp.ne.s32.totalorder %s23, %s26
    %p32 = scmp.eq.s32.totalorder %s13, 0
    %p33 = por %p31, %p32
    %p34 = scmp.ne.s32.totalorder %s23, %s26
    %p35 = scmp.eq.s32.totalorder %s18, 1
    %p36 = por %p34, %p35
    %p37 = scmp.ne.s32.totalorder %s26, %s27
    %p38 = scmp.eq.s32.totalorder %s18, 0
    %p39 = por %p37, %p38
    %p40 = scmp.ne.s32.totalorder %s26, %s27
    %p41 = scmp.eq.s32.totalorder %s19, 1
    %p42 = por %p40, %p41
    %p44 = scmp.ne.s32.totalorder %s27, %s43
    %p45 = scmp.eq.s32.totalorder %s19, 0
    %p46 = por %p44, %p45
    %s48 = sadd.s32 %s47, 1
    %p51 = scmp.eq.s32.totalorder %s13, 1
    %p52 = scmp.ne.s32.totalorder %s47, %s49
    %p53 = scmp.eq.s32.totalorder %s13, 0
    %p54 = por %p52, %p53
    %p55 = scmp.ne.s32.totalorder %s47, %s49
    %p56 = scmp.eq.s32.totalorder %s18, 1
    %p57 = por %p55, %p56
    %p58 = scmp.ne.s32.totalorder %s49, %s50
    %p59 = scmp.eq.s32.totalorder %s18, 0
    %p60 = por %p58, %p59
    %p61 = scmp.ne.s32.totalorder %s49, %s50
    %p62 = scmp.eq.s32.totalorder %s19, 1
    %p63 = por %p61, %p62
    %p65 = scmp.ne.s32.totalorder %s50, %s64
    %p66 = scmp.eq.s32.totalorder %s19, 0
    %p67 = por %p65, %p66
    %s68 = ssub.s32 %s13, %s20
    %p69 = scmp.eq.s32.totalorder %s68, 0
    %s71 = sadd.s32 %s70, 1
    %s72 = scalar_select %p69, %s70, %s71
    %p75 = pneg %p69
    %p76 = scmp.eq.s32.totalorder %s13, 1
    %p77 = por %p75, %p76
    %p78 = scmp.ne.s32.totalorder %s70, %s73
    %p79 = scmp.eq.s32.totalorder %s13, 0
    %p80 = por %p78, %p79
    %p81 = scmp.ne.s32.totalorder %s70, %s73
    %p82 = scmp.eq.s32.totalorder %s18, 1
    %p83 = por %p81, %p82
    %p84 = scmp.ne.s32.totalorder %s73, %s74
    %p85 = scmp.eq.s32.totalorder %s18, 0
    %p86 = por %p84, %p85
    %p87 = scmp.ne.s32.totalorder %s73, %s74
    %p88 = scmp.eq.s32.totalorder %s19, 1
    %p89 = por %p87, %p88
    %p91 = scmp.ne.s32.totalorder %s74, %s90
    %p92 = scmp.eq.s32.totalorder %s19, 0
    %p93 = por %p91, %p92
    %s95 = sadd.s32 %s94, 1
    %p98 = scmp.eq.s32.totalorder %s13, 1
    %p99 = scmp.ne.s32.totalorder %s94, %s96
    %p100 = scmp.eq.s32.totalorder %s13, 0
    %p101 = por %p99, %p100
    %p102 = scmp.ne.s32.totalorder %s94, %s96
    %p103 = scmp.eq.s32.totalorder %s18, 1
    %p104 = por %p102, %p103
    %p105 = scmp.ne.s32.totalorder %s96, %s97
    %p106 = scmp.eq.s32.totalorder %s18, 0
    %p107 = por %p105, %p106
    %p108 = scmp.ne.s32.totalorder %s96, %s97
    %p109 = scmp.eq.s32.totalorder %s19, 1
    %p110 = por %p108, %p109
    %p112 = scmp.ne.s32.totalorder %s97, %s111
    %p113 = scmp.eq.s32.totalorder %s19, 0
    %p114 = por %p112, %p113
    %s115 = ssub.s32 %s13, %s20
    %p116 = scmp.eq.s32.totalorder %s115, 0
    %s118 = sadd.s32 %s117, 1
    %s119 = scalar_select %p116, %s117, %s118
    %p122 = pneg %p116
    %p123 = scmp.eq.s32.totalorder %s13, 1
    %p124 = por %p122, %p123
    %p125 = scmp.ne.s32.totalorder %s117, %s120
    %p126 = scmp.eq.s32.totalorder %s13, 0
    %p127 = por %p125, %p126
    %p128 = scmp.ne.s32.totalorder %s117, %s120
    %p129 = scmp.eq.s32.totalorder %s18, 1
    %p130 = por %p128, %p129
    %p131 = scmp.ne.s32.totalorder %s120, %s121
    %p132 = scmp.eq.s32.totalorder %s18, 0
    %p133 = por %p131, %p132
    %p134 = scmp.ne.s32.totalorder %s120, %s121
    %p135 = scmp.eq.s32.totalorder %s19, 1
    %p136 = por %p134, %p135
    %p138 = scmp.ne.s32.totalorder %s121, %s137
    %p139 = scmp.eq.s32.totalorder %s19, 0
    %p140 = por %p138, %p139
    %s141 = ssub.s32 %s13, %s20
    %p142 = scmp.eq.s32.totalorder %s141, 0
    %s144 = sadd.s32 %s143, 1
    %s145 = scalar_select %p142, %s143, %s144
    %p148 = pneg %p142
    %p149 = scmp.eq.s32.totalorder %s13, 1
    %p150 = por %p148, %p149
    %p151 = scmp.ne.s32.totalorder %s143, %s146
    %p152 = scmp.eq.s32.totalorder %s13, 0
    %p153 = por %p151, %p152
    %p154 = scmp.ne.s32.totalorder %s143, %s146
    %p155 = scmp.eq.s32.totalorder %s18, 1
    %p156 = por %p154, %p155
    %p157 = scmp.ne.s32.totalorder %s146, %s147
    %p158 = scmp.eq.s32.totalorder %s18, 0
    %p159 = por %p157, %p158
    %p160 = scmp.ne.s32.totalorder %s146, %s147
    %p161 = scmp.eq.s32.totalorder %s19, 1
    %p162 = por %p160, %p161
    %p164 = scmp.ne.s32.totalorder %s147, %s163
    %p165 = scmp.eq.s32.totalorder %s19, 0
    %p166 = por %p164, %p165
    %s167 = ssub.s32 %s13, %s20
    %p168 = scmp.eq.s32.totalorder %s167, 0
    %s170 = sadd.s32 %s169, 1
    %s171 = scalar_select %p168, %s169, %s170
    %p174 = pneg %p168
    %p175 = scmp.eq.s32.totalorder %s13, 1
    %p176 = por %p174, %p175
    %p177 = scmp.ne.s32.totalorder %s169, %s172
    %p178 = scmp.eq.s32.totalorder %s13, 0
    %p179 = por %p177, %p178
    %p180 = scmp.ne.s32.totalorder %s169, %s172
    %p181 = scmp.eq.s32.totalorder %s18, 1
    %p182 = por %p180, %p181
    %p183 = scmp.ne.s32.totalorder %s172, %s173
    %p184 = scmp.eq.s32.totalorder %s18, 0
    %p185 = por %p183, %p184
    %p186 = scmp.ne.s32.totalorder %s172, %s173
    %p187 = scmp.eq.s32.totalorder %s19, 1
    %p188 = por %p186, %p187
    %p190 = scmp.ne.s32.totalorder %s173, %s189
    %p191 = scmp.eq.s32.totalorder %s19, 0
    %p192 = por %p190, %p191
    %p193 = scmp.le.s32.totalorder 1, %s13
    %p194 = scmp.lt.s32.totalorder %s13, 3
    %p195 = pnand %p193, %p194
    %p196 = pneg %p195
    // Predicated region
    $region9: #{deep_gcn_forward.29} parent=5 // pred_check
      _
    $region10: #{deep_gcn_forward.29} parent=5 // pred_check_branch
      %198 = sbr.rel (%p195) target = $region12
    $region11: #{deep_gcn_forward.29} parent=5 // pred_region
      %s199 = ssub.s32 %s13, 1
      // Predicated region
      $region13: #{deep_gcn_forward.29} parent=11 // pred_check
        %p200 = pneg %p60
      $region14: #{deep_gcn_forward.29} parent=11 // pred_check_branch
        %202 = sbr.rel (%p200) target = $region16
      $region15: #{deep_gcn_forward.29} parent=11 // pred_region
        _
      $region16: #{deep_gcn_forward.29} parent=11 // pred_fallthru
        _
      // Predicated region
      $region17: #{deep_gcn_forward.29} parent=11 // pred_check
        %p203 = pneg %p107
      $region18: #{deep_gcn_forward.29} parent=11 // pred_check_branch
        %205 = sbr.rel (%p203) target = $region20
      $region19: #{deep_gcn_forward.29} parent=11 // pred_region
        _
      $region20: #{deep_gcn_forward.29} parent=11 // pred_fallthru
        _
    $region12: #{deep_gcn_forward.29} parent=5 // pred_fallthru
      _
    %p206 = scmp.lt.s32.totalorder %s13, 2
    // Predicated region
    $region21: #{deep_gcn_forward.29} parent=5 // pred_check
      %p207 = pneg %p206
    $region22: #{deep_gcn_forward.29} parent=5 // pred_check_branch
      %209 = sbr.rel (%p207) target = $region24
    $region23: #{deep_gcn_forward.29} parent=5 // pred_region
      // Predicated region
      $region25: #{deep_gcn_forward.29} parent=23 // pred_check
        %p210 = pneg %p33
      $region26: #{deep_gcn_forward.29} parent=23 // pred_check_branch
        %212 = sbr.rel (%p210) target = $region28
      $region27: #{deep_gcn_forward.29} parent=23 // pred_region
        %s213 = smul.u32 64, %s13
        %p214 = scmp.lt.s32.totalorder %s213, 127
        %s215 = scalar_select %p214, %s213, 127
        %s216 = smul.addr %s215, 4
        %s217 = scalar_lea.vmem %s0, %s216
        %s218 = smul.u32 64, %s13
      $region28: #{deep_gcn_forward.29} parent=23 // pred_fallthru
        _
      // Predicated region
      $region29: #{deep_gcn_forward.29} parent=23 // pred_check
        %p219 = pneg %p80
      $region30: #{deep_gcn_forward.29} parent=23 // pred_check_branch
        %221 = sbr.rel (%p219) target = $region32
      $region31: #{deep_gcn_forward.29} parent=23 // pred_region
        %s222 = smul.u32 64, %s13
        %p223 = scmp.lt.s32.totalorder %s222, 127
        %s224 = scalar_select %p223, %s222, 127
        %s225 = smul.addr %s224, 4
        %s226 = scalar_lea.vmem %s2, %s225
        %s227 = smul.u32 64, %s13
      $region32: #{deep_gcn_forward.29} parent=23 // pred_fallthru
        _
    $region24: #{deep_gcn_forward.29} parent=5 // pred_fallthru
      _
    %p228 = scmp.le.s32.totalorder 1, %s13
    %p229 = scmp.lt.s32.totalorder %s13, 3
    %p230 = pnand %p228, %p229
    %p231 = pneg %p230
    // Predicated region
    $region33: #{deep_gcn_forward.29} parent=5 // pred_check
      _
    $region34: #{deep_gcn_forward.29} parent=5 // pred_check_branch
      %233 = sbr.rel (%p230) target = $region36
    $region35: #{deep_gcn_forward.29} parent=5 // pred_region
      %s234 = ssub.s32 %s13, 1
      %s235 = smul.u32 64, %s18
      %p236 = scmp.lt.s32.totalorder %s235, 127
      %s237 = scalar_select %p236, %s235, 127
      %s238 = smul.addr %s237, 4
      %s239 = scalar_lea.vmem %s0, %s238
      %p240 = pneg %p39
      %p241 = pneg %p36
      %p242 = pneg %p60
      %p243 = pneg %p57
      %s244 = smul.u32 64, %s18
      %p245 = scmp.lt.s32.totalorder %s244, 127
      %s246 = scalar_select %p245, %s244, 127
      %s247 = smul.addr %s246, 4
      %s248 = scalar_lea.vmem %s2, %s247
      %p249 = pneg %p86
      %p250 = pneg %p83
      %p251 = pneg %p107
      %p252 = pneg %p104
      %p253 = pneg %p133
      %p254 = pneg %p130
      %s255 = smul.u32 64, %s18
      %p256 = scmp.lt.s32.totalorder %s255, 127
      %s257 = scalar_select %p256, %s255, 127
      %s258 = smul.addr %s257, 4
      %s259 = scalar_lea.vmem %s4, %s258
      %p260 = pneg %p159
      %p261 = pneg %p156
      %p262 = scmp.lt.s32.totalorder %s18, 1
      %s263 = scalar_select %p262, %s18, 1
      %s264 = scalar_lea.vmem %s5, %s263
      %p265 = pneg %p185
      %p266 = pneg %p182
      %p267 = scmp.lt.s32.totalorder %s18, 1
      %s268 = scalar_select %p267, %s18, 1
      %s269 = scalar_lea.vmem %s6, %s268
      %s270 = smul.u32 64, %s18
      %p271 = scmp.lt.s32.totalorder %s270, 127
      %s272 = scalar_select %p271, %s270, 127
      %s273 = smul.addr %s272, 4
      %s274 = scalar_lea.vmem %s0, %s273
      %s275 = smul.u32 64, %s18
      %s276 = smul.u32 64, %s18
      %p277 = scmp.lt.s32.totalorder %s276, 127
      %s278 = scalar_select %p277, %s276, 127
      %s279 = smul.addr %s278, 4
      %s280 = scalar_lea.vmem %s2, %s279
      %s281 = smul.u32 64, %s18
      %s282 = smul.u32 64, %s18
      %p283 = scmp.lt.s32.totalorder %s282, 127
      %s284 = scalar_select %p283, %s282, 127
      %s285 = smul.addr %s284, 4
      %s286 = scalar_lea.vmem %s4, %s285
      %s287 = smul.u32 64, %s18
      %p288 = scmp.lt.s32.totalorder %s18, 1
      %s289 = scalar_select %p288, %s18, 1
      %s290 = scalar_lea.vmem %s5, %s289
      %p291 = scmp.lt.s32.totalorder %s18, 1
      %s292 = scalar_select %p291, %s18, 1
      %s293 = scalar_lea.vmem %s6, %s292
      %v295 = vld [vmem:[%s274] sm:$0xf]
      %v296 = vld [vmem:[%s274 + $0x4] sm:$0xf]
      %v297 = vld [vmem:[%s274 + $0x8] sm:$0xf]
      %v298 = vld [vmem:[%s274 + $0xc] sm:$0xf]
      %v299 = vld [vmem:[%s274 + $0x10] sm:$0xf]
      %v300 = vld [vmem:[%s274 + $0x14] sm:$0xf]
      %v301 = vld [vmem:[%s274 + $0x18] sm:$0xf]
      %v302 = vld [vmem:[%s274 + $0x1c] sm:$0xf]
      %v303 = vld [vmem:[%s274 + $0x20] sm:$0xf]
      %v304 = vld [vmem:[%s274 + $0x24] sm:$0xf]
      %v305 = vld [vmem:[%s274 + $0x28] sm:$0xf]
      %v306 = vld [vmem:[%s274 + $0x2c] sm:$0xf]
      %v307 = vld [vmem:[%s274 + $0x30] sm:$0xf]
      %v308 = vld [vmem:[%s274 + $0x34] sm:$0xf]
      %v309 = vld [vmem:[%s274 + $0x38] sm:$0xf]
      %v310 = vld [vmem:[%s274 + $0x3c] sm:$0xf]
      %v311 = vld [vmem:[%s274 + $0x40] sm:$0xf]
      %v312 = vld [vmem:[%s274 + $0x44] sm:$0xf]
      %v313 = vld [vmem:[%s274 + $0x48] sm:$0xf]
      %v314 = vld [vmem:[%s274 + $0x4c] sm:$0xf]
      %v315 = vld [vmem:[%s274 + $0x50] sm:$0xf]
      %v316 = vld [vmem:[%s274 + $0x54] sm:$0xf]
      %v317 = vld [vmem:[%s274 + $0x58] sm:$0xf]
      %v318 = vld [vmem:[%s274 + $0x5c] sm:$0xf]
      %v319 = vld [vmem:[%s274 + $0x60] sm:$0xf]
      %v320 = vld [vmem:[%s274 + $0x64] sm:$0xf]
      %v321 = vld [vmem:[%s274 + $0x68] sm:$0xf]
      %v322 = vld [vmem:[%s274 + $0x6c] sm:$0xf]
      %v323 = vld [vmem:[%s274 + $0x70] sm:$0xf]
      %v324 = vld [vmem:[%s274 + $0x74] sm:$0xf]
      %v325 = vld [vmem:[%s274 + $0x78] sm:$0xf]
      %v326 = vld [vmem:[%s274 + $0x7c] sm:$0xf]
      %v327 = vld [vmem:[%s274 + $0x80] sm:$0xf]
      %v328 = vld [vmem:[%s274 + $0x84] sm:$0xf]
      %v329 = vld [vmem:[%s274 + $0x88] sm:$0xf]
      %v330 = vld [vmem:[%s274 + $0x8c] sm:$0xf]
      %v331 = vld [vmem:[%s274 + $0x90] sm:$0xf]
      %v332 = vld [vmem:[%s274 + $0x94] sm:$0xf]
      %v333 = vld [vmem:[%s274 + $0x98] sm:$0xf]
      %v334 = vld [vmem:[%s274 + $0x9c] sm:$0xf]
      %v335 = vld [vmem:[%s274 + $0xa0] sm:$0xf]
      %v336 = vld [vmem:[%s274 + $0xa4] sm:$0xf]
      %v337 = vld [vmem:[%s274 + $0xa8] sm:$0xf]
      %v338 = vld [vmem:[%s274 + $0xac] sm:$0xf]
      %v339 = vld [vmem:[%s274 + $0xb0] sm:$0xf]
      %v340 = vld [vmem:[%s274 + $0xb4] sm:$0xf]
      %v341 = vld [vmem:[%s274 + $0xb8] sm:$0xf]
      %v342 = vld [vmem:[%s274 + $0xbc] sm:$0xf]
      %v343 = vld [vmem:[%s274 + $0xc0] sm:$0xf]
      %v344 = vld [vmem:[%s274 + $0xc4] sm:$0xf]
      %v345 = vld [vmem:[%s274 + $0xc8] sm:$0xf]
      %v346 = vld [vmem:[%s274 + $0xcc] sm:$0xf]
      %v347 = vld [vmem:[%s274 + $0xd0] sm:$0xf]
      %v348 = vld [vmem:[%s274 + $0xd4] sm:$0xf]
      %v349 = vld [vmem:[%s274 + $0xd8] sm:$0xf]
      %v350 = vld [vmem:[%s274 + $0xdc] sm:$0xf]
      %v351 = vld [vmem:[%s274 + $0xe0] sm:$0xf]
      %v352 = vld [vmem:[%s274 + $0xe4] sm:$0xf]
      %v353 = vld [vmem:[%s274 + $0xe8] sm:$0xf]
      %v354 = vld [vmem:[%s274 + $0xec] sm:$0xf]
      %v355 = vld [vmem:[%s274 + $0xf0] sm:$0xf]
      %v356 = vld [vmem:[%s274 + $0xf4] sm:$0xf]
      %v357 = vld [vmem:[%s274 + $0xf8] sm:$0xf]
      %v358 = vld [vmem:[%s274 + $0xfc] sm:$0xf]
      %v359 = vld [vmem:[%s1] sm:$0xf]
      %v360 = vld [vmem:[%s1 + $0x4] sm:$0xf]
      %v361 = vld [vmem:[%s1 + $0x8] sm:$0xf]
      %v362 = vld [vmem:[%s1 + $0xc] sm:$0xf]
      %v363 = vld [vmem:[%s1 + $0x10] sm:$0xf]
      %v364 = vld [vmem:[%s1 + $0x14] sm:$0xf]
      %v365 = vld [vmem:[%s1 + $0x18] sm:$0xf]
      %v366 = vld [vmem:[%s1 + $0x1c] sm:$0xf]
      %v367 = vld [vmem:[%s1 + $0x20] sm:$0xf]
      %v368 = vld [vmem:[%s1 + $0x24] sm:$0xf]
      %v369 = vld [vmem:[%s1 + $0x28] sm:$0xf]
      %v370 = vld [vmem:[%s1 + $0x2c] sm:$0xf]
      %v371 = vld [vmem:[%s1 + $0x30] sm:$0xf]
      %v372 = vld [vmem:[%s1 + $0x34] sm:$0x3]
      %v373 = vld [vmem:[%s280] sm:$0xf]
      %v374 = vld [vmem:[%s280 + $0x4] sm:$0xf]
      %v375 = vld [vmem:[%s280 + $0x8] sm:$0xf]
      %v376 = vld [vmem:[%s280 + $0xc] sm:$0xf]
      %v377 = vld [vmem:[%s280 + $0x10] sm:$0xf]
      %v378 = vld [vmem:[%s280 + $0x14] sm:$0xf]
      %v379 = vld [vmem:[%s280 + $0x18] sm:$0xf]
      %v380 = vld [vmem:[%s280 + $0x1c] sm:$0xf]
      %v381 = vld [vmem:[%s280 + $0x20] sm:$0xf]
      %v382 = vld [vmem:[%s280 + $0x24] sm:$0xf]
      %v383 = vld [vmem:[%s280 + $0x28] sm:$0xf]
      %v384 = vld [vmem:[%s280 + $0x2c] sm:$0xf]
      %v385 = vld [vmem:[%s280 + $0x30] sm:$0xf]
      %v386 = vld [vmem:[%s280 + $0x34] sm:$0xf]
      %v387 = vld [vmem:[%s280 + $0x38] sm:$0xf]
      %v388 = vld [vmem:[%s280 + $0x3c] sm:$0xf]
      %v389 = vld [vmem:[%s280 + $0x40] sm:$0xf]
      %v390 = vld [vmem:[%s280 + $0x44] sm:$0xf]
      %v391 = vld [vmem:[%s280 + $0x48] sm:$0xf]
      %v392 = vld [vmem:[%s280 + $0x4c] sm:$0xf]
      %v393 = vld [vmem:[%s280 + $0x50] sm:$0xf]
      %v394 = vld [vmem:[%s280 + $0x54] sm:$0xf]
      %v395 = vld [vmem:[%s280 + $0x58] sm:$0xf]
      %v396 = vld [vmem:[%s280 + $0x5c] sm:$0xf]
      %v397 = vld [vmem:[%s280 + $0x60] sm:$0xf]
      %v398 = vld [vmem:[%s280 + $0x64] sm:$0xf]
      %v399 = vld [vmem:[%s280 + $0x68] sm:$0xf]
      %v400 = vld [vmem:[%s280 + $0x6c] sm:$0xf]
      %v401 = vld [vmem:[%s280 + $0x70] sm:$0xf]
      %v402 = vld [vmem:[%s280 + $0x74] sm:$0xf]
      %v403 = vld [vmem:[%s280 + $0x78] sm:$0xf]
      %v404 = vld [vmem:[%s280 + $0x7c] sm:$0xf]
      %v405 = vld [vmem:[%s280 + $0x80] sm:$0xf]
      %v406 = vld [vmem:[%s280 + $0x84] sm:$0xf]
      %v407 = vld [vmem:[%s280 + $0x88] sm:$0xf]
      %v408 = vld [vmem:[%s280 + $0x8c] sm:$0xf]
      %v409 = vld [vmem:[%s280 + $0x90] sm:$0xf]
      %v410 = vld [vmem:[%s280 + $0x94] sm:$0xf]
      %v411 = vld [vmem:[%s280 + $0x98] sm:$0xf]
      %v412 = vld [vmem:[%s280 + $0x9c] sm:$0xf]
      %v413 = vld [vmem:[%s280 + $0xa0] sm:$0xf]
      %v414 = vld [vmem:[%s280 + $0xa4] sm:$0xf]
      %v415 = vld [vmem:[%s280 + $0xa8] sm:$0xf]
      %v416 = vld [vmem:[%s280 + $0xac] sm:$0xf]
      %v417 = vld [vmem:[%s280 + $0xb0] sm:$0xf]
      %v418 = vld [vmem:[%s280 + $0xb4] sm:$0xf]
      %v419 = vld [vmem:[%s280 + $0xb8] sm:$0xf]
      %v420 = vld [vmem:[%s280 + $0xbc] sm:$0xf]
      %v421 = vld [vmem:[%s280 + $0xc0] sm:$0xf]
      %v422 = vld [vmem:[%s280 + $0xc4] sm:$0xf]
      %v423 = vld [vmem:[%s280 + $0xc8] sm:$0xf]
      %v424 = vld [vmem:[%s280 + $0xcc] sm:$0xf]
      %v425 = vld [vmem:[%s280 + $0xd0] sm:$0xf]
      %v426 = vld [vmem:[%s280 + $0xd4] sm:$0xf]
      %v427 = vld [vmem:[%s280 + $0xd8] sm:$0xf]
      %v428 = vld [vmem:[%s280 + $0xdc] sm:$0xf]
      %v429 = vld [vmem:[%s280 + $0xe0] sm:$0xf]
      %v430 = vld [vmem:[%s280 + $0xe4] sm:$0xf]
      %v431 = vld [vmem:[%s280 + $0xe8] sm:$0xf]
      %v432 = vld [vmem:[%s280 + $0xec] sm:$0xf]
      %v433 = vld [vmem:[%s280 + $0xf0] sm:$0xf]
      %v434 = vld [vmem:[%s280 + $0xf4] sm:$0xf]
      %v435 = vld [vmem:[%s280 + $0xf8] sm:$0xf]
      %v436 = vld [vmem:[%s280 + $0xfc] sm:$0xf]
      %v437 = vld [vmem:[%s3] sm:$0xf]
      %v438 = vld [vmem:[%s3 + $0x4] sm:$0xf]
      %v439 = vld [vmem:[%s3 + $0x8] sm:$0xf]
      %v440 = vld [vmem:[%s3 + $0xc] sm:$0xf]
      %v441 = vld [vmem:[%s3 + $0x10] sm:$0xf]
      %v442 = vld [vmem:[%s3 + $0x14] sm:$0xf]
      %v443 = vld [vmem:[%s3 + $0x18] sm:$0xf]
      %v444 = vld [vmem:[%s3 + $0x1c] sm:$0xf]
      %v445 = vld [vmem:[%s3 + $0x20] sm:$0xf]
      %v446 = vld [vmem:[%s3 + $0x24] sm:$0xf]
      %v447 = vld [vmem:[%s3 + $0x28] sm:$0xf]
      %v448 = vld [vmem:[%s3 + $0x2c] sm:$0xf]
      %v449 = vld [vmem:[%s3 + $0x30] sm:$0xf]
      %v450 = vld [vmem:[%s3 + $0x34] sm:$0x3]
      %v515 = vunpack.c.l.b16 %v373
      %v516 = vunpack.c.l.b16 %v374
      %v517 = vunpack.c.l.b16 %v375
      %v518 = vunpack.c.l.b16 %v376
      %v519 = vunpack.c.l.b16 %v377
      %v520 = vunpack.c.l.b16 %v378
      %v521 = vunpack.c.l.b16 %v379
      %v522 = vunpack.c.l.b16 %v380
      %v523 = vunpack.c.l.b16 %v381
      %v524 = vunpack.c.l.b16 %v382
      %v525 = vunpack.c.l.b16 %v383
      %v526 = vunpack.c.l.b16 %v384
      %v527 = vunpack.c.l.b16 %v385
      %v528 = vunpack.c.l.b16 %v386
      %v529 = vunpack.c.l.b16 %v387
      %v530 = vunpack.c.l.b16 %v388
      %v531 = vunpack.c.l.b16 %v389
      %v532 = vunpack.c.l.b16 %v390
      %v533 = vunpack.c.l.b16 %v391
      %v534 = vunpack.c.l.b16 %v392
      %v535 = vunpack.c.l.b16 %v393
      %v536 = vunpack.c.l.b16 %v394
      %v537 = vunpack.c.l.b16 %v395
      %v538 = vunpack.c.l.b16 %v396
      %v539 = vunpack.c.l.b16 %v397
      %v540 = vunpack.c.l.b16 %v398
      %v541 = vunpack.c.l.b16 %v399
      %v542 = vunpack.c.l.b16 %v400
      %v543 = vunpack.c.l.b16 %v401
      %v544 = vunpack.c.l.b16 %v402
      %v545 = vunpack.c.l.b16 %v403
      %v546 = vunpack.c.l.b16 %v404
      %v547 = vunpack.c.l.b16 %v405
      %v548 = vunpack.c.l.b16 %v406
      %v549 = vunpack.c.l.b16 %v407
      %v550 = vunpack.c.l.b16 %v408
      %v551 = vunpack.c.l.b16 %v409
      %v552 = vunpack.c.l.b16 %v410
      %v553 = vunpack.c.l.b16 %v411
      %v554 = vunpack.c.l.b16 %v412
      %v555 = vunpack.c.l.b16 %v413
      %v556 = vunpack.c.l.b16 %v414
      %v557 = vunpack.c.l.b16 %v415
      %v558 = vunpack.c.l.b16 %v416
      %v559 = vunpack.c.l.b16 %v417
      %v560 = vunpack.c.l.b16 %v418
      %v561 = vunpack.c.l.b16 %v419
      %v562 = vunpack.c.l.b16 %v420
      %v563 = vunpack.c.l.b16 %v421
      %v564 = vunpack.c.l.b16 %v422
      %v565 = vunpack.c.l.b16 %v423
      %v566 = vunpack.c.l.b16 %v424
      %v567 = vunpack.c.l.b16 %v425
      %v568 = vunpack.c.l.b16 %v426
      %v569 = vunpack.c.l.b16 %v427
      %v570 = vunpack.c.l.b16 %v428
      %v571 = vunpack.c.l.b16 %v429
      %v572 = vunpack.c.l.b16 %v430
      %v573 = vunpack.c.l.b16 %v431
      %v574 = vunpack.c.l.b16 %v432
      %v575 = vunpack.c.l.b16 %v433
      %v576 = vunpack.c.l.b16 %v434
      %v577 = vunpack.c.l.b16 %v435
      %v578 = vunpack.c.l.b16 %v436
      %v579 = vpack.c.b16 %v516, %v515
      %v580 = vpack.c.b16 %v518, %v517
      %v581 = vpack.c.b16 %v520, %v519
      %v582 = vpack.c.b16 %v522, %v521
      %v583 = vpack.c.b16 %v524, %v523
      %v584 = vpack.c.b16 %v526, %v525
      %v585 = vpack.c.b16 %v528, %v527
      %v586 = vpack.c.b16 %v530, %v529
      %v587 = vpack.c.b16 %v532, %v531
      %v588 = vpack.c.b16 %v534, %v533
      %v589 = vpack.c.b16 %v536, %v535
      %v590 = vpack.c.b16 %v538, %v537
      %v591 = vpack.c.b16 %v540, %v539
      %v592 = vpack.c.b16 %v542, %v541
      %v593 = vpack.c.b16 %v544, %v543
      %v594 = vpack.c.b16 %v546, %v545
      %v595 = vpack.c.b16 %v548, %v547
      %v596 = vpack.c.b16 %v550, %v549
      %v597 = vpack.c.b16 %v552, %v551
      %v598 = vpack.c.b16 %v554, %v553
      %v599 = vpack.c.b16 %v556, %v555
      %v600 = vpack.c.b16 %v558, %v557
      %v601 = vpack.c.b16 %v560, %v559
      %v602 = vpack.c.b16 %v562, %v561
      %v603 = vpack.c.b16 %v564, %v563
      %v604 = vpack.c.b16 %v566, %v565
      %v605 = vpack.c.b16 %v568, %v567
      %v606 = vpack.c.b16 %v570, %v569
      %v607 = vpack.c.b16 %v572, %v571
      %v608 = vpack.c.b16 %v574, %v573
      %v609 = vpack.c.b16 %v576, %v575
      %v610 = vpack.c.b16 %v578, %v577
      %v625 = vunpack.c.l.b16 %v437
      %v626 = vunpack.c.l.b16 %v438
      %v627 = vunpack.c.l.b16 %v439
      %v628 = vunpack.c.l.b16 %v440
      %v629 = vunpack.c.l.b16 %v441
      %v630 = vunpack.c.l.b16 %v442
      %v631 = vunpack.c.l.b16 %v443
      %v632 = vunpack.c.l.b16 %v444
      %v633 = vunpack.c.l.b16 %v445
      %v634 = vunpack.c.l.b16 %v446
      %v635 = vunpack.c.l.b16 %v447
      %v636 = vunpack.c.l.b16 %v448
      %v637 = vunpack.c.l.b16 %v449
      %v638 = vunpack.c.l.b16 %v450
      %v639 = vpack.c.b16 %v626, %v625
      %v640 = vpack.c.b16 %v628, %v627
      %v641 = vpack.c.b16 %v630, %v629
      %v642 = vpack.c.b16 %v632, %v631
      %v643 = vpack.c.b16 %v634, %v633
      %v644 = vpack.c.b16 %v636, %v635
      %v645 = vpack.c.b16 %v638, %v637
      %vm652 = vcmask 883712
      %v654 = vsel %vm652, %v579, 0
      %v657 = vsel %vm652, %v580, 0
      %v660 = vsel %vm652, %v581, 0
      %v663 = vsel %vm652, %v582, 0
      %v666 = vsel %vm652, %v583, 0
      %v669 = vsel %vm652, %v584, 0
      %v672 = vsel %vm652, %v585, 0
      %v675 = vsel %vm652, %v586, 0
      %v678 = vsel %vm652, %v587, 0
      %v681 = vsel %vm652, %v588, 0
      %v684 = vsel %vm652, %v589, 0
      %v687 = vsel %vm652, %v590, 0
      %v690 = vsel %vm652, %v591, 0
      %v693 = vsel %vm652, %v592, 0
      %v696 = vsel %vm652, %v593, 0
      %v699 = vsel %vm652, %v594, 0
      %v702 = vsel %vm652, %v595, 0
      %v705 = vsel %vm652, %v596, 0
      %v708 = vsel %vm652, %v597, 0
      %v711 = vsel %vm652, %v598, 0
      %v714 = vsel %vm652, %v599, 0
      %v717 = vsel %vm652, %v600, 0
      %v720 = vsel %vm652, %v601, 0
      %v723 = vsel %vm652, %v602, 0
      %v726 = vsel %vm652, %v603, 0
      %v729 = vsel %vm652, %v604, 0
      %v732 = vsel %vm652, %v605, 0
      %v735 = vsel %vm652, %v606, 0
      %v738 = vsel %vm652, %v607, 0
      %v741 = vsel %vm652, %v608, 0
      %v744 = vsel %vm652, %v609, 0
      %v747 = vsel %vm652, %v610, 0
      %vm749 = vcmask 1045504
      %v751 = vsel %vm749, %v645, 0
      %753 = vmatprep.subr.bf16.mxu0 0
      %754 = vmatpush1.bf16.msra.mxu0 %v639
      %755 = vmatprep.subr.bf16.mxu0 0
      %756 = vmatpush1.bf16.msra.mxu0 %v640
      %757 = vmatprep.subr.bf16.mxu0 0
      %758 = vmatpush1.bf16.msra.mxu0 %v641
      %759 = vmatprep.subr.bf16.mxu0 0
      %760 = vmatpush1.bf16.msra.mxu0 %v642
      %761 = vmatprep.subr.bf16.mxu0 0
      %762 = vmatpush1.bf16.msra.mxu0 %v643
      %763 = vmatprep.subr.bf16.mxu0 0
      %764 = vmatpush1.bf16.msra.mxu0 %v644
      %765 = vmatprep.subr.bf16.mxu0 0
      %766 = vmatpush1.bf16.msra.mxu0 %v751
      %767 = vmatprep.subr.bf16.mxu0 0
      %768 = vmatpush1.bf16.msra.mxu0 0
      %769 = vmatprep.subr.bf16.mxu0 0
      %770 = vmatpush1.bf16.msra.mxu0 0
      %771 = vmatprep.subr.bf16.mxu0 0
      %772 = vmatpush1.bf16.msra.mxu0 0
      %773 = vmatprep.subr.bf16.mxu0 0
      %774 = vmatpush1.bf16.msra.mxu0 0
      %775 = vmatprep.subr.bf16.mxu0 0
      %776 = vmatpush1.bf16.msra.mxu0 0
      %777 = vmatprep.subr.bf16.mxu0 0
      %778 = vmatpush1.bf16.msra.mxu0 0
      %779 = vmatprep.subr.bf16.mxu0 0
      %780 = vmatpush1.bf16.msra.mxu0 0
      %781 = vmatprep.subr.bf16.mxu0 0
      %782 = vmatpush1.bf16.msra.mxu0 0
      %783 = vmatprep.subr.bf16.mxu0 0
      %784 = vmatpush1.bf16.msra.mxu0 0
      %785 = vmatprep.mubr.bf16.mxu0 0
      %786 = vmatmul.mubr.bf16.gmra.mrb[0].mxu0 %v654
      %v787 = vpop.f32.mrb[0].mxu0
      %v788 = vadd.f32 0.0, %v787
      %v789 = vpop.f32.mrb[0].mxu0
      %v790 = vpop.f32.mrb[0].mxu0
      %v791 = vadd.f32 0.0, %v790
      %v792 = vpop.f32.mrb[0].mxu0
      %793 = vmatprep.mubr.bf16.mxu0 0
      %794 = vmatmul.mubr.bf16.gmra.mrb[0].mxu0 %v657
      %v795 = vpop.f32.mrb[0].mxu0
      %v796 = vadd.f32 0.0, %v795
      %v797 = vpop.f32.mrb[0].mxu0
      %v798 = vpop.f32.mrb[0].mxu0
      %v799 = vadd.f32 0.0, %v798
      %v800 = vpop.f32.mrb[0].mxu0
      %801 = vmatprep.mubr.bf16.mxu0 0
      %802 = vmatmul.mubr.bf16.gmra.mrb[0].mxu0 %v660
      %v803 = vpop.f32.mrb[0].mxu0
      %v804 = vadd.f32 0.0, %v803
      %v805 = vpop.f32.mrb[0].mxu0
      %v806 = vpop.f32.mrb[0].mxu0
      %v807 = vadd.f32 0.0, %v806
      %v808 = vpop.f32.mrb[0].mxu0
      %809 = vmatprep.mubr.bf16.mxu0 0
      %810 = vmatmul.mubr.bf16.gmra.mrb[0].mxu0 %v663
      %v811 = vpop.f32.mrb[0].mxu0
      %v812 = vadd.f32 0.0, %v811
      %v813 = vpop.f32.mrb[0].mxu0
      %v814 = vpop.f32.mrb[0].mxu0
      %v815 = vadd.f32 0.0, %v814
      %v816 = vpop.f32.mrb[0].mxu0
      %817 = vmatprep.mubr.bf16.mxu0 0
      %818 = vmatmul.mubr.bf16.gmra.mrb[0].mxu0 %v666
      %v819 = vpop.f32.mrb[0].mxu0
      %v820 = vadd.f32 0.0, %v819
      %v821 = vpop.f32.mrb[0].mxu0
      %v822 = vpop.f32.mrb[0].mxu0
      %v823 = vadd.f32 0.0, %v822
      %v824 = vpop.f32.mrb[0].mxu0
      %825 = vmatprep.mubr.bf16.mxu0 0
      %826 = vmatmul.mubr.bf16.gmra.mrb[0].mxu0 %v669
      %v827 = vpop.f32.mrb[0].mxu0
      %v828 = vadd.f32 0.0, %v827
      %v829 = vpop.f32.mrb[0].mxu0
      %v830 = vpop.f32.mrb[0].mxu0
      %v831 = vadd.f32 0.0, %v830
      %v832 = vpop.f32.mrb[0].mxu0
      %833 = vmatprep.mubr.bf16.mxu0 0
      %834 = vmatmul.mubr.bf16.gmra.mrb[0].mxu0 %v672
      %v835 = vpop.f32.mrb[0].mxu0
      %v836 = vadd.f32 0.0, %v835
      %v837 = vpop.f32.mrb[0].mxu0
      %v838 = vpop.f32.mrb[0].mxu0
      %v839 = vadd.f32 0.0, %v838
      %v840 = vpop.f32.mrb[0].mxu0
      %841 = vmatprep.mubr.bf16.mxu0 0
      %842 = vmatmul.mubr.bf16.gmra.mrb[0].mxu0 %v675
      %v843 = vpop.f32.mrb[0].mxu0
      %v844 = vadd.f32 0.0, %v843
      %v845 = vpop.f32.mrb[0].mxu0
      %v846 = vpop.f32.mrb[0].mxu0
      %v847 = vadd.f32 0.0, %v846
      %v848 = vpop.f32.mrb[0].mxu0
      %849 = vmatprep.mubr.bf16.mxu0 0
      %850 = vmatmul.mubr.bf16.gmra.mrb[0].mxu0 %v678
      %v851 = vpop.f32.mrb[0].mxu0
      %v852 = vadd.f32 0.0, %v851
      %v853 = vpop.f32.mrb[0].mxu0
      %v854 = vpop.f32.mrb[0].mxu0
      %v855 = vadd.f32 0.0, %v854
      %v856 = vpop.f32.mrb[0].mxu0
      %857 = vmatprep.mubr.bf16.mxu0 0
      %858 = vmatmul.mubr.bf16.gmra.mrb[0].mxu0 %v681
      %v859 = vpop.f32.mrb[0].mxu0
      %v860 = vadd.f32 0.0, %v859
      %v861 = vpop.f32.mrb[0].mxu0
      %v862 = vpop.f32.mrb[0].mxu0
      %v863 = vadd.f32 0.0, %v862
      %v864 = vpop.f32.mrb[0].mxu0
      %865 = vmatprep.mubr.bf16.mxu0 0
      %866 = vmatmul.mubr.bf16.gmra.mrb[0].mxu0 %v684
      %v867 = vpop.f32.mrb[0].mxu0
      %v868 = vadd.f32 0.0, %v867
      %v869 = vpop.f32.mrb[0].mxu0
      %v870 = vpop.f32.mrb[0].mxu0
      %v871 = vadd.f32 0.0, %v870
      %v872 = vpop.f32.mrb[0].mxu0
      %873 = vmatprep.mubr.bf16.mxu0 0
      %874 = vmatmul.mubr.bf16.gmra.mrb[0].mxu0 %v687
      %v875 = vpop.f32.mrb[0].mxu0
      %v876 = vadd.f32 0.0, %v875
      %v877 = vpop.f32.mrb[0].mxu0
      %v878 = vpop.f32.mrb[0].mxu0
      %v879 = vadd.f32 0.0, %v878
      %v880 = vpop.f32.mrb[0].mxu0
      %881 = vmatprep.mubr.bf16.mxu0 0
      %882 = vmatmul.mubr.bf16.gmra.mrb[0].mxu0 %v690
      %v883 = vpop.f32.mrb[0].mxu0
      %v884 = vadd.f32 0.0, %v883
      %v885 = vpop.f32.mrb[0].mxu0
      %v886 = vpop.f32.mrb[0].mxu0
      %v887 = vadd.f32 0.0, %v886
      %v888 = vpop.f32.mrb[0].mxu0
      %889 = vmatprep.mubr.bf16.mxu0 0
      %890 = vmatmul.mubr.bf16.gmra.mrb[0].mxu0 %v693
      %v891 = vpop.f32.mrb[0].mxu0
      %v892 = vadd.f32 0.0, %v891
      %v893 = vpop.f32.mrb[0].mxu0
      %v894 = vpop.f32.mrb[0].mxu0
      %v895 = vadd.f32 0.0, %v894
      %v896 = vpop.f32.mrb[0].mxu0
      %897 = vmatprep.mubr.bf16.mxu0 0
      %898 = vmatmul.mubr.bf16.gmra.mrb[0].mxu0 %v696
      %v899 = vpop.f32.mrb[0].mxu0
      %v900 = vadd.f32 0.0, %v899
      %v901 = vpop.f32.mrb[0].mxu0
      %v902 = vpop.f32.mrb[0].mxu0
      %v903 = vadd.f32 0.0, %v902
      %v904 = vpop.f32.mrb[0].mxu0
      %905 = vmatprep.mubr.bf16.mxu0 0
      %906 = vmatmul.mubr.bf16.gmra.mrb[0].mxu0 %v699
      %v907 = vpop.f32.mrb[0].mxu0
      %v908 = vadd.f32 0.0, %v907
      %v909 = vpop.f32.mrb[0].mxu0
      %v910 = vpop.f32.mrb[0].mxu0
      %v911 = vadd.f32 0.0, %v910
      %v912 = vpop.f32.mrb[0].mxu0
      %913 = vmatprep.mubr.bf16.mxu0 0
      %914 = vmatmul.mubr.bf16.gmra.mrb[0].mxu0 %v702
      %v915 = vpop.f32.mrb[0].mxu0
      %v916 = vadd.f32 0.0, %v915
      %v917 = vpop.f32.mrb[0].mxu0
      %v918 = vpop.f32.mrb[0].mxu0
      %v919 = vadd.f32 0.0, %v918
      %v920 = vpop.f32.mrb[0].mxu0
      %921 = vmatprep.mubr.bf16.mxu0 0
      %922 = vmatmul.mubr.bf16.gmra.mrb[0].mxu0 %v705
      %v923 = vpop.f32.mrb[0].mxu0
      %v924 = vadd.f32 0.0, %v923
      %v925 = vpop.f32.mrb[0].mxu0
      %v926 = vpop.f32.mrb[0].mxu0
      %v927 = vadd.f32 0.0, %v926
      %v928 = vpop.f32.mrb[0].mxu0
      %929 = vmatprep.mubr.bf16.mxu0 0
      %930 = vmatmul.mubr.bf16.gmra.mrb[0].mxu0 %v708
      %v931 = vpop.f32.mrb[0].mxu0
      %v932 = vadd.f32 0.0, %v931
      %v933 = vpop.f32.mrb[0].mxu0
      %v934 = vpop.f32.mrb[0].mxu0
      %v935 = vadd.f32 0.0, %v934
      %v936 = vpop.f32.mrb[0].mxu0
      %937 = vmatprep.mubr.bf16.mxu0 0
      %938 = vmatmul.mubr.bf16.gmra.mrb[0].mxu0 %v711
      %v939 = vpop.f32.mrb[0].mxu0
      %v940 = vadd.f32 0.0, %v939
      %v941 = vpop.f32.mrb[0].mxu0
      %v942 = vpop.f32.mrb[0].mxu0
      %v943 = vadd.f32 0.0, %v942
      %v944 = vpop.f32.mrb[0].mxu0
      %945 = vmatprep.mubr.bf16.mxu0 0
      %946 = vmatmul.mubr.bf16.gmra.mrb[0].mxu0 %v714
      %v947 = vpop.f32.mrb[0].mxu0
      %v948 = vadd.f32 0.0, %v947
      %v949 = vpop.f32.mrb[0].mxu0
      %v950 = vpop.f32.mrb[0].mxu0
      %v951 = vadd.f32 0.0, %v950
      %v952 = vpop.f32.mrb[0].mxu0
      %953 = vmatprep.mubr.bf16.mxu0 0
      %954 = vmatmul.mubr.bf16.gmra.mrb[0].mxu0 %v717
      %v955 = vpop.f32.mrb[0].mxu0
      %v956 = vadd.f32 0.0, %v955
      %v957 = vpop.f32.mrb[0].mxu0
      %v958 = vpop.f32.mrb[0].mxu0
      %v959 = vadd.f32 0.0, %v958
      %v960 = vpop.f32.mrb[0].mxu0
      %961 = vmatprep.mubr.bf16.mxu0 0
      %962 = vmatmul.mubr.bf16.gmra.mrb[0].mxu0 %v720
      %v963 = vpop.f32.mrb[0].mxu0
      %v964 = vadd.f32 0.0, %v963
      %v965 = vpop.f32.mrb[0].mxu0
      %v966 = vpop.f32.mrb[0].mxu0
      %v967 = vadd.f32 0.0, %v966
      %v968 = vpop.f32.mrb[0].mxu0
      %969 = vmatprep.mubr.bf16.mxu0 0
      %970 = vmatmul.mubr.bf16.gmra.mrb[0].mxu0 %v723
      %v971 = vpop.f32.mrb[0].mxu0
      %v972 = vadd.f32 0.0, %v971
      %v973 = vpop.f32.mrb[0].mxu0
      %v974 = vpop.f32.mrb[0].mxu0
      %v975 = vadd.f32 0.0, %v974
      %v976 = vpop.f32.mrb[0].mxu0
      %977 = vmatprep.mubr.bf16.mxu0 0
      %978 = vmatmul.mubr.bf16.gmra.mrb[0].mxu0 %v726
      %v979 = vpop.f32.mrb[0].mxu0
      %v980 = vadd.f32 0.0, %v979
      %v981 = vpop.f32.mrb[0].mxu0
      %v982 = vpop.f32.mrb[0].mxu0
      %v983 = vadd.f32 0.0, %v982
      %v984 = vpop.f32.mrb[0].mxu0
      %985 = vmatprep.mubr.bf16.mxu0 0
      %986 = vmatmul.mubr.bf16.gmra.mrb[0].mxu0 %v729
      %v987 = vpop.f32.mrb[0].mxu0
      %v988 = vadd.f32 0.0, %v987
      %v989 = vpop.f32.mrb[0].mxu0
      %v990 = vpop.f32.mrb[0].mxu0
      %v991 = vadd.f32 0.0, %v990
      %v992 = vpop.f32.mrb[0].mxu0
      %993 = vmatprep.mubr.bf16.mxu0 0
      %994 = vmatmul.mubr.bf16.gmra.mrb[0].mxu0 %v732
      %v995 = vpop.f32.mrb[0].mxu0
      %v996 = vadd.f32 0.0, %v995
      %v997 = vpop.f32.mrb[0].mxu0
      %v998 = vpop.f32.mrb[0].mxu0
      %v999 = vadd.f32 0.0, %v998
      %v1000 = vpop.f32.mrb[0].mxu0
      %1001 = vmatprep.mubr.bf16.mxu0 0
      %1002 = vmatmul.mubr.bf16.gmra.mrb[0].mxu0 %v735
      %v1003 = vpop.f32.mrb[0].mxu0
      %v1004 = vadd.f32 0.0, %v1003
      %v1005 = vpop.f32.mrb[0].mxu0
      %v1006 = vpop.f32.mrb[0].mxu0
      %v1007 = vadd.f32 0.0, %v1006
      %v1008 = vpop.f32.mrb[0].mxu0
      %1009 = vmatprep.mubr.bf16.mxu0 0
      %1010 = vmatmul.mubr.bf16.gmra.mrb[0].mxu0 %v738
      %v1011 = vpop.f32.mrb[0].mxu0
      %v1012 = vadd.f32 0.0, %v1011
      %v1013 = vpop.f32.mrb[0].mxu0
      %v1014 = vpop.f32.mrb[0].mxu0
      %v1015 = vadd.f32 0.0, %v1014
      %v1016 = vpop.f32.mrb[0].mxu0
      %1017 = vmatprep.mubr.bf16.mxu0 0
      %1018 = vmatmul.mubr.bf16.gmra.mrb[0].mxu0 %v741
      %v1019 = vpop.f32.mrb[0].mxu0
      %v1020 = vadd.f32 0.0, %v1019
      %v1021 = vpop.f32.mrb[0].mxu0
      %v1022 = vpop.f32.mrb[0].mxu0
      %v1023 = vadd.f32 0.0, %v1022
      %v1024 = vpop.f32.mrb[0].mxu0
      %1025 = vmatprep.mubr.bf16.mxu0 0
      %1026 = vmatmul.mubr.bf16.gmra.mrb[0].mxu0 %v744
      %v1027 = vpop.f32.mrb[0].mxu0
      %v1028 = vadd.f32 0.0, %v1027
      %v1029 = vpop.f32.mrb[0].mxu0
      %v1030 = vpop.f32.mrb[0].mxu0
      %v1031 = vadd.f32 0.0, %v1030
      %v1032 = vpop.f32.mrb[0].mxu0
      %1033 = vmatprep.mubr.bf16.mxu0 0
      %1034 = vmatmul.mubr.bf16.gmra.mrb[0].mxu0 %v747
      %v1035 = vpop.f32.mrb[0].mxu0
      %v1036 = vadd.f32 0.0, %v1035
      %v1037 = vpop.f32.mrb[0].mxu0
      %v1038 = vpop.f32.mrb[0].mxu0
      %v1039 = vadd.f32 0.0, %v1038
      %v1040 = vpop.f32.mrb[0].mxu0
      %1041 = vdwg.mxu0
      %v1106 = vunpack.c.l.b16 %v295
      %v1107 = vunpack.c.l.b16 %v296
      %v1108 = vunpack.c.l.b16 %v297
      %v1109 = vunpack.c.l.b16 %v298
      %v1110 = vunpack.c.l.b16 %v299
      %v1111 = vunpack.c.l.b16 %v300
      %v1112 = vunpack.c.l.b16 %v301
      %v1113 = vunpack.c.l.b16 %v302
      %v1114 = vunpack.c.l.b16 %v303
      %v1115 = vunpack.c.l.b16 %v304
      %v1116 = vunpack.c.l.b16 %v305
      %v1117 = vunpack.c.l.b16 %v306
      %v1118 = vunpack.c.l.b16 %v307
      %v1119 = vunpack.c.l.b16 %v308
      %v1120 = vunpack.c.l.b16 %v309
      %v1121 = vunpack.c.l.b16 %v310
      %v1122 = vunpack.c.l.b16 %v311
      %v1123 = vunpack.c.l.b16 %v312
      %v1124 = vunpack.c.l.b16 %v313
      %v1125 = vunpack.c.l.b16 %v314
      %v1126 = vunpack.c.l.b16 %v315
      %v1127 = vunpack.c.l.b16 %v316
      %v1128 = vunpack.c.l.b16 %v317
      %v1129 = vunpack.c.l.b16 %v318
      %v1130 = vunpack.c.l.b16 %v319
      %v1131 = vunpack.c.l.b16 %v320
      %v1132 = vunpack.c.l.b16 %v321
      %v1133 = vunpack.c.l.b16 %v322
      %v1134 = vunpack.c.l.b16 %v323
      %v1135 = vunpack.c.l.b16 %v324
      %v1136 = vunpack.c.l.b16 %v325
      %v1137 = vunpack.c.l.b16 %v326
      %v1138 = vunpack.c.l.b16 %v327
      %v1139 = vunpack.c.l.b16 %v328
      %v1140 = vunpack.c.l.b16 %v329
      %v1141 = vunpack.c.l.b16 %v330
      %v1142 = vunpack.c.l.b16 %v331
      %v1143 = vunpack.c.l.b16 %v332
      %v1144 = vunpack.c.l.b16 %v333
      %v1145 = vunpack.c.l.b16 %v334
      %v1146 = vunpack.c.l.b16 %v335
      %v1147 = vunpack.c.l.b16 %v336
      %v1148 = vunpack.c.l.b16 %v337
      %v1149 = vunpack.c.l.b16 %v338
      %v1150 = vunpack.c.l.b16 %v339
      %v1151 = vunpack.c.l.b16 %v340
      %v1152 = vunpack.c.l.b16 %v341
      %v1153 = vunpack.c.l.b16 %v342
      %v1154 = vunpack.c.l.b16 %v343
      %v1155 = vunpack.c.l.b16 %v344
      %v1156 = vunpack.c.l.b16 %v345
      %v1157 = vunpack.c.l.b16 %v346
      %v1158 = vunpack.c.l.b16 %v347
      %v1159 = vunpack.c.l.b16 %v348
      %v1160 = vunpack.c.l.b16 %v349
      %v1161 = vunpack.c.l.b16 %v350
      %v1162 = vunpack.c.l.b16 %v351
      %v1163 = vunpack.c.l.b16 %v352
      %v1164 = vunpack.c.l.b16 %v353
      %v1165 = vunpack.c.l.b16 %v354
      %v1166 = vunpack.c.l.b16 %v355
      %v1167 = vunpack.c.l.b16 %v356
      %v1168 = vunpack.c.l.b16 %v357
      %v1169 = vunpack.c.l.b16 %v358
      %v1170 = vpack.c.b16 %v1107, %v1106
      %v1171 = vpack.c.b16 %v1109, %v1108
      %v1172 = vpack.c.b16 %v1111, %v1110
      %v1173 = vpack.c.b16 %v1113, %v1112
      %v1174 = vpack.c.b16 %v1115, %v1114
      %v1175 = vpack.c.b16 %v1117, %v1116
      %v1176 = vpack.c.b16 %v1119, %v1118
      %v1177 = vpack.c.b16 %v1121, %v1120
      %v1178 = vpack.c.b16 %v1123, %v1122
      %v1179 = vpack.c.b16 %v1125, %v1124
      %v1180 = vpack.c.b16 %v1127, %v1126
      %v1181 = vpack.c.b16 %v1129, %v1128
      %v1182 = vpack.c.b16 %v1131, %v1130
      %v1183 = vpack.c.b16 %v1133, %v1132
      %v1184 = vpack.c.b16 %v1135, %v1134
      %v1185 = vpack.c.b16 %v1137, %v1136
      %v1186 = vpack.c.b16 %v1139, %v1138
      %v1187 = vpack.c.b16 %v1141, %v1140
      %v1188 = vpack.c.b16 %v1143, %v1142
      %v1189 = vpack.c.b16 %v1145, %v1144
      %v1190 = vpack.c.b16 %v1147, %v1146
      %v1191 = vpack.c.b16 %v1149, %v1148
      %v1192 = vpack.c.b16 %v1151, %v1150
      %v1193 = vpack.c.b16 %v1153, %v1152
      %v1194 = vpack.c.b16 %v1155, %v1154
      %v1195 = vpack.c.b16 %v1157, %v1156
      %v1196 = vpack.c.b16 %v1159, %v1158
      %v1197 = vpack.c.b16 %v1161, %v1160
      %v1198 = vpack.c.b16 %v1163, %v1162
      %v1199 = vpack.c.b16 %v1165, %v1164
      %v1200 = vpack.c.b16 %v1167, %v1166
      %v1201 = vpack.c.b16 %v1169, %v1168
      %v1216 = vunpack.c.l.b16 %v359
      %v1217 = vunpack.c.l.b16 %v360
      %v1218 = vunpack.c.l.b16 %v361
      %v1219 = vunpack.c.l.b16 %v362
      %v1220 = vunpack.c.l.b16 %v363
      %v1221 = vunpack.c.l.b16 %v364
      %v1222 = vunpack.c.l.b16 %v365
      %v1223 = vunpack.c.l.b16 %v366
      %v1224 = vunpack.c.l.b16 %v367
      %v1225 = vunpack.c.l.b16 %v368
      %v1226 = vunpack.c.l.b16 %v369
      %v1227 = vunpack.c.l.b16 %v370
      %v1228 = vunpack.c.l.b16 %v371
      %v1229 = vunpack.c.l.b16 %v372
      %v1230 = vpack.c.b16 %v1217, %v1216
      %v1231 = vpack.c.b16 %v1219, %v1218
      %v1232 = vpack.c.b16 %v1221, %v1220
      %v1233 = vpack.c.b16 %v1223, %v1222
      %v1234 = vpack.c.b16 %v1225, %v1224
      %v1235 = vpack.c.b16 %v1227, %v1226
      %v1236 = vpack.c.b16 %v1229, %v1228
      %v1244 = vsel %vm652, %v1170, 0
      %v1247 = vsel %vm652, %v1171, 0
      %v1250 = vsel %vm652, %v1172, 0
      %v1253 = vsel %vm652, %v1173, 0
      %v1256 = vsel %vm652, %v1174, 0
      %v1259 = vsel %vm652, %v1175, 0
      %v1262 = vsel %vm652, %v1176, 0
      %v1265 = vsel %vm652, %v1177, 0
      %v1268 = vsel %vm652, %v1178, 0
      %v1271 = vsel %vm652, %v1179, 0
      %v1274 = vsel %vm652, %v1180, 0
      %v1277 = vsel %vm652, %v1181, 0
      %v1280 = vsel %vm652, %v1182, 0
      %v1283 = vsel %vm652, %v1183, 0
      %v1286 = vsel %vm652, %v1184, 0
      %v1289 = vsel %vm652, %v1185, 0
      %v1292 = vsel %vm652, %v1186, 0
      %v1295 = vsel %vm652, %v1187, 0
      %v1298 = vsel %vm652, %v1188, 0
      %v1301 = vsel %vm652, %v1189, 0
      %v1304 = vsel %vm652, %v1190, 0
      %v1307 = vsel %vm652, %v1191, 0
      %v1310 = vsel %vm652, %v1192, 0
      %v1313 = vsel %vm652, %v1193, 0
      %v1316 = vsel %vm652, %v1194, 0
      %v1319 = vsel %vm652, %v1195, 0
      %v1322 = vsel %vm652, %v1196, 0
      %v1325 = vsel %vm652, %v1197, 0
      %v1328 = vsel %vm652, %v1198, 0
      %v1331 = vsel %vm652, %v1199, 0
      %v1334 = vsel %vm652, %v1200, 0
      %v1337 = vsel %vm652, %v1201, 0
      %v1340 = vsel %vm749, %v1236, 0
      %1342 = vmatprep.subr.bf16.mxu0 0
      %1343 = vmatpush1.bf16.msra.mxu0 %v1230
      %1344 = vmatprep.subr.bf16.mxu0 0
      %1345 = vmatpush1.bf16.msra.mxu0 %v1231
      %1346 = vmatprep.subr.bf16.mxu0 0
      %1347 = vmatpush1.bf16.msra.mxu0 %v1232
      %1348 = vmatprep.subr.bf16.mxu0 0
      %1349 = vmatpush1.bf16.msra.mxu0 %v1233
      %1350 = vmatprep.subr.bf16.mxu0 0
      %1351 = vmatpush1.bf16.msra.mxu0 %v1234
      %1352 = vmatprep.subr.bf16.mxu0 0
      %1353 = vmatpush1.bf16.msra.mxu0 %v1235
      %1354 = vmatprep.subr.bf16.mxu0 0
      %1355 = vmatpush1.bf16.msra.mxu0 %v1340
      %1356 = vmatprep.subr.bf16.mxu0 0
      %1357 = vmatpush1.bf16.msra.mxu0 0
      %1358 = vmatprep.subr.bf16.mxu0 0
      %1359 = vmatpush1.bf16.msra.mxu0 0
      %1360 = vmatprep.subr.bf16.mxu0 0
      %1361 = vmatpush1.bf16.msra.mxu0 0
      %1362 = vmatprep.subr.bf16.mxu0 0
      %1363 = vmatpush1.bf16.msra.mxu0 0
      %1364 = vmatprep.subr.bf16.mxu0 0
      %1365 = vmatpush1.bf16.msra.mxu0 0
      %1366 = vmatprep.subr.bf16.mxu0 0
      %1367 = vmatpush1.bf16.msra.mxu0 0
      %1368 = vmatprep.subr.bf16.mxu0 0
      %1369 = vmatpush1.bf16.msra.mxu0 0
      %1370 = vmatprep.subr.bf16.mxu0 0
      %1371 = vmatpush1.bf16.msra.mxu0 0
      %1372 = vmatprep.subr.bf16.mxu0 0
      %1373 = vmatpush1.bf16.msra.mxu0 0
      %1374 = vmatprep.mubr.bf16.mxu0 0
      %1375 = vmatmul.mubr.bf16.gmra.mrb[0].mxu0 %v1244
      %v1376 = vpop.f32.mrb[0].mxu0
      %v1377 = vadd.f32 %v788, %v1376
      %v1378 = vpop.f32.mrb[0].mxu0
      %v1379 = vpop.f32.mrb[0].mxu0
      %v1380 = vadd.f32 %v791, %v1379
      %v1381 = vpop.f32.mrb[0].mxu0
      %1382 = vmatprep.mubr.bf16.mxu0 0
      %1383 = vmatmul.mubr.bf16.gmra.mrb[0].mxu0 %v1247
      %v1384 = vpop.f32.mrb[0].mxu0
      %v1385 = vadd.f32 %v796, %v1384
      %v1386 = vpop.f32.mrb[0].mxu0
      %v1387 = vpop.f32.mrb[0].mxu0
      %v1388 = vadd.f32 %v799, %v1387
      %v1389 = vpop.f32.mrb[0].mxu0
      %1390 = vmatprep.mubr.bf16.mxu0 0
      %1391 = vmatmul.mubr.bf16.gmra.mrb[0].mxu0 %v1250
      %v1392 = vpop.f32.mrb[0].mxu0
      %v1393 = vadd.f32 %v804, %v1392
      %v1394 = vpop.f32.mrb[0].mxu0
      %v1395 = vpop.f32.mrb[0].mxu0
      %v1396 = vadd.f32 %v807, %v1395
      %v1397 = vpop.f32.mrb[0].mxu0
      %1398 = vmatprep.mubr.bf16.mxu0 0
      %1399 = vmatmul.mubr.bf16.gmra.mrb[0].mxu0 %v1253
      %v1400 = vpop.f32.mrb[0].mxu0
      %v1401 = vadd.f32 %v812, %v1400
      %v1402 = vpop.f32.mrb[0].mxu0
      %v1403 = vpop.f32.mrb[0].mxu0
      %v1404 = vadd.f32 %v815, %v1403
      %v1405 = vpop.f32.mrb[0].mxu0
      %1406 = vmatprep.mubr.bf16.mxu0 0
      %1407 = vmatmul.mubr.bf16.gmra.mrb[0].mxu0 %v1256
      %v1408 = vpop.f32.mrb[0].mxu0
      %v1409 = vadd.f32 %v820, %v1408
      %v1410 = vpop.f32.mrb[0].mxu0
      %v1411 = vpop.f32.mrb[0].mxu0
      %v1412 = vadd.f32 %v823, %v1411
      %v1413 = vpop.f32.mrb[0].mxu0
      %1414 = vmatprep.mubr.bf16.mxu0 0
      %1415 = vmatmul.mubr.bf16.gmra.mrb[0].mxu0 %v1259
      %v1416 = vpop.f32.mrb[0].mxu0
      %v1417 = vadd.f32 %v828, %v1416
      %v1418 = vpop.f32.mrb[0].mxu0
      %v1419 = vpop.f32.mrb[0].mxu0
      %v1420 = vadd.f32 %v831, %v1419
      %v1421 = vpop.f32.mrb[0].mxu0
      %1422 = vmatprep.mubr.bf16.mxu0 0
      %1423 = vmatmul.mubr.bf16.gmra.mrb[0].mxu0 %v1262
      %v1424 = vpop.f32.mrb[0].mxu0
      %v1425 = vadd.f32 %v836, %v1424
      %v1426 = vpop.f32.mrb[0].mxu0
      %v1427 = vpop.f32.mrb[0].mxu0
      %v1428 = vadd.f32 %v839, %v1427
      %v1429 = vpop.f32.mrb[0].mxu0
      %1430 = vmatprep.mubr.bf16.mxu0 0
      %1431 = vmatmul.mubr.bf16.gmra.mrb[0].mxu0 %v1265
      %v1432 = vpop.f32.mrb[0].mxu0
      %v1433 = vadd.f32 %v844, %v1432
      %v1434 = vpop.f32.mrb[0].mxu0
      %v1435 = vpop.f32.mrb[0].mxu0
      %v1436 = vadd.f32 %v847, %v1435
      %v1437 = vpop.f32.mrb[0].mxu0
      %1438 = vmatprep.mubr.bf16.mxu0 0
      %1439 = vmatmul.mubr.bf16.gmra.mrb[0].mxu0 %v1268
      %v1440 = vpop.f32.mrb[0].mxu0
      %v1441 = vadd.f32 %v852, %v1440
      %v1442 = vpop.f32.mrb[0].mxu0
      %v1443 = vpop.f32.mrb[0].mxu0
      %v1444 = vadd.f32 %v855, %v1443
      %v1445 = vpop.f32.mrb[0].mxu0
      %1446 = vmatprep.mubr.bf16.mxu0 0
      %1447 = vmatmul.mubr.bf16.gmra.mrb[0].mxu0 %v1271
      %v1448 = vpop.f32.mrb[0].mxu0
      %v1449 = vadd.f32 %v860, %v1448
      %v1450 = vpop.f32.mrb[0].mxu0
      %v1451 = vpop.f32.mrb[0].mxu0
      %v1452 = vadd.f32 %v863, %v1451
      %v1453 = vpop.f32.mrb[0].mxu0
      %1454 = vmatprep.mubr.bf16.mxu0 0
      %1455 = vmatmul.mubr.bf16.gmra.mrb[0].mxu0 %v1274
      %v1456 = vpop.f32.mrb[0].mxu0
      %v1457 = vadd.f32 %v868, %v1456
      %v1458 = vpop.f32.mrb[0].mxu0
      %v1459 = vpop.f32.mrb[0].mxu0
      %v1460 = vadd.f32 %v871, %v1459
      %v1461 = vpop.f32.mrb[0].mxu0
      %1462 = vmatprep.mubr.bf16.mxu0 0
      %1463 = vmatmul.mubr.bf16.gmra.mrb[0].mxu0 %v1277
      %v1464 = vpop.f32.mrb[0].mxu0
      %v1465 = vadd.f32 %v876, %v1464
      %v1466 = vpop.f32.mrb[0].mxu0
      %v1467 = vpop.f32.mrb[0].mxu0
      %v1468 = vadd.f32 %v879, %v1467
      %v1469 = vpop.f32.mrb[0].mxu0
      %1470 = vmatprep.mubr.bf16.mxu0 0
      %1471 = vmatmul.mubr.bf16.gmra.mrb[0].mxu0 %v1280
      %v1472 = vpop.f32.mrb[0].mxu0
      %v1473 = vadd.f32 %v884, %v1472
      %v1474 = vpop.f32.mrb[0].mxu0
      %v1475 = vpop.f32.mrb[0].mxu0
      %v1476 = vadd.f32 %v887, %v1475
      %v1477 = vpop.f32.mrb[0].mxu0
      %1478 = vmatprep.mubr.bf16.mxu0 0
      %1479 = vmatmul.mubr.bf16.gmra.mrb[0].mxu0 %v1283
      %v1480 = vpop.f32.mrb[0].mxu0
      %v1481 = vadd.f32 %v892, %v1480
      %v1482 = vpop.f32.mrb[0].mxu0
      %v1483 = vpop.f32.mrb[0].mxu0
      %v1484 = vadd.f32 %v895, %v1483
      %v1485 = vpop.f32.mrb[0].mxu0
      %1486 = vmatprep.mubr.bf16.mxu0 0
      %1487 = vmatmul.mubr.bf16.gmra.mrb[0].mxu0 %v1286
      %v1488 = vpop.f32.mrb[0].mxu0
      %v1489 = vadd.f32 %v900, %v1488
      %v1490 = vpop.f32.mrb[0].mxu0
      %v1491 = vpop.f32.mrb[0].mxu0
      %v1492 = vadd.f32 %v903, %v1491
      %v1493 = vpop.f32.mrb[0].mxu0
      %1494 = vmatprep.mubr.bf16.mxu0 0
      %1495 = vmatmul.mubr.bf16.gmra.mrb[0].mxu0 %v1289
      %v1496 = vpop.f32.mrb[0].mxu0
      %v1497 = vadd.f32 %v908, %v1496
      %v1498 = vpop.f32.mrb[0].mxu0
      %v1499 = vpop.f32.mrb[0].mxu0
      %v1500 = vadd.f32 %v911, %v1499
      %v1501 = vpop.f32.mrb[0].mxu0
      %1502 = vmatprep.mubr.bf16.mxu0 0
      %1503 = vmatmul.mubr.bf16.gmra.mrb[0].mxu0 %v1292
      %v1504 = vpop.f32.mrb[0].mxu0
      %v1505 = vadd.f32 %v916, %v1504
      %v1506 = vpop.f32.mrb[0].mxu0
      %v1507 = vpop.f32.mrb[0].mxu0
      %v1508 = vadd.f32 %v919, %v1507
      %v1509 = vpop.f32.mrb[0].mxu0
      %1510 = vmatprep.mubr.bf16.mxu0 0
      %1511 = vmatmul.mubr.bf16.gmra.mrb[0].mxu0 %v1295
      %v1512 = vpop.f32.mrb[0].mxu0
      %v1513 = vadd.f32 %v924, %v1512
      %v1514 = vpop.f32.mrb[0].mxu0
      %v1515 = vpop.f32.mrb[0].mxu0
      %v1516 = vadd.f32 %v927, %v1515
      %v1517 = vpop.f32.mrb[0].mxu0
      %1518 = vmatprep.mubr.bf16.mxu0 0
      %1519 = vmatmul.mubr.bf16.gmra.mrb[0].mxu0 %v1298
      %v1520 = vpop.f32.mrb[0].mxu0
      %v1521 = vadd.f32 %v932, %v1520
      %v1522 = vpop.f32.mrb[0].mxu0
      %v1523 = vpop.f32.mrb[0].mxu0
      %v1524 = vadd.f32 %v935, %v1523
      %v1525 = vpop.f32.mrb[0].mxu0
      %1526 = vmatprep.mubr.bf16.mxu0 0
      %1527 = vmatmul.mubr.bf16.gmra.mrb[0].mxu0 %v1301
      %v1528 = vpop.f32.mrb[0].mxu0
      %v1529 = vadd.f32 %v940, %v1528
      %v1530 = vpop.f32.mrb[0].mxu0
      %v1531 = vpop.f32.mrb[0].mxu0
      %v1532 = vadd.f32 %v943, %v1531
      %v1533 = vpop.f32.mrb[0].mxu0
      %1534 = vmatprep.mubr.bf16.mxu0 0
      %1535 = vmatmul.mubr.bf16.gmra.mrb[0].mxu0 %v1304
      %v1536 = vpop.f32.mrb[0].mxu0
      %v1537 = vadd.f32 %v948, %v1536
      %v1538 = vpop.f32.mrb[0].mxu0
      %v1539 = vpop.f32.mrb[0].mxu0
      %v1540 = vadd.f32 %v951, %v1539
      %v1541 = vpop.f32.mrb[0].mxu0
      %1542 = vmatprep.mubr.bf16.mxu0 0
      %1543 = vmatmul.mubr.bf16.gmra.mrb[0].mxu0 %v1307
      %v1544 = vpop.f32.mrb[0].mxu0
      %v1545 = vadd.f32 %v956, %v1544
      %v1546 = vpop.f32.mrb[0].mxu0
      %v1547 = vpop.f32.mrb[0].mxu0
      %v1548 = vadd.f32 %v959, %v1547
      %v1549 = vpop.f32.mrb[0].mxu0
      %1550 = vmatprep.mubr.bf16.mxu0 0
      %1551 = vmatmul.mubr.bf16.gmra.mrb[0].mxu0 %v1310
      %v1552 = vpop.f32.mrb[0].mxu0
      %v1553 = vadd.f32 %v964, %v1552
      %v1554 = vpop.f32.mrb[0].mxu0
      %v1555 = vpop.f32.mrb[0].mxu0
      %v1556 = vadd.f32 %v967, %v1555
      %v1557 = vpop.f32.mrb[0].mxu0
      %1558 = vmatprep.mubr.bf16.mxu0 0
      %1559 = vmatmul.mubr.bf16.gmra.mrb[0].mxu0 %v1313
      %v1560 = vpop.f32.mrb[0].mxu0
      %v1561 = vadd.f32 %v972, %v1560
      %v1562 = vpop.f32.mrb[0].mxu0
      %v1563 = vpop.f32.mrb[0].mxu0
      %v1564 = vadd.f32 %v975, %v1563
      %v1565 = vpop.f32.mrb[0].mxu0
      %1566 = vmatprep.mubr.bf16.mxu0 0
      %1567 = vmatmul.mubr.bf16.gmra.mrb[0].mxu0 %v1316
      %v1568 = vpop.f32.mrb[0].mxu0
      %v1569 = vadd.f32 %v980, %v1568
      %v1570 = vpop.f32.mrb[0].mxu0
      %v1571 = vpop.f32.mrb[0].mxu0
      %v1572 = vadd.f32 %v983, %v1571
      %v1573 = vpop.f32.mrb[0].mxu0
      %1574 = vmatprep.mubr.bf16.mxu0 0
      %1575 = vmatmul.mubr.bf16.gmra.mrb[0].mxu0 %v1319
      %v1576 = vpop.f32.mrb[0].mxu0
      %v1577 = vadd.f32 %v988, %v1576
      %v1578 = vpop.f32.mrb[0].mxu0
      %v1579 = vpop.f32.mrb[0].mxu0
      %v1580 = vadd.f32 %v991, %v1579
      %v1581 = vpop.f32.mrb[0].mxu0
      %1582 = vmatprep.mubr.bf16.mxu0 0
      %1583 = vmatmul.mubr.bf16.gmra.mrb[0].mxu0 %v1322
      %v1584 = vpop.f32.mrb[0].mxu0
      %v1585 = vadd.f32 %v996, %v1584
      %v1586 = vpop.f32.mrb[0].mxu0
      %v1587 = vpop.f32.mrb[0].mxu0
      %v1588 = vadd.f32 %v999, %v1587
      %v1589 = vpop.f32.mrb[0].mxu0
      %1590 = vmatprep.mubr.bf16.mxu0 0
      %1591 = vmatmul.mubr.bf16.gmra.mrb[0].mxu0 %v1325
      %v1592 = vpop.f32.mrb[0].mxu0
      %v1593 = vadd.f32 %v1004, %v1592
      %v1594 = vpop.f32.mrb[0].mxu0
      %v1595 = vpop.f32.mrb[0].mxu0
      %v1596 = vadd.f32 %v1007, %v1595
      %v1597 = vpop.f32.mrb[0].mxu0
      %1598 = vmatprep.mubr.bf16.mxu0 0
      %1599 = vmatmul.mubr.bf16.gmra.mrb[0].mxu0 %v1328
      %v1600 = vpop.f32.mrb[0].mxu0
      %v1601 = vadd.f32 %v1012, %v1600
      %v1602 = vpop.f32.mrb[0].mxu0
      %v1603 = vpop.f32.mrb[0].mxu0
      %v1604 = vadd.f32 %v1015, %v1603
      %v1605 = vpop.f32.mrb[0].mxu0
      %1606 = vmatprep.mubr.bf16.mxu0 0
      %1607 = vmatmul.mubr.bf16.gmra.mrb[0].mxu0 %v1331
      %v1608 = vpop.f32.mrb[0].mxu0
      %v1609 = vadd.f32 %v1020, %v1608
      %v1610 = vpop.f32.mrb[0].mxu0
      %v1611 = vpop.f32.mrb[0].mxu0
      %v1612 = vadd.f32 %v1023, %v1611
      %v1613 = vpop.f32.mrb[0].mxu0
      %1614 = vmatprep.mubr.bf16.mxu0 0
      %1615 = vmatmul.mubr.bf16.gmra.mrb[0].mxu0 %v1334
      %v1616 = vpop.f32.mrb[0].mxu0
      %v1617 = vadd.f32 %v1028, %v1616
      %v1618 = vpop.f32.mrb[0].mxu0
      %v1619 = vpop.f32.mrb[0].mxu0
      %v1620 = vadd.f32 %v1031, %v1619
      %v1621 = vpop.f32.mrb[0].mxu0
      %1622 = vmatprep.mubr.bf16.mxu0 0
      %1623 = vmatmul.mubr.bf16.gmra.mrb[0].mxu0 %v1337
      %v1624 = vpop.f32.mrb[0].mxu0
      %v1625 = vadd.f32 %v1036, %v1624
      %v1626 = vpop.f32.mrb[0].mxu0
      %v1627 = vpop.f32.mrb[0].mxu0
      %v1628 = vadd.f32 %v1039, %v1627
      %v1629 = vpop.f32.mrb[0].mxu0
      %1630 = vdwg.mxu0
      %v1631 = vpack.c.bf16 %v1380, %v1377
      %v1632 = vpack.c.bf16 %v1388, %v1385
      %v1633 = vpack.c.bf16 %v1396, %v1393
      %v1634 = vpack.c.bf16 %v1404, %v1401
      %v1635 = vpack.c.bf16 %v1412, %v1409
      %v1636 = vpack.c.bf16 %v1420, %v1417
      %v1637 = vpack.c.bf16 %v1428, %v1425
      %v1638 = vpack.c.bf16 %v1436, %v1433
      %v1639 = vpack.c.bf16 %v1444, %v1441
      %v1640 = vpack.c.bf16 %v1452, %v1449
      %v1641 = vpack.c.bf16 %v1460, %v1457
      %v1642 = vpack.c.bf16 %v1468, %v1465
      %v1643 = vpack.c.bf16 %v1476, %v1473
      %v1644 = vpack.c.bf16 %v1484, %v1481
      %v1645 = vpack.c.bf16 %v1492, %v1489
      %v1646 = vpack.c.bf16 %v1500, %v1497
      %v1647 = vpack.c.bf16 %v1508, %v1505
      %v1648 = vpack.c.bf16 %v1516, %v1513
      %v1649 = vpack.c.bf16 %v1524, %v1521
      %v1650 = vpack.c.bf16 %v1532, %v1529
      %v1651 = vpack.c.bf16 %v1540, %v1537
      %v1652 = vpack.c.bf16 %v1548, %v1545
      %v1653 = vpack.c.bf16 %v1556, %v1553
      %v1654 = vpack.c.bf16 %v1564, %v1561
      %v1655 = vpack.c.bf16 %v1572, %v1569
      %v1656 = vpack.c.bf16 %v1580, %v1577
      %v1657 = vpack.c.bf16 %v1588, %v1585
      %v1658 = vpack.c.bf16 %v1596, %v1593
      %v1659 = vpack.c.bf16 %v1604, %v1601
      %v1660 = vpack.c.bf16 %v1612, %v1609
      %v1661 = vpack.c.bf16 %v1620, %v1617
      %v1662 = vpack.c.bf16 %v1628, %v1625
      %v1695 = vunpack.c.l.b16 %v1631
      %v1696 = vunpack.c.h.b16 %v1631
      %v1697 = vunpack.c.l.b16 %v1632
      %v1698 = vunpack.c.h.b16 %v1632
      %v1699 = vunpack.c.l.b16 %v1633
      %v1700 = vunpack.c.h.b16 %v1633
      %v1701 = vunpack.c.l.b16 %v1634
      %v1702 = vunpack.c.h.b16 %v1634
      %v1703 = vunpack.c.l.b16 %v1635
      %v1704 = vunpack.c.h.b16 %v1635
      %v1705 = vunpack.c.l.b16 %v1636
      %v1706 = vunpack.c.h.b16 %v1636
      %v1707 = vunpack.c.l.b16 %v1637
      %v1708 = vunpack.c.h.b16 %v1637
      %v1709 = vunpack.c.l.b16 %v1638
      %v1710 = vunpack.c.h.b16 %v1638
      %v1711 = vunpack.c.l.b16 %v1639
      %v1712 = vunpack.c.h.b16 %v1639
      %v1713 = vunpack.c.l.b16 %v1640
      %v1714 = vunpack.c.h.b16 %v1640
      %v1715 = vunpack.c.l.b16 %v1641
      %v1716 = vunpack.c.h.b16 %v1641
      %v1717 = vunpack.c.l.b16 %v1642
      %v1718 = vunpack.c.h.b16 %v1642
      %v1719 = vunpack.c.l.b16 %v1643
      %v1720 = vunpack.c.h.b16 %v1643
      %v1721 = vunpack.c.l.b16 %v1644
      %v1722 = vunpack.c.h.b16 %v1644
      %v1723 = vunpack.c.l.b16 %v1645
      %v1724 = vunpack.c.h.b16 %v1645
      %v1725 = vunpack.c.l.b16 %v1646
      %v1726 = vunpack.c.h.b16 %v1646
      %v1727 = vunpack.c.l.b16 %v1647
      %v1728 = vunpack.c.h.b16 %v1647
      %v1729 = vunpack.c.l.b16 %v1648
      %v1730 = vunpack.c.h.b16 %v1648
      %v1731 = vunpack.c.l.b16 %v1649
      %v1732 = vunpack.c.h.b16 %v1649
      %v1733 = vunpack.c.l.b16 %v1650
      %v1734 = vunpack.c.h.b16 %v1650
      %v1735 = vunpack.c.l.b16 %v1651
      %v1736 = vunpack.c.h.b16 %v1651
      %v1737 = vunpack.c.l.b16 %v1652
      %v1738 = vunpack.c.h.b16 %v1652
      %v1739 = vunpack.c.l.b16 %v1653
      %v1740 = vunpack.c.h.b16 %v1653
      %v1741 = vunpack.c.l.b16 %v1654
      %v1742 = vunpack.c.h.b16 %v1654
      %v1743 = vunpack.c.l.b16 %v1655
      %v1744 = vunpack.c.h.b16 %v1655
      %v1745 = vunpack.c.l.b16 %v1656
      %v1746 = vunpack.c.h.b16 %v1656
      %v1747 = vunpack.c.l.b16 %v1657
      %v1748 = vunpack.c.h.b16 %v1657
      %v1749 = vunpack.c.l.b16 %v1658
      %v1750 = vunpack.c.h.b16 %v1658
      %v1751 = vunpack.c.l.b16 %v1659
      %v1752 = vunpack.c.h.b16 %v1659
      %v1753 = vunpack.c.l.b16 %v1660
      %v1754 = vunpack.c.h.b16 %v1660
      %v1755 = vunpack.c.l.b16 %v1661
      %v1756 = vunpack.c.h.b16 %v1661
      %v1757 = vunpack.c.l.b16 %v1662
      %v1758 = vunpack.c.h.b16 %v1662
      %v1759 = vpack.c.b16 %v1695, %v1695
      %v1760 = vpack.c.b16 %v1696, %v1696
      %v1761 = vpack.c.b16 %v1697, %v1697
      %v1762 = vpack.c.b16 %v1698, %v1698
      %v1763 = vpack.c.b16 %v1699, %v1699
      %v1764 = vpack.c.b16 %v1700, %v1700
      %v1765 = vpack.c.b16 %v1701, %v1701
      %v1766 = vpack.c.b16 %v1702, %v1702
      %v1767 = vpack.c.b16 %v1703, %v1703
      %v1768 = vpack.c.b16 %v1704, %v1704
      %v1769 = vpack.c.b16 %v1705, %v1705
      %v1770 = vpack.c.b16 %v1706, %v1706
      %v1771 = vpack.c.b16 %v1707, %v1707
      %v1772 = vpack.c.b16 %v1708, %v1708
      %v1773 = vpack.c.b16 %v1709, %v1709
      %v1774 = vpack.c.b16 %v1710, %v1710
      %v1775 = vpack.c.b16 %v1711, %v1711
      %v1776 = vpack.c.b16 %v1712, %v1712
      %v1777 = vpack.c.b16 %v1713, %v1713
      %v1778 = vpack.c.b16 %v1714, %v1714
      %v1779 = vpack.c.b16 %v1715, %v1715
      %v1780 = vpack.c.b16 %v1716, %v1716
      %v1781 = vpack.c.b16 %v1717, %v1717
      %v1782 = vpack.c.b16 %v1718, %v1718
      %v1783 = vpack.c.b16 %v1719, %v1719
      %v1784 = vpack.c.b16 %v1720, %v1720
      %v1785 = vpack.c.b16 %v1721, %v1721
      %v1786 = vpack.c.b16 %v1722, %v1722
      %v1787 = vpack.c.b16 %v1723, %v1723
      %v1788 = vpack.c.b16 %v1724, %v1724
      %v1789 = vpack.c.b16 %v1725, %v1725
      %v1790 = vpack.c.b16 %v1726, %v1726
      %v1791 = vpack.c.b16 %v1727, %v1727
      %v1792 = vpack.c.b16 %v1728, %v1728
      %v1793 = vpack.c.b16 %v1729, %v1729
      %v1794 = vpack.c.b16 %v1730, %v1730
      %v1795 = vpack.c.b16 %v1731, %v1731
      %v1796 = vpack.c.b16 %v1732, %v1732
      %v1797 = vpack.c.b16 %v1733, %v1733
      %v1798 = vpack.c.b16 %v1734, %v1734
      %v1799 = vpack.c.b16 %v1735, %v1735
      %v1800 = vpack.c.b16 %v1736, %v1736
      %v1801 = vpack.c.b16 %v1737, %v1737
      %v1802 = vpack.c.b16 %v1738, %v1738
      %v1803 = vpack.c.b16 %v1739, %v1739
      %v1804 = vpack.c.b16 %v1740, %v1740
      %v1805 = vpack.c.b16 %v1741, %v1741
      %v1806 = vpack.c.b16 %v1742, %v1742
      %v1807 = vpack.c.b16 %v1743, %v1743
      %v1808 = vpack.c.b16 %v1744, %v1744
      %v1809 = vpack.c.b16 %v1745, %v1745
      %v1810 = vpack.c.b16 %v1746, %v1746
      %v1811 = vpack.c.b16 %v1747, %v1747
      %v1812 = vpack.c.b16 %v1748, %v1748
      %v1813 = vpack.c.b16 %v1749, %v1749
      %v1814 = vpack.c.b16 %v1750, %v1750
      %v1815 = vpack.c.b16 %v1751, %v1751
      %v1816 = vpack.c.b16 %v1752, %v1752
      %v1817 = vpack.c.b16 %v1753, %v1753
      %v1818 = vpack.c.b16 %v1754, %v1754
      %v1819 = vpack.c.b16 %v1755, %v1755
      %v1820 = vpack.c.b16 %v1756, %v1756
      %v1821 = vpack.c.b16 %v1757, %v1757
      %v1822 = vpack.c.b16 %v1758, %v1758
      %vm1887 = vcmask 27648
      %1888 = vst.msk [vmem:[%s286] sm:$0xf] %vm1887, %v1759
      %1889 = vst.msk [vmem:[%s286 + $0x4] sm:$0xf] %vm1887, %v1760
      %1890 = vst.msk [vmem:[%s286 + $0x8] sm:$0xf] %vm1887, %v1761
      %1891 = vst.msk [vmem:[%s286 + $0xc] sm:$0xf] %vm1887, %v1762
      %1892 = vst.msk [vmem:[%s286 + $0x10] sm:$0xf] %vm1887, %v1763
      %1893 = vst.msk [vmem:[%s286 + $0x14] sm:$0xf] %vm1887, %v1764
      %1894 = vst.msk [vmem:[%s286 + $0x18] sm:$0xf] %vm1887, %v1765
      %1895 = vst.msk [vmem:[%s286 + $0x1c] sm:$0xf] %vm1887, %v1766
      %1896 = vst.msk [vmem:[%s286 + $0x20] sm:$0xf] %vm1887, %v1767
      %1897 = vst.msk [vmem:[%s286 + $0x24] sm:$0xf] %vm1887, %v1768
      %1898 = vst.msk [vmem:[%s286 + $0x28] sm:$0xf] %vm1887, %v1769
      %1899 = vst.msk [vmem:[%s286 + $0x2c] sm:$0xf] %vm1887, %v1770
      %1900 = vst.msk [vmem:[%s286 + $0x30] sm:$0xf] %vm1887, %v1771
      %1901 = vst.msk [vmem:[%s286 + $0x34] sm:$0xf] %vm1887, %v1772
      %1902 = vst.msk [vmem:[%s286 + $0x38] sm:$0xf] %vm1887, %v1773
      %1903 = vst.msk [vmem:[%s286 + $0x3c] sm:$0xf] %vm1887, %v1774
      %1904 = vst.msk [vmem:[%s286 + $0x40] sm:$0xf] %vm1887, %v1775
      %1905 = vst.msk [vmem:[%s286 + $0x44] sm:$0xf] %vm1887, %v1776
      %1906 = vst.msk [vmem:[%s286 + $0x48] sm:$0xf] %vm1887, %v1777
      %1907 = vst.msk [vmem:[%s286 + $0x4c] sm:$0xf] %vm1887, %v1778
      %1908 = vst.msk [vmem:[%s286 + $0x50] sm:$0xf] %vm1887, %v1779
      %1909 = vst.msk [vmem:[%s286 + $0x54] sm:$0xf] %vm1887, %v1780
      %1910 = vst.msk [vmem:[%s286 + $0x58] sm:$0xf] %vm1887, %v1781
      %1911 = vst.msk [vmem:[%s286 + $0x5c] sm:$0xf] %vm1887, %v1782
      %1912 = vst.msk [vmem:[%s286 + $0x60] sm:$0xf] %vm1887, %v1783
      %1913 = vst.msk [vmem:[%s286 + $0x64] sm:$0xf] %vm1887, %v1784
      %1914 = vst.msk [vmem:[%s286 + $0x68] sm:$0xf] %vm1887, %v1785
      %1915 = vst.msk [vmem:[%s286 + $0x6c] sm:$0xf] %vm1887, %v1786
      %1916 = vst.msk [vmem:[%s286 + $0x70] sm:$0xf] %vm1887, %v1787
      %1917 = vst.msk [vmem:[%s286 + $0x74] sm:$0xf] %vm1887, %v1788
      %1918 = vst.msk [vmem:[%s286 + $0x78] sm:$0xf] %vm1887, %v1789
      %1919 = vst.msk [vmem:[%s286 + $0x7c] sm:$0xf] %vm1887, %v1790
      %1920 = vst.msk [vmem:[%s286 + $0x80] sm:$0xf] %vm1887, %v1791
      %1921 = vst.msk [vmem:[%s286 + $0x84] sm:$0xf] %vm1887, %v1792
      %1922 = vst.msk [vmem:[%s286 + $0x88] sm:$0xf] %vm1887, %v1793
      %1923 = vst.msk [vmem:[%s286 + $0x8c] sm:$0xf] %vm1887, %v1794
      %1924 = vst.msk [vmem:[%s286 + $0x90] sm:$0xf] %vm1887, %v1795
      %1925 = vst.msk [vmem:[%s286 + $0x94] sm:$0xf] %vm1887, %v1796
      %1926 = vst.msk [vmem:[%s286 + $0x98] sm:$0xf] %vm1887, %v1797
      %1927 = vst.msk [vmem:[%s286 + $0x9c] sm:$0xf] %vm1887, %v1798
      %1928 = vst.msk [vmem:[%s286 + $0xa0] sm:$0xf] %vm1887, %v1799
      %1929 = vst.msk [vmem:[%s286 + $0xa4] sm:$0xf] %vm1887, %v1800
      %1930 = vst.msk [vmem:[%s286 + $0xa8] sm:$0xf] %vm1887, %v1801
      %1931 = vst.msk [vmem:[%s286 + $0xac] sm:$0xf] %vm1887, %v1802
      %1932 = vst.msk [vmem:[%s286 + $0xb0] sm:$0xf] %vm1887, %v1803
      %1933 = vst.msk [vmem:[%s286 + $0xb4] sm:$0xf] %vm1887, %v1804
      %1934 = vst.msk [vmem:[%s286 + $0xb8] sm:$0xf] %vm1887, %v1805
      %1935 = vst.msk [vmem:[%s286 + $0xbc] sm:$0xf] %vm1887, %v1806
      %1936 = vst.msk [vmem:[%s286 + $0xc0] sm:$0xf] %vm1887, %v1807
      %1937 = vst.msk [vmem:[%s286 + $0xc4] sm:$0xf] %vm1887, %v1808
      %1938 = vst.msk [vmem:[%s286 + $0xc8] sm:$0xf] %vm1887, %v1809
      %1939 = vst.msk [vmem:[%s286 + $0xcc] sm:$0xf] %vm1887, %v1810
      %1940 = vst.msk [vmem:[%s286 + $0xd0] sm:$0xf] %vm1887, %v1811
      %1941 = vst.msk [vmem:[%s286 + $0xd4] sm:$0xf] %vm1887, %v1812
      %1942 = vst.msk [vmem:[%s286 + $0xd8] sm:$0xf] %vm1887, %v1813
      %1943 = vst.msk [vmem:[%s286 + $0xdc] sm:$0xf] %vm1887, %v1814
      %1944 = vst.msk [vmem:[%s286 + $0xe0] sm:$0xf] %vm1887, %v1815
      %1945 = vst.msk [vmem:[%s286 + $0xe4] sm:$0xf] %vm1887, %v1816
      %1946 = vst.msk [vmem:[%s286 + $0xe8] sm:$0xf] %vm1887, %v1817
      %1947 = vst.msk [vmem:[%s286 + $0xec] sm:$0xf] %vm1887, %v1818
      %1948 = vst.msk [vmem:[%s286 + $0xf0] sm:$0xf] %vm1887, %v1819
      %1949 = vst.msk [vmem:[%s286 + $0xf4] sm:$0xf] %vm1887, %v1820
      %1950 = vst.msk [vmem:[%s286 + $0xf8] sm:$0xf] %vm1887, %v1821
      %1951 = vst.msk [vmem:[%s286 + $0xfc] sm:$0xf] %vm1887, %v1822
      %vm1952 = vcmask 31744
      %v1953 = vsel %vm1952, %v1377, 0.0
      %v1954 = vsel %vm1952, %v1380, 0.0
      %v1955 = vadd.f32 %v1953, %v1954
      %v1956 = vsel %vm1952, %v1385, 0.0
      %v1957 = vadd.f32 %v1955, %v1956
      %v1958 = vsel %vm1952, %v1388, 0.0
      %v1959 = vadd.f32 %v1957, %v1958
      %v1960 = vsel %vm1952, %v1393, 0.0
      %v1961 = vadd.f32 %v1959, %v1960
      %v1962 = vsel %vm1952, %v1396, 0.0
      %v1963 = vadd.f32 %v1961, %v1962
      %v1964 = vsel %vm1952, %v1401, 0.0
      %v1965 = vadd.f32 %v1963, %v1964
      %v1966 = vsel %vm1952, %v1404, 0.0
      %v1967 = vadd.f32 %v1965, %v1966
      %v1968 = vsel %vm1952, %v1409, 0.0
      %v1969 = vadd.f32 %v1967, %v1968
      %v1970 = vsel %vm1952, %v1412, 0.0
      %v1971 = vadd.f32 %v1969, %v1970
      %v1972 = vsel %vm1952, %v1417, 0.0
      %v1973 = vadd.f32 %v1971, %v1972
      %v1974 = vsel %vm1952, %v1420, 0.0
      %v1975 = vadd.f32 %v1973, %v1974
      %v1976 = vsel %vm1952, %v1425, 0.0
      %v1977 = vadd.f32 %v1975, %v1976
      %v1978 = vsel %vm1952, %v1428, 0.0
      %v1979 = vadd.f32 %v1977, %v1978
      %v1980 = vsel %vm1952, %v1433, 0.0
      %v1981 = vadd.f32 %v1979, %v1980
      %v1982 = vsel %vm1952, %v1436, 0.0
      %v1983 = vadd.f32 %v1981, %v1982
      %v1984 = vsel %vm1952, %v1441, 0.0
      %v1985 = vadd.f32 %v1983, %v1984
      %v1986 = vsel %vm1952, %v1444, 0.0
      %v1987 = vadd.f32 %v1985, %v1986
      %v1988 = vsel %vm1952, %v1449, 0.0
      %v1989 = vadd.f32 %v1987, %v1988
      %v1990 = vsel %vm1952, %v1452, 0.0
      %v1991 = vadd.f32 %v1989, %v1990
      %v1992 = vsel %vm1952, %v1457, 0.0
      %v1993 = vadd.f32 %v1991, %v1992
      %v1994 = vsel %vm1952, %v1460, 0.0
      %v1995 = vadd.f32 %v1993, %v1994
      %v1996 = vsel %vm1952, %v1465, 0.0
      %v1997 = vadd.f32 %v1995, %v1996
      %v1998 = vsel %vm1952, %v1468, 0.0
      %v1999 = vadd.f32 %v1997, %v1998
      %v2000 = vsel %vm1952, %v1473, 0.0
      %v2001 = vadd.f32 %v1999, %v2000
      %v2002 = vsel %vm1952, %v1476, 0.0
      %v2003 = vadd.f32 %v2001, %v2002
      %v2004 = vsel %vm1952, %v1481, 0.0
      %v2005 = vadd.f32 %v2003, %v2004
      %v2006 = vsel %vm1952, %v1484, 0.0
      %v2007 = vadd.f32 %v2005, %v2006
      %v2008 = vsel %vm1952, %v1489, 0.0
      %v2009 = vadd.f32 %v2007, %v2008
      %v2010 = vsel %vm1952, %v1492, 0.0
      %v2011 = vadd.f32 %v2009, %v2010
      %v2012 = vsel %vm1952, %v1497, 0.0
      %v2013 = vadd.f32 %v2011, %v2012
      %v2014 = vsel %vm1952, %v1500, 0.0
      %v2015 = vadd.f32 %v2013, %v2014
      %v2016 = vsel %vm1952, %v1505, 0.0
      %v2017 = vadd.f32 %v2015, %v2016
      %v2018 = vsel %vm1952, %v1508, 0.0
      %v2019 = vadd.f32 %v2017, %v2018
      %v2020 = vsel %vm1952, %v1513, 0.0
      %v2021 = vadd.f32 %v2019, %v2020
      %v2022 = vsel %vm1952, %v1516, 0.0
      %v2023 = vadd.f32 %v2021, %v2022
      %v2024 = vsel %vm1952, %v1521, 0.0
      %v2025 = vadd.f32 %v2023, %v2024
      %v2026 = vsel %vm1952, %v1524, 0.0
      %v2027 = vadd.f32 %v2025, %v2026
      %v2028 = vsel %vm1952, %v1529, 0.0
      %v2029 = vadd.f32 %v2027, %v2028
      %v2030 = vsel %vm1952, %v1532, 0.0
      %v2031 = vadd.f32 %v2029, %v2030
      %v2032 = vsel %vm1952, %v1537, 0.0
      %v2033 = vadd.f32 %v2031, %v2032
      %v2034 = vsel %vm1952, %v1540, 0.0
      %v2035 = vadd.f32 %v2033, %v2034
      %v2036 = vsel %vm1952, %v1545, 0.0
      %v2037 = vadd.f32 %v2035, %v2036
      %v2038 = vsel %vm1952, %v1548, 0.0
      %v2039 = vadd.f32 %v2037, %v2038
      %v2040 = vsel %vm1952, %v1553, 0.0
      %v2041 = vadd.f32 %v2039, %v2040
      %v2042 = vsel %vm1952, %v1556, 0.0
      %v2043 = vadd.f32 %v2041, %v2042
      %v2044 = vsel %vm1952, %v1561, 0.0
      %v2045 = vadd.f32 %v2043, %v2044
      %v2046 = vsel %vm1952, %v1564, 0.0
      %v2047 = vadd.f32 %v2045, %v2046
      %v2048 = vsel %vm1952, %v1569, 0.0
      %v2049 = vadd.f32 %v2047, %v2048
      %v2050 = vsel %vm1952, %v1572, 0.0
      %v2051 = vadd.f32 %v2049, %v2050
      %v2052 = vsel %vm1952, %v1577, 0.0
      %v2053 = vadd.f32 %v2051, %v2052
      %v2054 = vsel %vm1952, %v1580, 0.0
      %v2055 = vadd.f32 %v2053, %v2054
      %v2056 = vsel %vm1952, %v1585, 0.0
      %v2057 = vadd.f32 %v2055, %v2056
      %v2058 = vsel %vm1952, %v1588, 0.0
      %v2059 = vadd.f32 %v2057, %v2058
      %v2060 = vsel %vm1952, %v1593, 0.0
      %v2061 = vadd.f32 %v2059, %v2060
      %v2062 = vsel %vm1952, %v1596, 0.0
      %v2063 = vadd.f32 %v2061, %v2062
      %v2064 = vsel %vm1952, %v1601, 0.0
      %v2065 = vadd.f32 %v2063, %v2064
      %v2066 = vsel %vm1952, %v1604, 0.0
      %v2067 = vadd.f32 %v2065, %v2066
      %v2068 = vsel %vm1952, %v1609, 0.0
      %v2069 = vadd.f32 %v2067, %v2068
      %v2070 = vsel %vm1952, %v1612, 0.0
      %v2071 = vadd.f32 %v2069, %v2070
      %v2072 = vsel %vm1952, %v1617, 0.0
      %v2073 = vadd.f32 %v2071, %v2072
      %v2074 = vsel %vm1952, %v1620, 0.0
      %v2075 = vadd.f32 %v2073, %v2074
      %v2076 = vsel %vm1952, %v1625, 0.0
      %v2077 = vadd.f32 %v2075, %v2076
      %v2078 = vsel %vm1952, %v1628, 0.0
      %v2079 = vadd.f32 %v2077, %v2078
      %v2080 = vrot.slane %v2079, 4
      %v2081 = vadd.f32 %v2079, %v2080
      %v2082 = vrot.slane %v2081, 2
      %v2083 = vadd.f32 %v2081, %v2082
      %v2084 = vrot.slane %v2083, 1
      %v2085 = vadd.f32 %v2083, %v2084
      %vm2086 = vcmask 24576
      %2087 = vst.msk [vmem:[%s290] sm:$0x1] %vm2086, %v2085
      %v2088 = vmul.f32 %v1377, %v1377
      %v2089 = vmul.f32 %v1380, %v1380
      %v2090 = vmul.f32 %v1385, %v1385
      %v2091 = vmul.f32 %v1388, %v1388
      %v2092 = vmul.f32 %v1393, %v1393
      %v2093 = vmul.f32 %v1396, %v1396
      %v2094 = vmul.f32 %v1401, %v1401
      %v2095 = vmul.f32 %v1404, %v1404
      %v2096 = vmul.f32 %v1409, %v1409
      %v2097 = vmul.f32 %v1412, %v1412
      %v2098 = vmul.f32 %v1417, %v1417
      %v2099 = vmul.f32 %v1420, %v1420
      %v2100 = vmul.f32 %v1425, %v1425
      %v2101 = vmul.f32 %v1428, %v1428
      %v2102 = vmul.f32 %v1433, %v1433
      %v2103 = vmul.f32 %v1436, %v1436
      %v2104 = vmul.f32 %v1441, %v1441
      %v2105 = vmul.f32 %v1444, %v1444
      %v2106 = vmul.f32 %v1449, %v1449
      %v2107 = vmul.f32 %v1452, %v1452
      %v2108 = vmul.f32 %v1457, %v1457
      %v2109 = vmul.f32 %v1460, %v1460
      %v2110 = vmul.f32 %v1465, %v1465
      %v2111 = vmul.f32 %v1468, %v1468
      %v2112 = vmul.f32 %v1473, %v1473
      %v2113 = vmul.f32 %v1476, %v1476
      %v2114 = vmul.f32 %v1481, %v1481
      %v2115 = vmul.f32 %v1484, %v1484
      %v2116 = vmul.f32 %v1489, %v1489
      %v2117 = vmul.f32 %v1492, %v1492
      %v2118 = vmul.f32 %v1497, %v1497
      %v2119 = vmul.f32 %v1500, %v1500
      %v2120 = vmul.f32 %v1505, %v1505
      %v2121 = vmul.f32 %v1508, %v1508
      %v2122 = vmul.f32 %v1513, %v1513
      %v2123 = vmul.f32 %v1516, %v1516
      %v2124 = vmul.f32 %v1521, %v1521
      %v2125 = vmul.f32 %v1524, %v1524
      %v2126 = vmul.f32 %v1529, %v1529
      %v2127 = vmul.f32 %v1532, %v1532
      %v2128 = vmul.f32 %v1537, %v1537
      %v2129 = vmul.f32 %v1540, %v1540
      %v2130 = vmul.f32 %v1545, %v1545
      %v2131 = vmul.f32 %v1548, %v1548
      %v2132 = vmul.f32 %v1553, %v1553
      %v2133 = vmul.f32 %v1556, %v1556
      %v2134 = vmul.f32 %v1561, %v1561
      %v2135 = vmul.f32 %v1564, %v1564
      %v2136 = vmul.f32 %v1569, %v1569
      %v2137 = vmul.f32 %v1572, %v1572
      %v2138 = vmul.f32 %v1577, %v1577
      %v2139 = vmul.f32 %v1580, %v1580
      %v2140 = vmul.f32 %v1585, %v1585
      %v2141 = vmul.f32 %v1588, %v1588
      %v2142 = vmul.f32 %v1593, %v1593
      %v2143 = vmul.f32 %v1596, %v1596
      %v2144 = vmul.f32 %v1601, %v1601
      %v2145 = vmul.f32 %v1604, %v1604
      %v2146 = vmul.f32 %v1609, %v1609
      %v2147 = vmul.f32 %v1612, %v1612
      %v2148 = vmul.f32 %v1617, %v1617
      %v2149 = vmul.f32 %v1620, %v1620
      %v2150 = vmul.f32 %v1625, %v1625
      %v2151 = vmul.f32 %v1628, %v1628
      %v2152 = vsel %vm1952, %v2088, 0.0
      %v2153 = vsel %vm1952, %v2089, 0.0
      %v2154 = vadd.f32 %v2152, %v2153
      %v2155 = vsel %vm1952, %v2090, 0.0
      %v2156 = vadd.f32 %v2154, %v2155
      %v2157 = vsel %vm1952, %v2091, 0.0
      %v2158 = vadd.f32 %v2156, %v2157
      %v2159 = vsel %vm1952, %v2092, 0.0
      %v2160 = vadd.f32 %v2158, %v2159
      %v2161 = vsel %vm1952, %v2093, 0.0
      %v2162 = vadd.f32 %v2160, %v2161
      %v2163 = vsel %vm1952, %v2094, 0.0
      %v2164 = vadd.f32 %v2162, %v2163
      %v2165 = vsel %vm1952, %v2095, 0.0
      %v2166 = vadd.f32 %v2164, %v2165
      %v2167 = vsel %vm1952, %v2096, 0.0
      %v2168 = vadd.f32 %v2166, %v2167
      %v2169 = vsel %vm1952, %v2097, 0.0
      %v2170 = vadd.f32 %v2168, %v2169
      %v2171 = vsel %vm1952, %v2098, 0.0
      %v2172 = vadd.f32 %v2170, %v2171
      %v2173 = vsel %vm1952, %v2099, 0.0
      %v2174 = vadd.f32 %v2172, %v2173
      %v2175 = vsel %vm1952, %v2100, 0.0
      %v2176 = vadd.f32 %v2174, %v2175
      %v2177 = vsel %vm1952, %v2101, 0.0
      %v2178 = vadd.f32 %v2176, %v2177
      %v2179 = vsel %vm1952, %v2102, 0.0
      %v2180 = vadd.f32 %v2178, %v2179
      %v2181 = vsel %vm1952, %v2103, 0.0
      %v2182 = vadd.f32 %v2180, %v2181
      %v2183 = vsel %vm1952, %v2104, 0.0
      %v2184 = vadd.f32 %v2182, %v2183
      %v2185 = vsel %vm1952, %v2105, 0.0
      %v2186 = vadd.f32 %v2184, %v2185
      %v2187 = vsel %vm1952, %v2106, 0.0
      %v2188 = vadd.f32 %v2186, %v2187
      %v2189 = vsel %vm1952, %v2107, 0.0
      %v2190 = vadd.f32 %v2188, %v2189
      %v2191 = vsel %vm1952, %v2108, 0.0
      %v2192 = vadd.f32 %v2190, %v2191
      %v2193 = vsel %vm1952, %v2109, 0.0
      %v2194 = vadd.f32 %v2192, %v2193
      %v2195 = vsel %vm1952, %v2110, 0.0
      %v2196 = vadd.f32 %v2194, %v2195
      %v2197 = vsel %vm1952, %v2111, 0.0
      %v2198 = vadd.f32 %v2196, %v2197
      %v2199 = vsel %vm1952, %v2112, 0.0
      %v2200 = vadd.f32 %v2198, %v2199
      %v2201 = vsel %vm1952, %v2113, 0.0
      %v2202 = vadd.f32 %v2200, %v2201
      %v2203 = vsel %vm1952, %v2114, 0.0
      %v2204 = vadd.f32 %v2202, %v2203
      %v2205 = vsel %vm1952, %v2115, 0.0
      %v2206 = vadd.f32 %v2204, %v2205
      %v2207 = vsel %vm1952, %v2116, 0.0
      %v2208 = vadd.f32 %v2206, %v2207
      %v2209 = vsel %vm1952, %v2117, 0.0
      %v2210 = vadd.f32 %v2208, %v2209
      %v2211 = vsel %vm1952, %v2118, 0.0
      %v2212 = vadd.f32 %v2210, %v2211
      %v2213 = vsel %vm1952, %v2119, 0.0
      %v2214 = vadd.f32 %v2212, %v2213
      %v2215 = vsel %vm1952, %v2120, 0.0
      %v2216 = vadd.f32 %v2214, %v2215
      %v2217 = vsel %vm1952, %v2121, 0.0
      %v2218 = vadd.f32 %v2216, %v2217
      %v2219 = vsel %vm1952, %v2122, 0.0
      %v2220 = vadd.f32 %v2218, %v2219
      %v2221 = vsel %vm1952, %v2123, 0.0
      %v2222 = vadd.f32 %v2220, %v2221
      %v2223 = vsel %vm1952, %v2124, 0.0
      %v2224 = vadd.f32 %v2222, %v2223
      %v2225 = vsel %vm1952, %v2125, 0.0
      %v2226 = vadd.f32 %v2224, %v2225
      %v2227 = vsel %vm1952, %v2126, 0.0
      %v2228 = vadd.f32 %v2226, %v2227
      %v2229 = vsel %vm1952, %v2127, 0.0
      %v2230 = vadd.f32 %v2228, %v2229
      %v2231 = vsel %vm1952, %v2128, 0.0
      %v2232 = vadd.f32 %v2230, %v2231
      %v2233 = vsel %vm1952, %v2129, 0.0
      %v2234 = vadd.f32 %v2232, %v2233
      %v2235 = vsel %vm1952, %v2130, 0.0
      %v2236 = vadd.f32 %v2234, %v2235
      %v2237 = vsel %vm1952, %v2131, 0.0
      %v2238 = vadd.f32 %v2236, %v2237
      %v2239 = vsel %vm1952, %v2132, 0.0
      %v2240 = vadd.f32 %v2238, %v2239
      %v2241 = vsel %vm1952, %v2133, 0.0
      %v2242 = vadd.f32 %v2240, %v2241
      %v2243 = vsel %vm1952, %v2134, 0.0
      %v2244 = vadd.f32 %v2242, %v2243
      %v2245 = vsel %vm1952, %v2135, 0.0
      %v2246 = vadd.f32 %v2244, %v2245
      %v2247 = vsel %vm1952, %v2136, 0.0
      %v2248 = vadd.f32 %v2246, %v2247
      %v2249 = vsel %vm1952, %v2137, 0.0
      %v2250 = vadd.f32 %v2248, %v2249
      %v2251 = vsel %vm1952, %v2138, 0.0
      %v2252 = vadd.f32 %v2250, %v2251
      %v2253 = vsel %vm1952, %v2139, 0.0
      %v2254 = vadd.f32 %v2252, %v2253
      %v2255 = vsel %vm1952, %v2140, 0.0
      %v2256 = vadd.f32 %v2254, %v2255
      %v2257 = vsel %vm1952, %v2141, 0.0
      %v2258 = vadd.f32 %v2256, %v2257
      %v2259 = vsel %vm1952, %v2142, 0.0
      %v2260 = vadd.f32 %v2258, %v2259
      %v2261 = vsel %vm1952, %v2143, 0.0
      %v2262 = vadd.f32 %v2260, %v2261
      %v2263 = vsel %vm1952, %v2144, 0.0
      %v2264 = vadd.f32 %v2262, %v2263
      %v2265 = vsel %vm1952, %v2145, 0.0
      %v2266 = vadd.f32 %v2264, %v2265
      %v2267 = vsel %vm1952, %v2146, 0.0
      %v2268 = vadd.f32 %v2266, %v2267
      %v2269 = vsel %vm1952, %v2147, 0.0
      %v2270 = vadd.f32 %v2268, %v2269
      %v2271 = vsel %vm1952, %v2148, 0.0
      %v2272 = vadd.f32 %v2270, %v2271
      %v2273 = vsel %vm1952, %v2149, 0.0
      %v2274 = vadd.f32 %v2272, %v2273
      %v2275 = vsel %vm1952, %v2150, 0.0
      %v2276 = vadd.f32 %v2274, %v2275
      %v2277 = vsel %vm1952, %v2151, 0.0
      %v2278 = vadd.f32 %v2276, %v2277
      %v2279 = vrot.slane %v2278, 4
      %v2280 = vadd.f32 %v2278, %v2279
      %v2281 = vrot.slane %v2280, 2
      %v2282 = vadd.f32 %v2280, %v2281
      %v2283 = vrot.slane %v2282, 1
      %v2284 = vadd.f32 %v2282, %v2283
      %2285 = vst.msk [vmem:[%s293] sm:$0x1] %vm2086, %v2284
      %s2286 = smul.u32 64, %s18
      %p2287 = scmp.lt.s32.totalorder %s2286, 127
      %s2288 = scalar_select %p2287, %s2286, 127
      %s2289 = smul.addr %s2288, 4
      %s2290 = scalar_lea.vmem %s4, %s2289
      %p2291 = scmp.lt.s32.totalorder %s18, 1
      %s2292 = scalar_select %p2291, %s18, 1
      %s2293 = scalar_lea.vmem %s5, %s2292
      %p2294 = scmp.lt.s32.totalorder %s18, 1
      %s2295 = scalar_select %p2294, %s18, 1
      %s2296 = scalar_lea.vmem %s6, %s2295
      // Predicated region
      $region37: #{deep_gcn_forward.29} parent=35 // pred_check
        %p2297 = pneg %p130
      $region38: #{deep_gcn_forward.29} parent=35 // pred_check_branch
        %2299 = sbr.rel (%p2297) target = $region40
      $region39: #{deep_gcn_forward.29} parent=35 // pred_region
        %s2300 = smul.u32 64, %s18
      $region40: #{deep_gcn_forward.29} parent=35 // pred_fallthru
        _
      // Predicated region
      $region41: #{deep_gcn_forward.29} parent=35 // pred_check
        %p2301 = pneg %p156
      $region42: #{deep_gcn_forward.29} parent=35 // pred_check_branch
        %2303 = sbr.rel (%p2301) target = $region44
      $region43: #{deep_gcn_forward.29} parent=35 // pred_region
        _
      $region44: #{deep_gcn_forward.29} parent=35 // pred_fallthru
        _
      // Predicated region
      $region45: #{deep_gcn_forward.29} parent=35 // pred_check
        %p2304 = pneg %p182
      $region46: #{deep_gcn_forward.29} parent=35 // pred_check_branch
        %2306 = sbr.rel (%p2304) target = $region48
      $region47: #{deep_gcn_forward.29} parent=35 // pred_region
        _
      $region48: #{deep_gcn_forward.29} parent=35 // pred_fallthru
        _
    $region36: #{deep_gcn_forward.29} parent=5 // pred_fallthru
      _
    %p2307 = scmp.le.s32.totalorder 2, %s13
    // Predicated region
    $region49: #{deep_gcn_forward.29} parent=5 // pred_check
      %p2308 = pneg %p2307
    $region50: #{deep_gcn_forward.29} parent=5 // pred_check_branch
      %2310 = sbr.rel (%p2308) target = $region52
    $region51: #{deep_gcn_forward.29} parent=5 // pred_region
      %s2311 = ssub.s32 %s13, 2
      // Predicated region
      $region53: #{deep_gcn_forward.29} parent=51 // pred_check
        %p2312 = pneg %p136
      $region54: #{deep_gcn_forward.29} parent=51 // pred_check_branch
        %2314 = sbr.rel (%p2312) target = $region56
      $region55: #{deep_gcn_forward.29} parent=51 // pred_region
        %s2315 = smul.u32 64, %s19
        %p2316 = scmp.lt.s32.totalorder %s2315, 127
        %s2317 = scalar_select %p2316, %s2315, 127
        %s2318 = smul.addr %s2317, 4
        %s2319 = scalar_lea.vmem %s4, %s2318
      $region56: #{deep_gcn_forward.29} parent=51 // pred_fallthru
        _
      // Predicated region
      $region57: #{deep_gcn_forward.29} parent=51 // pred_check
        %p2320 = pneg %p162
      $region58: #{deep_gcn_forward.29} parent=51 // pred_check_branch
        %2322 = sbr.rel (%p2320) target = $region60
      $region59: #{deep_gcn_forward.29} parent=51 // pred_region
        %p2323 = scmp.lt.s32.totalorder %s19, 1
        %s2324 = scalar_select %p2323, %s19, 1
        %s2325 = scalar_lea.vmem %s5, %s2324
      $region60: #{deep_gcn_forward.29} parent=51 // pred_fallthru
        _
      // Predicated region
      $region61: #{deep_gcn_forward.29} parent=51 // pred_check
        %p2326 = pneg %p188
      $region62: #{deep_gcn_forward.29} parent=51 // pred_check_branch
        %2328 = sbr.rel (%p2326) target = $region64
      $region63: #{deep_gcn_forward.29} parent=51 // pred_region
        %p2329 = scmp.lt.s32.totalorder %s19, 1
        %s2330 = scalar_select %p2329, %s19, 1
        %s2331 = scalar_lea.vmem %s6, %s2330
      $region64: #{deep_gcn_forward.29} parent=51 // pred_fallthru
        _
    $region52: #{deep_gcn_forward.29} parent=5 // pred_fallthru
      _
  $region6: #{deep_gcn_forward.29} parent=0 // loop_footer
    %s17 = sadd.s32 1, %s13
  $region7: #{deep_gcn_forward.29} parent=0 // loop_footer_branch
    %12 = sbr.rel target = $region3
  $region8: #{deep_gcn_forward.29} parent=0 // loop_exit
    _

// kernel: deep_gcn_forward.30
$region0: #{deep_gcn_forward.30}
  #allocation0 [shape = 'u32[]', space=smem, size = 0x4, offset = 0x4, fixed_abs, tag = 'smem constant byte address 0x4 - core index']
  #allocation1 [shape = 'u32[144,128]{1,0:T(1,128)}', space=vmem, size = 0x12000, scoped, tag = 'internal scratch']
  %s0 = inlined_call_operand.vmem [shape: bf16[32,128], index: 0, kind: input, shape index: {}]
  %s1 = inlined_call_operand.vmem [shape: f32[1,128], index: 1, kind: input, shape index: {}]
  %s2 = inlined_call_operand.vmem [shape: f32[1,128], index: 2, kind: input, shape index: {}]
  %s3 = inlined_call_operand.vmem [shape: bf16[32,128], index: 3, kind: output, shape index: {}]
  %s4 = sld [smem:[#allocation0]]
  $region22: #{deep_gcn_forward.30} parent=0
    _
  %s6 = ssub.s32 1, %s4
  %s7 = scalar_select 0, %s6, %s4
  // Predicated region
  $region2: #{deep_gcn_forward.30} parent=0 // pred_check
    _
  $region3: #{deep_gcn_forward.30} parent=0 // pred_check_branch
    %9 = sbr.rel (0) target = $region5
  $region4: #{deep_gcn_forward.30} parent=0 // pred_region
    _
  $region5: #{deep_gcn_forward.30} parent=0 // pred_fallthru
    _
  // Predicated region
  $region6: #{deep_gcn_forward.30} parent=0 // pred_check
    _
  $region7: #{deep_gcn_forward.30} parent=0 // pred_check_branch
    %11 = sbr.rel (0) target = $region9
  $region8: #{deep_gcn_forward.30} parent=0 // pred_region
    _
  $region9: #{deep_gcn_forward.30} parent=0 // pred_fallthru
    _
  // Predicated region
  $region10: #{deep_gcn_forward.30} parent=0 // pred_check
    _
  $region11: #{deep_gcn_forward.30} parent=0 // pred_check_branch
    %13 = sbr.rel (0) target = $region13
  $region12: #{deep_gcn_forward.30} parent=0 // pred_region
    _
  $region13: #{deep_gcn_forward.30} parent=0 // pred_fallthru
    _
  %v14 = vld [vmem:[%s0] sm:$0xf]
  %v15 = vld [vmem:[%s0 + $0x4] sm:$0xf]
  %v16 = vld [vmem:[%s0 + $0x8] sm:$0xf]
  %v17 = vld [vmem:[%s0 + $0xc] sm:$0xf]
  %v18 = vunpack.c.l.bf16 %v14
  %v19 = vunpack.c.l.bf16 %v15
  %v20 = vunpack.c.l.bf16 %v16
  %v21 = vunpack.c.l.bf16 %v17
  %v22 = vld [vmem:[%s1] sm:$0x1]
  %v24 = vlaneseq
  %v25 = vshrl.u32 %v24, 7
  %v26 = vsub.s32 0, %v25
  %v27 = vrot.slane %v22, %v26
  %v29 = vmul.f32 %v18, %v27
  %v30 = vmul.f32 %v19, %v27
  %v31 = vmul.f32 %v20, %v27
  %v32 = vmul.f32 %v21, %v27
  %v33 = vld [vmem:[%s2] sm:$0x1]
  %v35 = vlaneseq
  %v36 = vshrl.u32 %v35, 7
  %v37 = vsub.s32 0, %v36
  %v38 = vrot.slane %v33, %v37
  %v40 = vadd.f32 %v29, %v38
  %v41 = vadd.f32 %v30, %v38
  %v42 = vadd.f32 %v31, %v38
  %v43 = vadd.f32 %v32, %v38
  %v44 = vmax.f32 %v40, 0.0
  %v45 = vmax.f32 %v41, 0.0
  %v46 = vmax.f32 %v42, 0.0
  %v47 = vmax.f32 %v43, 0.0
  %v48 = vpack.c.bf16 %v45, %v44
  %v49 = vpack.c.bf16 %v47, %v46
  %v52 = vunpack.c.l.b16 %v48
  %v53 = vunpack.c.h.b16 %v48
  %v54 = vunpack.c.l.b16 %v49
  %v55 = vunpack.c.h.b16 %v49
  %v56 = vpack.c.b16 %v52, %v52
  %v57 = vpack.c.b16 %v53, %v53
  %v58 = vpack.c.b16 %v54, %v54
  %v59 = vpack.c.b16 %v55, %v55
  %64 = vst [vmem:[%s3] sm:$0xf] %v56
  %65 = vst [vmem:[%s3 + $0x4] sm:$0xf] %v57
  %66 = vst [vmem:[%s3 + $0x8] sm:$0xf] %v58
  %67 = vst [vmem:[%s3 + $0xc] sm:$0xf] %v59
  // Predicated region
  $region14: #{deep_gcn_forward.30} parent=0 // pred_check
    _
  $region15: #{deep_gcn_forward.30} parent=0 // pred_check_branch
    %69 = sbr.rel (0) target = $region17
  $region16: #{deep_gcn_forward.30} parent=0 // pred_region
    _
  $region17: #{deep_gcn_forward.30} parent=0 // pred_fallthru
    _
  // Predicated region
  $region18: #{deep_gcn_forward.30} parent=0 // pred_check
    _
  $region19: #{deep_gcn_forward.30} parent=0 // pred_check_branch
    %71 = sbr.rel (0) target = $region21
  $region20: #{deep_gcn_forward.30} parent=0 // pred_region
    _
  $region21: #{deep_gcn_forward.30} parent=0 // pred_fallthru
    _

// kernel: deep_gcn_forward.31
$region0: #{deep_gcn_forward.31}
  #allocation0 [shape = 'u32[]', space=smem, size = 0x4, offset = 0x4, fixed_abs, tag = 'smem constant byte address 0x4 - core index']
  #allocation1 [shape = 'u32[144,128]{1,0:T(1,128)}', space=vmem, size = 0x12000, scoped, tag = 'internal scratch']
  %s0 = inlined_call_operand.vmem [shape: bf16[1,1024,4], index: 0, kind: input, shape index: {}]
  %s1 = inlined_call_operand.vmem [shape: bf16[1,4,13], index: 1, kind: input, shape index: {}]
  %s2 = inlined_call_operand.vmem [shape: f32[1,13], index: 2, kind: input, shape index: {}]
  %s3 = inlined_call_operand.hbm [shape: f32[1,1024,13], index: 3, kind: output, shape index: {}]
  %s4 = sld [smem:[#allocation0]]
  $region45: #{deep_gcn_forward.31} parent=0
    _
  %s6 = ssub.s32 1, %s4
  %s7 = scalar_select 0, %s6, %s4
  $region1: #{deep_gcn_forward.31} parent=0
    #allocation2 [shape = 'u8[524288]{0}', space=vmem, size = 0x80000, scoped, tag = 'output window, operand 0']
    #allocation3 [shape = 's32[2]{0}', space=sflag, size = 0x8, scoped, tag = 'scoped memory for deep_gcn_forward.31']
    %8 = vsyncpa [#allocation3], 0
    %s9 = scalar_lea.sflag [#allocation3], 1
    %10 = vsyncpa %s9, 0
    loop: start=0, step=1, limit=4
    $region2: #{deep_gcn_forward.31} parent=1 // loop_pre_header
      _
    $region3: #{deep_gcn_forward.31} parent=1 // loop_header
      %s12 = sphi 0, %s16
      %p13 = scmp.ge.s32.totalorder %s12, 4
      %s19 = sphi 0, %s31
      %s20 = sphi 0, %s27
      %s21 = sphi 0, %s19
      %s22 = sphi 0, %s20
      %s23 = sphi 0, %s21
      %s24 = sphi 0, %s22
      %s36 = sphi 0, %s38
      %s39 = sphi 0, %s36
      %s40 = sphi 0, %s39
      %s56 = sphi 0, %s40
      %s62 = sphi 0, %s64
      %s65 = sphi 0, %s62
      %s66 = sphi 0, %s65
      %s82 = sphi 0, %s66
      %s86 = sphi 0, %s86
      %s88 = sphi 0, %s86
      %s89 = sphi 0, %s88
      %s103 = sphi 0, %s89
      %s111 = sphi 0, %s113
      %s114 = sphi 0, %s111
      %s115 = sphi 0, %s114
      %s131 = sphi 0, %s115
    $region4: #{deep_gcn_forward.31} parent=1 // loop_header_branch
      %15 = sbr.rel (%p13) target = $region8
    $region5: #{deep_gcn_forward.31} parent=1 // loop_body
      %s17 = ssub.s32 %s12, 1
      %s18 = ssub.s32 %s12, 2
      %s25 = sadd.s32 1, %s20
      %p26 = scmp.ge.s32.totalorder %s25, 2
      %s27 = scalar_select %p26, 0, %s25
      %s28 = sadd.s32 1, %s19
      %s29 = scalar_select %p26, %s28, %s19
      %p30 = scmp.ge.s32.totalorder %s29, 1
      %s31 = scalar_select %p30, 0, %s29
      %s32 = ssub.s32 %s19, %s31
      %s33 = ssub.s32 %s20, %s27
      %s34 = sor.u32 %s32, %s33
      %p35 = scmp.eq.s32.totalorder %s34, 0
      %s37 = sadd.s32 %s36, 1
      %s38 = scalar_select %p35, %s36, %s37
      %p41 = pneg %p35
      %p42 = scmp.eq.s32.totalorder %s12, 1
      %p43 = por %p41, %p42
      %p44 = scmp.ne.s32.totalorder %s36, %s39
      %p45 = scmp.eq.s32.totalorder %s12, 0
      %p46 = por %p44, %p45
      %p47 = scmp.ne.s32.totalorder %s36, %s39
      %p48 = scmp.eq.s32.totalorder %s17, 1
      %p49 = por %p47, %p48
      %p50 = scmp.ne.s32.totalorder %s39, %s40
      %p51 = scmp.eq.s32.totalorder %s17, 0
      %p52 = por %p50, %p51
      %p53 = scmp.ne.s32.totalorder %s39, %s40
      %p54 = scmp.eq.s32.totalorder %s18, 1
      %p55 = por %p53, %p54
      %p57 = scmp.ne.s32.totalorder %s40, %s56
      %p58 = scmp.eq.s32.totalorder %s18, 0
      %p59 = por %p57, %p58
      %s60 = ssub.s32 %s19, %s31
      %p61 = scmp.eq.s32.totalorder %s60, 0
      %s63 = sadd.s32 %s62, 1
      %s64 = scalar_select %p61, %s62, %s63
      %p67 = pneg %p61
      %p68 = scmp.eq.s32.totalorder %s12, 1
      %p69 = por %p67, %p68
      %p70 = scmp.ne.s32.totalorder %s62, %s65
      %p71 = scmp.eq.s32.totalorder %s12, 0
      %p72 = por %p70, %p71
      %p73 = scmp.ne.s32.totalorder %s62, %s65
      %p74 = scmp.eq.s32.totalorder %s17, 1
      %p75 = por %p73, %p74
      %p76 = scmp.ne.s32.totalorder %s65, %s66
      %p77 = scmp.eq.s32.totalorder %s17, 0
      %p78 = por %p76, %p77
      %p79 = scmp.ne.s32.totalorder %s65, %s66
      %p80 = scmp.eq.s32.totalorder %s18, 1
      %p81 = por %p79, %p80
      %p83 = scmp.ne.s32.totalorder %s66, %s82
      %p84 = scmp.eq.s32.totalorder %s18, 0
      %p85 = por %p83, %p84
      %s87 = sadd.s32 %s86, 1
      %p90 = scmp.eq.s32.totalorder %s12, 1
      %p91 = scmp.ne.s32.totalorder %s86, %s88
      %p92 = scmp.eq.s32.totalorder %s12, 0
      %p93 = por %p91, %p92
      %p94 = scmp.ne.s32.totalorder %s86, %s88
      %p95 = scmp.eq.s32.totalorder %s17, 1
      %p96 = por %p94, %p95
      %p97 = scmp.ne.s32.totalorder %s88, %s89
      %p98 = scmp.eq.s32.totalorder %s17, 0
      %p99 = por %p97, %p98
      %p100 = scmp.ne.s32.totalorder %s88, %s89
      %p101 = scmp.eq.s32.totalorder %s18, 1
      %p102 = por %p100, %p101
      %p104 = scmp.ne.s32.totalorder %s89, %s103
      %p105 = scmp.eq.s32.totalorder %s18, 0
      %p106 = por %p104, %p105
      %s107 = ssub.s32 %s19, %s31
      %s108 = ssub.s32 %s20, %s27
      %s109 = sor.u32 %s107, %s108
      %p110 = scmp.eq.s32.totalorder %s109, 0
      %s112 = sadd.s32 %s111, 1
      %s113 = scalar_select %p110, %s111, %s112
      %p116 = pneg %p110
      %p117 = scmp.eq.s32.totalorder %s12, 1
      %p118 = por %p116, %p117
      %p119 = scmp.ne.s32.totalorder %s111, %s114
      %p120 = scmp.eq.s32.totalorder %s12, 0
      %p121 = por %p119, %p120
      %p122 = scmp.ne.s32.totalorder %s111, %s114
      %p123 = scmp.eq.s32.totalorder %s17, 1
      %p124 = por %p122, %p123
      %p125 = scmp.ne.s32.totalorder %s114, %s115
      %p126 = scmp.eq.s32.totalorder %s17, 0
      %p127 = por %p125, %p126
      %p128 = scmp.ne.s32.totalorder %s114, %s115
      %p129 = scmp.eq.s32.totalorder %s18, 1
      %p130 = por %p128, %p129
      %p132 = scmp.ne.s32.totalorder %s115, %s131
      %p133 = scmp.eq.s32.totalorder %s18, 0
      %p134 = por %p132, %p133
      %p135 = scmp.le.s32.totalorder 1, %s12
      %p136 = scmp.lt.s32.totalorder %s12, 3
      %p137 = pnand %p135, %p136
      %p138 = pneg %p137
      // Predicated region
      $region9: #{deep_gcn_forward.31} parent=5 // pred_check
        _
      $region10: #{deep_gcn_forward.31} parent=5 // pred_check_branch
        %140 = sbr.rel (%p137) target = $region12
      $region11: #{deep_gcn_forward.31} parent=5 // pred_region
        %s141 = ssub.s32 %s12, 1
        // Predicated region
        $region13: #{deep_gcn_forward.31} parent=11 // pred_check
          %p142 = pneg %p78
        $region14: #{deep_gcn_forward.31} parent=11 // pred_check_branch
          %144 = sbr.rel (%p142) target = $region16
        $region15: #{deep_gcn_forward.31} parent=11 // pred_region
          %p145 = scmp.lt.s32.totalorder %s21, 0
          %s146 = scalar_select %p145, %s21, 0
          %s147 = smul.addr %s146, 2
          %s148 = scalar_lea.vmem %s1, %s147
        $region16: #{deep_gcn_forward.31} parent=11 // pred_fallthru
          _
        // Predicated region
        $region17: #{deep_gcn_forward.31} parent=11 // pred_check
          %p149 = pneg %p99
        $region18: #{deep_gcn_forward.31} parent=11 // pred_check_branch
          %151 = sbr.rel (%p149) target = $region20
        $region19: #{deep_gcn_forward.31} parent=11 // pred_region
          _
        $region20: #{deep_gcn_forward.31} parent=11 // pred_fallthru
          _
      $region12: #{deep_gcn_forward.31} parent=5 // pred_fallthru
        _
      %p152 = scmp.lt.s32.totalorder %s12, 2
      // Predicated region
      $region21: #{deep_gcn_forward.31} parent=5 // pred_check
        %p153 = pneg %p152
      $region22: #{deep_gcn_forward.31} parent=5 // pred_check_branch
        %155 = sbr.rel (%p153) target = $region24
      $region23: #{deep_gcn_forward.31} parent=5 // pred_region
        // Predicated region
        $region25: #{deep_gcn_forward.31} parent=23 // pred_check
          %p156 = pneg %p46
        $region26: #{deep_gcn_forward.31} parent=23 // pred_check_branch
          %158 = sbr.rel (%p156) target = $region28
        $region27: #{deep_gcn_forward.31} parent=23 // pred_region
          %s159 = smul.u32 64, %s20
          %p160 = scmp.lt.s32.totalorder %s19, 0
          %s161 = scalar_select %p160, %s19, 0
          %p162 = scmp.lt.s32.totalorder %s159, 127
          %s163 = scalar_select %p162, %s159, 127
          %s164 = smul.addr %s161, 128
          %s165 = sadd.s32 %s163, %s164
          %s166 = smul.addr %s165, 4
          %s167 = scalar_lea.vmem %s0, %s166
          %s168 = smul.u32 64, %s20
        $region28: #{deep_gcn_forward.31} parent=23 // pred_fallthru
          _
      $region24: #{deep_gcn_forward.31} parent=5 // pred_fallthru
        _
      %p169 = scmp.le.s32.totalorder 1, %s12
      %p170 = scmp.lt.s32.totalorder %s12, 3
      %p171 = pnand %p169, %p170
      %p172 = pneg %p171
      // Predicated region
      $region29: #{deep_gcn_forward.31} parent=5 // pred_check
        _
      $region30: #{deep_gcn_forward.31} parent=5 // pred_check_branch
        %174 = sbr.rel (%p171) target = $region32
      $region31: #{deep_gcn_forward.31} parent=5 // pred_region
        %s175 = ssub.s32 %s12, 1
        %s176 = smul.u32 64, %s22
        %p177 = scmp.lt.s32.totalorder %s21, 0
        %s178 = scalar_select %p177, %s21, 0
        %p179 = scmp.lt.s32.totalorder %s176, 127
        %s180 = scalar_select %p179, %s176, 127
        %s181 = smul.addr %s178, 128
        %s182 = sadd.s32 %s180, %s181
        %s183 = smul.addr %s182, 4
        %s184 = scalar_lea.vmem %s0, %s183
        %p185 = pneg %p52
        %p186 = pneg %p49
        %p187 = scmp.lt.s32.totalorder %s21, 0
        %s188 = scalar_select %p187, %s21, 0
        %s189 = smul.addr %s188, 2
        %s190 = scalar_lea.vmem %s1, %s189
        %p191 = pneg %p78
        %p192 = pneg %p75
        %p193 = pneg %p99
        %p194 = pneg %p96
        %p195 = pneg %p127
        %p196 = pneg %p124
        %s197 = sand.u32 %s114, 1
        %s198 = scalar_lea.sflag [#allocation3], %s197
        %s199 = sand.u32 %s114, 1
        %s200 = smul.addr %s199, 512
        %s201 = scalar_lea.vmem [#allocation2], %s200
        %s202 = smul.u32 64, %s22
        %p203 = scmp.lt.s32.totalorder %s21, 0
        %s204 = scalar_select %p203, %s21, 0
        %p205 = scmp.lt.s32.totalorder %s202, 127
        %s206 = scalar_select %p205, %s202, 127
        %s207 = smul.addr %s204, 128
        %s208 = sadd.s32 %s206, %s207
        %s209 = smul.addr %s208, 4
        %s210 = scalar_lea.vmem %s0, %s209
        %s211 = smul.u32 64, %s22
        %p212 = scmp.lt.s32.totalorder %s21, 0
        %s213 = scalar_select %p212, %s21, 0
        %s214 = smul.addr %s213, 2
        %s215 = scalar_lea.vmem %s1, %s214
        %s216 = smul.u32 64, %s22
        %v218 = vld [vmem:[%s210] sm:$0xf]
        %v219 = vld [vmem:[%s210 + $0x4] sm:$0xf]
        %v220 = vld [vmem:[%s210 + $0x8] sm:$0xf]
        %v221 = vld [vmem:[%s210 + $0xc] sm:$0xf]
        %v222 = vld [vmem:[%s210 + $0x10] sm:$0xf]
        %v223 = vld [vmem:[%s210 + $0x14] sm:$0xf]
        %v224 = vld [vmem:[%s210 + $0x18] sm:$0xf]
        %v225 = vld [vmem:[%s210 + $0x1c] sm:$0xf]
        %v226 = vld [vmem:[%s210 + $0x20] sm:$0xf]
        %v227 = vld [vmem:[%s210 + $0x24] sm:$0xf]
        %v228 = vld [vmem:[%s210 + $0x28] sm:$0xf]
        %v229 = vld [vmem:[%s210 + $0x2c] sm:$0xf]
        %v230 = vld [vmem:[%s210 + $0x30] sm:$0xf]
        %v231 = vld [vmem:[%s210 + $0x34] sm:$0xf]
        %v232 = vld [vmem:[%s210 + $0x38] sm:$0xf]
        %v233 = vld [vmem:[%s210 + $0x3c] sm:$0xf]
        %v234 = vld [vmem:[%s210 + $0x40] sm:$0xf]
        %v235 = vld [vmem:[%s210 + $0x44] sm:$0xf]
        %v236 = vld [vmem:[%s210 + $0x48] sm:$0xf]
        %v237 = vld [vmem:[%s210 + $0x4c] sm:$0xf]
        %v238 = vld [vmem:[%s210 + $0x50] sm:$0xf]
        %v239 = vld [vmem:[%s210 + $0x54] sm:$0xf]
        %v240 = vld [vmem:[%s210 + $0x58] sm:$0xf]
        %v241 = vld [vmem:[%s210 + $0x5c] sm:$0xf]
        %v242 = vld [vmem:[%s210 + $0x60] sm:$0xf]
        %v243 = vld [vmem:[%s210 + $0x64] sm:$0xf]
        %v244 = vld [vmem:[%s210 + $0x68] sm:$0xf]
        %v245 = vld [vmem:[%s210 + $0x6c] sm:$0xf]
        %v246 = vld [vmem:[%s210 + $0x70] sm:$0xf]
        %v247 = vld [vmem:[%s210 + $0x74] sm:$0xf]
        %v248 = vld [vmem:[%s210 + $0x78] sm:$0xf]
        %v249 = vld [vmem:[%s210 + $0x7c] sm:$0xf]
        %v250 = vld [vmem:[%s210 + $0x80] sm:$0xf]
        %v251 = vld [vmem:[%s210 + $0x84] sm:$0xf]
        %v252 = vld [vmem:[%s210 + $0x88] sm:$0xf]
        %v253 = vld [vmem:[%s210 + $0x8c] sm:$0xf]
        %v254 = vld [vmem:[%s210 + $0x90] sm:$0xf]
        %v255 = vld [vmem:[%s210 + $0x94] sm:$0xf]
        %v256 = vld [vmem:[%s210 + $0x98] sm:$0xf]
        %v257 = vld [vmem:[%s210 + $0x9c] sm:$0xf]
        %v258 = vld [vmem:[%s210 + $0xa0] sm:$0xf]
        %v259 = vld [vmem:[%s210 + $0xa4] sm:$0xf]
        %v260 = vld [vmem:[%s210 + $0xa8] sm:$0xf]
        %v261 = vld [vmem:[%s210 + $0xac] sm:$0xf]
        %v262 = vld [vmem:[%s210 + $0xb0] sm:$0xf]
        %v263 = vld [vmem:[%s210 + $0xb4] sm:$0xf]
        %v264 = vld [vmem:[%s210 + $0xb8] sm:$0xf]
        %v265 = vld [vmem:[%s210 + $0xbc] sm:$0xf]
        %v266 = vld [vmem:[%s210 + $0xc0] sm:$0xf]
        %v267 = vld [vmem:[%s210 + $0xc4] sm:$0xf]
        %v268 = vld [vmem:[%s210 + $0xc8] sm:$0xf]
        %v269 = vld [vmem:[%s210 + $0xcc] sm:$0xf]
        %v270 = vld [vmem:[%s210 + $0xd0] sm:$0xf]
        %v271 = vld [vmem:[%s210 + $0xd4] sm:$0xf]
        %v272 = vld [vmem:[%s210 + $0xd8] sm:$0xf]
        %v273 = vld [vmem:[%s210 + $0xdc] sm:$0xf]
        %v274 = vld [vmem:[%s210 + $0xe0] sm:$0xf]
        %v275 = vld [vmem:[%s210 + $0xe4] sm:$0xf]
        %v276 = vld [vmem:[%s210 + $0xe8] sm:$0xf]
        %v277 = vld [vmem:[%s210 + $0xec] sm:$0xf]
        %v278 = vld [vmem:[%s210 + $0xf0] sm:$0xf]
        %v279 = vld [vmem:[%s210 + $0xf4] sm:$0xf]
        %v280 = vld [vmem:[%s210 + $0xf8] sm:$0xf]
        %v281 = vld [vmem:[%s210 + $0xfc] sm:$0xf]
        %v282 = vld [vmem:[%s215] sm:$0x3]
        %v283 = vld [vmem:[%s2] sm:$0x1]
        %v285 = vlaneseq
        %v286 = vshrl.u32 %v285, 7
        %v287 = vsub.s32 0, %v286
        %v288 = vrot.slane %v283, %v287
        %v354 = vunpack.c.l.b16 %v218
        %v355 = vunpack.c.l.b16 %v219
        %v356 = vunpack.c.l.b16 %v220
        %v357 = vunpack.c.l.b16 %v221
        %v358 = vunpack.c.l.b16 %v222
        %v359 = vunpack.c.l.b16 %v223
        %v360 = vunpack.c.l.b16 %v224
        %v361 = vunpack.c.l.b16 %v225
        %v362 = vunpack.c.l.b16 %v226
        %v363 = vunpack.c.l.b16 %v227
        %v364 = vunpack.c.l.b16 %v228
        %v365 = vunpack.c.l.b16 %v229
        %v366 = vunpack.c.l.b16 %v230
        %v367 = vunpack.c.l.b16 %v231
        %v368 = vunpack.c.l.b16 %v232
        %v369 = vunpack.c.l.b16 %v233
        %v370 = vunpack.c.l.b16 %v234
        %v371 = vunpack.c.l.b16 %v235
        %v372 = vunpack.c.l.b16 %v236
        %v373 = vunpack.c.l.b16 %v237
        %v374 = vunpack.c.l.b16 %v238
        %v375 = vunpack.c.l.b16 %v239
        %v376 = vunpack.c.l.b16 %v240
        %v377 = vunpack.c.l.b16 %v241
        %v378 = vunpack.c.l.b16 %v242
        %v379 = vunpack.c.l.b16 %v243
        %v380 = vunpack.c.l.b16 %v244
        %v381 = vunpack.c.l.b16 %v245
        %v382 = vunpack.c.l.b16 %v246
        %v383 = vunpack.c.l.b16 %v247
        %v384 = vunpack.c.l.b16 %v248
        %v385 = vunpack.c.l.b16 %v249
        %v386 = vunpack.c.l.b16 %v250
        %v387 = vunpack.c.l.b16 %v251
        %v388 = vunpack.c.l.b16 %v252
        %v389 = vunpack.c.l.b16 %v253
        %v390 = vunpack.c.l.b16 %v254
        %v391 = vunpack.c.l.b16 %v255
        %v392 = vunpack.c.l.b16 %v256
        %v393 = vunpack.c.l.b16 %v257
        %v394 = vunpack.c.l.b16 %v258
        %v395 = vunpack.c.l.b16 %v259
        %v396 = vunpack.c.l.b16 %v260
        %v397 = vunpack.c.l.b16 %v261
        %v398 = vunpack.c.l.b16 %v262
        %v399 = vunpack.c.l.b16 %v263
        %v400 = vunpack.c.l.b16 %v264
        %v401 = vunpack.c.l.b16 %v265
        %v402 = vunpack.c.l.b16 %v266
        %v403 = vunpack.c.l.b16 %v267
        %v404 = vunpack.c.l.b16 %v268
        %v405 = vunpack.c.l.b16 %v269
        %v406 = vunpack.c.l.b16 %v270
        %v407 = vunpack.c.l.b16 %v271
        %v408 = vunpack.c.l.b16 %v272
        %v409 = vunpack.c.l.b16 %v273
        %v410 = vunpack.c.l.b16 %v274
        %v411 = vunpack.c.l.b16 %v275
        %v412 = vunpack.c.l.b16 %v276
        %v413 = vunpack.c.l.b16 %v277
        %v414 = vunpack.c.l.b16 %v278
        %v415 = vunpack.c.l.b16 %v279
        %v416 = vunpack.c.l.b16 %v280
        %v417 = vunpack.c.l.b16 %v281
        %v418 = vpack.c.b16 %v355, %v354
        %v419 = vpack.c.b16 %v357, %v356
        %v420 = vpack.c.b16 %v359, %v358
        %v421 = vpack.c.b16 %v361, %v360
        %v422 = vpack.c.b16 %v363, %v362
        %v423 = vpack.c.b16 %v365, %v364
        %v424 = vpack.c.b16 %v367, %v366
        %v425 = vpack.c.b16 %v369, %v368
        %v426 = vpack.c.b16 %v371, %v370
        %v427 = vpack.c.b16 %v373, %v372
        %v428 = vpack.c.b16 %v375, %v374
        %v429 = vpack.c.b16 %v377, %v376
        %v430 = vpack.c.b16 %v379, %v378
        %v431 = vpack.c.b16 %v381, %v380
        %v432 = vpack.c.b16 %v383, %v382
        %v433 = vpack.c.b16 %v385, %v384
        %v434 = vpack.c.b16 %v387, %v386
        %v435 = vpack.c.b16 %v389, %v388
        %v436 = vpack.c.b16 %v391, %v390
        %v437 = vpack.c.b16 %v393, %v392
        %v438 = vpack.c.b16 %v395, %v394
        %v439 = vpack.c.b16 %v397, %v396
        %v440 = vpack.c.b16 %v399, %v398
        %v441 = vpack.c.b16 %v401, %v400
        %v442 = vpack.c.b16 %v403, %v402
        %v443 = vpack.c.b16 %v405, %v404
        %v444 = vpack.c.b16 %v407, %v406
        %v445 = vpack.c.b16 %v409, %v408
        %v446 = vpack.c.b16 %v411, %v410
        %v447 = vpack.c.b16 %v413, %v412
        %v448 = vpack.c.b16 %v415, %v414
        %v449 = vpack.c.b16 %v417, %v416
        %vm450 = vcmask 31744
        %v452 = vsel %vm450, %v418, 0
        %v455 = vsel %vm450, %v419, 0
        %v458 = vsel %vm450, %v420, 0
        %v461 = vsel %vm450, %v421, 0
        %v464 = vsel %vm450, %v422, 0
        %v467 = vsel %vm450, %v423, 0
        %v470 = vsel %vm450, %v424, 0
        %v473 = vsel %vm450, %v425, 0
        %v476 = vsel %vm450, %v426, 0
        %v479 = vsel %vm450, %v427, 0
        %v482 = vsel %vm450, %v428, 0
        %v485 = vsel %vm450, %v429, 0
        %v488 = vsel %vm450, %v430, 0
        %v491 = vsel %vm450, %v431, 0
        %v494 = vsel %vm450, %v432, 0
        %v497 = vsel %vm450, %v433, 0
        %v500 = vsel %vm450, %v434, 0
        %v503 = vsel %vm450, %v435, 0
        %v506 = vsel %vm450, %v436, 0
        %v509 = vsel %vm450, %v437, 0
        %v512 = vsel %vm450, %v438, 0
        %v515 = vsel %vm450, %v439, 0
        %v518 = vsel %vm450, %v440, 0
        %v521 = vsel %vm450, %v441, 0
        %v524 = vsel %vm450, %v442, 0
        %v527 = vsel %vm450, %v443, 0
        %v530 = vsel %vm450, %v444, 0
        %v533 = vsel %vm450, %v445, 0
        %v536 = vsel %vm450, %v446, 0
        %v539 = vsel %vm450, %v447, 0
        %v542 = vsel %vm450, %v448, 0
        %v545 = vsel %vm450, %v449, 0
        %vm547 = vcmask 1041408
        %v549 = vsel %vm547, %v282, 0
        %551 = vmatprep.subr.bf16.mxu0 0
        %552 = vmatpush1.bf16.msra.mxu0 %v549
        %553 = vmatprep.subr.bf16.mxu0 0
        %554 = vmatpush1.bf16.msra.mxu0 0
        %555 = vmatprep.subr.bf16.mxu0 0
        %556 = vmatpush1.bf16.msra.mxu0 0
        %557 = vmatprep.subr.bf16.mxu0 0
        %558 = vmatpush1.bf16.msra.mxu0 0
        %559 = vmatprep.subr.bf16.mxu0 0
        %560 = vmatpush1.bf16.msra.mxu0 0
        %561 = vmatprep.subr.bf16.mxu0 0
        %562 = vmatpush1.bf16.msra.mxu0 0
        %563 = vmatprep.subr.bf16.mxu0 0
        %564 = vmatpush1.bf16.msra.mxu0 0
        %565 = vmatprep.subr.bf16.mxu0 0
        %566 = vmatpush1.bf16.msra.mxu0 0
        %567 = vmatprep.subr.bf16.mxu0 0
        %568 = vmatpush1.bf16.msra.mxu0 0
        %569 = vmatprep.subr.bf16.mxu0 0
        %570 = vmatpush1.bf16.msra.mxu0 0
        %571 = vmatprep.subr.bf16.mxu0 0
        %572 = vmatpush1.bf16.msra.mxu0 0
        %573 = vmatprep.subr.bf16.mxu0 0
        %574 = vmatpush1.bf16.msra.mxu0 0
        %575 = vmatprep.subr.bf16.mxu0 0
        %576 = vmatpush1.bf16.msra.mxu0 0
        %577 = vmatprep.subr.bf16.mxu0 0
        %578 = vmatpush1.bf16.msra.mxu0 0
        %579 = vmatprep.subr.bf16.mxu0 0
        %580 = vmatpush1.bf16.msra.mxu0 0
        %581 = vmatprep.subr.bf16.mxu0 0
        %582 = vmatpush1.bf16.msra.mxu0 0
        %583 = vmatprep.mubr.bf16.mxu0 0
        %584 = vmatmul.mubr.bf16.gmra.mrb[0].mxu0 %v452
        %v585 = vpop.f32.mrb[0].mxu0
        %v586 = vadd.f32 %v288, %v585
        %v587 = vpop.f32.mrb[0].mxu0
        %v588 = vpop.f32.mrb[0].mxu0
        %v589 = vadd.f32 %v288, %v588
        %v590 = vpop.f32.mrb[0].mxu0
        %591 = vmatprep.mubr.bf16.mxu0 0
        %592 = vmatmul.mubr.bf16.gmra.mrb[0].mxu0 %v455
        %v593 = vpop.f32.mrb[0].mxu0
        %v594 = vadd.f32 %v288, %v593
        %v595 = vpop.f32.mrb[0].mxu0
        %v596 = vpop.f32.mrb[0].mxu0
        %v597 = vadd.f32 %v288, %v596
        %v598 = vpop.f32.mrb[0].mxu0
        %599 = vmatprep.mubr.bf16.mxu0 0
        %600 = vmatmul.mubr.bf16.gmra.mrb[0].mxu0 %v458
        %v601 = vpop.f32.mrb[0].mxu0
        %v602 = vadd.f32 %v288, %v601
        %v603 = vpop.f32.mrb[0].mxu0
        %v604 = vpop.f32.mrb[0].mxu0
        %v605 = vadd.f32 %v288, %v604
        %v606 = vpop.f32.mrb[0].mxu0
        %607 = vmatprep.mubr.bf16.mxu0 0
        %608 = vmatmul.mubr.bf16.gmra.mrb[0].mxu0 %v461
        %v609 = vpop.f32.mrb[0].mxu0
        %v610 = vadd.f32 %v288, %v609
        %v611 = vpop.f32.mrb[0].mxu0
        %v612 = vpop.f32.mrb[0].mxu0
        %v613 = vadd.f32 %v288, %v612
        %v614 = vpop.f32.mrb[0].mxu0
        %615 = vmatprep.mubr.bf16.mxu0 0
        %616 = vmatmul.mubr.bf16.gmra.mrb[0].mxu0 %v464
        %v617 = vpop.f32.mrb[0].mxu0
        %v618 = vadd.f32 %v288, %v617
        %v619 = vpop.f32.mrb[0].mxu0
        %v620 = vpop.f32.mrb[0].mxu0
        %v621 = vadd.f32 %v288, %v620
        %v622 = vpop.f32.mrb[0].mxu0
        %623 = vmatprep.mubr.bf16.mxu0 0
        %624 = vmatmul.mubr.bf16.gmra.mrb[0].mxu0 %v467
        %v625 = vpop.f32.mrb[0].mxu0
        %v626 = vadd.f32 %v288, %v625
        %v627 = vpop.f32.mrb[0].mxu0
        %v628 = vpop.f32.mrb[0].mxu0
        %v629 = vadd.f32 %v288, %v628
        %v630 = vpop.f32.mrb[0].mxu0
        %631 = vmatprep.mubr.bf16.mxu0 0
        %632 = vmatmul.mubr.bf16.gmra.mrb[0].mxu0 %v470
        %v633 = vpop.f32.mrb[0].mxu0
        %v634 = vadd.f32 %v288, %v633
        %v635 = vpop.f32.mrb[0].mxu0
        %v636 = vpop.f32.mrb[0].mxu0
        %v637 = vadd.f32 %v288, %v636
        %v638 = vpop.f32.mrb[0].mxu0
        %639 = vmatprep.mubr.bf16.mxu0 0
        %640 = vmatmul.mubr.bf16.gmra.mrb[0].mxu0 %v473
        %v641 = vpop.f32.mrb[0].mxu0
        %v642 = vadd.f32 %v288, %v641
        %v643 = vpop.f32.mrb[0].mxu0
        %v644 = vpop.f32.mrb[0].mxu0
        %v645 = vadd.f32 %v288, %v644
        %v646 = vpop.f32.mrb[0].mxu0
        %647 = vmatprep.mubr.bf16.mxu0 0
        %648 = vmatmul.mubr.bf16.gmra.mrb[0].mxu0 %v476
        %v649 = vpop.f32.mrb[0].mxu0
        %v650 = vadd.f32 %v288, %v649
        %v651 = vpop.f32.mrb[0].mxu0
        %v652 = vpop.f32.mrb[0].mxu0
        %v653 = vadd.f32 %v288, %v652
        %v654 = vpop.f32.mrb[0].mxu0
        %655 = vmatprep.mubr.bf16.mxu0 0
        %656 = vmatmul.mubr.bf16.gmra.mrb[0].mxu0 %v479
        %v657 = vpop.f32.mrb[0].mxu0
        %v658 = vadd.f32 %v288, %v657
        %v659 = vpop.f32.mrb[0].mxu0
        %v660 = vpop.f32.mrb[0].mxu0
        %v661 = vadd.f32 %v288, %v660
        %v662 = vpop.f32.mrb[0].mxu0
        %663 = vmatprep.mubr.bf16.mxu0 0
        %664 = vmatmul.mubr.bf16.gmra.mrb[0].mxu0 %v482
        %v665 = vpop.f32.mrb[0].mxu0
        %v666 = vadd.f32 %v288, %v665
        %v667 = vpop.f32.mrb[0].mxu0
        %v668 = vpop.f32.mrb[0].mxu0
        %v669 = vadd.f32 %v288, %v668
        %v670 = vpop.f32.mrb[0].mxu0
        %671 = vmatprep.mubr.bf16.mxu0 0
        %672 = vmatmul.mubr.bf16.gmra.mrb[0].mxu0 %v485
        %v673 = vpop.f32.mrb[0].mxu0
        %v674 = vadd.f32 %v288, %v673
        %v675 = vpop.f32.mrb[0].mxu0
        %v676 = vpop.f32.mrb[0].mxu0
        %v677 = vadd.f32 %v288, %v676
        %v678 = vpop.f32.mrb[0].mxu0
        %679 = vmatprep.mubr.bf16.mxu0 0
        %680 = vmatmul.mubr.bf16.gmra.mrb[0].mxu0 %v488
        %v681 = vpop.f32.mrb[0].mxu0
        %v682 = vadd.f32 %v288, %v681
        %v683 = vpop.f32.mrb[0].mxu0
        %v684 = vpop.f32.mrb[0].mxu0
        %v685 = vadd.f32 %v288, %v684
        %v686 = vpop.f32.mrb[0].mxu0
        %687 = vmatprep.mubr.bf16.mxu0 0
        %688 = vmatmul.mubr.bf16.gmra.mrb[0].mxu0 %v491
        %v689 = vpop.f32.mrb[0].mxu0
        %v690 = vadd.f32 %v288, %v689
        %v691 = vpop.f32.mrb[0].mxu0
        %v692 = vpop.f32.mrb[0].mxu0
        %v693 = vadd.f32 %v288, %v692
        %v694 = vpop.f32.mrb[0].mxu0
        %695 = vmatprep.mubr.bf16.mxu0 0
        %696 = vmatmul.mubr.bf16.gmra.mrb[0].mxu0 %v494
        %v697 = vpop.f32.mrb[0].mxu0
        %v698 = vadd.f32 %v288, %v697
        %v699 = vpop.f32.mrb[0].mxu0
        %v700 = vpop.f32.mrb[0].mxu0
        %v701 = vadd.f32 %v288, %v700
        %v702 = vpop.f32.mrb[0].mxu0
        %703 = vmatprep.mubr.bf16.mxu0 0
        %704 = vmatmul.mubr.bf16.gmra.mrb[0].mxu0 %v497
        %v705 = vpop.f32.mrb[0].mxu0
        %v706 = vadd.f32 %v288, %v705
        %v707 = vpop.f32.mrb[0].mxu0
        %v708 = vpop.f32.mrb[0].mxu0
        %v709 = vadd.f32 %v288, %v708
        %v710 = vpop.f32.mrb[0].mxu0
        %711 = vmatprep.mubr.bf16.mxu0 0
        %712 = vmatmul.mubr.bf16.gmra.mrb[0].mxu0 %v500
        %v713 = vpop.f32.mrb[0].mxu0
        %v714 = vadd.f32 %v288, %v713
        %v715 = vpop.f32.mrb[0].mxu0
        %v716 = vpop.f32.mrb[0].mxu0
        %v717 = vadd.f32 %v288, %v716
        %v718 = vpop.f32.mrb[0].mxu0
        %719 = vmatprep.mubr.bf16.mxu0 0
        %720 = vmatmul.mubr.bf16.gmra.mrb[0].mxu0 %v503
        %v721 = vpop.f32.mrb[0].mxu0
        %v722 = vadd.f32 %v288, %v721
        %v723 = vpop.f32.mrb[0].mxu0
        %v724 = vpop.f32.mrb[0].mxu0
        %v725 = vadd.f32 %v288, %v724
        %v726 = vpop.f32.mrb[0].mxu0
        %727 = vmatprep.mubr.bf16.mxu0 0
        %728 = vmatmul.mubr.bf16.gmra.mrb[0].mxu0 %v506
        %v729 = vpop.f32.mrb[0].mxu0
        %v730 = vadd.f32 %v288, %v729
        %v731 = vpop.f32.mrb[0].mxu0
        %v732 = vpop.f32.mrb[0].mxu0
        %v733 = vadd.f32 %v288, %v732
        %v734 = vpop.f32.mrb[0].mxu0
        %735 = vmatprep.mubr.bf16.mxu0 0
        %736 = vmatmul.mubr.bf16.gmra.mrb[0].mxu0 %v509
        %v737 = vpop.f32.mrb[0].mxu0
        %v738 = vadd.f32 %v288, %v737
        %v739 = vpop.f32.mrb[0].mxu0
        %v740 = vpop.f32.mrb[0].mxu0
        %v741 = vadd.f32 %v288, %v740
        %v742 = vpop.f32.mrb[0].mxu0
        %743 = vmatprep.mubr.bf16.mxu0 0
        %744 = vmatmul.mubr.bf16.gmra.mrb[0].mxu0 %v512
        %v745 = vpop.f32.mrb[0].mxu0
        %v746 = vadd.f32 %v288, %v745
        %v747 = vpop.f32.mrb[0].mxu0
        %v748 = vpop.f32.mrb[0].mxu0
        %v749 = vadd.f32 %v288, %v748
        %v750 = vpop.f32.mrb[0].mxu0
        %751 = vmatprep.mubr.bf16.mxu0 0
        %752 = vmatmul.mubr.bf16.gmra.mrb[0].mxu0 %v515
        %v753 = vpop.f32.mrb[0].mxu0
        %v754 = vadd.f32 %v288, %v753
        %v755 = vpop.f32.mrb[0].mxu0
        %v756 = vpop.f32.mrb[0].mxu0
        %v757 = vadd.f32 %v288, %v756
        %v758 = vpop.f32.mrb[0].mxu0
        %759 = vmatprep.mubr.bf16.mxu0 0
        %760 = vmatmul.mubr.bf16.gmra.mrb[0].mxu0 %v518
        %v761 = vpop.f32.mrb[0].mxu0
        %v762 = vadd.f32 %v288, %v761
        %v763 = vpop.f32.mrb[0].mxu0
        %v764 = vpop.f32.mrb[0].mxu0
        %v765 = vadd.f32 %v288, %v764
        %v766 = vpop.f32.mrb[0].mxu0
        %767 = vmatprep.mubr.bf16.mxu0 0
        %768 = vmatmul.mubr.bf16.gmra.mrb[0].mxu0 %v521
        %v769 = vpop.f32.mrb[0].mxu0
        %v770 = vadd.f32 %v288, %v769
        %v771 = vpop.f32.mrb[0].mxu0
        %v772 = vpop.f32.mrb[0].mxu0
        %v773 = vadd.f32 %v288, %v772
        %v774 = vpop.f32.mrb[0].mxu0
        %775 = vmatprep.mubr.bf16.mxu0 0
        %776 = vmatmul.mubr.bf16.gmra.mrb[0].mxu0 %v524
        %v777 = vpop.f32.mrb[0].mxu0
        %v778 = vadd.f32 %v288, %v777
        %v779 = vpop.f32.mrb[0].mxu0
        %v780 = vpop.f32.mrb[0].mxu0
        %v781 = vadd.f32 %v288, %v780
        %v782 = vpop.f32.mrb[0].mxu0
        %783 = vmatprep.mubr.bf16.mxu0 0
        %784 = vmatmul.mubr.bf16.gmra.mrb[0].mxu0 %v527
        %v785 = vpop.f32.mrb[0].mxu0
        %v786 = vadd.f32 %v288, %v785
        %v787 = vpop.f32.mrb[0].mxu0
        %v788 = vpop.f32.mrb[0].mxu0
        %v789 = vadd.f32 %v288, %v788
        %v790 = vpop.f32.mrb[0].mxu0
        %791 = vmatprep.mubr.bf16.mxu0 0
        %792 = vmatmul.mubr.bf16.gmra.mrb[0].mxu0 %v530
        %v793 = vpop.f32.mrb[0].mxu0
        %v794 = vadd.f32 %v288, %v793
        %v795 = vpop.f32.mrb[0].mxu0
        %v796 = vpop.f32.mrb[0].mxu0
        %v797 = vadd.f32 %v288, %v796
        %v798 = vpop.f32.mrb[0].mxu0
        %799 = vmatprep.mubr.bf16.mxu0 0
        %800 = vmatmul.mubr.bf16.gmra.mrb[0].mxu0 %v533
        %v801 = vpop.f32.mrb[0].mxu0
        %v802 = vadd.f32 %v288, %v801
        %v803 = vpop.f32.mrb[0].mxu0
        %v804 = vpop.f32.mrb[0].mxu0
        %v805 = vadd.f32 %v288, %v804
        %v806 = vpop.f32.mrb[0].mxu0
        %807 = vmatprep.mubr.bf16.mxu0 0
        %808 = vmatmul.mubr.bf16.gmra.mrb[0].mxu0 %v536
        %v809 = vpop.f32.mrb[0].mxu0
        %v810 = vadd.f32 %v288, %v809
        %v811 = vpop.f32.mrb[0].mxu0
        %v812 = vpop.f32.mrb[0].mxu0
        %v813 = vadd.f32 %v288, %v812
        %v814 = vpop.f32.mrb[0].mxu0
        %815 = vmatprep.mubr.bf16.mxu0 0
        %816 = vmatmul.mubr.bf16.gmra.mrb[0].mxu0 %v539
        %v817 = vpop.f32.mrb[0].mxu0
        %v818 = vadd.f32 %v288, %v817
        %v819 = vpop.f32.mrb[0].mxu0
        %v820 = vpop.f32.mrb[0].mxu0
        %v821 = vadd.f32 %v288, %v820
        %v822 = vpop.f32.mrb[0].mxu0
        %823 = vmatprep.mubr.bf16.mxu0 0
        %824 = vmatmul.mubr.bf16.gmra.mrb[0].mxu0 %v542
        %v825 = vpop.f32.mrb[0].mxu0
        %v826 = vadd.f32 %v288, %v825
        %v827 = vpop.f32.mrb[0].mxu0
        %v828 = vpop.f32.mrb[0].mxu0
        %v829 = vadd.f32 %v288, %v828
        %v830 = vpop.f32.mrb[0].mxu0
        %831 = vmatprep.mubr.bf16.mxu0 0
        %832 = vmatmul.mubr.bf16.gmra.mrb[0].mxu0 %v545
        %v833 = vpop.f32.mrb[0].mxu0
        %v834 = vadd.f32 %v288, %v833
        %v835 = vpop.f32.mrb[0].mxu0
        %v836 = vpop.f32.mrb[0].mxu0
        %v837 = vadd.f32 %v288, %v836
        %v838 = vpop.f32.mrb[0].mxu0
        %839 = vdwg.mxu0
        %vm840 = vcmask 105472
        %841 = vst.msk [vmem:[%s201] sm:$0xff] %vm840, %v586
        %842 = vst.msk [vmem:[%s201 + $0x8] sm:$0xff] %vm840, %v589
        %843 = vst.msk [vmem:[%s201 + $0x10] sm:$0xff] %vm840, %v594
        %844 = vst.msk [vmem:[%s201 + $0x18] sm:$0xff] %vm840, %v597
        %845 = vst.msk [vmem:[%s201 + $0x20] sm:$0xff] %vm840, %v602
        %846 = vst.msk [vmem:[%s201 + $0x28] sm:$0xff] %vm840, %v605
        %847 = vst.msk [vmem:[%s201 + $0x30] sm:$0xff] %vm840, %v610
        %848 = vst.msk [vmem:[%s201 + $0x38] sm:$0xff] %vm840, %v613
        %849 = vst.msk [vmem:[%s201 + $0x40] sm:$0xff] %vm840, %v618
        %850 = vst.msk [vmem:[%s201 + $0x48] sm:$0xff] %vm840, %v621
        %851 = vst.msk [vmem:[%s201 + $0x50] sm:$0xff] %vm840, %v626
        %852 = vst.msk [vmem:[%s201 + $0x58] sm:$0xff] %vm840, %v629
        %853 = vst.msk [vmem:[%s201 + $0x60] sm:$0xff] %vm840, %v634
        %854 = vst.msk [vmem:[%s201 + $0x68] sm:$0xff] %vm840, %v637
        %855 = vst.msk [vmem:[%s201 + $0x70] sm:$0xff] %vm840, %v642
        %856 = vst.msk [vmem:[%s201 + $0x78] sm:$0xff] %vm840, %v645
        %857 = vst.msk [vmem:[%s201 + $0x80] sm:$0xff] %vm840, %v650
        %858 = vst.msk [vmem:[%s201 + $0x88] sm:$0xff] %vm840, %v653
        %859 = vst.msk [vmem:[%s201 + $0x90] sm:$0xff] %vm840, %v658
        %860 = vst.msk [vmem:[%s201 + $0x98] sm:$0xff] %vm840, %v661
        %861 = vst.msk [vmem:[%s201 + $0xa0] sm:$0xff] %vm840, %v666
        %862 = vst.msk [vmem:[%s201 + $0xa8] sm:$0xff] %vm840, %v669
        %863 = vst.msk [vmem:[%s201 + $0xb0] sm:$0xff] %vm840, %v674
        %864 = vst.msk [vmem:[%s201 + $0xb8] sm:$0xff] %vm840, %v677
        %865 = vst.msk [vmem:[%s201 + $0xc0] sm:$0xff] %vm840, %v682
        %866 = vst.msk [vmem:[%s201 + $0xc8] sm:$0xff] %vm840, %v685
        %867 = vst.msk [vmem:[%s201 + $0xd0] sm:$0xff] %vm840, %v690
        %868 = vst.msk [vmem:[%s201 + $0xd8] sm:$0xff] %vm840, %v693
        %869 = vst.msk [vmem:[%s201 + $0xe0] sm:$0xff] %vm840, %v698
        %870 = vst.msk [vmem:[%s201 + $0xe8] sm:$0xff] %vm840, %v701
        %871 = vst.msk [vmem:[%s201 + $0xf0] sm:$0xff] %vm840, %v706
        %872 = vst.msk [vmem:[%s201 + $0xf8] sm:$0xff] %vm840, %v709
        %873 = vst.msk [vmem:[%s201 + $0x100] sm:$0xff] %vm840, %v714
        %874 = vst.msk [vmem:[%s201 + $0x108] sm:$0xff] %vm840, %v717
        %875 = vst.msk [vmem:[%s201 + $0x110] sm:$0xff] %vm840, %v722
        %876 = vst.msk [vmem:[%s201 + $0x118] sm:$0xff] %vm840, %v725
        %877 = vst.msk [vmem:[%s201 + $0x120] sm:$0xff] %vm840, %v730
        %878 = vst.msk [vmem:[%s201 + $0x128] sm:$0xff] %vm840, %v733
        %879 = vst.msk [vmem:[%s201 + $0x130] sm:$0xff] %vm840, %v738
        %880 = vst.msk [vmem:[%s201 + $0x138] sm:$0xff] %vm840, %v741
        %881 = vst.msk [vmem:[%s201 + $0x140] sm:$0xff] %vm840, %v746
        %882 = vst.msk [vmem:[%s201 + $0x148] sm:$0xff] %vm840, %v749
        %883 = vst.msk [vmem:[%s201 + $0x150] sm:$0xff] %vm840, %v754
        %884 = vst.msk [vmem:[%s201 + $0x158] sm:$0xff] %vm840, %v757
        %885 = vst.msk [vmem:[%s201 + $0x160] sm:$0xff] %vm840, %v762
        %886 = vst.msk [vmem:[%s201 + $0x168] sm:$0xff] %vm840, %v765
        %887 = vst.msk [vmem:[%s201 + $0x170] sm:$0xff] %vm840, %v770
        %888 = vst.msk [vmem:[%s201 + $0x178] sm:$0xff] %vm840, %v773
        %889 = vst.msk [vmem:[%s201 + $0x180] sm:$0xff] %vm840, %v778
        %890 = vst.msk [vmem:[%s201 + $0x188] sm:$0xff] %vm840, %v781
        %891 = vst.msk [vmem:[%s201 + $0x190] sm:$0xff] %vm840, %v786
        %892 = vst.msk [vmem:[%s201 + $0x198] sm:$0xff] %vm840, %v789
        %893 = vst.msk [vmem:[%s201 + $0x1a0] sm:$0xff] %vm840, %v794
        %894 = vst.msk [vmem:[%s201 + $0x1a8] sm:$0xff] %vm840, %v797
        %895 = vst.msk [vmem:[%s201 + $0x1b0] sm:$0xff] %vm840, %v802
        %896 = vst.msk [vmem:[%s201 + $0x1b8] sm:$0xff] %vm840, %v805
        %897 = vst.msk [vmem:[%s201 + $0x1c0] sm:$0xff] %vm840, %v810
        %898 = vst.msk [vmem:[%s201 + $0x1c8] sm:$0xff] %vm840, %v813
        %899 = vst.msk [vmem:[%s201 + $0x1d0] sm:$0xff] %vm840, %v818
        %900 = vst.msk [vmem:[%s201 + $0x1d8] sm:$0xff] %vm840, %v821
        %901 = vst.msk [vmem:[%s201 + $0x1e0] sm:$0xff] %vm840, %v826
        %902 = vst.msk [vmem:[%s201 + $0x1e8] sm:$0xff] %vm840, %v829
        %903 = vst.msk [vmem:[%s201 + $0x1f0] sm:$0xff] %vm840, %v834
        %904 = vst.msk [vmem:[%s201 + $0x1f8] sm:$0xff] %vm840, %v837
        %s905 = sand.u32 %s114, 1
        %s906 = scalar_lea.sflag [#allocation3], %s905
        %s907 = sand.u32 %s114, 1
        %s908 = smul.addr %s907, 512
        %s909 = scalar_lea.vmem [#allocation2], %s908
        // Predicated region
        $region33: #{deep_gcn_forward.31} parent=31 // pred_check
          %p910 = pneg %p124
        $region34: #{deep_gcn_forward.31} parent=31 // pred_check_branch
          %912 = sbr.rel (%p910) target = $region36
        $region35: #{deep_gcn_forward.31} parent=31 // pred_region
          %s913 = smul.u32 64, %s22
          %s915 = ssub.s32 8192, 8192
          %916 = vsyncadd %s906, %s915
          %s917 = smul.addr %s21, 128
          %s918 = sadd.s32 %s913, %s917
          %s919 = smul.addr %s918, 128
          %s920 = scalar_lea.hbm %s3, %s919
          %s921 = sshll.u32 %s909, 4
          %s922 = int_to_ptr.vmem [resolvable:$true] %s921
          %927 = dma.vmem_to_hbm [thread:$0]  %s922, 8192, %s920, %s906, 128, 128, 8
        $region36: #{deep_gcn_forward.31} parent=31 // pred_fallthru
          _
      $region32: #{deep_gcn_forward.31} parent=5 // pred_fallthru
        _
      %p928 = scmp.le.s32.totalorder 2, %s12
      // Predicated region
      $region37: #{deep_gcn_forward.31} parent=5 // pred_check
        %p929 = pneg %p928
      $region38: #{deep_gcn_forward.31} parent=5 // pred_check_branch
        %931 = sbr.rel (%p929) target = $region40
      $region39: #{deep_gcn_forward.31} parent=5 // pred_region
        %s932 = ssub.s32 %s12, 2
        // Predicated region
        $region41: #{deep_gcn_forward.31} parent=39 // pred_check
          %p933 = pneg %p130
        $region42: #{deep_gcn_forward.31} parent=39 // pred_check_branch
          %935 = sbr.rel (%p933) target = $region44
        $region43: #{deep_gcn_forward.31} parent=39 // pred_region
          %s936 = sand.u32 %s115, 1
          %s937 = scalar_lea.sflag [#allocation3], %s936
          %s938 = sand.u32 %s115, 1
          %s939 = smul.addr %s938, 512
          %s940 = scalar_lea.vmem [#allocation2], %s939
          %941 = dma.done %s937, 8192
        $region44: #{deep_gcn_forward.31} parent=39 // pred_fallthru
          _
      $region40: #{deep_gcn_forward.31} parent=5 // pred_fallthru
        _
    $region6: #{deep_gcn_forward.31} parent=1 // loop_footer
      %s16 = sadd.s32 1, %s12
    $region7: #{deep_gcn_forward.31} parent=1 // loop_footer_branch
      %11 = sbr.rel target = $region3
    $region8: #{deep_gcn_forward.31} parent=1 // loop_exit
      _
    %942 = vsyncpa [#allocation3], 1
    %s943 = scalar_lea.sflag [#allocation3], 1
    %944 = vsyncpa %s943, 1

</llo_original>
